<compile_context>
chip_gen: v7x
topology: tpu7x:2x2x1
jax: 0.10.0
libtpu: 0.0.40
codegen_flags: <defaults>
</compile_context>

<pallas_src>
import functools
import math

import jax
import jax.numpy as jnp
from jax.experimental import pallas as pl
from jax.experimental.pallas import tpu as pltpu

BN_EPS = 1e-5
LANE = 128


# ----------------------------------------------------------------------------
# Layout helpers
# ----------------------------------------------------------------------------
def _pad_to(n, m=LANE):
    return max(m, ((n + m - 1) // m) * m)


def quad_perm(H, W):
    """perm[r] = row-major index h*W+w of the r-th position in recursive
    quad-parity order (even-even, even-odd, odd-even, odd-odd at every level).
    In this order the ee / oo spatial subsets needed by stride-2
    (FactorizedReduce) consumers are contiguous quarters, already ordered in
    the reduced-resolution grid's own recursive order."""
    if H % 2 or W % 2:
        return [h * W + w for h in range(H) for w in range(W)]
    sub = quad_perm(H // 2, W // 2)
    out = []
    for ph in (0, 1):
        for pw in (0, 1):
            for s in sub:
                sh, sw = divmod(s, W // 2)
                out.append((2 * sh + ph) * W + (2 * sw + pw))
    return out


def _pick_bm(M, bytes_per_row, budget=24 << 20, cap=2048):
    """Largest power-of-two row tile that divides M, fits a conservative VMEM
    budget (double-buffered ins/outs + f32 accumulator), and gives an even
    number of grid steps so both v7x TensorCores get balanced work."""
    cap = min(cap, max(8, budget // max(bytes_per_row, 1)))
    best = None
    for bm in (4096, 2048, 1024, 512, 256, 128, 64, 32, 16, 8):
        if bm > cap or bm > M or M % bm:
            continue
        if best is None:
            best = bm
        steps = M // bm
        if steps >= 2 and steps % 2 == 0:
            return bm
    return best if best is not None else M


# ----------------------------------------------------------------------------
# Pallas kernels
# ----------------------------------------------------------------------------
def _stem_kernel(H, W, x_ref, w_ref, shift_ref, o_ref):
    """Fused im2col 3x3 conv (pad 1) + BN on one sample: 9 accumulating
    matmuls on shifted in-VMEM views of the (row-flattened) padded image."""
    wp = W + 2
    rows = H * wp
    cpad = o_ref.shape[-1]
    acc = jnp.zeros((rows, cpad), jnp.float32)
    for k in range(9):
        dy, dx = divmod(k, 3)
        off = dy * wp + dx
        patch = x_ref[0, off:off + rows, :]
        acc = acc + jnp.dot(patch, w_ref[k], preferred_element_type=jnp.float32)
    o_ref[0, :, :] = (acc + shift_ref[...]).astype(o_ref.dtype)


def _ncell_kernel(x0_ref, x1_ref, w_ref, shift_ref, o_ref):
    """Normal cell (stride-1 preprocs): out = relu([x0|x1]) @ W + shift."""
    x = jnp.concatenate([jnp.maximum(x0_ref[...], 0.0),
                         jnp.maximum(x1_ref[...], 0.0)], axis=-1)
    acc = jnp.dot(x, w_ref[...], preferred_element_type=jnp.float32)
    o_ref[...] = (acc + shift_ref[...]).astype(o_ref.dtype)


def _ncell_fr_kernel(x0a_ref, x0b_ref, x1_ref, w_ref, shift_ref, o_ref):
    """Normal cell with FactorizedReduce preproc0 (reduction_p).  x0a/x0b are
    the ee / oo quadrant blocks of s0, selected by the BlockSpec index_map."""
    x = jnp.concatenate([jnp.maximum(x0a_ref[0, 0, :, :], 0.0),
                         jnp.maximum(x0b_ref[0, 0, :, :], 0.0),
                         jnp.maximum(x1_ref[0, :, :], 0.0)], axis=-1)
    acc = jnp.dot(x, w_ref[...], preferred_element_type=jnp.float32)
    o_ref[0, :, :] = (acc + shift_ref[...]).astype(o_ref.dtype)


def _rcell_kernel(n_parts, *refs):
    """Fully fused reduction cell.  Stage 1 builds U = [pre0 || pre1] for the
    ee and oo parities of the current grid (kept as VMEM values, never written
    to HBM), stage 2 applies the per-node FactorizedReduce edge weights."""
    ee = refs[:n_parts]
    oo = refs[n_parts:2 * n_parts]
    w1_ref, w2a_ref, w2b_ref, sh1_ref, sh2_ref, o_ref = refs[2 * n_parts:]
    w1 = w1_ref[...]

    def stage1(parts):
        x = jnp.concatenate([jnp.maximum(p[0, 0, :, :], 0.0) for p in parts],
                            axis=-1)
        u = jnp.dot(x, w1, preferred_element_type=jnp.float32) + sh1_ref[...]
        return jnp.maximum(u, 0.0).astype(jnp.bfloat16)

    u_ee = stage1(ee)
    u_oo = stage1(oo)
    acc = jnp.dot(u_ee, w2a_ref[...], preferred_element_type=jnp.float32)
    acc = acc + jnp.dot(u_oo, w2b_ref[...], preferred_element_type=jnp.float32)
    o_ref[0, :, :] = (acc + sh2_ref[...]).astype(o_ref.dtype)


def _head_kernel(x_ref, w_ref, b_ref, o_ref):
    """Global average pool (in-kernel row reduce) + linear, per sample."""
    x = x_ref[0, :, :]                                  # (HW, Cpad) bf16
    inv = 1.0 / x.shape[0]
    pooled = jnp.sum(x.astype(jnp.float32), axis=0, keepdims=True) * inv
    logits = jnp.dot(pooled.astype(jnp.bfloat16), w_ref[...],
                     preferred_element_type=jnp.float32) + b_ref[...]
    o_ref[0, :, :] = logits


# ----------------------------------------------------------------------------
# pallas_call wrappers
# ----------------------------------------------------------------------------
def stem_forward(x_nhwc, p):
    N, H, W, cin = x_nhwc.shape
    op = p['out_pad']
    wp = W + 2
    rows_in = (H + 3) * wp       # extra bottom pad keeps shifted slabs in range
    rows_out = H * wp
    xp = jnp.pad(x_nhwc, ((0, 0), (1, 2), (1, 1), (0, 0))).astype(jnp.bfloat16)
    xp = xp.reshape(N, rows_in, cin)
    kernel = functools.partial(_stem_kernel, H, W)
    raw = pl.pallas_call(
        kernel,
        out_shape=jax.ShapeDtypeStruct((N, rows_out, op), jnp.bfloat16),
        grid_spec=pltpu.PrefetchScalarGridSpec(
            num_scalar_prefetch=0, grid=(N,),
            in_specs=[pl.BlockSpec((1, rows_in, cin), lambda n: (n, 0, 0)),
                      pl.BlockSpec((9, cin, op), lambda n: (0, 0, 0)),
                      pl.BlockSpec((1, op), lambda n: (0, 0))],
            out_specs=pl.BlockSpec((1, rows_out, op), lambda n: (n, 0, 0))),
        compiler_params=pltpu.CompilerParams(
            dimension_semantics=("parallel",)),
    )(xp, p['w'], p['shift'])
    # One small gather: drops the 2 pad columns of each row AND permutes rows
    # into the recursive quad-parity order used by every downstream kernel.
    perm = quad_perm(H, W)
    idx = jnp.asarray([(q // W) * wp + (q % W) for q in perm], jnp.int32)
    return jnp.take(raw, idx, axis=1)                   # (N, H*W, Cpad)


def _flat_fused(x0, x1, w, shift, out_pad):
    """Plain normal cell: flat (M, c) tiles over the whole batch."""
    M, c0 = x0.shape
    c1 = x1.shape[1]
    bytes_per_row = 4 * (c0 + c1) + 8 * out_pad
    bm = _pick_bm(M, bytes_per_row)
    return pl.pallas_call(
        _ncell_kernel,
        out_shape=jax.ShapeDtypeStruct((M, out_pad), jnp.bfloat16),
        grid_spec=pltpu.PrefetchScalarGridSpec(
            num_scalar_prefetch=0, grid=(M // bm,),
            in_specs=[pl.BlockSpec((bm, c0), lambda m: (m, 0)),
                      pl.BlockSpec((bm, c1), lambda m: (m, 0)),
                      pl.BlockSpec(w.shape, lambda m: (0, 0)),
                      pl.BlockSpec(shift.shape, lambda m: (0, 0))],
            out_specs=pl.BlockSpec((bm, out_pad), lambda m: (m, 0))),
        compiler_params=pltpu.CompilerParams(
            dimension_semantics=("parallel",)),
    )(x0, x1, w, shift)


def normal_cell_forward(p, s0, s1):
    N, HW, c1p = s1.shape
    op = p['out_pad']
    if not p['reduction_p']:
        x0 = s0.reshape(N * HW, s0.shape[2])
        x1 = s1.reshape(N * HW, c1p)
        out = _flat_fused(x0, x1, p['w'], p['shift'], op)
        return out.reshape(N, HW, op)
    # reduction_p: preproc0 is a FactorizedReduce on s0 (2H x 2W).
    assert s0.shape[1] == 4 * HW, (s0.shape, s1.shape)
    c0p = s0.shape[2]
    s0v = s0.reshape(N, 4, HW, c0p)          # quadrants of the recursive layout
    return pl.pallas_call(
        _ncell_fr_kernel,
        out_shape=jax.ShapeDtypeStruct((N, HW, op), jnp.bfloat16),
        grid_spec=pltpu.PrefetchScalarGridSpec(
            num_scalar_prefetch=0, grid=(N,),
            in_specs=[pl.BlockSpec((1, 1, HW, c0p), lambda n: (n, 0, 0, 0)),
                      pl.BlockSpec((1, 1, HW, c0p), lambda n: (n, 3, 0, 0)),
                      pl.BlockSpec((1, HW, c1p), lambda n: (n, 0, 0)),
                      pl.BlockSpec(p['w'].shape, lambda n: (0, 0)),
                      pl.BlockSpec(p['shift'].shape, lambda n: (0, 0))],
            out_specs=pl.BlockSpec((1, HW, op), lambda n: (n, 0, 0))),
        compiler_params=pltpu.CompilerParams(
            dimension_semantics=("parallel",)),
    )(s0v, s0v, s1, p['w'], p['shift'])


def _rcell_call(parts_ee, parts_oo, w1, w2a, w2b, sh1, sh2, out_pad):
    N = parts_ee[0][0].shape[0]
    R = parts_ee[0][0].shape[2]
    n_parts = len(parts_ee)
    kernel = functools.partial(_rcell_kernel, n_parts)
    in_specs, inputs = [], []
    for arr, q in parts_ee + parts_oo:
        in_specs.append(pl.BlockSpec((1, 1, R, arr.shape[-1]),
                                     lambda n, q=q: (n, q, 0, 0)))
        inputs.append(arr)
    for w in (w1, w2a, w2b, sh1, sh2):
        in_specs.append(pl.BlockSpec(w.shape, lambda n: (0, 0)))
        inputs.append(w)
    return pl.pallas_call(
        kernel,
        out_shape=jax.ShapeDtypeStruct((N, R, out_pad), jnp.bfloat16),
        grid_spec=pltpu.PrefetchScalarGridSpec(
            num_scalar_prefetch=0, grid=(N,),
            in_specs=in_specs,
            out_specs=pl.BlockSpec((1, R, out_pad), lambda n: (n, 0, 0))),
        compiler_params=pltpu.CompilerParams(
            dimension_semantics=("parallel",)),
    )(*inputs)


def reduction_cell_forward(p, s0, s1):
    N, HW, c1p = s1.shape
    R = HW // 4                               # output rows per sample
    op = p['out_pad']
    c0p = s0.shape[2]
    s1v = s1.reshape(N, 4, R, c1p)
    if p['reduction_p']:
        assert s0.shape[1] == 4 * HW, (s0.shape, s1.shape)
        s0v = s0.reshape(N, 16, R, c0p)       # sixteenth blocks (two quad levels)
        parts_ee = [(s0v, 0), (s0v, 12), (s1v, 0)]   # FR conv1 / conv2 / pre1
        parts_oo = [(s0v, 3), (s0v, 15), (s1v, 3)]
    else:
        assert s0.shape[1] == HW, (s0.shape, s1.shape)
        s0v = s0.reshape(N, 4, R, c0p)
        parts_ee = [(s0v, 0), (s1v, 0)]
        parts_oo = [(s0v, 3), (s1v, 3)]
    return _rcell_call(parts_ee, parts_oo, p['w1'], p['w2a'], p['w2b'],
                       p['shift1'], p['shift2'], op)


def head_forward(x, hp):
    N, HW, cp = x.shape
    ncp = hp['w'].shape[1]
    out = pl.pallas_call(
        _head_kernel,
        out_shape=jax.ShapeDtypeStruct((N, 1, ncp), jnp.float32),
        grid_spec=pltpu.PrefetchScalarGridSpec(
            num_scalar_prefetch=0, grid=(N,),
            in_specs=[pl.BlockSpec((1, HW, cp), lambda n: (n, 0, 0)),
                      pl.BlockSpec(hp['w'].shape, lambda n: (0, 0)),
                      pl.BlockSpec(hp['b'].shape, lambda n: (0, 0))],
            out_specs=pl.BlockSpec((1, 1, ncp), lambda n: (n, 0, 0))),
        compiler_params=pltpu.CompilerParams(
            dimension_semantics=("parallel",)),
    )(x, hp['w'], hp['b'])
    return out.reshape(N, ncp)[:, :hp['n_classes']]


# ----------------------------------------------------------------------------
# Parameter initialization: per-cell weights are pre-assembled
# (BN scale folded, node blocks pre-summed for identical-node normal cells,
#  output channels zero-padded to a 128-lane multiple).
# ----------------------------------------------------------------------------
class KeyGen:
    def __init__(self, key):
        self.key = key

    def __call__(self):
        self.key, sub = jax.random.split(self.key)
        return sub


def conv_fold(kg, spec_cin, stored_cin, cout):
    """1x1-conv weight as a (stored_cin, cout) matmul matrix.  When the input
    activation was produced by a normal cell (stored = spec / n_nodes, all node
    blocks identical), the weight is summed over node blocks."""
    w = jax.random.normal(kg(), (cout, spec_cin), jnp.float32) * 0.1
    w = w.T
    if spec_cin != stored_cin:
        assert spec_cin % stored_cin == 0
        w = w.reshape(spec_cin // stored_cin, stored_cin, cout).sum(0)
    return w


def init_stem(kg, cin, cout):
    s = 1.0 / math.sqrt(1.0 + BN_EPS)
    op = _pad_to(cout)
    w = jax.random.normal(kg(), (cout, cin, 3, 3), jnp.float32) * 0.1
    w9 = jnp.transpose(w, (2, 3, 1, 0)).reshape(9, cin, cout) * s
    w9p = jnp.zeros((9, cin, op), jnp.float32).at[:, :, :cout].set(w9)
    return {'w': w9p.astype(jnp.bfloat16),
            'shift': jnp.zeros((1, op), jnp.float32),
            'out_real': cout, 'out_pad': op}


def init_normal_cell(kg, spec_pp, stored_pp, spec_p, stored_p, C,
                     reduction_p, n_nodes):
    """Normal cell stores only (M, C): every node output is identical, the
    n_nodes tiling is folded into the consumers' weights."""
    s = 1.0 / math.sqrt(1.0 + BN_EPS)
    c0p, c1p, op = _pad_to(stored_pp), _pad_to(stored_p), _pad_to(C)
    if reduction_p:
        w_fr1 = conv_fold(kg, spec_pp, stored_pp, C // 2) * s
        w_fr2 = conv_fold(kg, spec_pp, stored_pp, C // 2) * s
        w_p1 = conv_fold(kg, spec_p, stored_p, C) * s
        W = jnp.zeros((2 * c0p + c1p, op), jnp.float32)
        W = W.at[0:stored_pp, 0:C // 2].set(w_fr1)
        W = W.at[c0p:c0p + stored_pp, C // 2:C].set(w_fr2)
        W = W.at[2 * c0p:2 * c0p + stored_p, 0:C].set(w_p1)
    else:
        w_p0 = conv_fold(kg, spec_pp, stored_pp, C) * s
        w_p1 = conv_fold(kg, spec_p, stored_p, C) * s
        W = jnp.zeros((c0p + c1p, op), jnp.float32)
        W = W.at[0:stored_pp, 0:C].set(w_p0)
        W = W.at[c0p:c0p + stored_p, 0:C].set(w_p1)
    return {'type': 'normal', 'reduction_p': reduction_p, 'C': C,
            'w': W.astype(jnp.bfloat16),
            'shift': jnp.zeros((1, op), jnp.float32),
            'out_real': C, 'out_pad': op}


def init_reduction_cell(kg, spec_pp, stored_pp, spec_p, stored_p, C,
                        reduction_p, n_nodes):
    s = 1.0 / math.sqrt(1.0 + BN_EPS)
    c0p, c1p = _pad_to(stored_pp), _pad_to(stored_p)
    n_out = n_nodes * C
    op = _pad_to(n_out)
    # Stage 1: U = [pre0 || pre1] (width 2C; VMEM-only intermediate).
    # Block-diagonal K-concat keeps one MXU dot per parity; the zero blocks are
    # a bounded 2-3x inflation on this tiny (K, 2C) matrix.
    if reduction_p:
        w_fr1 = conv_fold(kg, spec_pp, stored_pp, C // 2) * s
        w_fr2 = conv_fold(kg, spec_pp, stored_pp, C // 2) * s
        w_p1 = conv_fold(kg, spec_p, stored_p, C) * s
        W1 = jnp.zeros((2 * c0p + c1p, 2 * C), jnp.float32)
        W1 = W1.at[0:stored_pp, 0:C // 2].set(w_fr1)
        W1 = W1.at[c0p:c0p + stored_pp, C // 2:C].set(w_fr2)
        W1 = W1.at[2 * c0p:2 * c0p + stored_p, C:2 * C].set(w_p1)
    else:
        w_p0 = conv_fold(kg, spec_pp, stored_pp, C) * s
        w_p1 = conv_fold(kg, spec_p, stored_p, C) * s
        W1 = jnp.zeros((c0p + c1p, 2 * C), jnp.float32)
        W1 = W1.at[0:stored_pp, 0:C].set(w_p0)
        W1 = W1.at[c0p:c0p + stored_p, C:2 * C].set(w_p1)
    # Stage 2: per-node FactorizedReduce edges on t0 = U[:, :C], t1 = U[:, C:].
    W2a = jnp.zeros((2 * C, op), jnp.float32)
    W2b = jnp.zeros((2 * C, op), jnp.float32)
    for j in range(n_nodes):
        for e in range(2):
            w1e = conv_fold(kg, C, C, C // 2) * s
            w2e = conv_fold(kg, C, C, C // 2) * s
            W2a = W2a.at[e * C:(e + 1) * C, j * C:j * C + C // 2].set(w1e)
            W2b = W2b.at[e * C:(e + 1) * C, j * C + C // 2:(j + 1) * C].set(w2e)
    return {'type': 'reduction', 'reduction_p': reduction_p, 'C': C,
            'w1': W1.astype(jnp.bfloat16),
            'w2a': W2a.astype(jnp.bfloat16), 'w2b': W2b.astype(jnp.bfloat16),
            'shift1': jnp.zeros((1, 2 * C), jnp.float32),
            'shift2': jnp.zeros((1, op), jnp.float32),
            'out_real': n_out, 'out_pad': op}


def init_head(kg, spec_c, stored_c, cin_pad, n_classes):
    ncp = _pad_to(n_classes)
    w = conv_fold(kg, spec_c, stored_c, n_classes)
    wp = jnp.zeros((cin_pad, ncp), jnp.float32).at[:stored_c, :n_classes].set(w)
    return {'w': wp.astype(jnp.bfloat16),
            'b': jnp.zeros((1, ncp), jnp.float32),
            'n_classes': n_classes}


def init_cnn(key, in_channels, channels, n_classes, n_layers, n_nodes=4,
             stem_multiplier=3):
    kg = KeyGen(key)
    params = {'n_nodes': n_nodes}
    c_stem = stem_multiplier * channels
    params['stem'] = init_stem(kg, in_channels, c_stem)
    spec_pp = spec_p = c_stem
    stored_pp = stored_p = c_stem
    c_cur = channels
    cells = []
    reduction_p, reduction = False, False
    for i in range(n_layers):
        reduction_p, reduction = reduction, False
        if i in [n_layers // 3, 2 * n_layers // 3]:
            c_cur *= 2
            reduction = True
        if reduction:
            cell = init_reduction_cell(kg, spec_pp, stored_pp, spec_p, stored_p,
                                       c_cur, reduction_p, n_nodes)
        else:
            cell = init_normal_cell(kg, spec_pp, stored_pp, spec_p, stored_p,
                                    c_cur, reduction_p, n_nodes)
        cells.append(cell)
        spec_pp, spec_p = spec_p, c_cur * n_nodes
        stored_pp, stored_p = stored_p, cell['out_real']
    params['cells'] = cells
    last_pad = cells[-1]['out_pad'] if cells else params['stem']['out_pad']
    params['head'] = init_head(kg, spec_p, stored_p, last_pad, n_classes)
    return params


# ----------------------------------------------------------------------------
# Forward pass (host glue is only free reshapes + one tiny post-stem gather)
# ----------------------------------------------------------------------------
def cnn_forward(params, x_nchw):
    x = jnp.transpose(x_nchw, (0, 2, 3, 1))        # NCHW -> NHWC
    s = stem_forward(x, params['stem'])            # (N, H*W, Cpad), quad order
    s0 = s1 = s
    for cell in params['cells']:
        if cell['type'] == 'normal':
            new = normal_cell_forward(cell, s0, s1)
        else:
            new = reduction_cell_forward(cell, s0, s1)
        s0, s1 = s1, new
    return head_forward(s1, params['head'])


# ----------------------------------------------------------------------------
if __name__ == "__main__":
    key = jax.random.PRNGKey(0)
    pkey, xkey = jax.random.split(key)

    input_size, in_channels, channels = 16, 3, 4
    n_classes, n_layers, n_nodes = 10, 3, 4

    params = init_cnn(pkey, in_channels, channels, n_classes, n_layers,
                      n_nodes=n_nodes, stem_multiplier=3)
    x = jax.random.normal(xkey, (2, in_channels, input_size, input_size),
                          jnp.float32)

    fwd = jax.jit(functools.partial(cnn_forward, params))
    logits = fwd(x)
    jax.block_until_ready(logits)
    assert logits.shape == (2, n_classes), logits.shape
    assert bool(jnp.all(jnp.isfinite(logits)))
    print("KERNEL_OK")
</pallas_src>

<mosaic_0001>
module attributes {stable_mosaic.version = 11 : i64} {
  func.func @_stem_kernel(%arg0: i32, %arg1: memref<1x342x3xbf16, #tpu.memory_space<vmem>>, %arg2: memref<9x3x128xbf16, #tpu.memory_space<vmem>>, %arg3: memref<1x128xf32, #tpu.memory_space<vmem>>, %arg4: memref<1x288x128xbf16, #tpu.memory_space<vmem>>) attributes {dimension_semantics = [#tpu.dimension_semantics<parallel>], iteration_bounds = array<i64: 2>, scalar_prefetch = 0 : i64, scratch_operands = 0 : i64, tpu.core_type = #tpu.core_type<tc>, window_params = [{transform_indices = @transform_0, window_bounds = array<i64: 1, 342, 3>}, {pipeline_mode = #tpu.pipeline_mode<synchronous>, transform_indices = @transform_1, window_bounds = array<i64: 9, 3, 128>}, {pipeline_mode = #tpu.pipeline_mode<synchronous>, transform_indices = @transform_2, window_bounds = array<i64: 1, 128>}, {transform_indices = @transform_3, window_bounds = array<i64: 1, 288, 128>}]} {
    %cst = arith.constant 0.000000e+00 : f32
    %0 = vector.broadcast %cst : f32 to vector<288x128xf32>
    %c0 = arith.constant 0 : index
    %c0_0 = arith.constant 0 : index
    %c0_1 = arith.constant 0 : index
    %1 = vector.load %arg1[%c0, %c0_0, %c0_1] : memref<1x342x3xbf16, #tpu.memory_space<vmem>>, vector<1x288x3xbf16>
    %2 = vector.shape_cast %1 : vector<1x288x3xbf16> to vector<288x3xbf16>
    %c0_2 = arith.constant 0 : index
    %c0_3 = arith.constant 0 : index
    %c0_4 = arith.constant 0 : index
    %3 = vector.load %arg2[%c0_2, %c0_3, %c0_4] : memref<9x3x128xbf16, #tpu.memory_space<vmem>>, vector<1x3x128xbf16>
    %4 = vector.shape_cast %3 : vector<1x3x128xbf16> to vector<3x128xbf16>
    %cst_5 = arith.constant dense<0.000000e+00> : vector<288x128xf32>
    %5 = tpu.matmul %2, %4, %cst_5 {dimension_numbers = #tpu.dot_dimension_numbers<[1], [0], [0], [1], [0, 0, 1, 1], [], []>} : vector<288x3xbf16>, vector<3x128xbf16>, vector<288x128xf32> -> vector<288x128xf32>
    %6 = arith.addf %0, %5 : vector<288x128xf32>
    %c0_6 = arith.constant 0 : index
    %c1 = arith.constant 1 : index
    %c0_7 = arith.constant 0 : index
    %7 = vector.load %arg1[%c0_6, %c1, %c0_7] : memref<1x342x3xbf16, #tpu.memory_space<vmem>>, vector<1x288x3xbf16>
    %8 = vector.shape_cast %7 : vector<1x288x3xbf16> to vector<288x3xbf16>
    %c1_8 = arith.constant 1 : index
    %c0_9 = arith.constant 0 : index
    %c0_10 = arith.constant 0 : index
    %9 = vector.load %arg2[%c1_8, %c0_9, %c0_10] : memref<9x3x128xbf16, #tpu.memory_space<vmem>>, vector<1x3x128xbf16>
    %10 = vector.shape_cast %9 : vector<1x3x128xbf16> to vector<3x128xbf16>
    %cst_11 = arith.constant dense<0.000000e+00> : vector<288x128xf32>
    %11 = tpu.matmul %8, %10, %cst_11 {dimension_numbers = #tpu.dot_dimension_numbers<[1], [0], [0], [1], [0, 0, 1, 1], [], []>} : vector<288x3xbf16>, vector<3x128xbf16>, vector<288x128xf32> -> vector<288x128xf32>
    %12 = arith.addf %6, %11 : vector<288x128xf32>
    %c0_12 = arith.constant 0 : index
    %c2 = arith.constant 2 : index
    %c0_13 = arith.constant 0 : index
    %13 = vector.load %arg1[%c0_12, %c2, %c0_13] : memref<1x342x3xbf16, #tpu.memory_space<vmem>>, vector<1x288x3xbf16>
    %14 = vector.shape_cast %13 : vector<1x288x3xbf16> to vector<288x3xbf16>
    %c2_14 = arith.constant 2 : index
    %c0_15 = arith.constant 0 : index
    %c0_16 = arith.constant 0 : index
    %15 = vector.load %arg2[%c2_14, %c0_15, %c0_16] : memref<9x3x128xbf16, #tpu.memory_space<vmem>>, vector<1x3x128xbf16>
    %16 = vector.shape_cast %15 : vector<1x3x128xbf16> to vector<3x128xbf16>
    %cst_17 = arith.constant dense<0.000000e+00> : vector<288x128xf32>
    %17 = tpu.matmul %14, %16, %cst_17 {dimension_numbers = #tpu.dot_dimension_numbers<[1], [0], [0], [1], [0, 0, 1, 1], [], []>} : vector<288x3xbf16>, vector<3x128xbf16>, vector<288x128xf32> -> vector<288x128xf32>
    %18 = arith.addf %12, %17 : vector<288x128xf32>
    %c0_18 = arith.constant 0 : index
    %c18 = arith.constant 18 : index
    %c0_19 = arith.constant 0 : index
    %19 = vector.load %arg1[%c0_18, %c18, %c0_19] : memref<1x342x3xbf16, #tpu.memory_space<vmem>>, vector<1x288x3xbf16>
    %20 = vector.shape_cast %19 : vector<1x288x3xbf16> to vector<288x3xbf16>
    %c3 = arith.constant 3 : index
    %c0_20 = arith.constant 0 : index
    %c0_21 = arith.constant 0 : index
    %21 = vector.load %arg2[%c3, %c0_20, %c0_21] : memref<9x3x128xbf16, #tpu.memory_space<vmem>>, vector<1x3x128xbf16>
    %22 = vector.shape_cast %21 : vector<1x3x128xbf16> to vector<3x128xbf16>
    %cst_22 = arith.constant dense<0.000000e+00> : vector<288x128xf32>
    %23 = tpu.matmul %20, %22, %cst_22 {dimension_numbers = #tpu.dot_dimension_numbers<[1], [0], [0], [1], [0, 0, 1, 1], [], []>} : vector<288x3xbf16>, vector<3x128xbf16>, vector<288x128xf32> -> vector<288x128xf32>
    %24 = arith.addf %18, %23 : vector<288x128xf32>
    %c0_23 = arith.constant 0 : index
    %c19 = arith.constant 19 : index
    %c0_24 = arith.constant 0 : index
    %25 = vector.load %arg1[%c0_23, %c19, %c0_24] : memref<1x342x3xbf16, #tpu.memory_space<vmem>>, vector<1x288x3xbf16>
    %26 = vector.shape_cast %25 : vector<1x288x3xbf16> to vector<288x3xbf16>
    %c4 = arith.constant 4 : index
    %c0_25 = arith.constant 0 : index
    %c0_26 = arith.constant 0 : index
    %27 = vector.load %arg2[%c4, %c0_25, %c0_26] : memref<9x3x128xbf16, #tpu.memory_space<vmem>>, vector<1x3x128xbf16>
    %28 = vector.shape_cast %27 : vector<1x3x128xbf16> to vector<3x128xbf16>
    %cst_27 = arith.constant dense<0.000000e+00> : vector<288x128xf32>
    %29 = tpu.matmul %26, %28, %cst_27 {dimension_numbers = #tpu.dot_dimension_numbers<[1], [0], [0], [1], [0, 0, 1, 1], [], []>} : vector<288x3xbf16>, vector<3x128xbf16>, vector<288x128xf32> -> vector<288x128xf32>
    %30 = arith.addf %24, %29 : vector<288x128xf32>
    %c0_28 = arith.constant 0 : index
    %c20 = arith.constant 20 : index
    %c0_29 = arith.constant 0 : index
    %31 = vector.load %arg1[%c0_28, %c20, %c0_29] : memref<1x342x3xbf16, #tpu.memory_space<vmem>>, vector<1x288x3xbf16>
    %32 = vector.shape_cast %31 : vector<1x288x3xbf16> to vector<288x3xbf16>
    %c5 = arith.constant 5 : index
    %c0_30 = arith.constant 0 : index
    %c0_31 = arith.constant 0 : index
    %33 = vector.load %arg2[%c5, %c0_30, %c0_31] : memref<9x3x128xbf16, #tpu.memory_space<vmem>>, vector<1x3x128xbf16>
    %34 = vector.shape_cast %33 : vector<1x3x128xbf16> to vector<3x128xbf16>
    %cst_32 = arith.constant dense<0.000000e+00> : vector<288x128xf32>
    %35 = tpu.matmul %32, %34, %cst_32 {dimension_numbers = #tpu.dot_dimension_numbers<[1], [0], [0], [1], [0, 0, 1, 1], [], []>} : vector<288x3xbf16>, vector<3x128xbf16>, vector<288x128xf32> -> vector<288x128xf32>
    %36 = arith.addf %30, %35 : vector<288x128xf32>
    %c0_33 = arith.constant 0 : index
    %c36 = arith.constant 36 : index
    %c0_34 = arith.constant 0 : index
    %37 = vector.load %arg1[%c0_33, %c36, %c0_34] : memref<1x342x3xbf16, #tpu.memory_space<vmem>>, vector<1x288x3xbf16>
    %38 = vector.shape_cast %37 : vector<1x288x3xbf16> to vector<288x3xbf16>
    %c6 = arith.constant 6 : index
    %c0_35 = arith.constant 0 : index
    %c0_36 = arith.constant 0 : index
    %39 = vector.load %arg2[%c6, %c0_35, %c0_36] : memref<9x3x128xbf16, #tpu.memory_space<vmem>>, vector<1x3x128xbf16>
    %40 = vector.shape_cast %39 : vector<1x3x128xbf16> to vector<3x128xbf16>
    %cst_37 = arith.constant dense<0.000000e+00> : vector<288x128xf32>
    %41 = tpu.matmul %38, %40, %cst_37 {dimension_numbers = #tpu.dot_dimension_numbers<[1], [0], [0], [1], [0, 0, 1, 1], [], []>} : vector<288x3xbf16>, vector<3x128xbf16>, vector<288x128xf32> -> vector<288x128xf32>
    %42 = arith.addf %36, %41 : vector<288x128xf32>
    %c0_38 = arith.constant 0 : index
    %c37 = arith.constant 37 : index
    %c0_39 = arith.constant 0 : index
    %43 = vector.load %arg1[%c0_38, %c37, %c0_39] : memref<1x342x3xbf16, #tpu.memory_space<vmem>>, vector<1x288x3xbf16>
    %44 = vector.shape_cast %43 : vector<1x288x3xbf16> to vector<288x3xbf16>
    %c7 = arith.constant 7 : index
    %c0_40 = arith.constant 0 : index
    %c0_41 = arith.constant 0 : index
    %45 = vector.load %arg2[%c7, %c0_40, %c0_41] : memref<9x3x128xbf16, #tpu.memory_space<vmem>>, vector<1x3x128xbf16>
    %46 = vector.shape_cast %45 : vector<1x3x128xbf16> to vector<3x128xbf16>
    %cst_42 = arith.constant dense<0.000000e+00> : vector<288x128xf32>
    %47 = tpu.matmul %44, %46, %cst_42 {dimension_numbers = #tpu.dot_dimension_numbers<[1], [0], [0], [1], [0, 0, 1, 1], [], []>} : vector<288x3xbf16>, vector<3x128xbf16>, vector<288x128xf32> -> vector<288x128xf32>
    %48 = arith.addf %42, %47 : vector<288x128xf32>
    %c0_43 = arith.constant 0 : index
    %c38 = arith.constant 38 : index
    %c0_44 = arith.constant 0 : index
    %49 = vector.load %arg1[%c0_43, %c38, %c0_44] : memref<1x342x3xbf16, #tpu.memory_space<vmem>>, vector<1x288x3xbf16>
    %50 = vector.shape_cast %49 : vector<1x288x3xbf16> to vector<288x3xbf16>
    %c8 = arith.constant 8 : index
    %c0_45 = arith.constant 0 : index
    %c0_46 = arith.constant 0 : index
    %51 = vector.load %arg2[%c8, %c0_45, %c0_46] : memref<9x3x128xbf16, #tpu.memory_space<vmem>>, vector<1x3x128xbf16>
    %52 = vector.shape_cast %51 : vector<1x3x128xbf16> to vector<3x128xbf16>
    %cst_47 = arith.constant dense<0.000000e+00> : vector<288x128xf32>
    %53 = tpu.matmul %50, %52, %cst_47 {dimension_numbers = #tpu.dot_dimension_numbers<[1], [0], [0], [1], [0, 0, 1, 1], [], []>} : vector<288x3xbf16>, vector<3x128xbf16>, vector<288x128xf32> -> vector<288x128xf32>
    %54 = arith.addf %48, %53 : vector<288x128xf32>
    %c0_48 = arith.constant 0 : index
    %c0_49 = arith.constant 0 : index
    %55 = vector.load %arg3[%c0_48, %c0_49] : memref<1x128xf32, #tpu.memory_space<vmem>>, vector<1x128xf32>
    %56 = vector.broadcast %55 : vector<1x128xf32> to vector<288x128xf32>
    %57 = arith.addf %54, %56 : vector<288x128xf32>
    %58 = arith.truncf %57 : vector<288x128xf32> to vector<288x128xbf16>
    %c0_50 = arith.constant 0 : index
    %c0_51 = arith.constant 0 : index
    %c0_52 = arith.constant 0 : index
    %59 = vector.load %arg4[%c0_50, %c0_51, %c0_52] : memref<1x288x128xbf16, #tpu.memory_space<vmem>>, vector<1x288x128xbf16>
    %60 = vector.shape_cast %59 : vector<1x288x128xbf16> to vector<288x128xbf16>
    %61 = vector.shape_cast %58 : vector<288x128xbf16> to vector<1x288x128xbf16>
    tpu.vector_store %arg4[%c0_50, %c0_51, %c0_52], %61 {strides = array<i32>} : memref<1x288x128xbf16, #tpu.memory_space<vmem>>, vector<1x288x128xbf16>,
    return
  }
  func.func @transform_0(%arg0: i32) -> (i32, i32, i32) {
    %c0_i32 = arith.constant 0 : i32
    %c0_i32_0 = arith.constant 0 : i32
    %c0_i32_1 = arith.constant 0 : i32
    return %arg0, %c0_i32, %c0_i32_0 : i32, i32, i32
  }
  func.func @transform_1(%arg0: i32) -> (i32, i32, i32) {
    %c0_i32 = arith.constant 0 : i32
    %c0_i32_0 = arith.constant 0 : i32
    %c0_i32_1 = arith.constant 0 : i32
    %c0_i32_2 = arith.constant 0 : i32
    return %c0_i32, %c0_i32_0, %c0_i32_1 : i32, i32, i32
  }
  func.func @transform_2(%arg0: i32) -> (i32, i32) {
    %c0_i32 = arith.constant 0 : i32
    %c0_i32_0 = arith.constant 0 : i32
    %c0_i32_1 = arith.constant 0 : i32
    return %c0_i32, %c0_i32_0 : i32, i32
  }
  func.func @transform_3(%arg0: i32) -> (i32, i32, i32) {
    %c0_i32 = arith.constant 0 : i32
    %c0_i32_0 = arith.constant 0 : i32
    %c0_i32_1 = arith.constant 0 : i32
    return %arg0, %c0_i32, %c0_i32_0 : i32, i32, i32
  }
}

module attributes {stable_mosaic.version = 11 : i64} {
  func.func @_ncell_kernel(%arg0: i32, %arg1: memref<256x128xbf16, #tpu.memory_space<vmem>>, %arg2: memref<256x128xbf16, #tpu.memory_space<vmem>>, %arg3: memref<256x128xbf16, #tpu.memory_space<vmem>>, %arg4: memref<1x128xf32, #tpu.memory_space<vmem>>, %arg5: memref<256x128xbf16, #tpu.memory_space<vmem>>) attributes {dimension_semantics = [#tpu.dimension_semantics<parallel>], iteration_bounds = array<i64: 2>, scalar_prefetch = 0 : i64, scratch_operands = 0 : i64, tpu.core_type = #tpu.core_type<tc>, window_params = [{transform_indices = @transform_0, window_bounds = array<i64: 256, 128>}, {transform_indices = @transform_1, window_bounds = array<i64: 256, 128>}, {pipeline_mode = #tpu.pipeline_mode<synchronous>, transform_indices = @transform_2, window_bounds = array<i64: 256, 128>}, {pipeline_mode = #tpu.pipeline_mode<synchronous>, transform_indices = @transform_3, window_bounds = array<i64: 1, 128>}, {transform_indices = @transform_4, window_bounds = array<i64: 256, 128>}]} {
    %c0 = arith.constant 0 : index
    %c0_0 = arith.constant 0 : index
    %0 = vector.load %arg1[%c0, %c0_0] : memref<256x128xbf16, #tpu.memory_space<vmem>>, vector<256x128xbf16>
    %cst = arith.constant 0.000000e+00 : bf16
    %1 = vector.broadcast %cst : bf16 to vector<256x128xbf16>
    %2 = arith.maximumf %0, %1 : vector<256x128xbf16>
    %c0_1 = arith.constant 0 : index
    %c0_2 = arith.constant 0 : index
    %3 = vector.load %arg2[%c0_1, %c0_2] : memref<256x128xbf16, #tpu.memory_space<vmem>>, vector<256x128xbf16>
    %cst_3 = arith.constant 0.000000e+00 : bf16
    %4 = vector.broadcast %cst_3 : bf16 to vector<256x128xbf16>
    %5 = arith.maximumf %3, %4 : vector<256x128xbf16>
    %6 = tpu.concatenate %2, %5 in 1 : vector<256x128xbf16>, vector<256x128xbf16> -> vector<256x256xbf16>
    %c0_4 = arith.constant 0 : index
    %c0_5 = arith.constant 0 : index
    %7 = vector.load %arg3[%c0_4, %c0_5] : memref<256x128xbf16, #tpu.memory_space<vmem>>, vector<256x128xbf16>
    %cst_6 = arith.constant dense<0.000000e+00> : vector<256x128xf32>
    %8 = tpu.matmul %6, %7, %cst_6 {dimension_numbers = #tpu.dot_dimension_numbers<[1], [0], [0], [1], [0, 0, 1, 1], [], []>} : vector<256x256xbf16>, vector<256x128xbf16>, vector<256x128xf32> -> vector<256x128xf32>
    %c0_7 = arith.constant 0 : index
    %c0_8 = arith.constant 0 : index
    %9 = vector.load %arg4[%c0_7, %c0_8] : memref<1x128xf32, #tpu.memory_space<vmem>>, vector<1x128xf32>
    %10 = vector.broadcast %9 : vector<1x128xf32> to vector<256x128xf32>
    %11 = arith.addf %8, %10 : vector<256x128xf32>
    %12 = arith.truncf %11 : vector<256x128xf32> to vector<256x128xbf16>
    %c0_9 = arith.constant 0 : index
    %c0_10 = arith.constant 0 : index
    %13 = vector.load %arg5[%c0_9, %c0_10] : memref<256x128xbf16, #tpu.memory_space<vmem>>, vector<256x128xbf16>
    tpu.vector_store %arg5[%c0_9, %c0_10], %12 {strides = array<i32>} : memref<256x128xbf16, #tpu.memory_space<vmem>>, vector<256x128xbf16>,
    return
  }
  func.func @transform_0(%arg0: i32) -> (i32, i32) {
    %c0_i32 = arith.constant 0 : i32
    %c0_i32_0 = arith.constant 0 : i32
    return %arg0, %c0_i32 : i32, i32
  }
  func.func @transform_1(%arg0: i32) -> (i32, i32) {
    %c0_i32 = arith.constant 0 : i32
    %c0_i32_0 = arith.constant 0 : i32
    return %arg0, %c0_i32 : i32, i32
  }
  func.func @transform_2(%arg0: i32) -> (i32, i32) {
    %c0_i32 = arith.constant 0 : i32
    %c0_i32_0 = arith.constant 0 : i32
    %c0_i32_1 = arith.constant 0 : i32
    return %c0_i32, %c0_i32_0 : i32, i32
  }
  func.func @transform_3(%arg0: i32) -> (i32, i32) {
    %c0_i32 = arith.constant 0 : i32
    %c0_i32_0 = arith.constant 0 : i32
    %c0_i32_1 = arith.constant 0 : i32
    return %c0_i32, %c0_i32_0 : i32, i32
  }
  func.func @transform_4(%arg0: i32) -> (i32, i32) {
    %c0_i32 = arith.constant 0 : i32
    %c0_i32_0 = arith.constant 0 : i32
    return %arg0, %c0_i32 : i32, i32
  }
}

module attributes {stable_mosaic.version = 11 : i64} {
  func.func @_rcell_kernel(%arg0: i32, %arg1: memref<1x1x64x128xbf16, #tpu.memory_space<vmem>>, %arg2: memref<1x1x64x128xbf16, #tpu.memory_space<vmem>>, %arg3: memref<1x1x64x128xbf16, #tpu.memory_space<vmem>>, %arg4: memref<1x1x64x128xbf16, #tpu.memory_space<vmem>>, %arg5: memref<256x16xbf16, #tpu.memory_space<vmem>>, %arg6: memref<16x128xbf16, #tpu.memory_space<vmem>>, %arg7: memref<16x128xbf16, #tpu.memory_space<vmem>>, %arg8: memref<1x16xf32, #tpu.memory_space<vmem>>, %arg9: memref<1x128xf32, #tpu.memory_space<vmem>>, %arg10: memref<1x64x128xbf16, #tpu.memory_space<vmem>>) attributes {dimension_semantics = [#tpu.dimension_semantics<parallel>], iteration_bounds = array<i64: 2>, scalar_prefetch = 0 : i64, scratch_operands = 0 : i64, tpu.core_type = #tpu.core_type<tc>, window_params = [{transform_indices = @transform_0, window_bounds = array<i64: 1, 1, 64, 128>}, {transform_indices = @transform_1, window_bounds = array<i64: 1, 1, 64, 128>}, {transform_indices = @transform_2, window_bounds = array<i64: 1, 1, 64, 128>}, {transform_indices = @transform_3, window_bounds = array<i64: 1, 1, 64, 128>}, {pipeline_mode = #tpu.pipeline_mode<synchronous>, transform_indices = @transform_4, window_bounds = array<i64: 256, 16>}, {pipeline_mode = #tpu.pipeline_mode<synchronous>, transform_indices = @transform_5, window_bounds = array<i64: 16, 128>}, {pipeline_mode = #tpu.pipeline_mode<synchronous>, transform_indices = @transform_6, window_bounds = array<i64: 16, 128>}, {pipeline_mode = #tpu.pipeline_mode<synchronous>, transform_indices = @transform_7, window_bounds = array<i64: 1, 16>}, {pipeline_mode = #tpu.pipeline_mode<synchronous>, transform_indices = @transform_8, window_bounds = array<i64: 1, 128>}, {transform_indices = @transform_9, window_bounds = array<i64: 1, 64, 128>}]} {
    %c0 = arith.constant 0 : index
    %c0_0 = arith.constant 0 : index
    %0 = vector.load %arg5[%c0, %c0_0] : memref<256x16xbf16, #tpu.memory_space<vmem>>, vector<256x16xbf16>
    %c0_1 = arith.constant 0 : index
    %c0_2 = arith.constant 0 : index
    %c0_3 = arith.constant 0 : index
    %c0_4 = arith.constant 0 : index
    %1 = vector.load %arg1[%c0_1, %c0_2, %c0_3, %c0_4] : memref<1x1x64x128xbf16, #tpu.memory_space<vmem>>, vector<1x1x64x128xbf16>
    %2 = vector.shape_cast %1 : vector<1x1x64x128xbf16> to vector<64x128xbf16>
    %cst = arith.constant 0.000000e+00 : bf16
    %3 = vector.broadcast %cst : bf16 to vector<64x128xbf16>
    %4 = arith.maximumf %2, %3 : vector<64x128xbf16>
    %c0_5 = arith.constant 0 : index
    %c0_6 = arith.constant 0 : index
    %c0_7 = arith.constant 0 : index
    %c0_8 = arith.constant 0 : index
    %5 = vector.load %arg2[%c0_5, %c0_6, %c0_7, %c0_8] : memref<1x1x64x128xbf16, #tpu.memory_space<vmem>>, vector<1x1x64x128xbf16>
    %6 = vector.shape_cast %5 : vector<1x1x64x128xbf16> to vector<64x128xbf16>
    %cst_9 = arith.constant 0.000000e+00 : bf16
    %7 = vector.broadcast %cst_9 : bf16 to vector<64x128xbf16>
    %8 = arith.maximumf %6, %7 : vector<64x128xbf16>
    %9 = tpu.concatenate %4, %8 in 1 : vector<64x128xbf16>, vector<64x128xbf16> -> vector<64x256xbf16>
    %cst_10 = arith.constant dense<0.000000e+00> : vector<64x16xf32>
    %10 = tpu.matmul %9, %0, %cst_10 {dimension_numbers = #tpu.dot_dimension_numbers<[1], [0], [0], [1], [0, 0, 1, 1], [], []>} : vector<64x256xbf16>, vector<256x16xbf16>, vector<64x16xf32> -> vector<64x16xf32>
    %c0_11 = arith.constant 0 : index
    %c0_12 = arith.constant 0 : index
    %11 = vector.load %arg8[%c0_11, %c0_12] : memref<1x16xf32, #tpu.memory_space<vmem>>, vector<1x16xf32>
    %12 = vector.broadcast %11 : vector<1x16xf32> to vector<64x16xf32>
    %13 = arith.addf %10, %12 : vector<64x16xf32>
    %cst_13 = arith.constant 0.000000e+00 : f32
    %14 = vector.broadcast %cst_13 : f32 to vector<64x16xf32>
    %15 = arith.maximumf %13, %14 : vector<64x16xf32>
    %16 = arith.truncf %15 : vector<64x16xf32> to vector<64x16xbf16>
    %c0_14 = arith.constant 0 : index
    %c0_15 = arith.constant 0 : index
    %c0_16 = arith.constant 0 : index
    %c0_17 = arith.constant 0 : index
    %17 = vector.load %arg3[%c0_14, %c0_15, %c0_16, %c0_17] : memref<1x1x64x128xbf16, #tpu.memory_space<vmem>>, vector<1x1x64x128xbf16>
    %18 = vector.shape_cast %17 : vector<1x1x64x128xbf16> to vector<64x128xbf16>
    %cst_18 = arith.constant 0.000000e+00 : bf16
    %19 = vector.broadcast %cst_18 : bf16 to vector<64x128xbf16>
    %20 = arith.maximumf %18, %19 : vector<64x128xbf16>
    %c0_19 = arith.constant 0 : index
    %c0_20 = arith.constant 0 : index
    %c0_21 = arith.constant 0 : index
    %c0_22 = arith.constant 0 : index
    %21 = vector.load %arg4[%c0_19, %c0_20, %c0_21, %c0_22] : memref<1x1x64x128xbf16, #tpu.memory_space<vmem>>, vector<1x1x64x128xbf16>
    %22 = vector.shape_cast %21 : vector<1x1x64x128xbf16> to vector<64x128xbf16>
    %cst_23 = arith.constant 0.000000e+00 : bf16
    %23 = vector.broadcast %cst_23 : bf16 to vector<64x128xbf16>
    %24 = arith.maximumf %22, %23 : vector<64x128xbf16>
    %25 = tpu.concatenate %20, %24 in 1 : vector<64x128xbf16>, vector<64x128xbf16> -> vector<64x256xbf16>
    %cst_24 = arith.constant dense<0.000000e+00> : vector<64x16xf32>
    %26 = tpu.matmul %25, %0, %cst_24 {dimension_numbers = #tpu.dot_dimension_numbers<[1], [0], [0], [1], [0, 0, 1, 1], [], []>} : vector<64x256xbf16>, vector<256x16xbf16>, vector<64x16xf32> -> vector<64x16xf32>
    %c0_25 = arith.constant 0 : index
    %c0_26 = arith.constant 0 : index
    %27 = vector.load %arg8[%c0_25, %c0_26] : memref<1x16xf32, #tpu.memory_space<vmem>>, vector<1x16xf32>
    %28 = vector.broadcast %27 : vector<1x16xf32> to vector<64x16xf32>
    %29 = arith.addf %26, %28 : vector<64x16xf32>
    %cst_27 = arith.constant 0.000000e+00 : f32
    %30 = vector.broadcast %cst_27 : f32 to vector<64x16xf32>
    %31 = arith.maximumf %29, %30 : vector<64x16xf32>
    %32 = arith.truncf %31 : vector<64x16xf32> to vector<64x16xbf16>
    %c0_28 = arith.constant 0 : index
    %c0_29 = arith.constant 0 : index
    %33 = vector.load %arg6[%c0_28, %c0_29] : memref<16x128xbf16, #tpu.memory_space<vmem>>, vector<16x128xbf16>
    %cst_30 = arith.constant dense<0.000000e+00> : vector<64x128xf32>
    %34 = tpu.matmul %16, %33, %cst_30 {dimension_numbers = #tpu.dot_dimension_numbers<[1], [0], [0], [1], [0, 0, 1, 1], [], []>} : vector<64x16xbf16>, vector<16x128xbf16>, vector<64x128xf32> -> vector<64x128xf32>
    %c0_31 = arith.constant 0 : index
    %c0_32 = arith.constant 0 : index
    %35 = vector.load %arg7[%c0_31, %c0_32] : memref<16x128xbf16, #tpu.memory_space<vmem>>, vector<16x128xbf16>
    %cst_33 = arith.constant dense<0.000000e+00> : vector<64x128xf32>
    %36 = tpu.matmul %32, %35, %cst_33 {dimension_numbers = #tpu.dot_dimension_numbers<[1], [0], [0], [1], [0, 0, 1, 1], [], []>} : vector<64x16xbf16>, vector<16x128xbf16>, vector<64x128xf32> -> vector<64x128xf32>
    %37 = arith.addf %34, %36 : vector<64x128xf32>
    %c0_34 = arith.constant 0 : index
    %c0_35 = arith.constant 0 : index
    %38 = vector.load %arg9[%c0_34, %c0_35] : memref<1x128xf32, #tpu.memory_space<vmem>>, vector<1x128xf32>
    %39 = vector.broadcast %38 : vector<1x128xf32> to vector<64x128xf32>
    %40 = arith.addf %37, %39 : vector<64x128xf32>
    %41 = arith.truncf %40 : vector<64x128xf32> to vector<64x128xbf16>
    %c0_36 = arith.constant 0 : index
    %c0_37 = arith.constant 0 : index
    %c0_38 = arith.constant 0 : index
    %42 = vector.load %arg10[%c0_36, %c0_37, %c0_38] : memref<1x64x128xbf16, #tpu.memory_space<vmem>>, vector<1x64x128xbf16>
    %43 = vector.shape_cast %42 : vector<1x64x128xbf16> to vector<64x128xbf16>
    %44 = vector.shape_cast %41 : vector<64x128xbf16> to vector<1x64x128xbf16>
    tpu.vector_store %arg10[%c0_36, %c0_37, %c0_38], %44 {strides = array<i32>} : memref<1x64x128xbf16, #tpu.memory_space<vmem>>, vector<1x64x128xbf16>,
    return
  }
  func.func @transform_0(%arg0: i32) -> (i32, i32, i32, i32) {
    %c0_i32 = arith.constant 0 : i32
    %c0_i32_0 = arith.constant 0 : i32
    %c0_i32_1 = arith.constant 0 : i32
    %c0_i32_2 = arith.constant 0 : i32
    return %arg0, %c0_i32, %c0_i32_0, %c0_i32_1 : i32, i32, i32, i32
  }
  func.func @transform_1(%arg0: i32) -> (i32, i32, i32, i32) {
    %c0_i32 = arith.constant 0 : i32
    %c0_i32_0 = arith.constant 0 : i32
    %c0_i32_1 = arith.constant 0 : i32
    %c0_i32_2 = arith.constant 0 : i32
    return %arg0, %c0_i32, %c0_i32_0, %c0_i32_1 : i32, i32, i32, i32
  }
  func.func @transform_2(%arg0: i32) -> (i32, i32, i32, i32) {
    %c3_i32 = arith.constant 3 : i32
    %c0_i32 = arith.constant 0 : i32
    %c0_i32_0 = arith.constant 0 : i32
    %c0_i32_1 = arith.constant 0 : i32
    return %arg0, %c3_i32, %c0_i32, %c0_i32_0 : i32, i32, i32, i32
  }
  func.func @transform_3(%arg0: i32) -> (i32, i32, i32, i32) {
    %c3_i32 = arith.constant 3 : i32
    %c0_i32 = arith.constant 0 : i32
    %c0_i32_0 = arith.constant 0 : i32
    %c0_i32_1 = arith.constant 0 : i32
    return %arg0, %c3_i32, %c0_i32, %c0_i32_0 : i32, i32, i32, i32
  }
  func.func @transform_4(%arg0: i32) -> (i32, i32) {
    %c0_i32 = arith.constant 0 : i32
    %c0_i32_0 = arith.constant 0 : i32
    %c0_i32_1 = arith.constant 0 : i32
    return %c0_i32, %c0_i32_0 : i32, i32
  }
  func.func @transform_5(%arg0: i32) -> (i32, i32) {
    %c0_i32 = arith.constant 0 : i32
    %c0_i32_0 = arith.constant 0 : i32
    %c0_i32_1 = arith.constant 0 : i32
    return %c0_i32, %c0_i32_0 : i32, i32
  }
  func.func @transform_6(%arg0: i32) -> (i32, i32) {
    %c0_i32 = arith.constant 0 : i32
    %c0_i32_0 = arith.constant 0 : i32
    %c0_i32_1 = arith.constant 0 : i32
    return %c0_i32, %c0_i32_0 : i32, i32
  }
  func.func @transform_7(%arg0: i32) -> (i32, i32) {
    %c0_i32 = arith.constant 0 : i32
    %c0_i32_0 = arith.constant 0 : i32
    %c0_i32_1 = arith.constant 0 : i32
    return %c0_i32, %c0_i32_0 : i32, i32
  }
  func.func @transform_8(%arg0: i32) -> (i32, i32) {
    %c0_i32 = arith.constant 0 : i32
    %c0_i32_0 = arith.constant 0 : i32
    %c0_i32_1 = arith.constant 0 : i32
    return %c0_i32, %c0_i32_0 : i32, i32
  }
  func.func @transform_9(%arg0: i32) -> (i32, i32, i32) {
    %c0_i32 = arith.constant 0 : i32
    %c0_i32_0 = arith.constant 0 : i32
    %c0_i32_1 = arith.constant 0 : i32
    return %arg0, %c0_i32, %c0_i32_0 : i32, i32, i32
  }
}

module attributes {stable_mosaic.version = 11 : i64} {
  func.func @_rcell_kernel(%arg0: i32, %arg1: memref<1x1x16x128xbf16, #tpu.memory_space<vmem>>, %arg2: memref<1x1x16x128xbf16, #tpu.memory_space<vmem>>, %arg3: memref<1x1x16x128xbf16, #tpu.memory_space<vmem>>, %arg4: memref<1x1x16x128xbf16, #tpu.memory_space<vmem>>, %arg5: memref<1x1x16x128xbf16, #tpu.memory_space<vmem>>, %arg6: memref<1x1x16x128xbf16, #tpu.memory_space<vmem>>, %arg7: memref<384x32xbf16, #tpu.memory_space<vmem>>, %arg8: memref<32x128xbf16, #tpu.memory_space<vmem>>, %arg9: memref<32x128xbf16, #tpu.memory_space<vmem>>, %arg10: memref<1x32xf32, #tpu.memory_space<vmem>>, %arg11: memref<1x128xf32, #tpu.memory_space<vmem>>, %arg12: memref<1x16x128xbf16, #tpu.memory_space<vmem>>) attributes {dimension_semantics = [#tpu.dimension_semantics<parallel>], iteration_bounds = array<i64: 2>, scalar_prefetch = 0 : i64, scratch_operands = 0 : i64, tpu.core_type = #tpu.core_type<tc>, window_params = [{transform_indices = @transform_0, window_bounds = array<i64: 1, 1, 16, 128>}, {transform_indices = @transform_1, window_bounds = array<i64: 1, 1, 16, 128>}, {transform_indices = @transform_2, window_bounds = array<i64: 1, 1, 16, 128>}, {transform_indices = @transform_3, window_bounds = array<i64: 1, 1, 16, 128>}, {transform_indices = @transform_4, window_bounds = array<i64: 1, 1, 16, 128>}, {transform_indices = @transform_5, window_bounds = array<i64: 1, 1, 16, 128>}, {pipeline_mode = #tpu.pipeline_mode<synchronous>, transform_indices = @transform_6, window_bounds = array<i64: 384, 32>}, {pipeline_mode = #tpu.pipeline_mode<synchronous>, transform_indices = @transform_7, window_bounds = array<i64: 32, 128>}, {pipeline_mode = #tpu.pipeline_mode<synchronous>, transform_indices = @transform_8, window_bounds = array<i64: 32, 128>}, {pipeline_mode = #tpu.pipeline_mode<synchronous>, transform_indices = @transform_9, window_bounds = array<i64: 1, 32>}, {pipeline_mode = #tpu.pipeline_mode<synchronous>, transform_indices = @transform_10, window_bounds = array<i64: 1, 128>}, {transform_indices = @transform_11, window_bounds = array<i64: 1, 16, 128>}]} {
    %c0 = arith.constant 0 : index
    %c0_0 = arith.constant 0 : index
    %0 = vector.load %arg7[%c0, %c0_0] : memref<384x32xbf16, #tpu.memory_space<vmem>>, vector<384x32xbf16>
    %c0_1 = arith.constant 0 : index
    %c0_2 = arith.constant 0 : index
    %c0_3 = arith.constant 0 : index
    %c0_4 = arith.constant 0 : index
    %1 = vector.load %arg1[%c0_1, %c0_2, %c0_3, %c0_4] : memref<1x1x16x128xbf16, #tpu.memory_space<vmem>>, vector<1x1x16x128xbf16>
    %2 = vector.shape_cast %1 : vector<1x1x16x128xbf16> to vector<16x128xbf16>
    %cst = arith.constant 0.000000e+00 : bf16
    %3 = vector.broadcast %cst : bf16 to vector<16x128xbf16>
    %4 = arith.maximumf %2, %3 : vector<16x128xbf16>
    %c0_5 = arith.constant 0 : index
    %c0_6 = arith.constant 0 : index
    %c0_7 = arith.constant 0 : index
    %c0_8 = arith.constant 0 : index
    %5 = vector.load %arg2[%c0_5, %c0_6, %c0_7, %c0_8] : memref<1x1x16x128xbf16, #tpu.memory_space<vmem>>, vector<1x1x16x128xbf16>
    %6 = vector.shape_cast %5 : vector<1x1x16x128xbf16> to vector<16x128xbf16>
    %cst_9 = arith.constant 0.000000e+00 : bf16
    %7 = vector.broadcast %cst_9 : bf16 to vector<16x128xbf16>
    %8 = arith.maximumf %6, %7 : vector<16x128xbf16>
    %c0_10 = arith.constant 0 : index
    %c0_11 = arith.constant 0 : index
    %c0_12 = arith.constant 0 : index
    %c0_13 = arith.constant 0 : index
    %9 = vector.load %arg3[%c0_10, %c0_11, %c0_12, %c0_13] : memref<1x1x16x128xbf16, #tpu.memory_space<vmem>>, vector<1x1x16x128xbf16>
    %10 = vector.shape_cast %9 : vector<1x1x16x128xbf16> to vector<16x128xbf16>
    %cst_14 = arith.constant 0.000000e+00 : bf16
    %11 = vector.broadcast %cst_14 : bf16 to vector<16x128xbf16>
    %12 = arith.maximumf %10, %11 : vector<16x128xbf16>
    %13 = tpu.concatenate %4, %8, %12 in 1 : vector<16x128xbf16>, vector<16x128xbf16>, vector<16x128xbf16> -> vector<16x384xbf16>
    %cst_15 = arith.constant dense<0.000000e+00> : vector<16x32xf32>
    %14 = tpu.matmul %13, %0, %cst_15 {dimension_numbers = #tpu.dot_dimension_numbers<[1], [0], [0], [1], [0, 0, 1, 1], [], []>} : vector<16x384xbf16>, vector<384x32xbf16>, vector<16x32xf32> -> vector<16x32xf32>
    %c0_16 = arith.constant 0 : index
    %c0_17 = arith.constant 0 : index
    %15 = vector.load %arg10[%c0_16, %c0_17] : memref<1x32xf32, #tpu.memory_space<vmem>>, vector<1x32xf32>
    %16 = vector.broadcast %15 : vector<1x32xf32> to vector<16x32xf32>
    %17 = arith.addf %14, %16 : vector<16x32xf32>
    %cst_18 = arith.constant 0.000000e+00 : f32
    %18 = vector.broadcast %cst_18 : f32 to vector<16x32xf32>
    %19 = arith.maximumf %17, %18 : vector<16x32xf32>
    %20 = arith.truncf %19 : vector<16x32xf32> to vector<16x32xbf16>
    %c0_19 = arith.constant 0 : index
    %c0_20 = arith.constant 0 : index
    %c0_21 = arith.constant 0 : index
    %c0_22 = arith.constant 0 : index
    %21 = vector.load %arg4[%c0_19, %c0_20, %c0_21, %c0_22] : memref<1x1x16x128xbf16, #tpu.memory_space<vmem>>, vector<1x1x16x128xbf16>
    %22 = vector.shape_cast %21 : vector<1x1x16x128xbf16> to vector<16x128xbf16>
    %cst_23 = arith.constant 0.000000e+00 : bf16
    %23 = vector.broadcast %cst_23 : bf16 to vector<16x128xbf16>
    %24 = arith.maximumf %22, %23 : vector<16x128xbf16>
    %c0_24 = arith.constant 0 : index
    %c0_25 = arith.constant 0 : index
    %c0_26 = arith.constant 0 : index
    %c0_27 = arith.constant 0 : index
    %25 = vector.load %arg5[%c0_24, %c0_25, %c0_26, %c0_27] : memref<1x1x16x128xbf16, #tpu.memory_space<vmem>>, vector<1x1x16x128xbf16>
    %26 = vector.shape_cast %25 : vector<1x1x16x128xbf16> to vector<16x128xbf16>
    %cst_28 = arith.constant 0.000000e+00 : bf16
    %27 = vector.broadcast %cst_28 : bf16 to vector<16x128xbf16>
    %28 = arith.maximumf %26, %27 : vector<16x128xbf16>
    %c0_29 = arith.constant 0 : index
    %c0_30 = arith.constant 0 : index
    %c0_31 = arith.constant 0 : index
    %c0_32 = arith.constant 0 : index
    %29 = vector.load %arg6[%c0_29, %c0_30, %c0_31, %c0_32] : memref<1x1x16x128xbf16, #tpu.memory_space<vmem>>, vector<1x1x16x128xbf16>
    %30 = vector.shape_cast %29 : vector<1x1x16x128xbf16> to vector<16x128xbf16>
    %cst_33 = arith.constant 0.000000e+00 : bf16
    %31 = vector.broadcast %cst_33 : bf16 to vector<16x128xbf16>
    %32 = arith.maximumf %30, %31 : vector<16x128xbf16>
    %33 = tpu.concatenate %24, %28, %32 in 1 : vector<16x128xbf16>, vector<16x128xbf16>, vector<16x128xbf16> -> vector<16x384xbf16>
    %cst_34 = arith.constant dense<0.000000e+00> : vector<16x32xf32>
    %34 = tpu.matmul %33, %0, %cst_34 {dimension_numbers = #tpu.dot_dimension_numbers<[1], [0], [0], [1], [0, 0, 1, 1], [], []>} : vector<16x384xbf16>, vector<384x32xbf16>, vector<16x32xf32> -> vector<16x32xf32>
    %c0_35 = arith.constant 0 : index
    %c0_36 = arith.constant 0 : index
    %35 = vector.load %arg10[%c0_35, %c0_36] : memref<1x32xf32, #tpu.memory_space<vmem>>, vector<1x32xf32>
    %36 = vector.broadcast %35 : vector<1x32xf32> to vector<16x32xf32>
    %37 = arith.addf %34, %36 : vector<16x32xf32>
    %cst_37 = arith.constant 0.000000e+00 : f32
    %38 = vector.broadcast %cst_37 : f32 to vector<16x32xf32>
    %39 = arith.maximumf %37, %38 : vector<16x32xf32>
    %40 = arith.truncf %39 : vector<16x32xf32> to vector<16x32xbf16>
    %c0_38 = arith.constant 0 : index
    %c0_39 = arith.constant 0 : index
    %41 = vector.load %arg8[%c0_38, %c0_39] : memref<32x128xbf16, #tpu.memory_space<vmem>>, vector<32x128xbf16>
    %cst_40 = arith.constant dense<0.000000e+00> : vector<16x128xf32>
    %42 = tpu.matmul %20, %41, %cst_40 {dimension_numbers = #tpu.dot_dimension_numbers<[1], [0], [0], [1], [0, 0, 1, 1], [], []>} : vector<16x32xbf16>, vector<32x128xbf16>, vector<16x128xf32> -> vector<16x128xf32>
    %c0_41 = arith.constant 0 : index
    %c0_42 = arith.constant 0 : index
    %43 = vector.load %arg9[%c0_41, %c0_42] : memref<32x128xbf16, #tpu.memory_space<vmem>>, vector<32x128xbf16>
    %cst_43 = arith.constant dense<0.000000e+00> : vector<16x128xf32>
    %44 = tpu.matmul %40, %43, %cst_43 {dimension_numbers = #tpu.dot_dimension_numbers<[1], [0], [0], [1], [0, 0, 1, 1], [], []>} : vector<16x32xbf16>, vector<32x128xbf16>, vector<16x128xf32> -> vector<16x128xf32>
    %45 = arith.addf %42, %44 : vector<16x128xf32>
    %c0_44 = arith.constant 0 : index
    %c0_45 = arith.constant 0 : index
    %46 = vector.load %arg11[%c0_44, %c0_45] : memref<1x128xf32, #tpu.memory_space<vmem>>, vector<1x128xf32>
    %47 = vector.broadcast %46 : vector<1x128xf32> to vector<16x128xf32>
    %48 = arith.addf %45, %47 : vector<16x128xf32>
    %49 = arith.truncf %48 : vector<16x128xf32> to vector<16x128xbf16>
    %c0_46 = arith.constant 0 : index
    %c0_47 = arith.constant 0 : index
    %c0_48 = arith.constant 0 : index
    %50 = vector.load %arg12[%c0_46, %c0_47, %c0_48] : memref<1x16x128xbf16, #tpu.memory_space<vmem>>, vector<1x16x128xbf16>
    %51 = vector.shape_cast %50 : vector<1x16x128xbf16> to vector<16x128xbf16>
    %52 = vector.shape_cast %49 : vector<16x128xbf16> to vector<1x16x128xbf16>
    tpu.vector_store %arg12[%c0_46, %c0_47, %c0_48], %52 {strides = array<i32>} : memref<1x16x128xbf16, #tpu.memory_space<vmem>>, vector<1x16x128xbf16>,
    return
  }
  func.func @transform_0(%arg0: i32) -> (i32, i32, i32, i32) {
    %c0_i32 = arith.constant 0 : i32
    %c0_i32_0 = arith.constant 0 : i32
    %c0_i32_1 = arith.constant 0 : i32
    %c0_i32_2 = arith.constant 0 : i32
    return %arg0, %c0_i32, %c0_i32_0, %c0_i32_1 : i32, i32, i32, i32
  }
  func.func @transform_1(%arg0: i32) -> (i32, i32, i32, i32) {
    %c12_i32 = arith.constant 12 : i32
    %c0_i32 = arith.constant 0 : i32
    %c0_i32_0 = arith.constant 0 : i32
    %c0_i32_1 = arith.constant 0 : i32
    return %arg0, %c12_i32, %c0_i32, %c0_i32_0 : i32, i32, i32, i32
  }
  func.func @transform_2(%arg0: i32) -> (i32, i32, i32, i32) {
    %c0_i32 = arith.constant 0 : i32
    %c0_i32_0 = arith.constant 0 : i32
    %c0_i32_1 = arith.constant 0 : i32
    %c0_i32_2 = arith.constant 0 : i32
    return %arg0, %c0_i32, %c0_i32_0, %c0_i32_1 : i32, i32, i32, i32
  }
  func.func @transform_3(%arg0: i32) -> (i32, i32, i32, i32) {
    %c3_i32 = arith.constant 3 : i32
    %c0_i32 = arith.constant 0 : i32
    %c0_i32_0 = arith.constant 0 : i32
    %c0_i32_1 = arith.constant 0 : i32
    return %arg0, %c3_i32, %c0_i32, %c0_i32_0 : i32, i32, i32, i32
  }
  func.func @transform_4(%arg0: i32) -> (i32, i32, i32, i32) {
    %c15_i32 = arith.constant 15 : i32
    %c0_i32 = arith.constant 0 : i32
    %c0_i32_0 = arith.constant 0 : i32
    %c0_i32_1 = arith.constant 0 : i32
    return %arg0, %c15_i32, %c0_i32, %c0_i32_0 : i32, i32, i32, i32
  }
  func.func @transform_5(%arg0: i32) -> (i32, i32, i32, i32) {
    %c3_i32 = arith.constant 3 : i32
    %c0_i32 = arith.constant 0 : i32
    %c0_i32_0 = arith.constant 0 : i32
    %c0_i32_1 = arith.constant 0 : i32
    return %arg0, %c3_i32, %c0_i32, %c0_i32_0 : i32, i32, i32, i32
  }
  func.func @transform_6(%arg0: i32) -> (i32, i32) {
    %c0_i32 = arith.constant 0 : i32
    %c0_i32_0 = arith.constant 0 : i32
    %c0_i32_1 = arith.constant 0 : i32
    return %c0_i32, %c0_i32_0 : i32, i32
  }
  func.func @transform_7(%arg0: i32) -> (i32, i32) {
    %c0_i32 = arith.constant 0 : i32
    %c0_i32_0 = arith.constant 0 : i32
    %c0_i32_1 = arith.constant 0 : i32
    return %c0_i32, %c0_i32_0 : i32, i32
  }
  func.func @transform_8(%arg0: i32) -> (i32, i32) {
    %c0_i32 = arith.constant 0 : i32
    %c0_i32_0 = arith.constant 0 : i32
    %c0_i32_1 = arith.constant 0 : i32
    return %c0_i32, %c0_i32_0 : i32, i32
  }
  func.func @transform_9(%arg0: i32) -> (i32, i32) {
    %c0_i32 = arith.constant 0 : i32
    %c0_i32_0 = arith.constant 0 : i32
    %c0_i32_1 = arith.constant 0 : i32
    return %c0_i32, %c0_i32_0 : i32, i32
  }
  func.func @transform_10(%arg0: i32) -> (i32, i32) {
    %c0_i32 = arith.constant 0 : i32
    %c0_i32_0 = arith.constant 0 : i32
    %c0_i32_1 = arith.constant 0 : i32
    return %c0_i32, %c0_i32_0 : i32, i32
  }
  func.func @transform_11(%arg0: i32) -> (i32, i32, i32) {
    %c0_i32 = arith.constant 0 : i32
    %c0_i32_0 = arith.constant 0 : i32
    %c0_i32_1 = arith.constant 0 : i32
    return %arg0, %c0_i32, %c0_i32_0 : i32, i32, i32
  }
}

module attributes {stable_mosaic.version = 11 : i64} {
  func.func @_head_kernel(%arg0: i32, %arg1: memref<1x16x128xbf16, #tpu.memory_space<vmem>>, %arg2: memref<128x128xbf16, #tpu.memory_space<vmem>>, %arg3: memref<1x128xf32, #tpu.memory_space<vmem>>, %arg4: memref<1x1x128xf32, #tpu.memory_space<vmem>>) attributes {dimension_semantics = [#tpu.dimension_semantics<parallel>], iteration_bounds = array<i64: 2>, scalar_prefetch = 0 : i64, scratch_operands = 0 : i64, tpu.core_type = #tpu.core_type<tc>, window_params = [{transform_indices = @transform_0, window_bounds = array<i64: 1, 16, 128>}, {pipeline_mode = #tpu.pipeline_mode<synchronous>, transform_indices = @transform_1, window_bounds = array<i64: 128, 128>}, {pipeline_mode = #tpu.pipeline_mode<synchronous>, transform_indices = @transform_2, window_bounds = array<i64: 1, 128>}, {transform_indices = @transform_3, window_bounds = array<i64: 1, 1, 128>}]} {
    %c0 = arith.constant 0 : index
    %c0_0 = arith.constant 0 : index
    %c0_1 = arith.constant 0 : index
    %0 = vector.load %arg1[%c0, %c0_0, %c0_1] : memref<1x16x128xbf16, #tpu.memory_space<vmem>>, vector<1x16x128xbf16>
    %1 = vector.shape_cast %0 : vector<1x16x128xbf16> to vector<16x128xbf16>
    %2 = arith.extf %1 : vector<16x128xbf16> to vector<16x128xf32>
    %cst = arith.constant dense<0.000000e+00> : vector<128xf32>
    %3 = vector.multi_reduction <add>, %2, %cst [0] : vector<16x128xf32> to vector<128xf32>
    %4 = vector.shape_cast %3 : vector<128xf32> to vector<1x128xf32>
    %cst_2 = arith.constant 6.250000e-02 : f32
    %5 = vector.broadcast %cst_2 : f32 to vector<1x128xf32>
    %6 = arith.mulf %4, %5 : vector<1x128xf32>
    %7 = arith.truncf %6 : vector<1x128xf32> to vector<1x128xbf16>
    %c0_3 = arith.constant 0 : index
    %c0_4 = arith.constant 0 : index
    %8 = vector.load %arg2[%c0_3, %c0_4] : memref<128x128xbf16, #tpu.memory_space<vmem>>, vector<128x128xbf16>
    %cst_5 = arith.constant dense<0.000000e+00> : vector<1x128xf32>
    %9 = tpu.matmul %7, %8, %cst_5 {dimension_numbers = #tpu.dot_dimension_numbers<[1], [0], [0], [1], [0, 0, 1, 1], [], []>} : vector<1x128xbf16>, vector<128x128xbf16>, vector<1x128xf32> -> vector<1x128xf32>
    %c0_6 = arith.constant 0 : index
    %c0_7 = arith.constant 0 : index
    %10 = vector.load %arg3[%c0_6, %c0_7] : memref<1x128xf32, #tpu.memory_space<vmem>>, vector<1x128xf32>
    %11 = arith.addf %9, %10 : vector<1x128xf32>
    %c0_8 = arith.constant 0 : index
    %c0_9 = arith.constant 0 : index
    %c0_10 = arith.constant 0 : index
    %12 = vector.load %arg4[%c0_8, %c0_9, %c0_10] : memref<1x1x128xf32, #tpu.memory_space<vmem>>, vector<1x1x128xf32>
    %13 = vector.shape_cast %12 : vector<1x1x128xf32> to vector<1x128xf32>
    %14 = vector.shape_cast %11 : vector<1x128xf32> to vector<1x1x128xf32>
    tpu.vector_store %arg4[%c0_8, %c0_9, %c0_10], %14 {strides = array<i32>} : memref<1x1x128xf32, #tpu.memory_space<vmem>>, vector<1x1x128xf32>,
    return
  }
  func.func @transform_0(%arg0: i32) -> (i32, i32, i32) {
    %c0_i32 = arith.constant 0 : i32
    %c0_i32_0 = arith.constant 0 : i32
    %c0_i32_1 = arith.constant 0 : i32
    return %arg0, %c0_i32, %c0_i32_0 : i32, i32, i32
  }
  func.func @transform_1(%arg0: i32) -> (i32, i32) {
    %c0_i32 = arith.constant 0 : i32
    %c0_i32_0 = arith.constant 0 : i32
    %c0_i32_1 = arith.constant 0 : i32
    return %c0_i32, %c0_i32_0 : i32, i32
  }
  func.func @transform_2(%arg0: i32) -> (i32, i32) {
    %c0_i32 = arith.constant 0 : i32
    %c0_i32_0 = arith.constant 0 : i32
    %c0_i32_1 = arith.constant 0 : i32
    return %c0_i32, %c0_i32_0 : i32, i32
  }
  func.func @transform_3(%arg0: i32) -> (i32, i32, i32) {
    %c0_i32 = arith.constant 0 : i32
    %c0_i32_0 = arith.constant 0 : i32
    %c0_i32_1 = arith.constant 0 : i32
    return %arg0, %c0_i32, %c0_i32_0 : i32, i32, i32
  }
}

</mosaic_0001>

<llo_original>
// kernel: cnn_forward.7
$region0: #{cnn_forward.7}
  #allocation0 [shape = 'u32[]', space=smem, size = 0x4, offset = 0x4, fixed_abs, tag = 'smem constant byte address 0x4 - core index']
  #allocation1 [shape = 'u32[144,128]{1,0:T(1,128)}', space=vmem, size = 0x12000, scoped, tag = 'internal scratch']
  %s0 = inlined_call_operand.vmem [shape: bf16[2,4,64,128], index: 0, kind: input, shape index: {}, may-alias: {0,2}]
  %s1 = inlined_call_operand.vmem [shape: bf16[2,4,64,128], index: 1, kind: input, shape index: {}, may-alias: {1,3}]
  %s2 = inlined_call_operand.vmem [shape: bf16[2,4,64,128], index: 2, kind: input, shape index: {}, may-alias: {0,2}]
  %s3 = inlined_call_operand.vmem [shape: bf16[2,4,64,128], index: 3, kind: input, shape index: {}, may-alias: {1,3}]
  %s4 = inlined_call_operand.vmem [shape: bf16[256,16], index: 4, kind: input, shape index: {}]
  %s5 = inlined_call_operand.vmem [shape: bf16[16,128], index: 5, kind: input, shape index: {}]
  %s6 = inlined_call_operand.vmem [shape: bf16[16,128], index: 6, kind: input, shape index: {}]
  %s7 = inlined_call_operand.vmem [shape: f32[1,16], index: 7, kind: input, shape index: {}]
  %s8 = inlined_call_operand.vmem [shape: f32[1,128], index: 8, kind: input, shape index: {}]
  %s9 = inlined_call_operand.vmem [shape: bf16[2,64,128], index: 9, kind: output, shape index: {}]
  %s10 = sld [smem:[#allocation0]]
  $region69: #{cnn_forward.7} parent=0
    _
  %s12 = ssub.s32 1, %s10
  %s13 = scalar_select 0, %s12, %s10
  loop: start=0, step=1, limit=4
  $region2: #{cnn_forward.7} parent=0 // loop_pre_header
    _
  $region3: #{cnn_forward.7} parent=0 // loop_header
    %s15 = sphi 0, %s19
    %p16 = scmp.ge.s32.totalorder %s15, 4
    %s25 = sphi 0, %s27
    %s28 = sphi 0, %s25
    %s29 = sphi 0, %s28
    %s45 = sphi 0, %s29
    %s51 = sphi 0, %s53
    %s54 = sphi 0, %s51
    %s55 = sphi 0, %s54
    %s71 = sphi 0, %s55
    %s77 = sphi 0, %s79
    %s80 = sphi 0, %s77
    %s81 = sphi 0, %s80
    %s97 = sphi 0, %s81
    %s103 = sphi 0, %s105
    %s106 = sphi 0, %s103
    %s107 = sphi 0, %s106
    %s123 = sphi 0, %s107
    %s127 = sphi 0, %s127
    %s129 = sphi 0, %s127
    %s130 = sphi 0, %s129
    %s144 = sphi 0, %s130
    %s148 = sphi 0, %s148
    %s150 = sphi 0, %s148
    %s151 = sphi 0, %s150
    %s165 = sphi 0, %s151
    %s169 = sphi 0, %s169
    %s171 = sphi 0, %s169
    %s172 = sphi 0, %s171
    %s186 = sphi 0, %s172
    %s190 = sphi 0, %s190
    %s192 = sphi 0, %s190
    %s193 = sphi 0, %s192
    %s207 = sphi 0, %s193
    %s211 = sphi 0, %s211
    %s213 = sphi 0, %s211
    %s214 = sphi 0, %s213
    %s228 = sphi 0, %s214
    %s234 = sphi 0, %s236
    %s237 = sphi 0, %s234
    %s238 = sphi 0, %s237
    %s254 = sphi 0, %s238
  $region4: #{cnn_forward.7} parent=0 // loop_header_branch
    %18 = sbr.rel (%p16) target = $region8
  $region5: #{cnn_forward.7} parent=0 // loop_body
    %s20 = ssub.s32 %s15, 1
    %s21 = ssub.s32 %s15, 2
    %s22 = sadd.s32 %s15, 1
    %s23 = ssub.s32 %s15, %s22
    %p24 = scmp.eq.s32.totalorder %s23, 0
    %s26 = sadd.s32 %s25, 1
    %s27 = scalar_select %p24, %s25, %s26
    %p30 = pneg %p24
    %p31 = scmp.eq.s32.totalorder %s15, 1
    %p32 = por %p30, %p31
    %p33 = scmp.ne.s32.totalorder %s25, %s28
    %p34 = scmp.eq.s32.totalorder %s15, 0
    %p35 = por %p33, %p34
    %p36 = scmp.ne.s32.totalorder %s25, %s28
    %p37 = scmp.eq.s32.totalorder %s20, 1
    %p38 = por %p36, %p37
    %p39 = scmp.ne.s32.totalorder %s28, %s29
    %p40 = scmp.eq.s32.totalorder %s20, 0
    %p41 = por %p39, %p40
    %p42 = scmp.ne.s32.totalorder %s28, %s29
    %p43 = scmp.eq.s32.totalorder %s21, 1
    %p44 = por %p42, %p43
    %p46 = scmp.ne.s32.totalorder %s29, %s45
    %p47 = scmp.eq.s32.totalorder %s21, 0
    %p48 = por %p46, %p47
    %s49 = ssub.s32 %s15, %s22
    %p50 = scmp.eq.s32.totalorder %s49, 0
    %s52 = sadd.s32 %s51, 1
    %s53 = scalar_select %p50, %s51, %s52
    %p56 = pneg %p50
    %p57 = scmp.eq.s32.totalorder %s15, 1
    %p58 = por %p56, %p57
    %p59 = scmp.ne.s32.totalorder %s51, %s54
    %p60 = scmp.eq.s32.totalorder %s15, 0
    %p61 = por %p59, %p60
    %p62 = scmp.ne.s32.totalorder %s51, %s54
    %p63 = scmp.eq.s32.totalorder %s20, 1
    %p64 = por %p62, %p63
    %p65 = scmp.ne.s32.totalorder %s54, %s55
    %p66 = scmp.eq.s32.totalorder %s20, 0
    %p67 = por %p65, %p66
    %p68 = scmp.ne.s32.totalorder %s54, %s55
    %p69 = scmp.eq.s32.totalorder %s21, 1
    %p70 = por %p68, %p69
    %p72 = scmp.ne.s32.totalorder %s55, %s71
    %p73 = scmp.eq.s32.totalorder %s21, 0
    %p74 = por %p72, %p73
    %s75 = ssub.s32 %s15, %s22
    %p76 = scmp.eq.s32.totalorder %s75, 0
    %s78 = sadd.s32 %s77, 1
    %s79 = scalar_select %p76, %s77, %s78
    %p82 = pneg %p76
    %p83 = scmp.eq.s32.totalorder %s15, 1
    %p84 = por %p82, %p83
    %p85 = scmp.ne.s32.totalorder %s77, %s80
    %p86 = scmp.eq.s32.totalorder %s15, 0
    %p87 = por %p85, %p86
    %p88 = scmp.ne.s32.totalorder %s77, %s80
    %p89 = scmp.eq.s32.totalorder %s20, 1
    %p90 = por %p88, %p89
    %p91 = scmp.ne.s32.totalorder %s80, %s81
    %p92 = scmp.eq.s32.totalorder %s20, 0
    %p93 = por %p91, %p92
    %p94 = scmp.ne.s32.totalorder %s80, %s81
    %p95 = scmp.eq.s32.totalorder %s21, 1
    %p96 = por %p94, %p95
    %p98 = scmp.ne.s32.totalorder %s81, %s97
    %p99 = scmp.eq.s32.totalorder %s21, 0
    %p100 = por %p98, %p99
    %s101 = ssub.s32 %s15, %s22
    %p102 = scmp.eq.s32.totalorder %s101, 0
    %s104 = sadd.s32 %s103, 1
    %s105 = scalar_select %p102, %s103, %s104
    %p108 = pneg %p102
    %p109 = scmp.eq.s32.totalorder %s15, 1
    %p110 = por %p108, %p109
    %p111 = scmp.ne.s32.totalorder %s103, %s106
    %p112 = scmp.eq.s32.totalorder %s15, 0
    %p113 = por %p111, %p112
    %p114 = scmp.ne.s32.totalorder %s103, %s106
    %p115 = scmp.eq.s32.totalorder %s20, 1
    %p116 = por %p114, %p115
    %p117 = scmp.ne.s32.totalorder %s106, %s107
    %p118 = scmp.eq.s32.totalorder %s20, 0
    %p119 = por %p117, %p118
    %p120 = scmp.ne.s32.totalorder %s106, %s107
    %p121 = scmp.eq.s32.totalorder %s21, 1
    %p122 = por %p120, %p121
    %p124 = scmp.ne.s32.totalorder %s107, %s123
    %p125 = scmp.eq.s32.totalorder %s21, 0
    %p126 = por %p124, %p125
    %s128 = sadd.s32 %s127, 1
    %p131 = scmp.eq.s32.totalorder %s15, 1
    %p132 = scmp.ne.s32.totalorder %s127, %s129
    %p133 = scmp.eq.s32.totalorder %s15, 0
    %p134 = por %p132, %p133
    %p135 = scmp.ne.s32.totalorder %s127, %s129
    %p136 = scmp.eq.s32.totalorder %s20, 1
    %p137 = por %p135, %p136
    %p138 = scmp.ne.s32.totalorder %s129, %s130
    %p139 = scmp.eq.s32.totalorder %s20, 0
    %p140 = por %p138, %p139
    %p141 = scmp.ne.s32.totalorder %s129, %s130
    %p142 = scmp.eq.s32.totalorder %s21, 1
    %p143 = por %p141, %p142
    %p145 = scmp.ne.s32.totalorder %s130, %s144
    %p146 = scmp.eq.s32.totalorder %s21, 0
    %p147 = por %p145, %p146
    %s149 = sadd.s32 %s148, 1
    %p152 = scmp.eq.s32.totalorder %s15, 1
    %p153 = scmp.ne.s32.totalorder %s148, %s150
    %p154 = scmp.eq.s32.totalorder %s15, 0
    %p155 = por %p153, %p154
    %p156 = scmp.ne.s32.totalorder %s148, %s150
    %p157 = scmp.eq.s32.totalorder %s20, 1
    %p158 = por %p156, %p157
    %p159 = scmp.ne.s32.totalorder %s150, %s151
    %p160 = scmp.eq.s32.totalorder %s20, 0
    %p161 = por %p159, %p160
    %p162 = scmp.ne.s32.totalorder %s150, %s151
    %p163 = scmp.eq.s32.totalorder %s21, 1
    %p164 = por %p162, %p163
    %p166 = scmp.ne.s32.totalorder %s151, %s165
    %p167 = scmp.eq.s32.totalorder %s21, 0
    %p168 = por %p166, %p167
    %s170 = sadd.s32 %s169, 1
    %p173 = scmp.eq.s32.totalorder %s15, 1
    %p174 = scmp.ne.s32.totalorder %s169, %s171
    %p175 = scmp.eq.s32.totalorder %s15, 0
    %p176 = por %p174, %p175
    %p177 = scmp.ne.s32.totalorder %s169, %s171
    %p178 = scmp.eq.s32.totalorder %s20, 1
    %p179 = por %p177, %p178
    %p180 = scmp.ne.s32.totalorder %s171, %s172
    %p181 = scmp.eq.s32.totalorder %s20, 0
    %p182 = por %p180, %p181
    %p183 = scmp.ne.s32.totalorder %s171, %s172
    %p184 = scmp.eq.s32.totalorder %s21, 1
    %p185 = por %p183, %p184
    %p187 = scmp.ne.s32.totalorder %s172, %s186
    %p188 = scmp.eq.s32.totalorder %s21, 0
    %p189 = por %p187, %p188
    %s191 = sadd.s32 %s190, 1
    %p194 = scmp.eq.s32.totalorder %s15, 1
    %p195 = scmp.ne.s32.totalorder %s190, %s192
    %p196 = scmp.eq.s32.totalorder %s15, 0
    %p197 = por %p195, %p196
    %p198 = scmp.ne.s32.totalorder %s190, %s192
    %p199 = scmp.eq.s32.totalorder %s20, 1
    %p200 = por %p198, %p199
    %p201 = scmp.ne.s32.totalorder %s192, %s193
    %p202 = scmp.eq.s32.totalorder %s20, 0
    %p203 = por %p201, %p202
    %p204 = scmp.ne.s32.totalorder %s192, %s193
    %p205 = scmp.eq.s32.totalorder %s21, 1
    %p206 = por %p204, %p205
    %p208 = scmp.ne.s32.totalorder %s193, %s207
    %p209 = scmp.eq.s32.totalorder %s21, 0
    %p210 = por %p208, %p209
    %s212 = sadd.s32 %s211, 1
    %p215 = scmp.eq.s32.totalorder %s15, 1
    %p216 = scmp.ne.s32.totalorder %s211, %s213
    %p217 = scmp.eq.s32.totalorder %s15, 0
    %p218 = por %p216, %p217
    %p219 = scmp.ne.s32.totalorder %s211, %s213
    %p220 = scmp.eq.s32.totalorder %s20, 1
    %p221 = por %p219, %p220
    %p222 = scmp.ne.s32.totalorder %s213, %s214
    %p223 = scmp.eq.s32.totalorder %s20, 0
    %p224 = por %p222, %p223
    %p225 = scmp.ne.s32.totalorder %s213, %s214
    %p226 = scmp.eq.s32.totalorder %s21, 1
    %p227 = por %p225, %p226
    %p229 = scmp.ne.s32.totalorder %s214, %s228
    %p230 = scmp.eq.s32.totalorder %s21, 0
    %p231 = por %p229, %p230
    %s232 = ssub.s32 %s15, %s22
    %p233 = scmp.eq.s32.totalorder %s232, 0
    %s235 = sadd.s32 %s234, 1
    %s236 = scalar_select %p233, %s234, %s235
    %p239 = pneg %p233
    %p240 = scmp.eq.s32.totalorder %s15, 1
    %p241 = por %p239, %p240
    %p242 = scmp.ne.s32.totalorder %s234, %s237
    %p243 = scmp.eq.s32.totalorder %s15, 0
    %p244 = por %p242, %p243
    %p245 = scmp.ne.s32.totalorder %s234, %s237
    %p246 = scmp.eq.s32.totalorder %s20, 1
    %p247 = por %p245, %p246
    %p248 = scmp.ne.s32.totalorder %s237, %s238
    %p249 = scmp.eq.s32.totalorder %s20, 0
    %p250 = por %p248, %p249
    %p251 = scmp.ne.s32.totalorder %s237, %s238
    %p252 = scmp.eq.s32.totalorder %s21, 1
    %p253 = por %p251, %p252
    %p255 = scmp.ne.s32.totalorder %s238, %s254
    %p256 = scmp.eq.s32.totalorder %s21, 0
    %p257 = por %p255, %p256
    %p258 = scmp.le.s32.totalorder 1, %s15
    %p259 = scmp.lt.s32.totalorder %s15, 3
    %p260 = pnand %p258, %p259
    %p261 = pneg %p260
    // Predicated region
    $region9: #{cnn_forward.7} parent=5 // pred_check
      _
    $region10: #{cnn_forward.7} parent=5 // pred_check_branch
      %263 = sbr.rel (%p260) target = $region12
    $region11: #{cnn_forward.7} parent=5 // pred_region
      %s264 = ssub.s32 %s15, 1
      // Predicated region
      $region13: #{cnn_forward.7} parent=11 // pred_check
        %p265 = pneg %p140
      $region14: #{cnn_forward.7} parent=11 // pred_check_branch
        %267 = sbr.rel (%p265) target = $region16
      $region15: #{cnn_forward.7} parent=11 // pred_region
        _
      $region16: #{cnn_forward.7} parent=11 // pred_fallthru
        _
      // Predicated region
      $region17: #{cnn_forward.7} parent=11 // pred_check
        %p268 = pneg %p161
      $region18: #{cnn_forward.7} parent=11 // pred_check_branch
        %270 = sbr.rel (%p268) target = $region20
      $region19: #{cnn_forward.7} parent=11 // pred_region
        _
      $region20: #{cnn_forward.7} parent=11 // pred_fallthru
        _
      // Predicated region
      $region21: #{cnn_forward.7} parent=11 // pred_check
        %p271 = pneg %p182
      $region22: #{cnn_forward.7} parent=11 // pred_check_branch
        %273 = sbr.rel (%p271) target = $region24
      $region23: #{cnn_forward.7} parent=11 // pred_region
        _
      $region24: #{cnn_forward.7} parent=11 // pred_fallthru
        _
      // Predicated region
      $region25: #{cnn_forward.7} parent=11 // pred_check
        %p274 = pneg %p203
      $region26: #{cnn_forward.7} parent=11 // pred_check_branch
        %276 = sbr.rel (%p274) target = $region28
      $region27: #{cnn_forward.7} parent=11 // pred_region
        _
      $region28: #{cnn_forward.7} parent=11 // pred_fallthru
        _
      // Predicated region
      $region29: #{cnn_forward.7} parent=11 // pred_check
        %p277 = pneg %p224
      $region30: #{cnn_forward.7} parent=11 // pred_check_branch
        %279 = sbr.rel (%p277) target = $region32
      $region31: #{cnn_forward.7} parent=11 // pred_region
        _
      $region32: #{cnn_forward.7} parent=11 // pred_fallthru
        _
    $region12: #{cnn_forward.7} parent=5 // pred_fallthru
      _
    %p280 = scmp.lt.s32.totalorder %s15, 2
    // Predicated region
    $region33: #{cnn_forward.7} parent=5 // pred_check
      %p281 = pneg %p280
    $region34: #{cnn_forward.7} parent=5 // pred_check_branch
      %283 = sbr.rel (%p281) target = $region36
    $region35: #{cnn_forward.7} parent=5 // pred_region
      // Predicated region
      $region37: #{cnn_forward.7} parent=35 // pred_check
        %p284 = pneg %p35
      $region38: #{cnn_forward.7} parent=35 // pred_check_branch
        %286 = sbr.rel (%p284) target = $region40
      $region39: #{cnn_forward.7} parent=35 // pred_region
        %p287 = scmp.lt.s32.totalorder %s15, 1
        %s288 = scalar_select %p287, %s15, 1
        %s289 = smul.addr %s288, 32
        %s290 = smul.addr %s289, 4
        %s291 = scalar_lea.vmem %s0, %s290
      $region40: #{cnn_forward.7} parent=35 // pred_fallthru
        _
      // Predicated region
      $region41: #{cnn_forward.7} parent=35 // pred_check
        %p292 = pneg %p61
      $region42: #{cnn_forward.7} parent=35 // pred_check_branch
        %294 = sbr.rel (%p292) target = $region44
      $region43: #{cnn_forward.7} parent=35 // pred_region
        %p295 = scmp.lt.s32.totalorder %s15, 1
        %s296 = scalar_select %p295, %s15, 1
        %s297 = smul.addr %s296, 32
        %s298 = smul.addr %s297, 4
        %s299 = scalar_lea.vmem %s1, %s298
      $region44: #{cnn_forward.7} parent=35 // pred_fallthru
        _
      // Predicated region
      $region45: #{cnn_forward.7} parent=35 // pred_check
        %p300 = pneg %p87
      $region46: #{cnn_forward.7} parent=35 // pred_check_branch
        %302 = sbr.rel (%p300) target = $region48
      $region47: #{cnn_forward.7} parent=35 // pred_region
        %p303 = scmp.lt.s32.totalorder %s15, 1
        %s304 = scalar_select %p303, %s15, 1
        %s305 = smul.addr %s304, 32
        %s306 = sadd.s32 24, %s305
        %s307 = smul.addr %s306, 4
        %s308 = scalar_lea.vmem %s2, %s307
      $region48: #{cnn_forward.7} parent=35 // pred_fallthru
        _
      // Predicated region
      $region49: #{cnn_forward.7} parent=35 // pred_check
        %p309 = pneg %p113
      $region50: #{cnn_forward.7} parent=35 // pred_check_branch
        %311 = sbr.rel (%p309) target = $region52
      $region51: #{cnn_forward.7} parent=35 // pred_region
        %p312 = scmp.lt.s32.totalorder %s15, 1
        %s313 = scalar_select %p312, %s15, 1
        %s314 = smul.addr %s313, 32
        %s315 = sadd.s32 24, %s314
        %s316 = smul.addr %s315, 4
        %s317 = scalar_lea.vmem %s3, %s316
      $region52: #{cnn_forward.7} parent=35 // pred_fallthru
        _
    $region36: #{cnn_forward.7} parent=5 // pred_fallthru
      _
    %p318 = scmp.le.s32.totalorder 1, %s15
    %p319 = scmp.lt.s32.totalorder %s15, 3
    %p320 = pnand %p318, %p319
    %p321 = pneg %p320
    // Predicated region
    $region53: #{cnn_forward.7} parent=5 // pred_check
      _
    $region54: #{cnn_forward.7} parent=5 // pred_check_branch
      %323 = sbr.rel (%p320) target = $region56
    $region55: #{cnn_forward.7} parent=5 // pred_region
      %s324 = ssub.s32 %s15, 1
      %p325 = scmp.lt.s32.totalorder %s20, 1
      %s326 = scalar_select %p325, %s20, 1
      %s327 = smul.addr %s326, 32
      %s328 = smul.addr %s327, 4
      %s329 = scalar_lea.vmem %s0, %s328
      %p330 = pneg %p41
      %p331 = pneg %p38
      %p332 = scmp.lt.s32.totalorder %s20, 1
      %s333 = scalar_select %p332, %s20, 1
      %s334 = smul.addr %s333, 32
      %s335 = smul.addr %s334, 4
      %s336 = scalar_lea.vmem %s1, %s335
      %p337 = pneg %p67
      %p338 = pneg %p64
      %p339 = scmp.lt.s32.totalorder %s20, 1
      %s340 = scalar_select %p339, %s20, 1
      %s341 = smul.addr %s340, 32
      %s342 = sadd.s32 24, %s341
      %s343 = smul.addr %s342, 4
      %s344 = scalar_lea.vmem %s2, %s343
      %p345 = pneg %p93
      %p346 = pneg %p90
      %p347 = scmp.lt.s32.totalorder %s20, 1
      %s348 = scalar_select %p347, %s20, 1
      %s349 = smul.addr %s348, 32
      %s350 = sadd.s32 24, %s349
      %s351 = smul.addr %s350, 4
      %s352 = scalar_lea.vmem %s3, %s351
      %p353 = pneg %p119
      %p354 = pneg %p116
      %p355 = pneg %p140
      %p356 = pneg %p137
      %p357 = pneg %p161
      %p358 = pneg %p158
      %p359 = pneg %p182
      %p360 = pneg %p179
      %p361 = pneg %p203
      %p362 = pneg %p200
      %p363 = pneg %p224
      %p364 = pneg %p221
      %p365 = pneg %p250
      %p366 = pneg %p247
      %p367 = scmp.lt.s32.totalorder %s20, 1
      %s368 = scalar_select %p367, %s20, 1
      %s369 = smul.addr %s368, 8
      %s370 = smul.addr %s369, 4
      %s371 = scalar_lea.vmem %s9, %s370
      %p372 = scmp.lt.s32.totalorder %s20, 1
      %s373 = scalar_select %p372, %s20, 1
      %s374 = smul.addr %s373, 32
      %s375 = smul.addr %s374, 4
      %s376 = scalar_lea.vmem %s0, %s375
      %p377 = scmp.lt.s32.totalorder %s20, 1
      %s378 = scalar_select %p377, %s20, 1
      %s379 = smul.addr %s378, 32
      %s380 = smul.addr %s379, 4
      %s381 = scalar_lea.vmem %s1, %s380
      %p382 = scmp.lt.s32.totalorder %s20, 1
      %s383 = scalar_select %p382, %s20, 1
      %s384 = smul.addr %s383, 32
      %s385 = sadd.s32 24, %s384
      %s386 = smul.addr %s385, 4
      %s387 = scalar_lea.vmem %s2, %s386
      %p388 = scmp.lt.s32.totalorder %s20, 1
      %s389 = scalar_select %p388, %s20, 1
      %s390 = smul.addr %s389, 32
      %s391 = sadd.s32 24, %s390
      %s392 = smul.addr %s391, 4
      %s393 = scalar_lea.vmem %s3, %s392
      %p394 = scmp.lt.s32.totalorder %s20, 1
      %s395 = scalar_select %p394, %s20, 1
      %s396 = smul.addr %s395, 8
      %s397 = smul.addr %s396, 4
      %s398 = scalar_lea.vmem %s9, %s397
      %v400 = vld [vmem:[%s4] sm:$0xf]
      %v401 = vld [vmem:[%s4 + $0x4] sm:$0xf]
      %v402 = vld [vmem:[%s4 + $0x8] sm:$0xf]
      %v403 = vld [vmem:[%s4 + $0xc] sm:$0xf]
      %v404 = vld [vmem:[%s4 + $0x10] sm:$0xf]
      %v405 = vld [vmem:[%s4 + $0x14] sm:$0xf]
      %v406 = vld [vmem:[%s4 + $0x18] sm:$0xf]
      %v407 = vld [vmem:[%s4 + $0x1c] sm:$0xf]
      %v408 = vld [vmem:[%s4 + $0x20] sm:$0xf]
      %v409 = vld [vmem:[%s4 + $0x24] sm:$0xf]
      %v410 = vld [vmem:[%s4 + $0x28] sm:$0xf]
      %v411 = vld [vmem:[%s4 + $0x2c] sm:$0xf]
      %v412 = vld [vmem:[%s4 + $0x30] sm:$0xf]
      %v413 = vld [vmem:[%s4 + $0x34] sm:$0xf]
      %v414 = vld [vmem:[%s4 + $0x38] sm:$0xf]
      %v415 = vld [vmem:[%s4 + $0x3c] sm:$0xf]
      %v416 = vld [vmem:[%s4 + $0x40] sm:$0xf]
      %v417 = vld [vmem:[%s4 + $0x44] sm:$0xf]
      %v418 = vld [vmem:[%s4 + $0x48] sm:$0xf]
      %v419 = vld [vmem:[%s4 + $0x4c] sm:$0xf]
      %v420 = vld [vmem:[%s4 + $0x50] sm:$0xf]
      %v421 = vld [vmem:[%s4 + $0x54] sm:$0xf]
      %v422 = vld [vmem:[%s4 + $0x58] sm:$0xf]
      %v423 = vld [vmem:[%s4 + $0x5c] sm:$0xf]
      %v424 = vld [vmem:[%s4 + $0x60] sm:$0xf]
      %v425 = vld [vmem:[%s4 + $0x64] sm:$0xf]
      %v426 = vld [vmem:[%s4 + $0x68] sm:$0xf]
      %v427 = vld [vmem:[%s4 + $0x6c] sm:$0xf]
      %v428 = vld [vmem:[%s4 + $0x70] sm:$0xf]
      %v429 = vld [vmem:[%s4 + $0x74] sm:$0xf]
      %v430 = vld [vmem:[%s4 + $0x78] sm:$0xf]
      %v431 = vld [vmem:[%s4 + $0x7c] sm:$0xf]
      %v432 = vld [vmem:[%s376] sm:$0xf]
      %v433 = vld [vmem:[%s376 + $0x4] sm:$0xf]
      %v434 = vld [vmem:[%s376 + $0x8] sm:$0xf]
      %v435 = vld [vmem:[%s376 + $0xc] sm:$0xf]
      %v436 = vld [vmem:[%s376 + $0x10] sm:$0xf]
      %v437 = vld [vmem:[%s376 + $0x14] sm:$0xf]
      %v438 = vld [vmem:[%s376 + $0x18] sm:$0xf]
      %v439 = vld [vmem:[%s376 + $0x1c] sm:$0xf]
      %v440 = vmax.bf16 %v432, 0
      %v441 = vmax.bf16 %v433, 0
      %v442 = vmax.bf16 %v434, 0
      %v443 = vmax.bf16 %v435, 0
      %v444 = vmax.bf16 %v436, 0
      %v445 = vmax.bf16 %v437, 0
      %v446 = vmax.bf16 %v438, 0
      %v447 = vmax.bf16 %v439, 0
      %v448 = vld [vmem:[%s381] sm:$0xf]
      %v449 = vld [vmem:[%s381 + $0x4] sm:$0xf]
      %v450 = vld [vmem:[%s381 + $0x8] sm:$0xf]
      %v451 = vld [vmem:[%s381 + $0xc] sm:$0xf]
      %v452 = vld [vmem:[%s381 + $0x10] sm:$0xf]
      %v453 = vld [vmem:[%s381 + $0x14] sm:$0xf]
      %v454 = vld [vmem:[%s381 + $0x18] sm:$0xf]
      %v455 = vld [vmem:[%s381 + $0x1c] sm:$0xf]
      %v456 = vmax.bf16 %v448, 0
      %v457 = vmax.bf16 %v449, 0
      %v458 = vmax.bf16 %v450, 0
      %v459 = vmax.bf16 %v451, 0
      %v460 = vmax.bf16 %v452, 0
      %v461 = vmax.bf16 %v453, 0
      %v462 = vmax.bf16 %v454, 0
      %v463 = vmax.bf16 %v455, 0
      %v472 = vunpack.c.l.b16 %v440
      %v473 = vunpack.c.l.b16 %v441
      %v474 = vunpack.c.l.b16 %v442
      %v475 = vunpack.c.l.b16 %v443
      %v476 = vunpack.c.l.b16 %v444
      %v477 = vunpack.c.l.b16 %v445
      %v478 = vunpack.c.l.b16 %v446
      %v479 = vunpack.c.l.b16 %v447
      %v480 = vpack.c.b16 %v473, %v472
      %v481 = vpack.c.b16 %v475, %v474
      %v482 = vpack.c.b16 %v477, %v476
      %v483 = vpack.c.b16 %v479, %v478
      %v496 = vunpack.c.l.b16 %v456
      %v497 = vunpack.c.l.b16 %v457
      %v498 = vunpack.c.l.b16 %v458
      %v499 = vunpack.c.l.b16 %v459
      %v500 = vunpack.c.l.b16 %v460
      %v501 = vunpack.c.l.b16 %v461
      %v502 = vunpack.c.l.b16 %v462
      %v503 = vunpack.c.l.b16 %v463
      %v504 = vpack.c.b16 %v497, %v496
      %v505 = vpack.c.b16 %v499, %v498
      %v506 = vpack.c.b16 %v501, %v500
      %v507 = vpack.c.b16 %v503, %v502
      %v512 = vld [vmem:[%s7] sm:$0x1]
      %v514 = vlaneseq
      %v515 = vshrl.u32 %v514, 7
      %v516 = vsub.s32 0, %v515
      %v517 = vrot.slane %v512, %v516
      %v551 = vunpack.c.l.b16 %v400
      %v552 = vunpack.c.l.b16 %v401
      %v553 = vunpack.c.l.b16 %v402
      %v554 = vunpack.c.l.b16 %v403
      %v555 = vunpack.c.l.b16 %v404
      %v556 = vunpack.c.l.b16 %v405
      %v557 = vunpack.c.l.b16 %v406
      %v558 = vunpack.c.l.b16 %v407
      %v559 = vunpack.c.l.b16 %v408
      %v560 = vunpack.c.l.b16 %v409
      %v561 = vunpack.c.l.b16 %v410
      %v562 = vunpack.c.l.b16 %v411
      %v563 = vunpack.c.l.b16 %v412
      %v564 = vunpack.c.l.b16 %v413
      %v565 = vunpack.c.l.b16 %v414
      %v566 = vunpack.c.l.b16 %v415
      %v567 = vunpack.c.l.b16 %v416
      %v568 = vunpack.c.l.b16 %v417
      %v569 = vunpack.c.l.b16 %v418
      %v570 = vunpack.c.l.b16 %v419
      %v571 = vunpack.c.l.b16 %v420
      %v572 = vunpack.c.l.b16 %v421
      %v573 = vunpack.c.l.b16 %v422
      %v574 = vunpack.c.l.b16 %v423
      %v575 = vunpack.c.l.b16 %v424
      %v576 = vunpack.c.l.b16 %v425
      %v577 = vunpack.c.l.b16 %v426
      %v578 = vunpack.c.l.b16 %v427
      %v579 = vunpack.c.l.b16 %v428
      %v580 = vunpack.c.l.b16 %v429
      %v581 = vunpack.c.l.b16 %v430
      %v582 = vunpack.c.l.b16 %v431
      %v583 = vpack.c.b16 %v552, %v551
      %v584 = vpack.c.b16 %v554, %v553
      %v585 = vpack.c.b16 %v556, %v555
      %v586 = vpack.c.b16 %v558, %v557
      %v587 = vpack.c.b16 %v560, %v559
      %v588 = vpack.c.b16 %v562, %v561
      %v589 = vpack.c.b16 %v564, %v563
      %v590 = vpack.c.b16 %v566, %v565
      %v591 = vpack.c.b16 %v568, %v567
      %v592 = vpack.c.b16 %v570, %v569
      %v593 = vpack.c.b16 %v572, %v571
      %v594 = vpack.c.b16 %v574, %v573
      %v595 = vpack.c.b16 %v576, %v575
      %v596 = vpack.c.b16 %v578, %v577
      %v597 = vpack.c.b16 %v580, %v579
      %v598 = vpack.c.b16 %v582, %v581
      %615 = vmatprep.subr.bf16.mxu0 0
      %616 = vmatpush1.bf16.msra.mxu0 %v583
      %617 = vmatprep.subr.bf16.mxu0 0
      %618 = vmatpush1.bf16.msra.mxu0 %v584
      %619 = vmatprep.subr.bf16.mxu0 0
      %620 = vmatpush1.bf16.msra.mxu0 %v585
      %621 = vmatprep.subr.bf16.mxu0 0
      %622 = vmatpush1.bf16.msra.mxu0 %v586
      %623 = vmatprep.subr.bf16.mxu0 0
      %624 = vmatpush1.bf16.msra.mxu0 %v587
      %625 = vmatprep.subr.bf16.mxu0 0
      %626 = vmatpush1.bf16.msra.mxu0 %v588
      %627 = vmatprep.subr.bf16.mxu0 0
      %628 = vmatpush1.bf16.msra.mxu0 %v589
      %629 = vmatprep.subr.bf16.mxu0 0
      %630 = vmatpush1.bf16.msra.mxu0 %v590
      %631 = vmatprep.subr.bf16.mxu0 0
      %632 = vmatpush1.bf16.msra.mxu0 %v591
      %633 = vmatprep.subr.bf16.mxu0 0
      %634 = vmatpush1.bf16.msra.mxu0 %v592
      %635 = vmatprep.subr.bf16.mxu0 0
      %636 = vmatpush1.bf16.msra.mxu0 %v593
      %637 = vmatprep.subr.bf16.mxu0 0
      %638 = vmatpush1.bf16.msra.mxu0 %v594
      %639 = vmatprep.subr.bf16.mxu0 0
      %640 = vmatpush1.bf16.msra.mxu0 %v595
      %641 = vmatprep.subr.bf16.mxu0 0
      %642 = vmatpush1.bf16.msra.mxu0 %v596
      %643 = vmatprep.subr.bf16.mxu0 0
      %644 = vmatpush1.bf16.msra.mxu0 %v597
      %645 = vmatprep.subr.bf16.mxu0 0
      %646 = vmatpush1.bf16.msra.mxu0 %v598
      %647 = vmatprep.mubr.bf16.mxu0 %v504
      %648 = vmatmul.mubr.bf16.gmra.mrb[0].mxu0 %v480
      %v649 = vpop.f32.mrb[0].mxu0
      %v650 = vadd.f32 %v517, %v649
      %v651 = vpop.f32.mrb[0].mxu0
      %v652 = vpop.f32.mrb[0].mxu0
      %v653 = vadd.f32 %v517, %v652
      %v654 = vpop.f32.mrb[0].mxu0
      %655 = vmatprep.mubr.bf16.mxu0 %v505
      %656 = vmatmul.mubr.bf16.gmra.mrb[0].mxu0 %v481
      %v657 = vpop.f32.mrb[0].mxu0
      %v658 = vadd.f32 %v517, %v657
      %v659 = vpop.f32.mrb[0].mxu0
      %v660 = vpop.f32.mrb[0].mxu0
      %v661 = vadd.f32 %v517, %v660
      %v662 = vpop.f32.mrb[0].mxu0
      %663 = vmatprep.mubr.bf16.mxu0 %v506
      %664 = vmatmul.mubr.bf16.gmra.mrb[0].mxu0 %v482
      %v665 = vpop.f32.mrb[0].mxu0
      %v666 = vadd.f32 %v517, %v665
      %v667 = vpop.f32.mrb[0].mxu0
      %v668 = vpop.f32.mrb[0].mxu0
      %v669 = vadd.f32 %v517, %v668
      %v670 = vpop.f32.mrb[0].mxu0
      %671 = vmatprep.mubr.bf16.mxu0 %v507
      %672 = vmatmul.mubr.bf16.gmra.mrb[0].mxu0 %v483
      %v673 = vpop.f32.mrb[0].mxu0
      %v674 = vadd.f32 %v517, %v673
      %v675 = vpop.f32.mrb[0].mxu0
      %v676 = vpop.f32.mrb[0].mxu0
      %v677 = vadd.f32 %v517, %v676
      %v678 = vpop.f32.mrb[0].mxu0
      %679 = vdwg.mxu0
      %v680 = vmax.f32 %v650, 0.0
      %v681 = vmax.f32 %v653, 0.0
      %v682 = vmax.f32 %v658, 0.0
      %v683 = vmax.f32 %v661, 0.0
      %v684 = vmax.f32 %v666, 0.0
      %v685 = vmax.f32 %v669, 0.0
      %v686 = vmax.f32 %v674, 0.0
      %v687 = vmax.f32 %v677, 0.0
      %v688 = vpack.c.bf16 %v681, %v680
      %v689 = vpack.c.bf16 %v683, %v682
      %v690 = vpack.c.bf16 %v685, %v684
      %v691 = vpack.c.bf16 %v687, %v686
      %v692 = vld [vmem:[%s387] sm:$0xf]
      %v693 = vld [vmem:[%s387 + $0x4] sm:$0xf]
      %v694 = vld [vmem:[%s387 + $0x8] sm:$0xf]
      %v695 = vld [vmem:[%s387 + $0xc] sm:$0xf]
      %v696 = vld [vmem:[%s387 + $0x10] sm:$0xf]
      %v697 = vld [vmem:[%s387 + $0x14] sm:$0xf]
      %v698 = vld [vmem:[%s387 + $0x18] sm:$0xf]
      %v699 = vld [vmem:[%s387 + $0x1c] sm:$0xf]
      %v700 = vmax.bf16 %v692, 0
      %v701 = vmax.bf16 %v693, 0
      %v702 = vmax.bf16 %v694, 0
      %v703 = vmax.bf16 %v695, 0
      %v704 = vmax.bf16 %v696, 0
      %v705 = vmax.bf16 %v697, 0
      %v706 = vmax.bf16 %v698, 0
      %v707 = vmax.bf16 %v699, 0
      %v708 = vld [vmem:[%s393] sm:$0xf]
      %v709 = vld [vmem:[%s393 + $0x4] sm:$0xf]
      %v710 = vld [vmem:[%s393 + $0x8] sm:$0xf]
      %v711 = vld [vmem:[%s393 + $0xc] sm:$0xf]
      %v712 = vld [vmem:[%s393 + $0x10] sm:$0xf]
      %v713 = vld [vmem:[%s393 + $0x14] sm:$0xf]
      %v714 = vld [vmem:[%s393 + $0x18] sm:$0xf]
      %v715 = vld [vmem:[%s393 + $0x1c] sm:$0xf]
      %v716 = vmax.bf16 %v708, 0
      %v717 = vmax.bf16 %v709, 0
      %v718 = vmax.bf16 %v710, 0
      %v719 = vmax.bf16 %v711, 0
      %v720 = vmax.bf16 %v712, 0
      %v721 = vmax.bf16 %v713, 0
      %v722 = vmax.bf16 %v714, 0
      %v723 = vmax.bf16 %v715, 0
      %v732 = vunpack.c.l.b16 %v700
      %v733 = vunpack.c.l.b16 %v701
      %v734 = vunpack.c.l.b16 %v702
      %v735 = vunpack.c.l.b16 %v703
      %v736 = vunpack.c.l.b16 %v704
      %v737 = vunpack.c.l.b16 %v705
      %v738 = vunpack.c.l.b16 %v706
      %v739 = vunpack.c.l.b16 %v707
      %v740 = vpack.c.b16 %v733, %v732
      %v741 = vpack.c.b16 %v735, %v734
      %v742 = vpack.c.b16 %v737, %v736
      %v743 = vpack.c.b16 %v739, %v738
      %v756 = vunpack.c.l.b16 %v716
      %v757 = vunpack.c.l.b16 %v717
      %v758 = vunpack.c.l.b16 %v718
      %v759 = vunpack.c.l.b16 %v719
      %v760 = vunpack.c.l.b16 %v720
      %v761 = vunpack.c.l.b16 %v721
      %v762 = vunpack.c.l.b16 %v722
      %v763 = vunpack.c.l.b16 %v723
      %v764 = vpack.c.b16 %v757, %v756
      %v765 = vpack.c.b16 %v759, %v758
      %v766 = vpack.c.b16 %v761, %v760
      %v767 = vpack.c.b16 %v763, %v762
      %772 = vmatprep.subr.bf16.mxu0 0
      %773 = vmatpush1.bf16.msra.mxu0 %v583
      %774 = vmatprep.subr.bf16.mxu0 0
      %775 = vmatpush1.bf16.msra.mxu0 %v584
      %776 = vmatprep.subr.bf16.mxu0 0
      %777 = vmatpush1.bf16.msra.mxu0 %v585
      %778 = vmatprep.subr.bf16.mxu0 0
      %779 = vmatpush1.bf16.msra.mxu0 %v586
      %780 = vmatprep.subr.bf16.mxu0 0
      %781 = vmatpush1.bf16.msra.mxu0 %v587
      %782 = vmatprep.subr.bf16.mxu0 0
      %783 = vmatpush1.bf16.msra.mxu0 %v588
      %784 = vmatprep.subr.bf16.mxu0 0
      %785 = vmatpush1.bf16.msra.mxu0 %v589
      %786 = vmatprep.subr.bf16.mxu0 0
      %787 = vmatpush1.bf16.msra.mxu0 %v590
      %788 = vmatprep.subr.bf16.mxu0 0
      %789 = vmatpush1.bf16.msra.mxu0 %v591
      %790 = vmatprep.subr.bf16.mxu0 0
      %791 = vmatpush1.bf16.msra.mxu0 %v592
      %792 = vmatprep.subr.bf16.mxu0 0
      %793 = vmatpush1.bf16.msra.mxu0 %v593
      %794 = vmatprep.subr.bf16.mxu0 0
      %795 = vmatpush1.bf16.msra.mxu0 %v594
      %796 = vmatprep.subr.bf16.mxu0 0
      %797 = vmatpush1.bf16.msra.mxu0 %v595
      %798 = vmatprep.subr.bf16.mxu0 0
      %799 = vmatpush1.bf16.msra.mxu0 %v596
      %800 = vmatprep.subr.bf16.mxu0 0
      %801 = vmatpush1.bf16.msra.mxu0 %v597
      %802 = vmatprep.subr.bf16.mxu0 0
      %803 = vmatpush1.bf16.msra.mxu0 %v598
      %804 = vmatprep.mubr.bf16.mxu0 %v764
      %805 = vmatmul.mubr.bf16.gmra.mrb[0].mxu0 %v740
      %v806 = vpop.f32.mrb[0].mxu0
      %v807 = vadd.f32 %v517, %v806
      %v808 = vpop.f32.mrb[0].mxu0
      %v809 = vpop.f32.mrb[0].mxu0
      %v810 = vadd.f32 %v517, %v809
      %v811 = vpop.f32.mrb[0].mxu0
      %812 = vmatprep.mubr.bf16.mxu0 %v765
      %813 = vmatmul.mubr.bf16.gmra.mrb[0].mxu0 %v741
      %v814 = vpop.f32.mrb[0].mxu0
      %v815 = vadd.f32 %v517, %v814
      %v816 = vpop.f32.mrb[0].mxu0
      %v817 = vpop.f32.mrb[0].mxu0
      %v818 = vadd.f32 %v517, %v817
      %v819 = vpop.f32.mrb[0].mxu0
      %820 = vmatprep.mubr.bf16.mxu0 %v766
      %821 = vmatmul.mubr.bf16.gmra.mrb[0].mxu0 %v742
      %v822 = vpop.f32.mrb[0].mxu0
      %v823 = vadd.f32 %v517, %v822
      %v824 = vpop.f32.mrb[0].mxu0
      %v825 = vpop.f32.mrb[0].mxu0
      %v826 = vadd.f32 %v517, %v825
      %v827 = vpop.f32.mrb[0].mxu0
      %828 = vmatprep.mubr.bf16.mxu0 %v767
      %829 = vmatmul.mubr.bf16.gmra.mrb[0].mxu0 %v743
      %v830 = vpop.f32.mrb[0].mxu0
      %v831 = vadd.f32 %v517, %v830
      %v832 = vpop.f32.mrb[0].mxu0
      %v833 = vpop.f32.mrb[0].mxu0
      %v834 = vadd.f32 %v517, %v833
      %v835 = vpop.f32.mrb[0].mxu0
      %836 = vdwg.mxu0
      %v837 = vmax.f32 %v807, 0.0
      %v838 = vmax.f32 %v810, 0.0
      %v839 = vmax.f32 %v815, 0.0
      %v840 = vmax.f32 %v818, 0.0
      %v841 = vmax.f32 %v823, 0.0
      %v842 = vmax.f32 %v826, 0.0
      %v843 = vmax.f32 %v831, 0.0
      %v844 = vmax.f32 %v834, 0.0
      %v845 = vpack.c.bf16 %v838, %v837
      %v846 = vpack.c.bf16 %v840, %v839
      %v847 = vpack.c.bf16 %v842, %v841
      %v848 = vpack.c.bf16 %v844, %v843
      %v849 = vld [vmem:[%s5] sm:$0xf]
      %v850 = vld [vmem:[%s5 + $0x4] sm:$0xf]
      %v851 = vld [vmem:[%s6] sm:$0xf]
      %v852 = vld [vmem:[%s6 + $0x4] sm:$0xf]
      %v855 = vunpack.c.l.b16 %v851
      %v856 = vunpack.c.l.b16 %v852
      %v857 = vpack.c.b16 %v856, %v855
      %vm859 = vcmask 130048
      %v861 = vsel %vm859, %v845, 0
      %v864 = vsel %vm859, %v846, 0
      %v867 = vsel %vm859, %v847, 0
      %v870 = vsel %vm859, %v848, 0
      %872 = vmatprep.subr.bf16.mxu0 0
      %873 = vmatpush1.bf16.msra.mxu0 %v857
      %874 = vmatprep.subr.bf16.mxu0 0
      %875 = vmatpush1.bf16.msra.mxu0 0
      %876 = vmatprep.subr.bf16.mxu0 0
      %877 = vmatpush1.bf16.msra.mxu0 0
      %878 = vmatprep.subr.bf16.mxu0 0
      %879 = vmatpush1.bf16.msra.mxu0 0
      %880 = vmatprep.subr.bf16.mxu0 0
      %881 = vmatpush1.bf16.msra.mxu0 0
      %882 = vmatprep.subr.bf16.mxu0 0
      %883 = vmatpush1.bf16.msra.mxu0 0
      %884 = vmatprep.subr.bf16.mxu0 0
      %885 = vmatpush1.bf16.msra.mxu0 0
      %886 = vmatprep.subr.bf16.mxu0 0
      %887 = vmatpush1.bf16.msra.mxu0 0
      %888 = vmatprep.subr.bf16.mxu0 0
      %889 = vmatpush1.bf16.msra.mxu0 0
      %890 = vmatprep.subr.bf16.mxu0 0
      %891 = vmatpush1.bf16.msra.mxu0 0
      %892 = vmatprep.subr.bf16.mxu0 0
      %893 = vmatpush1.bf16.msra.mxu0 0
      %894 = vmatprep.subr.bf16.mxu0 0
      %895 = vmatpush1.bf16.msra.mxu0 0
      %896 = vmatprep.subr.bf16.mxu0 0
      %897 = vmatpush1.bf16.msra.mxu0 0
      %898 = vmatprep.subr.bf16.mxu0 0
      %899 = vmatpush1.bf16.msra.mxu0 0
      %900 = vmatprep.subr.bf16.mxu0 0
      %901 = vmatpush1.bf16.msra.mxu0 0
      %902 = vmatprep.subr.bf16.mxu0 0
      %903 = vmatpush1.bf16.msra.mxu0 0
      %904 = vmatprep.mubr.bf16.mxu0 0
      %905 = vmatmul.mubr.bf16.gmra.mrb[0].mxu0 %v861
      %v906 = vpop.f32.mrb[0].mxu0
      %v907 = vadd.f32 0.0, %v906
      %v908 = vpop.f32.mrb[0].mxu0
      %v909 = vpop.f32.mrb[0].mxu0
      %v910 = vadd.f32 0.0, %v909
      %v911 = vpop.f32.mrb[0].mxu0
      %912 = vmatprep.mubr.bf16.mxu0 0
      %913 = vmatmul.mubr.bf16.gmra.mrb[0].mxu0 %v864
      %v914 = vpop.f32.mrb[0].mxu0
      %v915 = vadd.f32 0.0, %v914
      %v916 = vpop.f32.mrb[0].mxu0
      %v917 = vpop.f32.mrb[0].mxu0
      %v918 = vadd.f32 0.0, %v917
      %v919 = vpop.f32.mrb[0].mxu0
      %920 = vmatprep.mubr.bf16.mxu0 0
      %921 = vmatmul.mubr.bf16.gmra.mrb[0].mxu0 %v867
      %v922 = vpop.f32.mrb[0].mxu0
      %v923 = vadd.f32 0.0, %v922
      %v924 = vpop.f32.mrb[0].mxu0
      %v925 = vpop.f32.mrb[0].mxu0
      %v926 = vadd.f32 0.0, %v925
      %v927 = vpop.f32.mrb[0].mxu0
      %928 = vmatprep.mubr.bf16.mxu0 0
      %929 = vmatmul.mubr.bf16.gmra.mrb[0].mxu0 %v870
      %v930 = vpop.f32.mrb[0].mxu0
      %v931 = vadd.f32 0.0, %v930
      %v932 = vpop.f32.mrb[0].mxu0
      %v933 = vpop.f32.mrb[0].mxu0
      %v934 = vadd.f32 0.0, %v933
      %v935 = vpop.f32.mrb[0].mxu0
      %936 = vdwg.mxu0
      %v939 = vunpack.c.l.b16 %v849
      %v940 = vunpack.c.l.b16 %v850
      %v941 = vpack.c.b16 %v940, %v939
      %v944 = vsel %vm859, %v688, 0
      %v947 = vsel %vm859, %v689, 0
      %v950 = vsel %vm859, %v690, 0
      %v953 = vsel %vm859, %v691, 0
      %955 = vmatprep.subr.bf16.mxu0 0
      %956 = vmatpush1.bf16.msra.mxu0 %v941
      %957 = vmatprep.subr.bf16.mxu0 0
      %958 = vmatpush1.bf16.msra.mxu0 0
      %959 = vmatprep.subr.bf16.mxu0 0
      %960 = vmatpush1.bf16.msra.mxu0 0
      %961 = vmatprep.subr.bf16.mxu0 0
      %962 = vmatpush1.bf16.msra.mxu0 0
      %963 = vmatprep.subr.bf16.mxu0 0
      %964 = vmatpush1.bf16.msra.mxu0 0
      %965 = vmatprep.subr.bf16.mxu0 0
      %966 = vmatpush1.bf16.msra.mxu0 0
      %967 = vmatprep.subr.bf16.mxu0 0
      %968 = vmatpush1.bf16.msra.mxu0 0
      %969 = vmatprep.subr.bf16.mxu0 0
      %970 = vmatpush1.bf16.msra.mxu0 0
      %971 = vmatprep.subr.bf16.mxu0 0
      %972 = vmatpush1.bf16.msra.mxu0 0
      %973 = vmatprep.subr.bf16.mxu0 0
      %974 = vmatpush1.bf16.msra.mxu0 0
      %975 = vmatprep.subr.bf16.mxu0 0
      %976 = vmatpush1.bf16.msra.mxu0 0
      %977 = vmatprep.subr.bf16.mxu0 0
      %978 = vmatpush1.bf16.msra.mxu0 0
      %979 = vmatprep.subr.bf16.mxu0 0
      %980 = vmatpush1.bf16.msra.mxu0 0
      %981 = vmatprep.subr.bf16.mxu0 0
      %982 = vmatpush1.bf16.msra.mxu0 0
      %983 = vmatprep.subr.bf16.mxu0 0
      %984 = vmatpush1.bf16.msra.mxu0 0
      %985 = vmatprep.subr.bf16.mxu0 0
      %986 = vmatpush1.bf16.msra.mxu0 0
      %987 = vmatprep.mubr.bf16.mxu0 0
      %988 = vmatmul.mubr.bf16.gmra.mrb[0].mxu0 %v944
      %v989 = vpop.f32.mrb[0].mxu0
      %v990 = vadd.f32 %v907, %v989
      %v991 = vpop.f32.mrb[0].mxu0
      %v992 = vpop.f32.mrb[0].mxu0
      %v993 = vadd.f32 %v910, %v992
      %v994 = vpop.f32.mrb[0].mxu0
      %995 = vmatprep.mubr.bf16.mxu0 0
      %996 = vmatmul.mubr.bf16.gmra.mrb[0].mxu0 %v947
      %v997 = vpop.f32.mrb[0].mxu0
      %v998 = vadd.f32 %v915, %v997
      %v999 = vpop.f32.mrb[0].mxu0
      %v1000 = vpop.f32.mrb[0].mxu0
      %v1001 = vadd.f32 %v918, %v1000
      %v1002 = vpop.f32.mrb[0].mxu0
      %1003 = vmatprep.mubr.bf16.mxu0 0
      %1004 = vmatmul.mubr.bf16.gmra.mrb[0].mxu0 %v950
      %v1005 = vpop.f32.mrb[0].mxu0
      %v1006 = vadd.f32 %v923, %v1005
      %v1007 = vpop.f32.mrb[0].mxu0
      %v1008 = vpop.f32.mrb[0].mxu0
      %v1009 = vadd.f32 %v926, %v1008
      %v1010 = vpop.f32.mrb[0].mxu0
      %1011 = vmatprep.mubr.bf16.mxu0 0
      %1012 = vmatmul.mubr.bf16.gmra.mrb[0].mxu0 %v953
      %v1013 = vpop.f32.mrb[0].mxu0
      %v1014 = vadd.f32 %v931, %v1013
      %v1015 = vpop.f32.mrb[0].mxu0
      %v1016 = vpop.f32.mrb[0].mxu0
      %v1017 = vadd.f32 %v934, %v1016
      %v1018 = vpop.f32.mrb[0].mxu0
      %1019 = vdwg.mxu0
      %v1020 = vld [vmem:[%s8] sm:$0x1]
      %v1022 = vlaneseq
      %v1023 = vshrl.u32 %v1022, 7
      %v1024 = vsub.s32 0, %v1023
      %v1025 = vrot.slane %v1020, %v1024
      %v1027 = vadd.f32 %v990, %v1025
      %v1028 = vadd.f32 %v993, %v1025
      %v1029 = vadd.f32 %v998, %v1025
      %v1030 = vadd.f32 %v1001, %v1025
      %v1031 = vadd.f32 %v1006, %v1025
      %v1032 = vadd.f32 %v1009, %v1025
      %v1033 = vadd.f32 %v1014, %v1025
      %v1034 = vadd.f32 %v1017, %v1025
      %v1035 = vpack.c.bf16 %v1028, %v1027
      %v1036 = vpack.c.bf16 %v1030, %v1029
      %v1037 = vpack.c.bf16 %v1032, %v1031
      %v1038 = vpack.c.bf16 %v1034, %v1033
      %v1043 = vunpack.c.l.b16 %v1035
      %v1044 = vunpack.c.h.b16 %v1035
      %v1045 = vunpack.c.l.b16 %v1036
      %v1046 = vunpack.c.h.b16 %v1036
      %v1047 = vunpack.c.l.b16 %v1037
      %v1048 = vunpack.c.h.b16 %v1037
      %v1049 = vunpack.c.l.b16 %v1038
      %v1050 = vunpack.c.h.b16 %v1038
      %v1051 = vpack.c.b16 %v1043, %v1043
      %v1052 = vpack.c.b16 %v1044, %v1044
      %v1053 = vpack.c.b16 %v1045, %v1045
      %v1054 = vpack.c.b16 %v1046, %v1046
      %v1055 = vpack.c.b16 %v1047, %v1047
      %v1056 = vpack.c.b16 %v1048, %v1048
      %v1057 = vpack.c.b16 %v1049, %v1049
      %v1058 = vpack.c.b16 %v1050, %v1050
      %1067 = vst [vmem:[%s398] sm:$0xf] %v1051
      %1068 = vst [vmem:[%s398 + $0x4] sm:$0xf] %v1052
      %1069 = vst [vmem:[%s398 + $0x8] sm:$0xf] %v1053
      %1070 = vst [vmem:[%s398 + $0xc] sm:$0xf] %v1054
      %1071 = vst [vmem:[%s398 + $0x10] sm:$0xf] %v1055
      %1072 = vst [vmem:[%s398 + $0x14] sm:$0xf] %v1056
      %1073 = vst [vmem:[%s398 + $0x18] sm:$0xf] %v1057
      %1074 = vst [vmem:[%s398 + $0x1c] sm:$0xf] %v1058
      %p1075 = scmp.lt.s32.totalorder %s20, 1
      %s1076 = scalar_select %p1075, %s20, 1
      %s1077 = smul.addr %s1076, 8
      %s1078 = smul.addr %s1077, 4
      %s1079 = scalar_lea.vmem %s9, %s1078
      // Predicated region
      $region57: #{cnn_forward.7} parent=55 // pred_check
        %p1080 = pneg %p247
      $region58: #{cnn_forward.7} parent=55 // pred_check_branch
        %1082 = sbr.rel (%p1080) target = $region60
      $region59: #{cnn_forward.7} parent=55 // pred_region
        _
      $region60: #{cnn_forward.7} parent=55 // pred_fallthru
        _
    $region56: #{cnn_forward.7} parent=5 // pred_fallthru
      _
    %p1083 = scmp.le.s32.totalorder 2, %s15
    // Predicated region
    $region61: #{cnn_forward.7} parent=5 // pred_check
      %p1084 = pneg %p1083
    $region62: #{cnn_forward.7} parent=5 // pred_check_branch
      %1086 = sbr.rel (%p1084) target = $region64
    $region63: #{cnn_forward.7} parent=5 // pred_region
      %s1087 = ssub.s32 %s15, 2
      // Predicated region
      $region65: #{cnn_forward.7} parent=63 // pred_check
        %p1088 = pneg %p253
      $region66: #{cnn_forward.7} parent=63 // pred_check_branch
        %1090 = sbr.rel (%p1088) target = $region68
      $region67: #{cnn_forward.7} parent=63 // pred_region
        %p1091 = scmp.lt.s32.totalorder %s21, 1
        %s1092 = scalar_select %p1091, %s21, 1
        %s1093 = smul.addr %s1092, 8
        %s1094 = smul.addr %s1093, 4
        %s1095 = scalar_lea.vmem %s9, %s1094
      $region68: #{cnn_forward.7} parent=63 // pred_fallthru
        _
    $region64: #{cnn_forward.7} parent=5 // pred_fallthru
      _
  $region6: #{cnn_forward.7} parent=0 // loop_footer
    %s19 = sadd.s32 1, %s15
  $region7: #{cnn_forward.7} parent=0 // loop_footer_branch
    %14 = sbr.rel target = $region3
  $region8: #{cnn_forward.7} parent=0 // loop_exit
    _

// kernel: cnn_forward.6
$region0: #{cnn_forward.6}
  #allocation0 [shape = 'u32[]', space=smem, size = 0x4, offset = 0x4, fixed_abs, tag = 'smem constant byte address 0x4 - core index']
  #allocation1 [shape = 'u32[144,128]{1,0:T(1,128)}', space=vmem, size = 0x12000, scoped, tag = 'internal scratch']
  %s0 = inlined_call_operand.vmem [shape: bf16[512,128], index: 0, kind: input, shape index: {}, may-alias: {0,1}]
  %s1 = inlined_call_operand.vmem [shape: bf16[512,128], index: 1, kind: input, shape index: {}, may-alias: {0,1}]
  %s2 = inlined_call_operand.vmem [shape: bf16[256,128], index: 2, kind: input, shape index: {}]
  %s3 = inlined_call_operand.vmem [shape: f32[1,128], index: 3, kind: input, shape index: {}]
  %s4 = inlined_call_operand.vmem [shape: bf16[512,128], index: 4, kind: output, shape index: {}]
  %s5 = sld [smem:[#allocation0]]
  $region49: #{cnn_forward.6} parent=0
    _
  %s7 = ssub.s32 1, %s5
  %s8 = scalar_select 0, %s7, %s5
  loop: start=0, step=1, limit=4
  $region2: #{cnn_forward.6} parent=0 // loop_pre_header
    _
  $region3: #{cnn_forward.6} parent=0 // loop_header
    %s10 = sphi 0, %s14
    %p11 = scmp.ge.s32.totalorder %s10, 4
    %s20 = sphi 0, %s22
    %s23 = sphi 0, %s20
    %s24 = sphi 0, %s23
    %s40 = sphi 0, %s24
    %s46 = sphi 0, %s48
    %s49 = sphi 0, %s46
    %s50 = sphi 0, %s49
    %s66 = sphi 0, %s50
    %s70 = sphi 0, %s70
    %s72 = sphi 0, %s70
    %s73 = sphi 0, %s72
    %s87 = sphi 0, %s73
    %s91 = sphi 0, %s91
    %s93 = sphi 0, %s91
    %s94 = sphi 0, %s93
    %s108 = sphi 0, %s94
    %s114 = sphi 0, %s116
    %s117 = sphi 0, %s114
    %s118 = sphi 0, %s117
    %s134 = sphi 0, %s118
  $region4: #{cnn_forward.6} parent=0 // loop_header_branch
    %13 = sbr.rel (%p11) target = $region8
  $region5: #{cnn_forward.6} parent=0 // loop_body
    %s15 = ssub.s32 %s10, 1
    %s16 = ssub.s32 %s10, 2
    %s17 = sadd.s32 %s10, 1
    %s18 = ssub.s32 %s10, %s17
    %p19 = scmp.eq.s32.totalorder %s18, 0
    %s21 = sadd.s32 %s20, 1
    %s22 = scalar_select %p19, %s20, %s21
    %p25 = pneg %p19
    %p26 = scmp.eq.s32.totalorder %s10, 1
    %p27 = por %p25, %p26
    %p28 = scmp.ne.s32.totalorder %s20, %s23
    %p29 = scmp.eq.s32.totalorder %s10, 0
    %p30 = por %p28, %p29
    %p31 = scmp.ne.s32.totalorder %s20, %s23
    %p32 = scmp.eq.s32.totalorder %s15, 1
    %p33 = por %p31, %p32
    %p34 = scmp.ne.s32.totalorder %s23, %s24
    %p35 = scmp.eq.s32.totalorder %s15, 0
    %p36 = por %p34, %p35
    %p37 = scmp.ne.s32.totalorder %s23, %s24
    %p38 = scmp.eq.s32.totalorder %s16, 1
    %p39 = por %p37, %p38
    %p41 = scmp.ne.s32.totalorder %s24, %s40
    %p42 = scmp.eq.s32.totalorder %s16, 0
    %p43 = por %p41, %p42
    %s44 = ssub.s32 %s10, %s17
    %p45 = scmp.eq.s32.totalorder %s44, 0
    %s47 = sadd.s32 %s46, 1
    %s48 = scalar_select %p45, %s46, %s47
    %p51 = pneg %p45
    %p52 = scmp.eq.s32.totalorder %s10, 1
    %p53 = por %p51, %p52
    %p54 = scmp.ne.s32.totalorder %s46, %s49
    %p55 = scmp.eq.s32.totalorder %s10, 0
    %p56 = por %p54, %p55
    %p57 = scmp.ne.s32.totalorder %s46, %s49
    %p58 = scmp.eq.s32.totalorder %s15, 1
    %p59 = por %p57, %p58
    %p60 = scmp.ne.s32.totalorder %s49, %s50
    %p61 = scmp.eq.s32.totalorder %s15, 0
    %p62 = por %p60, %p61
    %p63 = scmp.ne.s32.totalorder %s49, %s50
    %p64 = scmp.eq.s32.totalorder %s16, 1
    %p65 = por %p63, %p64
    %p67 = scmp.ne.s32.totalorder %s50, %s66
    %p68 = scmp.eq.s32.totalorder %s16, 0
    %p69 = por %p67, %p68
    %s71 = sadd.s32 %s70, 1
    %p74 = scmp.eq.s32.totalorder %s10, 1
    %p75 = scmp.ne.s32.totalorder %s70, %s72
    %p76 = scmp.eq.s32.totalorder %s10, 0
    %p77 = por %p75, %p76
    %p78 = scmp.ne.s32.totalorder %s70, %s72
    %p79 = scmp.eq.s32.totalorder %s15, 1
    %p80 = por %p78, %p79
    %p81 = scmp.ne.s32.totalorder %s72, %s73
    %p82 = scmp.eq.s32.totalorder %s15, 0
    %p83 = por %p81, %p82
    %p84 = scmp.ne.s32.totalorder %s72, %s73
    %p85 = scmp.eq.s32.totalorder %s16, 1
    %p86 = por %p84, %p85
    %p88 = scmp.ne.s32.totalorder %s73, %s87
    %p89 = scmp.eq.s32.totalorder %s16, 0
    %p90 = por %p88, %p89
    %s92 = sadd.s32 %s91, 1
    %p95 = scmp.eq.s32.totalorder %s10, 1
    %p96 = scmp.ne.s32.totalorder %s91, %s93
    %p97 = scmp.eq.s32.totalorder %s10, 0
    %p98 = por %p96, %p97
    %p99 = scmp.ne.s32.totalorder %s91, %s93
    %p100 = scmp.eq.s32.totalorder %s15, 1
    %p101 = por %p99, %p100
    %p102 = scmp.ne.s32.totalorder %s93, %s94
    %p103 = scmp.eq.s32.totalorder %s15, 0
    %p104 = por %p102, %p103
    %p105 = scmp.ne.s32.totalorder %s93, %s94
    %p106 = scmp.eq.s32.totalorder %s16, 1
    %p107 = por %p105, %p106
    %p109 = scmp.ne.s32.totalorder %s94, %s108
    %p110 = scmp.eq.s32.totalorder %s16, 0
    %p111 = por %p109, %p110
    %s112 = ssub.s32 %s10, %s17
    %p113 = scmp.eq.s32.totalorder %s112, 0
    %s115 = sadd.s32 %s114, 1
    %s116 = scalar_select %p113, %s114, %s115
    %p119 = pneg %p113
    %p120 = scmp.eq.s32.totalorder %s10, 1
    %p121 = por %p119, %p120
    %p122 = scmp.ne.s32.totalorder %s114, %s117
    %p123 = scmp.eq.s32.totalorder %s10, 0
    %p124 = por %p122, %p123
    %p125 = scmp.ne.s32.totalorder %s114, %s117
    %p126 = scmp.eq.s32.totalorder %s15, 1
    %p127 = por %p125, %p126
    %p128 = scmp.ne.s32.totalorder %s117, %s118
    %p129 = scmp.eq.s32.totalorder %s15, 0
    %p130 = por %p128, %p129
    %p131 = scmp.ne.s32.totalorder %s117, %s118
    %p132 = scmp.eq.s32.totalorder %s16, 1
    %p133 = por %p131, %p132
    %p135 = scmp.ne.s32.totalorder %s118, %s134
    %p136 = scmp.eq.s32.totalorder %s16, 0
    %p137 = por %p135, %p136
    %p138 = scmp.le.s32.totalorder 1, %s10
    %p139 = scmp.lt.s32.totalorder %s10, 3
    %p140 = pnand %p138, %p139
    %p141 = pneg %p140
    // Predicated region
    $region9: #{cnn_forward.6} parent=5 // pred_check
      _
    $region10: #{cnn_forward.6} parent=5 // pred_check_branch
      %143 = sbr.rel (%p140) target = $region12
    $region11: #{cnn_forward.6} parent=5 // pred_region
      %s144 = ssub.s32 %s10, 1
      // Predicated region
      $region13: #{cnn_forward.6} parent=11 // pred_check
        %p145 = pneg %p83
      $region14: #{cnn_forward.6} parent=11 // pred_check_branch
        %147 = sbr.rel (%p145) target = $region16
      $region15: #{cnn_forward.6} parent=11 // pred_region
        _
      $region16: #{cnn_forward.6} parent=11 // pred_fallthru
        _
      // Predicated region
      $region17: #{cnn_forward.6} parent=11 // pred_check
        %p148 = pneg %p104
      $region18: #{cnn_forward.6} parent=11 // pred_check_branch
        %150 = sbr.rel (%p148) target = $region20
      $region19: #{cnn_forward.6} parent=11 // pred_region
        _
      $region20: #{cnn_forward.6} parent=11 // pred_fallthru
        _
    $region12: #{cnn_forward.6} parent=5 // pred_fallthru
      _
    %p151 = scmp.lt.s32.totalorder %s10, 2
    // Predicated region
    $region21: #{cnn_forward.6} parent=5 // pred_check
      %p152 = pneg %p151
    $region22: #{cnn_forward.6} parent=5 // pred_check_branch
      %154 = sbr.rel (%p152) target = $region24
    $region23: #{cnn_forward.6} parent=5 // pred_region
      // Predicated region
      $region25: #{cnn_forward.6} parent=23 // pred_check
        %p155 = pneg %p30
      $region26: #{cnn_forward.6} parent=23 // pred_check_branch
        %157 = sbr.rel (%p155) target = $region28
      $region27: #{cnn_forward.6} parent=23 // pred_region
        %s158 = smul.u32 32, %s10
        %p159 = scmp.lt.s32.totalorder %s158, 63
        %s160 = scalar_select %p159, %s158, 63
        %s161 = smul.addr %s160, 4
        %s162 = scalar_lea.vmem %s0, %s161
        %s163 = smul.u32 32, %s10
      $region28: #{cnn_forward.6} parent=23 // pred_fallthru
        _
      // Predicated region
      $region29: #{cnn_forward.6} parent=23 // pred_check
        %p164 = pneg %p56
      $region30: #{cnn_forward.6} parent=23 // pred_check_branch
        %166 = sbr.rel (%p164) target = $region32
      $region31: #{cnn_forward.6} parent=23 // pred_region
        %s167 = smul.u32 32, %s10
        %p168 = scmp.lt.s32.totalorder %s167, 63
        %s169 = scalar_select %p168, %s167, 63
        %s170 = smul.addr %s169, 4
        %s171 = scalar_lea.vmem %s1, %s170
        %s172 = smul.u32 32, %s10
      $region32: #{cnn_forward.6} parent=23 // pred_fallthru
        _
    $region24: #{cnn_forward.6} parent=5 // pred_fallthru
      _
    %p173 = scmp.le.s32.totalorder 1, %s10
    %p174 = scmp.lt.s32.totalorder %s10, 3
    %p175 = pnand %p173, %p174
    %p176 = pneg %p175
    // Predicated region
    $region33: #{cnn_forward.6} parent=5 // pred_check
      _
    $region34: #{cnn_forward.6} parent=5 // pred_check_branch
      %178 = sbr.rel (%p175) target = $region36
    $region35: #{cnn_forward.6} parent=5 // pred_region
      %s179 = ssub.s32 %s10, 1
      %s180 = smul.u32 32, %s15
      %p181 = scmp.lt.s32.totalorder %s180, 63
      %s182 = scalar_select %p181, %s180, 63
      %s183 = smul.addr %s182, 4
      %s184 = scalar_lea.vmem %s0, %s183
      %p185 = pneg %p36
      %p186 = pneg %p33
      %s187 = smul.u32 32, %s15
      %p188 = scmp.lt.s32.totalorder %s187, 63
      %s189 = scalar_select %p188, %s187, 63
      %s190 = smul.addr %s189, 4
      %s191 = scalar_lea.vmem %s1, %s190
      %p192 = pneg %p62
      %p193 = pneg %p59
      %p194 = pneg %p83
      %p195 = pneg %p80
      %p196 = pneg %p104
      %p197 = pneg %p101
      %p198 = pneg %p130
      %p199 = pneg %p127
      %s200 = smul.u32 32, %s15
      %p201 = scmp.lt.s32.totalorder %s200, 63
      %s202 = scalar_select %p201, %s200, 63
      %s203 = smul.addr %s202, 4
      %s204 = scalar_lea.vmem %s4, %s203
      %s205 = smul.u32 32, %s15
      %p206 = scmp.lt.s32.totalorder %s205, 63
      %s207 = scalar_select %p206, %s205, 63
      %s208 = smul.addr %s207, 4
      %s209 = scalar_lea.vmem %s0, %s208
      %s210 = smul.u32 32, %s15
      %s211 = smul.u32 32, %s15
      %p212 = scmp.lt.s32.totalorder %s211, 63
      %s213 = scalar_select %p212, %s211, 63
      %s214 = smul.addr %s213, 4
      %s215 = scalar_lea.vmem %s1, %s214
      %s216 = smul.u32 32, %s15
      %s217 = smul.u32 32, %s15
      %p218 = scmp.lt.s32.totalorder %s217, 63
      %s219 = scalar_select %p218, %s217, 63
      %s220 = smul.addr %s219, 4
      %s221 = scalar_lea.vmem %s4, %s220
      %s222 = smul.u32 32, %s15
      %v224 = vld [vmem:[%s209] sm:$0xf]
      %v225 = vld [vmem:[%s209 + $0x4] sm:$0xf]
      %v226 = vld [vmem:[%s209 + $0x8] sm:$0xf]
      %v227 = vld [vmem:[%s209 + $0xc] sm:$0xf]
      %v228 = vld [vmem:[%s209 + $0x10] sm:$0xf]
      %v229 = vld [vmem:[%s209 + $0x14] sm:$0xf]
      %v230 = vld [vmem:[%s209 + $0x18] sm:$0xf]
      %v231 = vld [vmem:[%s209 + $0x1c] sm:$0xf]
      %v232 = vld [vmem:[%s209 + $0x20] sm:$0xf]
      %v233 = vld [vmem:[%s209 + $0x24] sm:$0xf]
      %v234 = vld [vmem:[%s209 + $0x28] sm:$0xf]
      %v235 = vld [vmem:[%s209 + $0x2c] sm:$0xf]
      %v236 = vld [vmem:[%s209 + $0x30] sm:$0xf]
      %v237 = vld [vmem:[%s209 + $0x34] sm:$0xf]
      %v238 = vld [vmem:[%s209 + $0x38] sm:$0xf]
      %v239 = vld [vmem:[%s209 + $0x3c] sm:$0xf]
      %v240 = vld [vmem:[%s209 + $0x40] sm:$0xf]
      %v241 = vld [vmem:[%s209 + $0x44] sm:$0xf]
      %v242 = vld [vmem:[%s209 + $0x48] sm:$0xf]
      %v243 = vld [vmem:[%s209 + $0x4c] sm:$0xf]
      %v244 = vld [vmem:[%s209 + $0x50] sm:$0xf]
      %v245 = vld [vmem:[%s209 + $0x54] sm:$0xf]
      %v246 = vld [vmem:[%s209 + $0x58] sm:$0xf]
      %v247 = vld [vmem:[%s209 + $0x5c] sm:$0xf]
      %v248 = vld [vmem:[%s209 + $0x60] sm:$0xf]
      %v249 = vld [vmem:[%s209 + $0x64] sm:$0xf]
      %v250 = vld [vmem:[%s209 + $0x68] sm:$0xf]
      %v251 = vld [vmem:[%s209 + $0x6c] sm:$0xf]
      %v252 = vld [vmem:[%s209 + $0x70] sm:$0xf]
      %v253 = vld [vmem:[%s209 + $0x74] sm:$0xf]
      %v254 = vld [vmem:[%s209 + $0x78] sm:$0xf]
      %v255 = vld [vmem:[%s209 + $0x7c] sm:$0xf]
      %v256 = vmax.bf16 %v224, 0
      %v257 = vmax.bf16 %v225, 0
      %v258 = vmax.bf16 %v226, 0
      %v259 = vmax.bf16 %v227, 0
      %v260 = vmax.bf16 %v228, 0
      %v261 = vmax.bf16 %v229, 0
      %v262 = vmax.bf16 %v230, 0
      %v263 = vmax.bf16 %v231, 0
      %v264 = vmax.bf16 %v232, 0
      %v265 = vmax.bf16 %v233, 0
      %v266 = vmax.bf16 %v234, 0
      %v267 = vmax.bf16 %v235, 0
      %v268 = vmax.bf16 %v236, 0
      %v269 = vmax.bf16 %v237, 0
      %v270 = vmax.bf16 %v238, 0
      %v271 = vmax.bf16 %v239, 0
      %v272 = vmax.bf16 %v240, 0
      %v273 = vmax.bf16 %v241, 0
      %v274 = vmax.bf16 %v242, 0
      %v275 = vmax.bf16 %v243, 0
      %v276 = vmax.bf16 %v244, 0
      %v277 = vmax.bf16 %v245, 0
      %v278 = vmax.bf16 %v246, 0
      %v279 = vmax.bf16 %v247, 0
      %v280 = vmax.bf16 %v248, 0
      %v281 = vmax.bf16 %v249, 0
      %v282 = vmax.bf16 %v250, 0
      %v283 = vmax.bf16 %v251, 0
      %v284 = vmax.bf16 %v252, 0
      %v285 = vmax.bf16 %v253, 0
      %v286 = vmax.bf16 %v254, 0
      %v287 = vmax.bf16 %v255, 0
      %v288 = vld [vmem:[%s215] sm:$0xf]
      %v289 = vld [vmem:[%s215 + $0x4] sm:$0xf]
      %v290 = vld [vmem:[%s215 + $0x8] sm:$0xf]
      %v291 = vld [vmem:[%s215 + $0xc] sm:$0xf]
      %v292 = vld [vmem:[%s215 + $0x10] sm:$0xf]
      %v293 = vld [vmem:[%s215 + $0x14] sm:$0xf]
      %v294 = vld [vmem:[%s215 + $0x18] sm:$0xf]
      %v295 = vld [vmem:[%s215 + $0x1c] sm:$0xf]
      %v296 = vld [vmem:[%s215 + $0x20] sm:$0xf]
      %v297 = vld [vmem:[%s215 + $0x24] sm:$0xf]
      %v298 = vld [vmem:[%s215 + $0x28] sm:$0xf]
      %v299 = vld [vmem:[%s215 + $0x2c] sm:$0xf]
      %v300 = vld [vmem:[%s215 + $0x30] sm:$0xf]
      %v301 = vld [vmem:[%s215 + $0x34] sm:$0xf]
      %v302 = vld [vmem:[%s215 + $0x38] sm:$0xf]
      %v303 = vld [vmem:[%s215 + $0x3c] sm:$0xf]
      %v304 = vld [vmem:[%s215 + $0x40] sm:$0xf]
      %v305 = vld [vmem:[%s215 + $0x44] sm:$0xf]
      %v306 = vld [vmem:[%s215 + $0x48] sm:$0xf]
      %v307 = vld [vmem:[%s215 + $0x4c] sm:$0xf]
      %v308 = vld [vmem:[%s215 + $0x50] sm:$0xf]
      %v309 = vld [vmem:[%s215 + $0x54] sm:$0xf]
      %v310 = vld [vmem:[%s215 + $0x58] sm:$0xf]
      %v311 = vld [vmem:[%s215 + $0x5c] sm:$0xf]
      %v312 = vld [vmem:[%s215 + $0x60] sm:$0xf]
      %v313 = vld [vmem:[%s215 + $0x64] sm:$0xf]
      %v314 = vld [vmem:[%s215 + $0x68] sm:$0xf]
      %v315 = vld [vmem:[%s215 + $0x6c] sm:$0xf]
      %v316 = vld [vmem:[%s215 + $0x70] sm:$0xf]
      %v317 = vld [vmem:[%s215 + $0x74] sm:$0xf]
      %v318 = vld [vmem:[%s215 + $0x78] sm:$0xf]
      %v319 = vld [vmem:[%s215 + $0x7c] sm:$0xf]
      %v320 = vmax.bf16 %v288, 0
      %v321 = vmax.bf16 %v289, 0
      %v322 = vmax.bf16 %v290, 0
      %v323 = vmax.bf16 %v291, 0
      %v324 = vmax.bf16 %v292, 0
      %v325 = vmax.bf16 %v293, 0
      %v326 = vmax.bf16 %v294, 0
      %v327 = vmax.bf16 %v295, 0
      %v328 = vmax.bf16 %v296, 0
      %v329 = vmax.bf16 %v297, 0
      %v330 = vmax.bf16 %v298, 0
      %v331 = vmax.bf16 %v299, 0
      %v332 = vmax.bf16 %v300, 0
      %v333 = vmax.bf16 %v301, 0
      %v334 = vmax.bf16 %v302, 0
      %v335 = vmax.bf16 %v303, 0
      %v336 = vmax.bf16 %v304, 0
      %v337 = vmax.bf16 %v305, 0
      %v338 = vmax.bf16 %v306, 0
      %v339 = vmax.bf16 %v307, 0
      %v340 = vmax.bf16 %v308, 0
      %v341 = vmax.bf16 %v309, 0
      %v342 = vmax.bf16 %v310, 0
      %v343 = vmax.bf16 %v311, 0
      %v344 = vmax.bf16 %v312, 0
      %v345 = vmax.bf16 %v313, 0
      %v346 = vmax.bf16 %v314, 0
      %v347 = vmax.bf16 %v315, 0
      %v348 = vmax.bf16 %v316, 0
      %v349 = vmax.bf16 %v317, 0
      %v350 = vmax.bf16 %v318, 0
      %v351 = vmax.bf16 %v319, 0
      %v384 = vunpack.c.l.b16 %v256
      %v385 = vunpack.c.l.b16 %v257
      %v386 = vunpack.c.l.b16 %v258
      %v387 = vunpack.c.l.b16 %v259
      %v388 = vunpack.c.l.b16 %v260
      %v389 = vunpack.c.l.b16 %v261
      %v390 = vunpack.c.l.b16 %v262
      %v391 = vunpack.c.l.b16 %v263
      %v392 = vunpack.c.l.b16 %v264
      %v393 = vunpack.c.l.b16 %v265
      %v394 = vunpack.c.l.b16 %v266
      %v395 = vunpack.c.l.b16 %v267
      %v396 = vunpack.c.l.b16 %v268
      %v397 = vunpack.c.l.b16 %v269
      %v398 = vunpack.c.l.b16 %v270
      %v399 = vunpack.c.l.b16 %v271
      %v400 = vunpack.c.l.b16 %v272
      %v401 = vunpack.c.l.b16 %v273
      %v402 = vunpack.c.l.b16 %v274
      %v403 = vunpack.c.l.b16 %v275
      %v404 = vunpack.c.l.b16 %v276
      %v405 = vunpack.c.l.b16 %v277
      %v406 = vunpack.c.l.b16 %v278
      %v407 = vunpack.c.l.b16 %v279
      %v408 = vunpack.c.l.b16 %v280
      %v409 = vunpack.c.l.b16 %v281
      %v410 = vunpack.c.l.b16 %v282
      %v411 = vunpack.c.l.b16 %v283
      %v412 = vunpack.c.l.b16 %v284
      %v413 = vunpack.c.l.b16 %v285
      %v414 = vunpack.c.l.b16 %v286
      %v415 = vunpack.c.l.b16 %v287
      %v416 = vpack.c.b16 %v385, %v384
      %v417 = vpack.c.b16 %v387, %v386
      %v418 = vpack.c.b16 %v389, %v388
      %v419 = vpack.c.b16 %v391, %v390
      %v420 = vpack.c.b16 %v393, %v392
      %v421 = vpack.c.b16 %v395, %v394
      %v422 = vpack.c.b16 %v397, %v396
      %v423 = vpack.c.b16 %v399, %v398
      %v424 = vpack.c.b16 %v401, %v400
      %v425 = vpack.c.b16 %v403, %v402
      %v426 = vpack.c.b16 %v405, %v404
      %v427 = vpack.c.b16 %v407, %v406
      %v428 = vpack.c.b16 %v409, %v408
      %v429 = vpack.c.b16 %v411, %v410
      %v430 = vpack.c.b16 %v413, %v412
      %v431 = vpack.c.b16 %v415, %v414
      %v480 = vunpack.c.l.b16 %v320
      %v481 = vunpack.c.l.b16 %v321
      %v482 = vunpack.c.l.b16 %v322
      %v483 = vunpack.c.l.b16 %v323
      %v484 = vunpack.c.l.b16 %v324
      %v485 = vunpack.c.l.b16 %v325
      %v486 = vunpack.c.l.b16 %v326
      %v487 = vunpack.c.l.b16 %v327
      %v488 = vunpack.c.l.b16 %v328
      %v489 = vunpack.c.l.b16 %v329
      %v490 = vunpack.c.l.b16 %v330
      %v491 = vunpack.c.l.b16 %v331
      %v492 = vunpack.c.l.b16 %v332
      %v493 = vunpack.c.l.b16 %v333
      %v494 = vunpack.c.l.b16 %v334
      %v495 = vunpack.c.l.b16 %v335
      %v496 = vunpack.c.l.b16 %v336
      %v497 = vunpack.c.l.b16 %v337
      %v498 = vunpack.c.l.b16 %v338
      %v499 = vunpack.c.l.b16 %v339
      %v500 = vunpack.c.l.b16 %v340
      %v501 = vunpack.c.l.b16 %v341
      %v502 = vunpack.c.l.b16 %v342
      %v503 = vunpack.c.l.b16 %v343
      %v504 = vunpack.c.l.b16 %v344
      %v505 = vunpack.c.l.b16 %v345
      %v506 = vunpack.c.l.b16 %v346
      %v507 = vunpack.c.l.b16 %v347
      %v508 = vunpack.c.l.b16 %v348
      %v509 = vunpack.c.l.b16 %v349
      %v510 = vunpack.c.l.b16 %v350
      %v511 = vunpack.c.l.b16 %v351
      %v512 = vpack.c.b16 %v481, %v480
      %v513 = vpack.c.b16 %v483, %v482
      %v514 = vpack.c.b16 %v485, %v484
      %v515 = vpack.c.b16 %v487, %v486
      %v516 = vpack.c.b16 %v489, %v488
      %v517 = vpack.c.b16 %v491, %v490
      %v518 = vpack.c.b16 %v493, %v492
      %v519 = vpack.c.b16 %v495, %v494
      %v520 = vpack.c.b16 %v497, %v496
      %v521 = vpack.c.b16 %v499, %v498
      %v522 = vpack.c.b16 %v501, %v500
      %v523 = vpack.c.b16 %v503, %v502
      %v524 = vpack.c.b16 %v505, %v504
      %v525 = vpack.c.b16 %v507, %v506
      %v526 = vpack.c.b16 %v509, %v508
      %v527 = vpack.c.b16 %v511, %v510
      %v544 = vld [vmem:[%s2] sm:$0xf]
      %v545 = vld [vmem:[%s2 + $0x4] sm:$0xf]
      %v546 = vld [vmem:[%s2 + $0x8] sm:$0xf]
      %v547 = vld [vmem:[%s2 + $0xc] sm:$0xf]
      %v548 = vld [vmem:[%s2 + $0x10] sm:$0xf]
      %v549 = vld [vmem:[%s2 + $0x14] sm:$0xf]
      %v550 = vld [vmem:[%s2 + $0x18] sm:$0xf]
      %v551 = vld [vmem:[%s2 + $0x1c] sm:$0xf]
      %v552 = vld [vmem:[%s2 + $0x20] sm:$0xf]
      %v553 = vld [vmem:[%s2 + $0x24] sm:$0xf]
      %v554 = vld [vmem:[%s2 + $0x28] sm:$0xf]
      %v555 = vld [vmem:[%s2 + $0x2c] sm:$0xf]
      %v556 = vld [vmem:[%s2 + $0x30] sm:$0xf]
      %v557 = vld [vmem:[%s2 + $0x34] sm:$0xf]
      %v558 = vld [vmem:[%s2 + $0x38] sm:$0xf]
      %v559 = vld [vmem:[%s2 + $0x3c] sm:$0xf]
      %v560 = vld [vmem:[%s2 + $0x40] sm:$0xf]
      %v561 = vld [vmem:[%s2 + $0x44] sm:$0xf]
      %v562 = vld [vmem:[%s2 + $0x48] sm:$0xf]
      %v563 = vld [vmem:[%s2 + $0x4c] sm:$0xf]
      %v564 = vld [vmem:[%s2 + $0x50] sm:$0xf]
      %v565 = vld [vmem:[%s2 + $0x54] sm:$0xf]
      %v566 = vld [vmem:[%s2 + $0x58] sm:$0xf]
      %v567 = vld [vmem:[%s2 + $0x5c] sm:$0xf]
      %v568 = vld [vmem:[%s2 + $0x60] sm:$0xf]
      %v569 = vld [vmem:[%s2 + $0x64] sm:$0xf]
      %v570 = vld [vmem:[%s2 + $0x68] sm:$0xf]
      %v571 = vld [vmem:[%s2 + $0x6c] sm:$0xf]
      %v572 = vld [vmem:[%s2 + $0x70] sm:$0xf]
      %v573 = vld [vmem:[%s2 + $0x74] sm:$0xf]
      %v574 = vld [vmem:[%s2 + $0x78] sm:$0xf]
      %v575 = vld [vmem:[%s2 + $0x7c] sm:$0xf]
      %v576 = vld [vmem:[%s3] sm:$0x1]
      %v578 = vlaneseq
      %v579 = vshrl.u32 %v578, 7
      %v580 = vsub.s32 0, %v579
      %v581 = vrot.slane %v576, %v580
      %v615 = vunpack.c.l.b16 %v544
      %v616 = vunpack.c.l.b16 %v545
      %v617 = vunpack.c.l.b16 %v546
      %v618 = vunpack.c.l.b16 %v547
      %v619 = vunpack.c.l.b16 %v548
      %v620 = vunpack.c.l.b16 %v549
      %v621 = vunpack.c.l.b16 %v550
      %v622 = vunpack.c.l.b16 %v551
      %v623 = vunpack.c.l.b16 %v552
      %v624 = vunpack.c.l.b16 %v553
      %v625 = vunpack.c.l.b16 %v554
      %v626 = vunpack.c.l.b16 %v555
      %v627 = vunpack.c.l.b16 %v556
      %v628 = vunpack.c.l.b16 %v557
      %v629 = vunpack.c.l.b16 %v558
      %v630 = vunpack.c.l.b16 %v559
      %v631 = vunpack.c.l.b16 %v560
      %v632 = vunpack.c.l.b16 %v561
      %v633 = vunpack.c.l.b16 %v562
      %v634 = vunpack.c.l.b16 %v563
      %v635 = vunpack.c.l.b16 %v564
      %v636 = vunpack.c.l.b16 %v565
      %v637 = vunpack.c.l.b16 %v566
      %v638 = vunpack.c.l.b16 %v567
      %v639 = vunpack.c.l.b16 %v568
      %v640 = vunpack.c.l.b16 %v569
      %v641 = vunpack.c.l.b16 %v570
      %v642 = vunpack.c.l.b16 %v571
      %v643 = vunpack.c.l.b16 %v572
      %v644 = vunpack.c.l.b16 %v573
      %v645 = vunpack.c.l.b16 %v574
      %v646 = vunpack.c.l.b16 %v575
      %v647 = vpack.c.b16 %v616, %v615
      %v648 = vpack.c.b16 %v618, %v617
      %v649 = vpack.c.b16 %v620, %v619
      %v650 = vpack.c.b16 %v622, %v621
      %v651 = vpack.c.b16 %v624, %v623
      %v652 = vpack.c.b16 %v626, %v625
      %v653 = vpack.c.b16 %v628, %v627
      %v654 = vpack.c.b16 %v630, %v629
      %v655 = vpack.c.b16 %v632, %v631
      %v656 = vpack.c.b16 %v634, %v633
      %v657 = vpack.c.b16 %v636, %v635
      %v658 = vpack.c.b16 %v638, %v637
      %v659 = vpack.c.b16 %v640, %v639
      %v660 = vpack.c.b16 %v642, %v641
      %v661 = vpack.c.b16 %v644, %v643
      %v662 = vpack.c.b16 %v646, %v645
      %679 = vmatprep.subr.bf16.mxu0 0
      %680 = vmatpush1.bf16.msra.mxu0 %v647
      %681 = vmatprep.subr.bf16.mxu0 0
      %682 = vmatpush1.bf16.msra.mxu0 %v648
      %683 = vmatprep.subr.bf16.mxu0 0
      %684 = vmatpush1.bf16.msra.mxu0 %v649
      %685 = vmatprep.subr.bf16.mxu0 0
      %686 = vmatpush1.bf16.msra.mxu0 %v650
      %687 = vmatprep.subr.bf16.mxu0 0
      %688 = vmatpush1.bf16.msra.mxu0 %v651
      %689 = vmatprep.subr.bf16.mxu0 0
      %690 = vmatpush1.bf16.msra.mxu0 %v652
      %691 = vmatprep.subr.bf16.mxu0 0
      %692 = vmatpush1.bf16.msra.mxu0 %v653
      %693 = vmatprep.subr.bf16.mxu0 0
      %694 = vmatpush1.bf16.msra.mxu0 %v654
      %695 = vmatprep.subr.bf16.mxu0 0
      %696 = vmatpush1.bf16.msra.mxu0 %v655
      %697 = vmatprep.subr.bf16.mxu0 0
      %698 = vmatpush1.bf16.msra.mxu0 %v656
      %699 = vmatprep.subr.bf16.mxu0 0
      %700 = vmatpush1.bf16.msra.mxu0 %v657
      %701 = vmatprep.subr.bf16.mxu0 0
      %702 = vmatpush1.bf16.msra.mxu0 %v658
      %703 = vmatprep.subr.bf16.mxu0 0
      %704 = vmatpush1.bf16.msra.mxu0 %v659
      %705 = vmatprep.subr.bf16.mxu0 0
      %706 = vmatpush1.bf16.msra.mxu0 %v660
      %707 = vmatprep.subr.bf16.mxu0 0
      %708 = vmatpush1.bf16.msra.mxu0 %v661
      %709 = vmatprep.subr.bf16.mxu0 0
      %710 = vmatpush1.bf16.msra.mxu0 %v662
      %711 = vmatprep.mubr.bf16.mxu0 %v512
      %712 = vmatmul.mubr.bf16.gmra.mrb[0].mxu0 %v416
      %v713 = vpop.f32.mrb[0].mxu0
      %v714 = vadd.f32 %v581, %v713
      %v715 = vpop.f32.mrb[0].mxu0
      %v716 = vpop.f32.mrb[0].mxu0
      %v717 = vadd.f32 %v581, %v716
      %v718 = vpop.f32.mrb[0].mxu0
      %719 = vmatprep.mubr.bf16.mxu0 %v513
      %720 = vmatmul.mubr.bf16.gmra.mrb[0].mxu0 %v417
      %v721 = vpop.f32.mrb[0].mxu0
      %v722 = vadd.f32 %v581, %v721
      %v723 = vpop.f32.mrb[0].mxu0
      %v724 = vpop.f32.mrb[0].mxu0
      %v725 = vadd.f32 %v581, %v724
      %v726 = vpop.f32.mrb[0].mxu0
      %727 = vmatprep.mubr.bf16.mxu0 %v514
      %728 = vmatmul.mubr.bf16.gmra.mrb[0].mxu0 %v418
      %v729 = vpop.f32.mrb[0].mxu0
      %v730 = vadd.f32 %v581, %v729
      %v731 = vpop.f32.mrb[0].mxu0
      %v732 = vpop.f32.mrb[0].mxu0
      %v733 = vadd.f32 %v581, %v732
      %v734 = vpop.f32.mrb[0].mxu0
      %735 = vmatprep.mubr.bf16.mxu0 %v515
      %736 = vmatmul.mubr.bf16.gmra.mrb[0].mxu0 %v419
      %v737 = vpop.f32.mrb[0].mxu0
      %v738 = vadd.f32 %v581, %v737
      %v739 = vpop.f32.mrb[0].mxu0
      %v740 = vpop.f32.mrb[0].mxu0
      %v741 = vadd.f32 %v581, %v740
      %v742 = vpop.f32.mrb[0].mxu0
      %743 = vmatprep.mubr.bf16.mxu0 %v516
      %744 = vmatmul.mubr.bf16.gmra.mrb[0].mxu0 %v420
      %v745 = vpop.f32.mrb[0].mxu0
      %v746 = vadd.f32 %v581, %v745
      %v747 = vpop.f32.mrb[0].mxu0
      %v748 = vpop.f32.mrb[0].mxu0
      %v749 = vadd.f32 %v581, %v748
      %v750 = vpop.f32.mrb[0].mxu0
      %751 = vmatprep.mubr.bf16.mxu0 %v517
      %752 = vmatmul.mubr.bf16.gmra.mrb[0].mxu0 %v421
      %v753 = vpop.f32.mrb[0].mxu0
      %v754 = vadd.f32 %v581, %v753
      %v755 = vpop.f32.mrb[0].mxu0
      %v756 = vpop.f32.mrb[0].mxu0
      %v757 = vadd.f32 %v581, %v756
      %v758 = vpop.f32.mrb[0].mxu0
      %759 = vmatprep.mubr.bf16.mxu0 %v518
      %760 = vmatmul.mubr.bf16.gmra.mrb[0].mxu0 %v422
      %v761 = vpop.f32.mrb[0].mxu0
      %v762 = vadd.f32 %v581, %v761
      %v763 = vpop.f32.mrb[0].mxu0
      %v764 = vpop.f32.mrb[0].mxu0
      %v765 = vadd.f32 %v581, %v764
      %v766 = vpop.f32.mrb[0].mxu0
      %767 = vmatprep.mubr.bf16.mxu0 %v519
      %768 = vmatmul.mubr.bf16.gmra.mrb[0].mxu0 %v423
      %v769 = vpop.f32.mrb[0].mxu0
      %v770 = vadd.f32 %v581, %v769
      %v771 = vpop.f32.mrb[0].mxu0
      %v772 = vpop.f32.mrb[0].mxu0
      %v773 = vadd.f32 %v581, %v772
      %v774 = vpop.f32.mrb[0].mxu0
      %775 = vmatprep.mubr.bf16.mxu0 %v520
      %776 = vmatmul.mubr.bf16.gmra.mrb[0].mxu0 %v424
      %v777 = vpop.f32.mrb[0].mxu0
      %v778 = vadd.f32 %v581, %v777
      %v779 = vpop.f32.mrb[0].mxu0
      %v780 = vpop.f32.mrb[0].mxu0
      %v781 = vadd.f32 %v581, %v780
      %v782 = vpop.f32.mrb[0].mxu0
      %783 = vmatprep.mubr.bf16.mxu0 %v521
      %784 = vmatmul.mubr.bf16.gmra.mrb[0].mxu0 %v425
      %v785 = vpop.f32.mrb[0].mxu0
      %v786 = vadd.f32 %v581, %v785
      %v787 = vpop.f32.mrb[0].mxu0
      %v788 = vpop.f32.mrb[0].mxu0
      %v789 = vadd.f32 %v581, %v788
      %v790 = vpop.f32.mrb[0].mxu0
      %791 = vmatprep.mubr.bf16.mxu0 %v522
      %792 = vmatmul.mubr.bf16.gmra.mrb[0].mxu0 %v426
      %v793 = vpop.f32.mrb[0].mxu0
      %v794 = vadd.f32 %v581, %v793
      %v795 = vpop.f32.mrb[0].mxu0
      %v796 = vpop.f32.mrb[0].mxu0
      %v797 = vadd.f32 %v581, %v796
      %v798 = vpop.f32.mrb[0].mxu0
      %799 = vmatprep.mubr.bf16.mxu0 %v523
      %800 = vmatmul.mubr.bf16.gmra.mrb[0].mxu0 %v427
      %v801 = vpop.f32.mrb[0].mxu0
      %v802 = vadd.f32 %v581, %v801
      %v803 = vpop.f32.mrb[0].mxu0
      %v804 = vpop.f32.mrb[0].mxu0
      %v805 = vadd.f32 %v581, %v804
      %v806 = vpop.f32.mrb[0].mxu0
      %807 = vmatprep.mubr.bf16.mxu0 %v524
      %808 = vmatmul.mubr.bf16.gmra.mrb[0].mxu0 %v428
      %v809 = vpop.f32.mrb[0].mxu0
      %v810 = vadd.f32 %v581, %v809
      %v811 = vpop.f32.mrb[0].mxu0
      %v812 = vpop.f32.mrb[0].mxu0
      %v813 = vadd.f32 %v581, %v812
      %v814 = vpop.f32.mrb[0].mxu0
      %815 = vmatprep.mubr.bf16.mxu0 %v525
      %816 = vmatmul.mubr.bf16.gmra.mrb[0].mxu0 %v429
      %v817 = vpop.f32.mrb[0].mxu0
      %v818 = vadd.f32 %v581, %v817
      %v819 = vpop.f32.mrb[0].mxu0
      %v820 = vpop.f32.mrb[0].mxu0
      %v821 = vadd.f32 %v581, %v820
      %v822 = vpop.f32.mrb[0].mxu0
      %823 = vmatprep.mubr.bf16.mxu0 %v526
      %824 = vmatmul.mubr.bf16.gmra.mrb[0].mxu0 %v430
      %v825 = vpop.f32.mrb[0].mxu0
      %v826 = vadd.f32 %v581, %v825
      %v827 = vpop.f32.mrb[0].mxu0
      %v828 = vpop.f32.mrb[0].mxu0
      %v829 = vadd.f32 %v581, %v828
      %v830 = vpop.f32.mrb[0].mxu0
      %831 = vmatprep.mubr.bf16.mxu0 %v527
      %832 = vmatmul.mubr.bf16.gmra.mrb[0].mxu0 %v431
      %v833 = vpop.f32.mrb[0].mxu0
      %v834 = vadd.f32 %v581, %v833
      %v835 = vpop.f32.mrb[0].mxu0
      %v836 = vpop.f32.mrb[0].mxu0
      %v837 = vadd.f32 %v581, %v836
      %v838 = vpop.f32.mrb[0].mxu0
      %839 = vdwg.mxu0
      %v840 = vpack.c.bf16 %v717, %v714
      %v841 = vpack.c.bf16 %v725, %v722
      %v842 = vpack.c.bf16 %v733, %v730
      %v843 = vpack.c.bf16 %v741, %v738
      %v844 = vpack.c.bf16 %v749, %v746
      %v845 = vpack.c.bf16 %v757, %v754
      %v846 = vpack.c.bf16 %v765, %v762
      %v847 = vpack.c.bf16 %v773, %v770
      %v848 = vpack.c.bf16 %v781, %v778
      %v849 = vpack.c.bf16 %v789, %v786
      %v850 = vpack.c.bf16 %v797, %v794
      %v851 = vpack.c.bf16 %v805, %v802
      %v852 = vpack.c.bf16 %v813, %v810
      %v853 = vpack.c.bf16 %v821, %v818
      %v854 = vpack.c.bf16 %v829, %v826
      %v855 = vpack.c.bf16 %v837, %v834
      %v872 = vunpack.c.l.b16 %v840
      %v873 = vunpack.c.h.b16 %v840
      %v874 = vunpack.c.l.b16 %v841
      %v875 = vunpack.c.h.b16 %v841
      %v876 = vunpack.c.l.b16 %v842
      %v877 = vunpack.c.h.b16 %v842
      %v878 = vunpack.c.l.b16 %v843
      %v879 = vunpack.c.h.b16 %v843
      %v880 = vunpack.c.l.b16 %v844
      %v881 = vunpack.c.h.b16 %v844
      %v882 = vunpack.c.l.b16 %v845
      %v883 = vunpack.c.h.b16 %v845
      %v884 = vunpack.c.l.b16 %v846
      %v885 = vunpack.c.h.b16 %v846
      %v886 = vunpack.c.l.b16 %v847
      %v887 = vunpack.c.h.b16 %v847
      %v888 = vunpack.c.l.b16 %v848
      %v889 = vunpack.c.h.b16 %v848
      %v890 = vunpack.c.l.b16 %v849
      %v891 = vunpack.c.h.b16 %v849
      %v892 = vunpack.c.l.b16 %v850
      %v893 = vunpack.c.h.b16 %v850
      %v894 = vunpack.c.l.b16 %v851
      %v895 = vunpack.c.h.b16 %v851
      %v896 = vunpack.c.l.b16 %v852
      %v897 = vunpack.c.h.b16 %v852
      %v898 = vunpack.c.l.b16 %v853
      %v899 = vunpack.c.h.b16 %v853
      %v900 = vunpack.c.l.b16 %v854
      %v901 = vunpack.c.h.b16 %v854
      %v902 = vunpack.c.l.b16 %v855
      %v903 = vunpack.c.h.b16 %v855
      %v904 = vpack.c.b16 %v872, %v872
      %v905 = vpack.c.b16 %v873, %v873
      %v906 = vpack.c.b16 %v874, %v874
      %v907 = vpack.c.b16 %v875, %v875
      %v908 = vpack.c.b16 %v876, %v876
      %v909 = vpack.c.b16 %v877, %v877
      %v910 = vpack.c.b16 %v878, %v878
      %v911 = vpack.c.b16 %v879, %v879
      %v912 = vpack.c.b16 %v880, %v880
      %v913 = vpack.c.b16 %v881, %v881
      %v914 = vpack.c.b16 %v882, %v882
      %v915 = vpack.c.b16 %v883, %v883
      %v916 = vpack.c.b16 %v884, %v884
      %v917 = vpack.c.b16 %v885, %v885
      %v918 = vpack.c.b16 %v886, %v886
      %v919 = vpack.c.b16 %v887, %v887
      %v920 = vpack.c.b16 %v888, %v888
      %v921 = vpack.c.b16 %v889, %v889
      %v922 = vpack.c.b16 %v890, %v890
      %v923 = vpack.c.b16 %v891, %v891
      %v924 = vpack.c.b16 %v892, %v892
      %v925 = vpack.c.b16 %v893, %v893
      %v926 = vpack.c.b16 %v894, %v894
      %v927 = vpack.c.b16 %v895, %v895
      %v928 = vpack.c.b16 %v896, %v896
      %v929 = vpack.c.b16 %v897, %v897
      %v930 = vpack.c.b16 %v898, %v898
      %v931 = vpack.c.b16 %v899, %v899
      %v932 = vpack.c.b16 %v900, %v900
      %v933 = vpack.c.b16 %v901, %v901
      %v934 = vpack.c.b16 %v902, %v902
      %v935 = vpack.c.b16 %v903, %v903
      %968 = vst [vmem:[%s221] sm:$0xf] %v904
      %969 = vst [vmem:[%s221 + $0x4] sm:$0xf] %v905
      %970 = vst [vmem:[%s221 + $0x8] sm:$0xf] %v906
      %971 = vst [vmem:[%s221 + $0xc] sm:$0xf] %v907
      %972 = vst [vmem:[%s221 + $0x10] sm:$0xf] %v908
      %973 = vst [vmem:[%s221 + $0x14] sm:$0xf] %v909
      %974 = vst [vmem:[%s221 + $0x18] sm:$0xf] %v910
      %975 = vst [vmem:[%s221 + $0x1c] sm:$0xf] %v911
      %976 = vst [vmem:[%s221 + $0x20] sm:$0xf] %v912
      %977 = vst [vmem:[%s221 + $0x24] sm:$0xf] %v913
      %978 = vst [vmem:[%s221 + $0x28] sm:$0xf] %v914
      %979 = vst [vmem:[%s221 + $0x2c] sm:$0xf] %v915
      %980 = vst [vmem:[%s221 + $0x30] sm:$0xf] %v916
      %981 = vst [vmem:[%s221 + $0x34] sm:$0xf] %v917
      %982 = vst [vmem:[%s221 + $0x38] sm:$0xf] %v918
      %983 = vst [vmem:[%s221 + $0x3c] sm:$0xf] %v919
      %984 = vst [vmem:[%s221 + $0x40] sm:$0xf] %v920
      %985 = vst [vmem:[%s221 + $0x44] sm:$0xf] %v921
      %986 = vst [vmem:[%s221 + $0x48] sm:$0xf] %v922
      %987 = vst [vmem:[%s221 + $0x4c] sm:$0xf] %v923
      %988 = vst [vmem:[%s221 + $0x50] sm:$0xf] %v924
      %989 = vst [vmem:[%s221 + $0x54] sm:$0xf] %v925
      %990 = vst [vmem:[%s221 + $0x58] sm:$0xf] %v926
      %991 = vst [vmem:[%s221 + $0x5c] sm:$0xf] %v927
      %992 = vst [vmem:[%s221 + $0x60] sm:$0xf] %v928
      %993 = vst [vmem:[%s221 + $0x64] sm:$0xf] %v929
      %994 = vst [vmem:[%s221 + $0x68] sm:$0xf] %v930
      %995 = vst [vmem:[%s221 + $0x6c] sm:$0xf] %v931
      %996 = vst [vmem:[%s221 + $0x70] sm:$0xf] %v932
      %997 = vst [vmem:[%s221 + $0x74] sm:$0xf] %v933
      %998 = vst [vmem:[%s221 + $0x78] sm:$0xf] %v934
      %999 = vst [vmem:[%s221 + $0x7c] sm:$0xf] %v935
      %s1000 = smul.u32 32, %s15
      %p1001 = scmp.lt.s32.totalorder %s1000, 63
      %s1002 = scalar_select %p1001, %s1000, 63
      %s1003 = smul.addr %s1002, 4
      %s1004 = scalar_lea.vmem %s4, %s1003
      // Predicated region
      $region37: #{cnn_forward.6} parent=35 // pred_check
        %p1005 = pneg %p127
      $region38: #{cnn_forward.6} parent=35 // pred_check_branch
        %1007 = sbr.rel (%p1005) target = $region40
      $region39: #{cnn_forward.6} parent=35 // pred_region
        %s1008 = smul.u32 32, %s15
      $region40: #{cnn_forward.6} parent=35 // pred_fallthru
        _
    $region36: #{cnn_forward.6} parent=5 // pred_fallthru
      _
    %p1009 = scmp.le.s32.totalorder 2, %s10
    // Predicated region
    $region41: #{cnn_forward.6} parent=5 // pred_check
      %p1010 = pneg %p1009
    $region42: #{cnn_forward.6} parent=5 // pred_check_branch
      %1012 = sbr.rel (%p1010) target = $region44
    $region43: #{cnn_forward.6} parent=5 // pred_region
      %s1013 = ssub.s32 %s10, 2
      // Predicated region
      $region45: #{cnn_forward.6} parent=43 // pred_check
        %p1014 = pneg %p133
      $region46: #{cnn_forward.6} parent=43 // pred_check_branch
        %1016 = sbr.rel (%p1014) target = $region48
      $region47: #{cnn_forward.6} parent=43 // pred_region
        %s1017 = smul.u32 32, %s16
        %p1018 = scmp.lt.s32.totalorder %s1017, 63
        %s1019 = scalar_select %p1018, %s1017, 63
        %s1020 = smul.addr %s1019, 4
        %s1021 = scalar_lea.vmem %s4, %s1020
      $region48: #{cnn_forward.6} parent=43 // pred_fallthru
        _
    $region44: #{cnn_forward.6} parent=5 // pred_fallthru
      _
  $region6: #{cnn_forward.6} parent=0 // loop_footer
    %s14 = sadd.s32 1, %s10
  $region7: #{cnn_forward.6} parent=0 // loop_footer_branch
    %9 = sbr.rel target = $region3
  $region8: #{cnn_forward.6} parent=0 // loop_exit
    _

// kernel: cnn_forward.9
$region0: #{cnn_forward.9}
  #allocation0 [shape = 'u32[]', space=smem, size = 0x4, offset = 0x4, fixed_abs, tag = 'smem constant byte address 0x4 - core index']
  #allocation1 [shape = 'u32[144,128]{1,0:T(1,128)}', space=vmem, size = 0x12000, scoped, tag = 'internal scratch']
  %s0 = inlined_call_operand.vmem [shape: bf16[2,16,128], index: 0, kind: input, shape index: {}]
  %s1 = inlined_call_operand.vmem [shape: bf16[128,128], index: 1, kind: input, shape index: {}]
  %s2 = inlined_call_operand.vmem [shape: f32[1,128], index: 2, kind: input, shape index: {}]
  %s3 = inlined_call_operand.hbm [shape: f32[2,1,128], index: 3, kind: output, shape index: {}]
  %s4 = sld [smem:[#allocation0]]
  $region45: #{cnn_forward.9} parent=0
    _
  %s6 = ssub.s32 1, %s4
  %s7 = scalar_select 0, %s6, %s4
  $region1: #{cnn_forward.9} parent=0
    #allocation2 [shape = 'u8[1024]{0}', space=vmem, size = 0x400, scoped, tag = 'output window, operand 0']
    #allocation3 [shape = 's32[2]{0}', space=sflag, size = 0x8, scoped, tag = 'scoped memory for cnn_forward.9']
    %8 = vsyncpa [#allocation3], 0
    %s9 = scalar_lea.sflag [#allocation3], 1
    %10 = vsyncpa %s9, 0
    loop: start=0, step=1, limit=4
    $region2: #{cnn_forward.9} parent=1 // loop_pre_header
      _
    $region3: #{cnn_forward.9} parent=1 // loop_header
      %s12 = sphi 0, %s16
      %p13 = scmp.ge.s32.totalorder %s12, 4
      %s22 = sphi 0, %s24
      %s25 = sphi 0, %s22
      %s26 = sphi 0, %s25
      %s42 = sphi 0, %s26
      %s46 = sphi 0, %s46
      %s48 = sphi 0, %s46
      %s49 = sphi 0, %s48
      %s63 = sphi 0, %s49
      %s67 = sphi 0, %s67
      %s69 = sphi 0, %s67
      %s70 = sphi 0, %s69
      %s84 = sphi 0, %s70
      %s90 = sphi 0, %s92
      %s93 = sphi 0, %s90
      %s94 = sphi 0, %s93
      %s110 = sphi 0, %s94
    $region4: #{cnn_forward.9} parent=1 // loop_header_branch
      %15 = sbr.rel (%p13) target = $region8
    $region5: #{cnn_forward.9} parent=1 // loop_body
      %s17 = ssub.s32 %s12, 1
      %s18 = ssub.s32 %s12, 2
      %s19 = sadd.s32 %s12, 1
      %s20 = ssub.s32 %s12, %s19
      %p21 = scmp.eq.s32.totalorder %s20, 0
      %s23 = sadd.s32 %s22, 1
      %s24 = scalar_select %p21, %s22, %s23
      %p27 = pneg %p21
      %p28 = scmp.eq.s32.totalorder %s12, 1
      %p29 = por %p27, %p28
      %p30 = scmp.ne.s32.totalorder %s22, %s25
      %p31 = scmp.eq.s32.totalorder %s12, 0
      %p32 = por %p30, %p31
      %p33 = scmp.ne.s32.totalorder %s22, %s25
      %p34 = scmp.eq.s32.totalorder %s17, 1
      %p35 = por %p33, %p34
      %p36 = scmp.ne.s32.totalorder %s25, %s26
      %p37 = scmp.eq.s32.totalorder %s17, 0
      %p38 = por %p36, %p37
      %p39 = scmp.ne.s32.totalorder %s25, %s26
      %p40 = scmp.eq.s32.totalorder %s18, 1
      %p41 = por %p39, %p40
      %p43 = scmp.ne.s32.totalorder %s26, %s42
      %p44 = scmp.eq.s32.totalorder %s18, 0
      %p45 = por %p43, %p44
      %s47 = sadd.s32 %s46, 1
      %p50 = scmp.eq.s32.totalorder %s12, 1
      %p51 = scmp.ne.s32.totalorder %s46, %s48
      %p52 = scmp.eq.s32.totalorder %s12, 0
      %p53 = por %p51, %p52
      %p54 = scmp.ne.s32.totalorder %s46, %s48
      %p55 = scmp.eq.s32.totalorder %s17, 1
      %p56 = por %p54, %p55
      %p57 = scmp.ne.s32.totalorder %s48, %s49
      %p58 = scmp.eq.s32.totalorder %s17, 0
      %p59 = por %p57, %p58
      %p60 = scmp.ne.s32.totalorder %s48, %s49
      %p61 = scmp.eq.s32.totalorder %s18, 1
      %p62 = por %p60, %p61
      %p64 = scmp.ne.s32.totalorder %s49, %s63
      %p65 = scmp.eq.s32.totalorder %s18, 0
      %p66 = por %p64, %p65
      %s68 = sadd.s32 %s67, 1
      %p71 = scmp.eq.s32.totalorder %s12, 1
      %p72 = scmp.ne.s32.totalorder %s67, %s69
      %p73 = scmp.eq.s32.totalorder %s12, 0
      %p74 = por %p72, %p73
      %p75 = scmp.ne.s32.totalorder %s67, %s69
      %p76 = scmp.eq.s32.totalorder %s17, 1
      %p77 = por %p75, %p76
      %p78 = scmp.ne.s32.totalorder %s69, %s70
      %p79 = scmp.eq.s32.totalorder %s17, 0
      %p80 = por %p78, %p79
      %p81 = scmp.ne.s32.totalorder %s69, %s70
      %p82 = scmp.eq.s32.totalorder %s18, 1
      %p83 = por %p81, %p82
      %p85 = scmp.ne.s32.totalorder %s70, %s84
      %p86 = scmp.eq.s32.totalorder %s18, 0
      %p87 = por %p85, %p86
      %s88 = ssub.s32 %s12, %s19
      %p89 = scmp.eq.s32.totalorder %s88, 0
      %s91 = sadd.s32 %s90, 1
      %s92 = scalar_select %p89, %s90, %s91
      %p95 = pneg %p89
      %p96 = scmp.eq.s32.totalorder %s12, 1
      %p97 = por %p95, %p96
      %p98 = scmp.ne.s32.totalorder %s90, %s93
      %p99 = scmp.eq.s32.totalorder %s12, 0
      %p100 = por %p98, %p99
      %p101 = scmp.ne.s32.totalorder %s90, %s93
      %p102 = scmp.eq.s32.totalorder %s17, 1
      %p103 = por %p101, %p102
      %p104 = scmp.ne.s32.totalorder %s93, %s94
      %p105 = scmp.eq.s32.totalorder %s17, 0
      %p106 = por %p104, %p105
      %p107 = scmp.ne.s32.totalorder %s93, %s94
      %p108 = scmp.eq.s32.totalorder %s18, 1
      %p109 = por %p107, %p108
      %p111 = scmp.ne.s32.totalorder %s94, %s110
      %p112 = scmp.eq.s32.totalorder %s18, 0
      %p113 = por %p111, %p112
      %p114 = scmp.le.s32.totalorder 1, %s12
      %p115 = scmp.lt.s32.totalorder %s12, 3
      %p116 = pnand %p114, %p115
      %p117 = pneg %p116
      // Predicated region
      $region9: #{cnn_forward.9} parent=5 // pred_check
        _
      $region10: #{cnn_forward.9} parent=5 // pred_check_branch
        %119 = sbr.rel (%p116) target = $region12
      $region11: #{cnn_forward.9} parent=5 // pred_region
        %s120 = ssub.s32 %s12, 1
        // Predicated region
        $region13: #{cnn_forward.9} parent=11 // pred_check
          %p121 = pneg %p59
        $region14: #{cnn_forward.9} parent=11 // pred_check_branch
          %123 = sbr.rel (%p121) target = $region16
        $region15: #{cnn_forward.9} parent=11 // pred_region
          _
        $region16: #{cnn_forward.9} parent=11 // pred_fallthru
          _
        // Predicated region
        $region17: #{cnn_forward.9} parent=11 // pred_check
          %p124 = pneg %p80
        $region18: #{cnn_forward.9} parent=11 // pred_check_branch
          %126 = sbr.rel (%p124) target = $region20
        $region19: #{cnn_forward.9} parent=11 // pred_region
          _
        $region20: #{cnn_forward.9} parent=11 // pred_fallthru
          _
      $region12: #{cnn_forward.9} parent=5 // pred_fallthru
        _
      %p127 = scmp.lt.s32.totalorder %s12, 2
      // Predicated region
      $region21: #{cnn_forward.9} parent=5 // pred_check
        %p128 = pneg %p127
      $region22: #{cnn_forward.9} parent=5 // pred_check_branch
        %130 = sbr.rel (%p128) target = $region24
      $region23: #{cnn_forward.9} parent=5 // pred_region
        // Predicated region
        $region25: #{cnn_forward.9} parent=23 // pred_check
          %p131 = pneg %p32
        $region26: #{cnn_forward.9} parent=23 // pred_check_branch
          %133 = sbr.rel (%p131) target = $region28
        $region27: #{cnn_forward.9} parent=23 // pred_region
          %p134 = scmp.lt.s32.totalorder %s12, 1
          %s135 = scalar_select %p134, %s12, 1
          %s136 = smul.addr %s135, 2
          %s137 = smul.addr %s136, 4
          %s138 = scalar_lea.vmem %s0, %s137
        $region28: #{cnn_forward.9} parent=23 // pred_fallthru
          _
      $region24: #{cnn_forward.9} parent=5 // pred_fallthru
        _
      %p139 = scmp.le.s32.totalorder 1, %s12
      %p140 = scmp.lt.s32.totalorder %s12, 3
      %p141 = pnand %p139, %p140
      %p142 = pneg %p141
      // Predicated region
      $region29: #{cnn_forward.9} parent=5 // pred_check
        _
      $region30: #{cnn_forward.9} parent=5 // pred_check_branch
        %144 = sbr.rel (%p141) target = $region32
      $region31: #{cnn_forward.9} parent=5 // pred_region
        %s145 = ssub.s32 %s12, 1
        %p146 = scmp.lt.s32.totalorder %s17, 1
        %s147 = scalar_select %p146, %s17, 1
        %s148 = smul.addr %s147, 2
        %s149 = smul.addr %s148, 4
        %s150 = scalar_lea.vmem %s0, %s149
        %p151 = pneg %p38
        %p152 = pneg %p35
        %p153 = pneg %p59
        %p154 = pneg %p56
        %p155 = pneg %p80
        %p156 = pneg %p77
        %p157 = pneg %p106
        %p158 = pneg %p103
        %s159 = sand.u32 %s93, 1
        %s160 = scalar_lea.sflag [#allocation3], %s159
        %s161 = sand.u32 %s93, 1
        %s162 = scalar_lea.vmem [#allocation2], %s161
        %p163 = scmp.lt.s32.totalorder %s17, 1
        %s164 = scalar_select %p163, %s17, 1
        %s165 = smul.addr %s164, 2
        %s166 = smul.addr %s165, 4
        %s167 = scalar_lea.vmem %s0, %s166
        %v169 = vld [vmem:[%s167] sm:$0xf]
        %v170 = vld [vmem:[%s167 + $0x4] sm:$0xf]
        %v171 = vunpack.c.l.bf16 %v169
        %v172 = vunpack.c.l.bf16 %v170
        %v173 = vadd.f32 %v171, %v172
        %v174 = vrot.slane %v173, 4
        %v175 = vadd.f32 %v173, %v174
        %v176 = vrot.slane %v175, 2
        %v177 = vadd.f32 %v175, %v176
        %v178 = vrot.slane %v177, 1
        %v179 = vadd.f32 %v177, %v178
        %v180 = vmul.f32 %v179, 0.0625
        %v181 = vpack.c.bf16 %v180, %v180
        %v182 = vld [vmem:[%s1] sm:$0xf]
        %v183 = vld [vmem:[%s1 + $0x4] sm:$0xf]
        %v184 = vld [vmem:[%s1 + $0x8] sm:$0xf]
        %v185 = vld [vmem:[%s1 + $0xc] sm:$0xf]
        %v186 = vld [vmem:[%s1 + $0x10] sm:$0xf]
        %v187 = vld [vmem:[%s1 + $0x14] sm:$0xf]
        %v188 = vld [vmem:[%s1 + $0x18] sm:$0xf]
        %v189 = vld [vmem:[%s1 + $0x1c] sm:$0xf]
        %v190 = vld [vmem:[%s1 + $0x20] sm:$0xf]
        %v191 = vld [vmem:[%s1 + $0x24] sm:$0xf]
        %v192 = vld [vmem:[%s1 + $0x28] sm:$0xf]
        %v193 = vld [vmem:[%s1 + $0x2c] sm:$0xf]
        %v194 = vld [vmem:[%s1 + $0x30] sm:$0xf]
        %v195 = vld [vmem:[%s1 + $0x34] sm:$0xf]
        %v196 = vld [vmem:[%s1 + $0x38] sm:$0xf]
        %v197 = vld [vmem:[%s1 + $0x3c] sm:$0xf]
        %v198 = vld [vmem:[%s2] sm:$0x1]
        %v215 = vunpack.c.l.b16 %v182
        %v216 = vunpack.c.l.b16 %v183
        %v217 = vunpack.c.l.b16 %v184
        %v218 = vunpack.c.l.b16 %v185
        %v219 = vunpack.c.l.b16 %v186
        %v220 = vunpack.c.l.b16 %v187
        %v221 = vunpack.c.l.b16 %v188
        %v222 = vunpack.c.l.b16 %v189
        %v223 = vunpack.c.l.b16 %v190
        %v224 = vunpack.c.l.b16 %v191
        %v225 = vunpack.c.l.b16 %v192
        %v226 = vunpack.c.l.b16 %v193
        %v227 = vunpack.c.l.b16 %v194
        %v228 = vunpack.c.l.b16 %v195
        %v229 = vunpack.c.l.b16 %v196
        %v230 = vunpack.c.l.b16 %v197
        %v231 = vpack.c.b16 %v216, %v215
        %v232 = vpack.c.b16 %v218, %v217
        %v233 = vpack.c.b16 %v220, %v219
        %v234 = vpack.c.b16 %v222, %v221
        %v235 = vpack.c.b16 %v224, %v223
        %v236 = vpack.c.b16 %v226, %v225
        %v237 = vpack.c.b16 %v228, %v227
        %v238 = vpack.c.b16 %v230, %v229
        %247 = vmatprep.subr.bf16.mxu0 0
        %248 = vmatpush1.bf16.msra.mxu0 %v231
        %249 = vmatprep.subr.bf16.mxu0 0
        %250 = vmatpush1.bf16.msra.mxu0 %v232
        %251 = vmatprep.subr.bf16.mxu0 0
        %252 = vmatpush1.bf16.msra.mxu0 %v233
        %253 = vmatprep.subr.bf16.mxu0 0
        %254 = vmatpush1.bf16.msra.mxu0 %v234
        %255 = vmatprep.subr.bf16.mxu0 0
        %256 = vmatpush1.bf16.msra.mxu0 %v235
        %257 = vmatprep.subr.bf16.mxu0 0
        %258 = vmatpush1.bf16.msra.mxu0 %v236
        %259 = vmatprep.subr.bf16.mxu0 0
        %260 = vmatpush1.bf16.msra.mxu0 %v237
        %261 = vmatprep.subr.bf16.mxu0 0
        %262 = vmatpush1.bf16.msra.mxu0 %v238
        %263 = vmatprep.subr.bf16.mxu0 0
        %264 = vmatpush1.bf16.msra.mxu0 0
        %265 = vmatprep.subr.bf16.mxu0 0
        %266 = vmatpush1.bf16.msra.mxu0 0
        %267 = vmatprep.subr.bf16.mxu0 0
        %268 = vmatpush1.bf16.msra.mxu0 0
        %269 = vmatprep.subr.bf16.mxu0 0
        %270 = vmatpush1.bf16.msra.mxu0 0
        %271 = vmatprep.subr.bf16.mxu0 0
        %272 = vmatpush1.bf16.msra.mxu0 0
        %273 = vmatprep.subr.bf16.mxu0 0
        %274 = vmatpush1.bf16.msra.mxu0 0
        %275 = vmatprep.subr.bf16.mxu0 0
        %276 = vmatpush1.bf16.msra.mxu0 0
        %277 = vmatprep.subr.bf16.mxu0 0
        %278 = vmatpush1.bf16.msra.mxu0 0
        %279 = vmatprep.mubr.bf16.mxu0 0
        %280 = vmatmul.mubr.bf16.gmra.mrb[0].mxu0 %v181
        %v281 = vpop.f32.mrb[0].mxu0
        %v282 = vadd.f32 %v198, %v281
        %v283 = vpop.f32.mrb[0].mxu0
        %v284 = vpop.f32.mrb[0].mxu0
        %v285 = vpop.f32.mrb[0].mxu0
        %286 = vdwg.mxu0
        %287 = vst [vmem:[%s162] sm:$0x1] %v282
        %s288 = sand.u32 %s93, 1
        %s289 = scalar_lea.sflag [#allocation3], %s288
        %s290 = sand.u32 %s93, 1
        %s291 = scalar_lea.vmem [#allocation2], %s290
        // Predicated region
        $region33: #{cnn_forward.9} parent=31 // pred_check
          %p292 = pneg %p103
        $region34: #{cnn_forward.9} parent=31 // pred_check_branch
          %294 = sbr.rel (%p292) target = $region36
        $region35: #{cnn_forward.9} parent=31 // pred_region
          %s296 = ssub.s32 16, 16
          %297 = vsyncadd %s289, %s296
          %s298 = smul.addr %s17, 16
          %s299 = scalar_lea.hbm %s3, %s298
          %s301 = sshll.u32 %s291, 4
          %s302 = int_to_ptr.vmem [resolvable:$true] %s301
          %304 = dma.vmem_to_hbm [thread:$0]  %s302, 16, %s299, %s289
        $region36: #{cnn_forward.9} parent=31 // pred_fallthru
          _
      $region32: #{cnn_forward.9} parent=5 // pred_fallthru
        _
      %p305 = scmp.le.s32.totalorder 2, %s12
      // Predicated region
      $region37: #{cnn_forward.9} parent=5 // pred_check
        %p306 = pneg %p305
      $region38: #{cnn_forward.9} parent=5 // pred_check_branch
        %308 = sbr.rel (%p306) target = $region40
      $region39: #{cnn_forward.9} parent=5 // pred_region
        %s309 = ssub.s32 %s12, 2
        // Predicated region
        $region41: #{cnn_forward.9} parent=39 // pred_check
          %p310 = pneg %p109
        $region42: #{cnn_forward.9} parent=39 // pred_check_branch
          %312 = sbr.rel (%p310) target = $region44
        $region43: #{cnn_forward.9} parent=39 // pred_region
          %s313 = sand.u32 %s94, 1
          %s314 = scalar_lea.sflag [#allocation3], %s313
          %s315 = sand.u32 %s94, 1
          %s316 = scalar_lea.vmem [#allocation2], %s315
          %317 = dma.done %s314, 16
        $region44: #{cnn_forward.9} parent=39 // pred_fallthru
          _
      $region40: #{cnn_forward.9} parent=5 // pred_fallthru
        _
    $region6: #{cnn_forward.9} parent=1 // loop_footer
      %s16 = sadd.s32 1, %s12
    $region7: #{cnn_forward.9} parent=1 // loop_footer_branch
      %11 = sbr.rel target = $region3
    $region8: #{cnn_forward.9} parent=1 // loop_exit
      _
    %318 = vsyncpa [#allocation3], 1
    %s319 = scalar_lea.sflag [#allocation3], 1
    %320 = vsyncpa %s319, 1

// kernel: cnn_forward.8
$region0: #{cnn_forward.8}
  #allocation0 [shape = 'u32[]', space=smem, size = 0x4, offset = 0x4, fixed_abs, tag = 'smem constant byte address 0x4 - core index']
  #allocation1 [shape = 'u32[144,128]{1,0:T(1,128)}', space=vmem, size = 0x12000, scoped, tag = 'internal scratch']
  %s0 = inlined_call_operand.vmem [shape: bf16[2,16,16,128], index: 0, kind: input, shape index: {}, may-alias: {0,1,3,4}]
  %s1 = inlined_call_operand.vmem [shape: bf16[2,16,16,128], index: 1, kind: input, shape index: {}, may-alias: {0,1,3,4}]
  %s2 = inlined_call_operand.vmem [shape: bf16[2,4,16,128], index: 2, kind: input, shape index: {}, may-alias: {2,5}]
  %s3 = inlined_call_operand.vmem [shape: bf16[2,16,16,128], index: 3, kind: input, shape index: {}, may-alias: {0,1,3,4}]
  %s4 = inlined_call_operand.vmem [shape: bf16[2,16,16,128], index: 4, kind: input, shape index: {}, may-alias: {0,1,3,4}]
  %s5 = inlined_call_operand.vmem [shape: bf16[2,4,16,128], index: 5, kind: input, shape index: {}, may-alias: {2,5}]
  %s6 = inlined_call_operand.vmem [shape: bf16[384,32], index: 6, kind: input, shape index: {}]
  %s7 = inlined_call_operand.vmem [shape: bf16[32,128], index: 7, kind: input, shape index: {}]
  %s8 = inlined_call_operand.vmem [shape: bf16[32,128], index: 8, kind: input, shape index: {}]
  %s9 = inlined_call_operand.vmem [shape: f32[1,32], index: 9, kind: input, shape index: {}]
  %s10 = inlined_call_operand.vmem [shape: f32[1,128], index: 10, kind: input, shape index: {}]
  %s11 = inlined_call_operand.vmem [shape: bf16[2,16,128], index: 11, kind: output, shape index: {}]
  %s12 = sld [smem:[#allocation0]]
  $region77: #{cnn_forward.8} parent=0
    _
  %s14 = ssub.s32 1, %s12
  %s15 = scalar_select 0, %s14, %s12
  loop: start=0, step=1, limit=4
  $region2: #{cnn_forward.8} parent=0 // loop_pre_header
    _
  $region3: #{cnn_forward.8} parent=0 // loop_header
    %s17 = sphi 0, %s21
    %p18 = scmp.ge.s32.totalorder %s17, 4
    %s27 = sphi 0, %s29
    %s30 = sphi 0, %s27
    %s31 = sphi 0, %s30
    %s47 = sphi 0, %s31
    %s53 = sphi 0, %s55
    %s56 = sphi 0, %s53
    %s57 = sphi 0, %s56
    %s73 = sphi 0, %s57
    %s79 = sphi 0, %s81
    %s82 = sphi 0, %s79
    %s83 = sphi 0, %s82
    %s99 = sphi 0, %s83
    %s105 = sphi 0, %s107
    %s108 = sphi 0, %s105
    %s109 = sphi 0, %s108
    %s125 = sphi 0, %s109
    %s131 = sphi 0, %s133
    %s134 = sphi 0, %s131
    %s135 = sphi 0, %s134
    %s151 = sphi 0, %s135
    %s157 = sphi 0, %s159
    %s160 = sphi 0, %s157
    %s161 = sphi 0, %s160
    %s177 = sphi 0, %s161
    %s181 = sphi 0, %s181
    %s183 = sphi 0, %s181
    %s184 = sphi 0, %s183
    %s198 = sphi 0, %s184
    %s202 = sphi 0, %s202
    %s204 = sphi 0, %s202
    %s205 = sphi 0, %s204
    %s219 = sphi 0, %s205
    %s223 = sphi 0, %s223
    %s225 = sphi 0, %s223
    %s226 = sphi 0, %s225
    %s240 = sphi 0, %s226
    %s244 = sphi 0, %s244
    %s246 = sphi 0, %s244
    %s247 = sphi 0, %s246
    %s261 = sphi 0, %s247
    %s265 = sphi 0, %s265
    %s267 = sphi 0, %s265
    %s268 = sphi 0, %s267
    %s282 = sphi 0, %s268
    %s288 = sphi 0, %s290
    %s291 = sphi 0, %s288
    %s292 = sphi 0, %s291
    %s308 = sphi 0, %s292
  $region4: #{cnn_forward.8} parent=0 // loop_header_branch
    %20 = sbr.rel (%p18) target = $region8
  $region5: #{cnn_forward.8} parent=0 // loop_body
    %s22 = ssub.s32 %s17, 1
    %s23 = ssub.s32 %s17, 2
    %s24 = sadd.s32 %s17, 1
    %s25 = ssub.s32 %s17, %s24
    %p26 = scmp.eq.s32.totalorder %s25, 0
    %s28 = sadd.s32 %s27, 1
    %s29 = scalar_select %p26, %s27, %s28
    %p32 = pneg %p26
    %p33 = scmp.eq.s32.totalorder %s17, 1
    %p34 = por %p32, %p33
    %p35 = scmp.ne.s32.totalorder %s27, %s30
    %p36 = scmp.eq.s32.totalorder %s17, 0
    %p37 = por %p35, %p36
    %p38 = scmp.ne.s32.totalorder %s27, %s30
    %p39 = scmp.eq.s32.totalorder %s22, 1
    %p40 = por %p38, %p39
    %p41 = scmp.ne.s32.totalorder %s30, %s31
    %p42 = scmp.eq.s32.totalorder %s22, 0
    %p43 = por %p41, %p42
    %p44 = scmp.ne.s32.totalorder %s30, %s31
    %p45 = scmp.eq.s32.totalorder %s23, 1
    %p46 = por %p44, %p45
    %p48 = scmp.ne.s32.totalorder %s31, %s47
    %p49 = scmp.eq.s32.totalorder %s23, 0
    %p50 = por %p48, %p49
    %s51 = ssub.s32 %s17, %s24
    %p52 = scmp.eq.s32.totalorder %s51, 0
    %s54 = sadd.s32 %s53, 1
    %s55 = scalar_select %p52, %s53, %s54
    %p58 = pneg %p52
    %p59 = scmp.eq.s32.totalorder %s17, 1
    %p60 = por %p58, %p59
    %p61 = scmp.ne.s32.totalorder %s53, %s56
    %p62 = scmp.eq.s32.totalorder %s17, 0
    %p63 = por %p61, %p62
    %p64 = scmp.ne.s32.totalorder %s53, %s56
    %p65 = scmp.eq.s32.totalorder %s22, 1
    %p66 = por %p64, %p65
    %p67 = scmp.ne.s32.totalorder %s56, %s57
    %p68 = scmp.eq.s32.totalorder %s22, 0
    %p69 = por %p67, %p68
    %p70 = scmp.ne.s32.totalorder %s56, %s57
    %p71 = scmp.eq.s32.totalorder %s23, 1
    %p72 = por %p70, %p71
    %p74 = scmp.ne.s32.totalorder %s57, %s73
    %p75 = scmp.eq.s32.totalorder %s23, 0
    %p76 = por %p74, %p75
    %s77 = ssub.s32 %s17, %s24
    %p78 = scmp.eq.s32.totalorder %s77, 0
    %s80 = sadd.s32 %s79, 1
    %s81 = scalar_select %p78, %s79, %s80
    %p84 = pneg %p78
    %p85 = scmp.eq.s32.totalorder %s17, 1
    %p86 = por %p84, %p85
    %p87 = scmp.ne.s32.totalorder %s79, %s82
    %p88 = scmp.eq.s32.totalorder %s17, 0
    %p89 = por %p87, %p88
    %p90 = scmp.ne.s32.totalorder %s79, %s82
    %p91 = scmp.eq.s32.totalorder %s22, 1
    %p92 = por %p90, %p91
    %p93 = scmp.ne.s32.totalorder %s82, %s83
    %p94 = scmp.eq.s32.totalorder %s22, 0
    %p95 = por %p93, %p94
    %p96 = scmp.ne.s32.totalorder %s82, %s83
    %p97 = scmp.eq.s32.totalorder %s23, 1
    %p98 = por %p96, %p97
    %p100 = scmp.ne.s32.totalorder %s83, %s99
    %p101 = scmp.eq.s32.totalorder %s23, 0
    %p102 = por %p100, %p101
    %s103 = ssub.s32 %s17, %s24
    %p104 = scmp.eq.s32.totalorder %s103, 0
    %s106 = sadd.s32 %s105, 1
    %s107 = scalar_select %p104, %s105, %s106
    %p110 = pneg %p104
    %p111 = scmp.eq.s32.totalorder %s17, 1
    %p112 = por %p110, %p111
    %p113 = scmp.ne.s32.totalorder %s105, %s108
    %p114 = scmp.eq.s32.totalorder %s17, 0
    %p115 = por %p113, %p114
    %p116 = scmp.ne.s32.totalorder %s105, %s108
    %p117 = scmp.eq.s32.totalorder %s22, 1
    %p118 = por %p116, %p117
    %p119 = scmp.ne.s32.totalorder %s108, %s109
    %p120 = scmp.eq.s32.totalorder %s22, 0
    %p121 = por %p119, %p120
    %p122 = scmp.ne.s32.totalorder %s108, %s109
    %p123 = scmp.eq.s32.totalorder %s23, 1
    %p124 = por %p122, %p123
    %p126 = scmp.ne.s32.totalorder %s109, %s125
    %p127 = scmp.eq.s32.totalorder %s23, 0
    %p128 = por %p126, %p127
    %s129 = ssub.s32 %s17, %s24
    %p130 = scmp.eq.s32.totalorder %s129, 0
    %s132 = sadd.s32 %s131, 1
    %s133 = scalar_select %p130, %s131, %s132
    %p136 = pneg %p130
    %p137 = scmp.eq.s32.totalorder %s17, 1
    %p138 = por %p136, %p137
    %p139 = scmp.ne.s32.totalorder %s131, %s134
    %p140 = scmp.eq.s32.totalorder %s17, 0
    %p141 = por %p139, %p140
    %p142 = scmp.ne.s32.totalorder %s131, %s134
    %p143 = scmp.eq.s32.totalorder %s22, 1
    %p144 = por %p142, %p143
    %p145 = scmp.ne.s32.totalorder %s134, %s135
    %p146 = scmp.eq.s32.totalorder %s22, 0
    %p147 = por %p145, %p146
    %p148 = scmp.ne.s32.totalorder %s134, %s135
    %p149 = scmp.eq.s32.totalorder %s23, 1
    %p150 = por %p148, %p149
    %p152 = scmp.ne.s32.totalorder %s135, %s151
    %p153 = scmp.eq.s32.totalorder %s23, 0
    %p154 = por %p152, %p153
    %s155 = ssub.s32 %s17, %s24
    %p156 = scmp.eq.s32.totalorder %s155, 0
    %s158 = sadd.s32 %s157, 1
    %s159 = scalar_select %p156, %s157, %s158
    %p162 = pneg %p156
    %p163 = scmp.eq.s32.totalorder %s17, 1
    %p164 = por %p162, %p163
    %p165 = scmp.ne.s32.totalorder %s157, %s160
    %p166 = scmp.eq.s32.totalorder %s17, 0
    %p167 = por %p165, %p166
    %p168 = scmp.ne.s32.totalorder %s157, %s160
    %p169 = scmp.eq.s32.totalorder %s22, 1
    %p170 = por %p168, %p169
    %p171 = scmp.ne.s32.totalorder %s160, %s161
    %p172 = scmp.eq.s32.totalorder %s22, 0
    %p173 = por %p171, %p172
    %p174 = scmp.ne.s32.totalorder %s160, %s161
    %p175 = scmp.eq.s32.totalorder %s23, 1
    %p176 = por %p174, %p175
    %p178 = scmp.ne.s32.totalorder %s161, %s177
    %p179 = scmp.eq.s32.totalorder %s23, 0
    %p180 = por %p178, %p179
    %s182 = sadd.s32 %s181, 1
    %p185 = scmp.eq.s32.totalorder %s17, 1
    %p186 = scmp.ne.s32.totalorder %s181, %s183
    %p187 = scmp.eq.s32.totalorder %s17, 0
    %p188 = por %p186, %p187
    %p189 = scmp.ne.s32.totalorder %s181, %s183
    %p190 = scmp.eq.s32.totalorder %s22, 1
    %p191 = por %p189, %p190
    %p192 = scmp.ne.s32.totalorder %s183, %s184
    %p193 = scmp.eq.s32.totalorder %s22, 0
    %p194 = por %p192, %p193
    %p195 = scmp.ne.s32.totalorder %s183, %s184
    %p196 = scmp.eq.s32.totalorder %s23, 1
    %p197 = por %p195, %p196
    %p199 = scmp.ne.s32.totalorder %s184, %s198
    %p200 = scmp.eq.s32.totalorder %s23, 0
    %p201 = por %p199, %p200
    %s203 = sadd.s32 %s202, 1
    %p206 = scmp.eq.s32.totalorder %s17, 1
    %p207 = scmp.ne.s32.totalorder %s202, %s204
    %p208 = scmp.eq.s32.totalorder %s17, 0
    %p209 = por %p207, %p208
    %p210 = scmp.ne.s32.totalorder %s202, %s204
    %p211 = scmp.eq.s32.totalorder %s22, 1
    %p212 = por %p210, %p211
    %p213 = scmp.ne.s32.totalorder %s204, %s205
    %p214 = scmp.eq.s32.totalorder %s22, 0
    %p215 = por %p213, %p214
    %p216 = scmp.ne.s32.totalorder %s204, %s205
    %p217 = scmp.eq.s32.totalorder %s23, 1
    %p218 = por %p216, %p217
    %p220 = scmp.ne.s32.totalorder %s205, %s219
    %p221 = scmp.eq.s32.totalorder %s23, 0
    %p222 = por %p220, %p221
    %s224 = sadd.s32 %s223, 1
    %p227 = scmp.eq.s32.totalorder %s17, 1
    %p228 = scmp.ne.s32.totalorder %s223, %s225
    %p229 = scmp.eq.s32.totalorder %s17, 0
    %p230 = por %p228, %p229
    %p231 = scmp.ne.s32.totalorder %s223, %s225
    %p232 = scmp.eq.s32.totalorder %s22, 1
    %p233 = por %p231, %p232
    %p234 = scmp.ne.s32.totalorder %s225, %s226
    %p235 = scmp.eq.s32.totalorder %s22, 0
    %p236 = por %p234, %p235
    %p237 = scmp.ne.s32.totalorder %s225, %s226
    %p238 = scmp.eq.s32.totalorder %s23, 1
    %p239 = por %p237, %p238
    %p241 = scmp.ne.s32.totalorder %s226, %s240
    %p242 = scmp.eq.s32.totalorder %s23, 0
    %p243 = por %p241, %p242
    %s245 = sadd.s32 %s244, 1
    %p248 = scmp.eq.s32.totalorder %s17, 1
    %p249 = scmp.ne.s32.totalorder %s244, %s246
    %p250 = scmp.eq.s32.totalorder %s17, 0
    %p251 = por %p249, %p250
    %p252 = scmp.ne.s32.totalorder %s244, %s246
    %p253 = scmp.eq.s32.totalorder %s22, 1
    %p254 = por %p252, %p253
    %p255 = scmp.ne.s32.totalorder %s246, %s247
    %p256 = scmp.eq.s32.totalorder %s22, 0
    %p257 = por %p255, %p256
    %p258 = scmp.ne.s32.totalorder %s246, %s247
    %p259 = scmp.eq.s32.totalorder %s23, 1
    %p260 = por %p258, %p259
    %p262 = scmp.ne.s32.totalorder %s247, %s261
    %p263 = scmp.eq.s32.totalorder %s23, 0
    %p264 = por %p262, %p263
    %s266 = sadd.s32 %s265, 1
    %p269 = scmp.eq.s32.totalorder %s17, 1
    %p270 = scmp.ne.s32.totalorder %s265, %s267
    %p271 = scmp.eq.s32.totalorder %s17, 0
    %p272 = por %p270, %p271
    %p273 = scmp.ne.s32.totalorder %s265, %s267
    %p274 = scmp.eq.s32.totalorder %s22, 1
    %p275 = por %p273, %p274
    %p276 = scmp.ne.s32.totalorder %s267, %s268
    %p277 = scmp.eq.s32.totalorder %s22, 0
    %p278 = por %p276, %p277
    %p279 = scmp.ne.s32.totalorder %s267, %s268
    %p280 = scmp.eq.s32.totalorder %s23, 1
    %p281 = por %p279, %p280
    %p283 = scmp.ne.s32.totalorder %s268, %s282
    %p284 = scmp.eq.s32.totalorder %s23, 0
    %p285 = por %p283, %p284
    %s286 = ssub.s32 %s17, %s24
    %p287 = scmp.eq.s32.totalorder %s286, 0
    %s289 = sadd.s32 %s288, 1
    %s290 = scalar_select %p287, %s288, %s289
    %p293 = pneg %p287
    %p294 = scmp.eq.s32.totalorder %s17, 1
    %p295 = por %p293, %p294
    %p296 = scmp.ne.s32.totalorder %s288, %s291
    %p297 = scmp.eq.s32.totalorder %s17, 0
    %p298 = por %p296, %p297
    %p299 = scmp.ne.s32.totalorder %s288, %s291
    %p300 = scmp.eq.s32.totalorder %s22, 1
    %p301 = por %p299, %p300
    %p302 = scmp.ne.s32.totalorder %s291, %s292
    %p303 = scmp.eq.s32.totalorder %s22, 0
    %p304 = por %p302, %p303
    %p305 = scmp.ne.s32.totalorder %s291, %s292
    %p306 = scmp.eq.s32.totalorder %s23, 1
    %p307 = por %p305, %p306
    %p309 = scmp.ne.s32.totalorder %s292, %s308
    %p310 = scmp.eq.s32.totalorder %s23, 0
    %p311 = por %p309, %p310
    %p312 = scmp.le.s32.totalorder 1, %s17
    %p313 = scmp.lt.s32.totalorder %s17, 3
    %p314 = pnand %p312, %p313
    %p315 = pneg %p314
    // Predicated region
    $region9: #{cnn_forward.8} parent=5 // pred_check
      _
    $region10: #{cnn_forward.8} parent=5 // pred_check_branch
      %317 = sbr.rel (%p314) target = $region12
    $region11: #{cnn_forward.8} parent=5 // pred_region
      %s318 = ssub.s32 %s17, 1
      // Predicated region
      $region13: #{cnn_forward.8} parent=11 // pred_check
        %p319 = pneg %p194
      $region14: #{cnn_forward.8} parent=11 // pred_check_branch
        %321 = sbr.rel (%p319) target = $region16
      $region15: #{cnn_forward.8} parent=11 // pred_region
        _
      $region16: #{cnn_forward.8} parent=11 // pred_fallthru
        _
      // Predicated region
      $region17: #{cnn_forward.8} parent=11 // pred_check
        %p322 = pneg %p215
      $region18: #{cnn_forward.8} parent=11 // pred_check_branch
        %324 = sbr.rel (%p322) target = $region20
      $region19: #{cnn_forward.8} parent=11 // pred_region
        _
      $region20: #{cnn_forward.8} parent=11 // pred_fallthru
        _
      // Predicated region
      $region21: #{cnn_forward.8} parent=11 // pred_check
        %p325 = pneg %p236
      $region22: #{cnn_forward.8} parent=11 // pred_check_branch
        %327 = sbr.rel (%p325) target = $region24
      $region23: #{cnn_forward.8} parent=11 // pred_region
        _
      $region24: #{cnn_forward.8} parent=11 // pred_fallthru
        _
      // Predicated region
      $region25: #{cnn_forward.8} parent=11 // pred_check
        %p328 = pneg %p257
      $region26: #{cnn_forward.8} parent=11 // pred_check_branch
        %330 = sbr.rel (%p328) target = $region28
      $region27: #{cnn_forward.8} parent=11 // pred_region
        _
      $region28: #{cnn_forward.8} parent=11 // pred_fallthru
        _
      // Predicated region
      $region29: #{cnn_forward.8} parent=11 // pred_check
        %p331 = pneg %p278
      $region30: #{cnn_forward.8} parent=11 // pred_check_branch
        %333 = sbr.rel (%p331) target = $region32
      $region31: #{cnn_forward.8} parent=11 // pred_region
        _
      $region32: #{cnn_forward.8} parent=11 // pred_fallthru
        _
    $region12: #{cnn_forward.8} parent=5 // pred_fallthru
      _
    %p334 = scmp.lt.s32.totalorder %s17, 2
    // Predicated region
    $region33: #{cnn_forward.8} parent=5 // pred_check
      %p335 = pneg %p334
    $region34: #{cnn_forward.8} parent=5 // pred_check_branch
      %337 = sbr.rel (%p335) target = $region36
    $region35: #{cnn_forward.8} parent=5 // pred_region
      // Predicated region
      $region37: #{cnn_forward.8} parent=35 // pred_check
        %p338 = pneg %p37
      $region38: #{cnn_forward.8} parent=35 // pred_check_branch
        %340 = sbr.rel (%p338) target = $region40
      $region39: #{cnn_forward.8} parent=35 // pred_region
        %p341 = scmp.lt.s32.totalorder %s17, 1
        %s342 = scalar_select %p341, %s17, 1
        %s343 = smul.addr %s342, 32
        %s344 = smul.addr %s343, 4
        %s345 = scalar_lea.vmem %s0, %s344
      $region40: #{cnn_forward.8} parent=35 // pred_fallthru
        _
      // Predicated region
      $region41: #{cnn_forward.8} parent=35 // pred_check
        %p346 = pneg %p63
      $region42: #{cnn_forward.8} parent=35 // pred_check_branch
        %348 = sbr.rel (%p346) target = $region44
      $region43: #{cnn_forward.8} parent=35 // pred_region
        %p349 = scmp.lt.s32.totalorder %s17, 1
        %s350 = scalar_select %p349, %s17, 1
        %s351 = smul.addr %s350, 32
        %s352 = sadd.s32 24, %s351
        %s353 = smul.addr %s352, 4
        %s354 = scalar_lea.vmem %s1, %s353
      $region44: #{cnn_forward.8} parent=35 // pred_fallthru
        _
      // Predicated region
      $region45: #{cnn_forward.8} parent=35 // pred_check
        %p355 = pneg %p89
      $region46: #{cnn_forward.8} parent=35 // pred_check_branch
        %357 = sbr.rel (%p355) target = $region48
      $region47: #{cnn_forward.8} parent=35 // pred_region
        %p358 = scmp.lt.s32.totalorder %s17, 1
        %s359 = scalar_select %p358, %s17, 1
        %s360 = smul.addr %s359, 8
        %s361 = smul.addr %s360, 4
        %s362 = scalar_lea.vmem %s2, %s361
      $region48: #{cnn_forward.8} parent=35 // pred_fallthru
        _
      // Predicated region
      $region49: #{cnn_forward.8} parent=35 // pred_check
        %p363 = pneg %p115
      $region50: #{cnn_forward.8} parent=35 // pred_check_branch
        %365 = sbr.rel (%p363) target = $region52
      $region51: #{cnn_forward.8} parent=35 // pred_region
        %p366 = scmp.lt.s32.totalorder %s17, 1
        %s367 = scalar_select %p366, %s17, 1
        %s368 = smul.addr %s367, 32
        %s369 = sadd.s32 6, %s368
        %s370 = smul.addr %s369, 4
        %s371 = scalar_lea.vmem %s3, %s370
      $region52: #{cnn_forward.8} parent=35 // pred_fallthru
        _
      // Predicated region
      $region53: #{cnn_forward.8} parent=35 // pred_check
        %p372 = pneg %p141
      $region54: #{cnn_forward.8} parent=35 // pred_check_branch
        %374 = sbr.rel (%p372) target = $region56
      $region55: #{cnn_forward.8} parent=35 // pred_region
        %p375 = scmp.lt.s32.totalorder %s17, 1
        %s376 = scalar_select %p375, %s17, 1
        %s377 = smul.addr %s376, 32
        %s378 = sadd.s32 30, %s377
        %s379 = smul.addr %s378, 4
        %s380 = scalar_lea.vmem %s4, %s379
      $region56: #{cnn_forward.8} parent=35 // pred_fallthru
        _
      // Predicated region
      $region57: #{cnn_forward.8} parent=35 // pred_check
        %p381 = pneg %p167
      $region58: #{cnn_forward.8} parent=35 // pred_check_branch
        %383 = sbr.rel (%p381) target = $region60
      $region59: #{cnn_forward.8} parent=35 // pred_region
        %p384 = scmp.lt.s32.totalorder %s17, 1
        %s385 = scalar_select %p384, %s17, 1
        %s386 = smul.addr %s385, 8
        %s387 = sadd.s32 6, %s386
        %s388 = smul.addr %s387, 4
        %s389 = scalar_lea.vmem %s5, %s388
      $region60: #{cnn_forward.8} parent=35 // pred_fallthru
        _
    $region36: #{cnn_forward.8} parent=5 // pred_fallthru
      _
    %p390 = scmp.le.s32.totalorder 1, %s17
    %p391 = scmp.lt.s32.totalorder %s17, 3
    %p392 = pnand %p390, %p391
    %p393 = pneg %p392
    // Predicated region
    $region61: #{cnn_forward.8} parent=5 // pred_check
      _
    $region62: #{cnn_forward.8} parent=5 // pred_check_branch
      %395 = sbr.rel (%p392) target = $region64
    $region63: #{cnn_forward.8} parent=5 // pred_region
      %s396 = ssub.s32 %s17, 1
      %p397 = scmp.lt.s32.totalorder %s22, 1
      %s398 = scalar_select %p397, %s22, 1
      %s399 = smul.addr %s398, 32
      %s400 = smul.addr %s399, 4
      %s401 = scalar_lea.vmem %s0, %s400
      %p402 = pneg %p43
      %p403 = pneg %p40
      %p404 = scmp.lt.s32.totalorder %s22, 1
      %s405 = scalar_select %p404, %s22, 1
      %s406 = smul.addr %s405, 32
      %s407 = sadd.s32 24, %s406
      %s408 = smul.addr %s407, 4
      %s409 = scalar_lea.vmem %s1, %s408
      %p410 = pneg %p69
      %p411 = pneg %p66
      %p412 = scmp.lt.s32.totalorder %s22, 1
      %s413 = scalar_select %p412, %s22, 1
      %s414 = smul.addr %s413, 8
      %s415 = smul.addr %s414, 4
      %s416 = scalar_lea.vmem %s2, %s415
      %p417 = pneg %p95
      %p418 = pneg %p92
      %p419 = scmp.lt.s32.totalorder %s22, 1
      %s420 = scalar_select %p419, %s22, 1
      %s421 = smul.addr %s420, 32
      %s422 = sadd.s32 6, %s421
      %s423 = smul.addr %s422, 4
      %s424 = scalar_lea.vmem %s3, %s423
      %p425 = pneg %p121
      %p426 = pneg %p118
      %p427 = scmp.lt.s32.totalorder %s22, 1
      %s428 = scalar_select %p427, %s22, 1
      %s429 = smul.addr %s428, 32
      %s430 = sadd.s32 30, %s429
      %s431 = smul.addr %s430, 4
      %s432 = scalar_lea.vmem %s4, %s431
      %p433 = pneg %p147
      %p434 = pneg %p144
      %p435 = scmp.lt.s32.totalorder %s22, 1
      %s436 = scalar_select %p435, %s22, 1
      %s437 = smul.addr %s436, 8
      %s438 = sadd.s32 6, %s437
      %s439 = smul.addr %s438, 4
      %s440 = scalar_lea.vmem %s5, %s439
      %p441 = pneg %p173
      %p442 = pneg %p170
      %p443 = pneg %p194
      %p444 = pneg %p191
      %p445 = pneg %p215
      %p446 = pneg %p212
      %p447 = pneg %p236
      %p448 = pneg %p233
      %p449 = pneg %p257
      %p450 = pneg %p254
      %p451 = pneg %p278
      %p452 = pneg %p275
      %p453 = pneg %p304
      %p454 = pneg %p301
      %p455 = scmp.lt.s32.totalorder %s22, 1
      %s456 = scalar_select %p455, %s22, 1
      %s457 = smul.addr %s456, 2
      %s458 = smul.addr %s457, 4
      %s459 = scalar_lea.vmem %s11, %s458
      %p460 = scmp.lt.s32.totalorder %s22, 1
      %s461 = scalar_select %p460, %s22, 1
      %s462 = smul.addr %s461, 32
      %s463 = smul.addr %s462, 4
      %s464 = scalar_lea.vmem %s0, %s463
      %p465 = scmp.lt.s32.totalorder %s22, 1
      %s466 = scalar_select %p465, %s22, 1
      %s467 = smul.addr %s466, 32
      %s468 = sadd.s32 24, %s467
      %s469 = smul.addr %s468, 4
      %s470 = scalar_lea.vmem %s1, %s469
      %p471 = scmp.lt.s32.totalorder %s22, 1
      %s472 = scalar_select %p471, %s22, 1
      %s473 = smul.addr %s472, 8
      %s474 = smul.addr %s473, 4
      %s475 = scalar_lea.vmem %s2, %s474
      %p476 = scmp.lt.s32.totalorder %s22, 1
      %s477 = scalar_select %p476, %s22, 1
      %s478 = smul.addr %s477, 32
      %s479 = sadd.s32 6, %s478
      %s480 = smul.addr %s479, 4
      %s481 = scalar_lea.vmem %s3, %s480
      %p482 = scmp.lt.s32.totalorder %s22, 1
      %s483 = scalar_select %p482, %s22, 1
      %s484 = smul.addr %s483, 32
      %s485 = sadd.s32 30, %s484
      %s486 = smul.addr %s485, 4
      %s487 = scalar_lea.vmem %s4, %s486
      %p488 = scmp.lt.s32.totalorder %s22, 1
      %s489 = scalar_select %p488, %s22, 1
      %s490 = smul.addr %s489, 8
      %s491 = sadd.s32 6, %s490
      %s492 = smul.addr %s491, 4
      %s493 = scalar_lea.vmem %s5, %s492
      %p494 = scmp.lt.s32.totalorder %s22, 1
      %s495 = scalar_select %p494, %s22, 1
      %s496 = smul.addr %s495, 2
      %s497 = smul.addr %s496, 4
      %s498 = scalar_lea.vmem %s11, %s497
      %v500 = vld [vmem:[%s6] sm:$0xf]
      %v501 = vld [vmem:[%s6 + $0x4] sm:$0xf]
      %v502 = vld [vmem:[%s6 + $0x8] sm:$0xf]
      %v503 = vld [vmem:[%s6 + $0xc] sm:$0xf]
      %v504 = vld [vmem:[%s6 + $0x10] sm:$0xf]
      %v505 = vld [vmem:[%s6 + $0x14] sm:$0xf]
      %v506 = vld [vmem:[%s6 + $0x18] sm:$0xf]
      %v507 = vld [vmem:[%s6 + $0x1c] sm:$0xf]
      %v508 = vld [vmem:[%s6 + $0x20] sm:$0xf]
      %v509 = vld [vmem:[%s6 + $0x24] sm:$0xf]
      %v510 = vld [vmem:[%s6 + $0x28] sm:$0xf]
      %v511 = vld [vmem:[%s6 + $0x2c] sm:$0xf]
      %v512 = vld [vmem:[%s6 + $0x30] sm:$0xf]
      %v513 = vld [vmem:[%s6 + $0x34] sm:$0xf]
      %v514 = vld [vmem:[%s6 + $0x38] sm:$0xf]
      %v515 = vld [vmem:[%s6 + $0x3c] sm:$0xf]
      %v516 = vld [vmem:[%s6 + $0x40] sm:$0xf]
      %v517 = vld [vmem:[%s6 + $0x44] sm:$0xf]
      %v518 = vld [vmem:[%s6 + $0x48] sm:$0xf]
      %v519 = vld [vmem:[%s6 + $0x4c] sm:$0xf]
      %v520 = vld [vmem:[%s6 + $0x50] sm:$0xf]
      %v521 = vld [vmem:[%s6 + $0x54] sm:$0xf]
      %v522 = vld [vmem:[%s6 + $0x58] sm:$0xf]
      %v523 = vld [vmem:[%s6 + $0x5c] sm:$0xf]
      %v524 = vld [vmem:[%s6 + $0x60] sm:$0xf]
      %v525 = vld [vmem:[%s6 + $0x64] sm:$0xf]
      %v526 = vld [vmem:[%s6 + $0x68] sm:$0xf]
      %v527 = vld [vmem:[%s6 + $0x6c] sm:$0xf]
      %v528 = vld [vmem:[%s6 + $0x70] sm:$0xf]
      %v529 = vld [vmem:[%s6 + $0x74] sm:$0xf]
      %v530 = vld [vmem:[%s6 + $0x78] sm:$0xf]
      %v531 = vld [vmem:[%s6 + $0x7c] sm:$0xf]
      %v532 = vld [vmem:[%s6 + $0x80] sm:$0xf]
      %v533 = vld [vmem:[%s6 + $0x84] sm:$0xf]
      %v534 = vld [vmem:[%s6 + $0x88] sm:$0xf]
      %v535 = vld [vmem:[%s6 + $0x8c] sm:$0xf]
      %v536 = vld [vmem:[%s6 + $0x90] sm:$0xf]
      %v537 = vld [vmem:[%s6 + $0x94] sm:$0xf]
      %v538 = vld [vmem:[%s6 + $0x98] sm:$0xf]
      %v539 = vld [vmem:[%s6 + $0x9c] sm:$0xf]
      %v540 = vld [vmem:[%s6 + $0xa0] sm:$0xf]
      %v541 = vld [vmem:[%s6 + $0xa4] sm:$0xf]
      %v542 = vld [vmem:[%s6 + $0xa8] sm:$0xf]
      %v543 = vld [vmem:[%s6 + $0xac] sm:$0xf]
      %v544 = vld [vmem:[%s6 + $0xb0] sm:$0xf]
      %v545 = vld [vmem:[%s6 + $0xb4] sm:$0xf]
      %v546 = vld [vmem:[%s6 + $0xb8] sm:$0xf]
      %v547 = vld [vmem:[%s6 + $0xbc] sm:$0xf]
      %v548 = vld [vmem:[%s464] sm:$0xf]
      %v549 = vld [vmem:[%s464 + $0x4] sm:$0xf]
      %v550 = vmax.bf16 %v548, 0
      %v551 = vmax.bf16 %v549, 0
      %v552 = vld [vmem:[%s470] sm:$0xf]
      %v553 = vld [vmem:[%s470 + $0x4] sm:$0xf]
      %v554 = vmax.bf16 %v552, 0
      %v555 = vmax.bf16 %v553, 0
      %v556 = vld [vmem:[%s475] sm:$0xf]
      %v557 = vld [vmem:[%s475 + $0x4] sm:$0xf]
      %v558 = vmax.bf16 %v556, 0
      %v559 = vmax.bf16 %v557, 0
      %v562 = vunpack.c.l.b16 %v550
      %v563 = vunpack.c.l.b16 %v551
      %v564 = vpack.c.b16 %v563, %v562
      %v568 = vunpack.c.l.b16 %v554
      %v569 = vunpack.c.l.b16 %v555
      %v570 = vpack.c.b16 %v569, %v568
      %v574 = vunpack.c.l.b16 %v558
      %v575 = vunpack.c.l.b16 %v559
      %v576 = vpack.c.b16 %v575, %v574
      %v578 = vld [vmem:[%s9] sm:$0x1]
      %v580 = vlaneseq
      %v581 = vshrl.u32 %v580, 7
      %v582 = vsub.s32 0, %v581
      %v583 = vrot.slane %v578, %v582
      %v633 = vunpack.c.l.b16 %v500
      %v634 = vunpack.c.l.b16 %v501
      %v635 = vunpack.c.l.b16 %v502
      %v636 = vunpack.c.l.b16 %v503
      %v637 = vunpack.c.l.b16 %v504
      %v638 = vunpack.c.l.b16 %v505
      %v639 = vunpack.c.l.b16 %v506
      %v640 = vunpack.c.l.b16 %v507
      %v641 = vunpack.c.l.b16 %v508
      %v642 = vunpack.c.l.b16 %v509
      %v643 = vunpack.c.l.b16 %v510
      %v644 = vunpack.c.l.b16 %v511
      %v645 = vunpack.c.l.b16 %v512
      %v646 = vunpack.c.l.b16 %v513
      %v647 = vunpack.c.l.b16 %v514
      %v648 = vunpack.c.l.b16 %v515
      %v649 = vunpack.c.l.b16 %v516
      %v650 = vunpack.c.l.b16 %v517
      %v651 = vunpack.c.l.b16 %v518
      %v652 = vunpack.c.l.b16 %v519
      %v653 = vunpack.c.l.b16 %v520
      %v654 = vunpack.c.l.b16 %v521
      %v655 = vunpack.c.l.b16 %v522
      %v656 = vunpack.c.l.b16 %v523
      %v657 = vunpack.c.l.b16 %v524
      %v658 = vunpack.c.l.b16 %v525
      %v659 = vunpack.c.l.b16 %v526
      %v660 = vunpack.c.l.b16 %v527
      %v661 = vunpack.c.l.b16 %v528
      %v662 = vunpack.c.l.b16 %v529
      %v663 = vunpack.c.l.b16 %v530
      %v664 = vunpack.c.l.b16 %v531
      %v665 = vunpack.c.l.b16 %v532
      %v666 = vunpack.c.l.b16 %v533
      %v667 = vunpack.c.l.b16 %v534
      %v668 = vunpack.c.l.b16 %v535
      %v669 = vunpack.c.l.b16 %v536
      %v670 = vunpack.c.l.b16 %v537
      %v671 = vunpack.c.l.b16 %v538
      %v672 = vunpack.c.l.b16 %v539
      %v673 = vunpack.c.l.b16 %v540
      %v674 = vunpack.c.l.b16 %v541
      %v675 = vunpack.c.l.b16 %v542
      %v676 = vunpack.c.l.b16 %v543
      %v677 = vunpack.c.l.b16 %v544
      %v678 = vunpack.c.l.b16 %v545
      %v679 = vunpack.c.l.b16 %v546
      %v680 = vunpack.c.l.b16 %v547
      %v681 = vpack.c.b16 %v634, %v633
      %v682 = vpack.c.b16 %v636, %v635
      %v683 = vpack.c.b16 %v638, %v637
      %v684 = vpack.c.b16 %v640, %v639
      %v685 = vpack.c.b16 %v642, %v641
      %v686 = vpack.c.b16 %v644, %v643
      %v687 = vpack.c.b16 %v646, %v645
      %v688 = vpack.c.b16 %v648, %v647
      %v689 = vpack.c.b16 %v650, %v649
      %v690 = vpack.c.b16 %v652, %v651
      %v691 = vpack.c.b16 %v654, %v653
      %v692 = vpack.c.b16 %v656, %v655
      %v693 = vpack.c.b16 %v658, %v657
      %v694 = vpack.c.b16 %v660, %v659
      %v695 = vpack.c.b16 %v662, %v661
      %v696 = vpack.c.b16 %v664, %v663
      %v697 = vpack.c.b16 %v666, %v665
      %v698 = vpack.c.b16 %v668, %v667
      %v699 = vpack.c.b16 %v670, %v669
      %v700 = vpack.c.b16 %v672, %v671
      %v701 = vpack.c.b16 %v674, %v673
      %v702 = vpack.c.b16 %v676, %v675
      %v703 = vpack.c.b16 %v678, %v677
      %v704 = vpack.c.b16 %v680, %v679
      %729 = vmatprep.subr.bf16.mxu0 0
      %730 = vmatpush1.bf16.msra.mxu0 %v681
      %731 = vmatprep.subr.bf16.mxu0 0
      %732 = vmatpush1.bf16.msra.mxu0 %v682
      %733 = vmatprep.subr.bf16.mxu0 0
      %734 = vmatpush1.bf16.msra.mxu0 %v683
      %735 = vmatprep.subr.bf16.mxu0 0
      %736 = vmatpush1.bf16.msra.mxu0 %v684
      %737 = vmatprep.subr.bf16.mxu0 0
      %738 = vmatpush1.bf16.msra.mxu0 %v685
      %739 = vmatprep.subr.bf16.mxu0 0
      %740 = vmatpush1.bf16.msra.mxu0 %v686
      %741 = vmatprep.subr.bf16.mxu0 0
      %742 = vmatpush1.bf16.msra.mxu0 %v687
      %743 = vmatprep.subr.bf16.mxu0 0
      %744 = vmatpush1.bf16.msra.mxu0 %v688
      %745 = vmatprep.subr.bf16.mxu0 0
      %746 = vmatpush1.bf16.msra.mxu0 %v689
      %747 = vmatprep.subr.bf16.mxu0 0
      %748 = vmatpush1.bf16.msra.mxu0 %v690
      %749 = vmatprep.subr.bf16.mxu0 0
      %750 = vmatpush1.bf16.msra.mxu0 %v691
      %751 = vmatprep.subr.bf16.mxu0 0
      %752 = vmatpush1.bf16.msra.mxu0 %v692
      %753 = vmatprep.subr.bf16.mxu0 0
      %754 = vmatpush1.bf16.msra.mxu0 %v693
      %755 = vmatprep.subr.bf16.mxu0 0
      %756 = vmatpush1.bf16.msra.mxu0 %v694
      %757 = vmatprep.subr.bf16.mxu0 0
      %758 = vmatpush1.bf16.msra.mxu0 %v695
      %759 = vmatprep.subr.bf16.mxu0 0
      %760 = vmatpush1.bf16.msra.mxu0 %v696
      %761 = vmatprep.mubr.bf16.mxu0 %v570
      %762 = vmatmul.mubr.bf16.gmra.mrb[0].mxu0 %v564
      %v763 = vpop.f32.mrb[0].mxu0
      %v764 = vadd.f32 %v583, %v763
      %v765 = vpop.f32.mrb[0].mxu0
      %v766 = vpop.f32.mrb[0].mxu0
      %v767 = vadd.f32 %v583, %v766
      %v768 = vpop.f32.mrb[0].mxu0
      %769 = vdwg.mxu0
      %770 = vmatprep.subr.bf16.mxu0 0
      %771 = vmatpush1.bf16.msra.mxu0 %v697
      %772 = vmatprep.subr.bf16.mxu0 0
      %773 = vmatpush1.bf16.msra.mxu0 %v698
      %774 = vmatprep.subr.bf16.mxu0 0
      %775 = vmatpush1.bf16.msra.mxu0 %v699
      %776 = vmatprep.subr.bf16.mxu0 0
      %777 = vmatpush1.bf16.msra.mxu0 %v700
      %778 = vmatprep.subr.bf16.mxu0 0
      %779 = vmatpush1.bf16.msra.mxu0 %v701
      %780 = vmatprep.subr.bf16.mxu0 0
      %781 = vmatpush1.bf16.msra.mxu0 %v702
      %782 = vmatprep.subr.bf16.mxu0 0
      %783 = vmatpush1.bf16.msra.mxu0 %v703
      %784 = vmatprep.subr.bf16.mxu0 0
      %785 = vmatpush1.bf16.msra.mxu0 %v704
      %786 = vmatprep.subr.bf16.mxu0 0
      %787 = vmatpush1.bf16.msra.mxu0 0
      %788 = vmatprep.subr.bf16.mxu0 0
      %789 = vmatpush1.bf16.msra.mxu0 0
      %790 = vmatprep.subr.bf16.mxu0 0
      %791 = vmatpush1.bf16.msra.mxu0 0
      %792 = vmatprep.subr.bf16.mxu0 0
      %793 = vmatpush1.bf16.msra.mxu0 0
      %794 = vmatprep.subr.bf16.mxu0 0
      %795 = vmatpush1.bf16.msra.mxu0 0
      %796 = vmatprep.subr.bf16.mxu0 0
      %797 = vmatpush1.bf16.msra.mxu0 0
      %798 = vmatprep.subr.bf16.mxu0 0
      %799 = vmatpush1.bf16.msra.mxu0 0
      %800 = vmatprep.subr.bf16.mxu0 0
      %801 = vmatpush1.bf16.msra.mxu0 0
      %802 = vmatprep.mubr.bf16.mxu0 0
      %803 = vmatmul.mubr.bf16.gmra.mrb[0].mxu0 %v576
      %v804 = vpop.f32.mrb[0].mxu0
      %v805 = vadd.f32 %v764, %v804
      %v806 = vpop.f32.mrb[0].mxu0
      %v807 = vpop.f32.mrb[0].mxu0
      %v808 = vadd.f32 %v767, %v807
      %v809 = vpop.f32.mrb[0].mxu0
      %810 = vdwg.mxu0
      %v811 = vmax.f32 %v805, 0.0
      %v812 = vmax.f32 %v808, 0.0
      %v813 = vpack.c.bf16 %v812, %v811
      %v814 = vld [vmem:[%s481] sm:$0xf]
      %v815 = vld [vmem:[%s481 + $0x4] sm:$0xf]
      %v816 = vmax.bf16 %v814, 0
      %v817 = vmax.bf16 %v815, 0
      %v818 = vld [vmem:[%s487] sm:$0xf]
      %v819 = vld [vmem:[%s487 + $0x4] sm:$0xf]
      %v820 = vmax.bf16 %v818, 0
      %v821 = vmax.bf16 %v819, 0
      %v822 = vld [vmem:[%s493] sm:$0xf]
      %v823 = vld [vmem:[%s493 + $0x4] sm:$0xf]
      %v824 = vmax.bf16 %v822, 0
      %v825 = vmax.bf16 %v823, 0
      %v828 = vunpack.c.l.b16 %v816
      %v829 = vunpack.c.l.b16 %v817
      %v830 = vpack.c.b16 %v829, %v828
      %v834 = vunpack.c.l.b16 %v820
      %v835 = vunpack.c.l.b16 %v821
      %v836 = vpack.c.b16 %v835, %v834
      %v840 = vunpack.c.l.b16 %v824
      %v841 = vunpack.c.l.b16 %v825
      %v842 = vpack.c.b16 %v841, %v840
      %844 = vmatprep.subr.bf16.mxu0 0
      %845 = vmatpush1.bf16.msra.mxu0 %v681
      %846 = vmatprep.subr.bf16.mxu0 0
      %847 = vmatpush1.bf16.msra.mxu0 %v682
      %848 = vmatprep.subr.bf16.mxu0 0
      %849 = vmatpush1.bf16.msra.mxu0 %v683
      %850 = vmatprep.subr.bf16.mxu0 0
      %851 = vmatpush1.bf16.msra.mxu0 %v684
      %852 = vmatprep.subr.bf16.mxu0 0
      %853 = vmatpush1.bf16.msra.mxu0 %v685
      %854 = vmatprep.subr.bf16.mxu0 0
      %855 = vmatpush1.bf16.msra.mxu0 %v686
      %856 = vmatprep.subr.bf16.mxu0 0
      %857 = vmatpush1.bf16.msra.mxu0 %v687
      %858 = vmatprep.subr.bf16.mxu0 0
      %859 = vmatpush1.bf16.msra.mxu0 %v688
      %860 = vmatprep.subr.bf16.mxu0 0
      %861 = vmatpush1.bf16.msra.mxu0 %v689
      %862 = vmatprep.subr.bf16.mxu0 0
      %863 = vmatpush1.bf16.msra.mxu0 %v690
      %864 = vmatprep.subr.bf16.mxu0 0
      %865 = vmatpush1.bf16.msra.mxu0 %v691
      %866 = vmatprep.subr.bf16.mxu0 0
      %867 = vmatpush1.bf16.msra.mxu0 %v692
      %868 = vmatprep.subr.bf16.mxu0 0
      %869 = vmatpush1.bf16.msra.mxu0 %v693
      %870 = vmatprep.subr.bf16.mxu0 0
      %871 = vmatpush1.bf16.msra.mxu0 %v694
      %872 = vmatprep.subr.bf16.mxu0 0
      %873 = vmatpush1.bf16.msra.mxu0 %v695
      %874 = vmatprep.subr.bf16.mxu0 0
      %875 = vmatpush1.bf16.msra.mxu0 %v696
      %876 = vmatprep.mubr.bf16.mxu0 %v836
      %877 = vmatmul.mubr.bf16.gmra.mrb[0].mxu0 %v830
      %v878 = vpop.f32.mrb[0].mxu0
      %v879 = vadd.f32 %v583, %v878
      %v880 = vpop.f32.mrb[0].mxu0
      %v881 = vpop.f32.mrb[0].mxu0
      %v882 = vadd.f32 %v583, %v881
      %v883 = vpop.f32.mrb[0].mxu0
      %884 = vdwg.mxu0
      %885 = vmatprep.subr.bf16.mxu0 0
      %886 = vmatpush1.bf16.msra.mxu0 %v697
      %887 = vmatprep.subr.bf16.mxu0 0
      %888 = vmatpush1.bf16.msra.mxu0 %v698
      %889 = vmatprep.subr.bf16.mxu0 0
      %890 = vmatpush1.bf16.msra.mxu0 %v699
      %891 = vmatprep.subr.bf16.mxu0 0
      %892 = vmatpush1.bf16.msra.mxu0 %v700
      %893 = vmatprep.subr.bf16.mxu0 0
      %894 = vmatpush1.bf16.msra.mxu0 %v701
      %895 = vmatprep.subr.bf16.mxu0 0
      %896 = vmatpush1.bf16.msra.mxu0 %v702
      %897 = vmatprep.subr.bf16.mxu0 0
      %898 = vmatpush1.bf16.msra.mxu0 %v703
      %899 = vmatprep.subr.bf16.mxu0 0
      %900 = vmatpush1.bf16.msra.mxu0 %v704
      %901 = vmatprep.subr.bf16.mxu0 0
      %902 = vmatpush1.bf16.msra.mxu0 0
      %903 = vmatprep.subr.bf16.mxu0 0
      %904 = vmatpush1.bf16.msra.mxu0 0
      %905 = vmatprep.subr.bf16.mxu0 0
      %906 = vmatpush1.bf16.msra.mxu0 0
      %907 = vmatprep.subr.bf16.mxu0 0
      %908 = vmatpush1.bf16.msra.mxu0 0
      %909 = vmatprep.subr.bf16.mxu0 0
      %910 = vmatpush1.bf16.msra.mxu0 0
      %911 = vmatprep.subr.bf16.mxu0 0
      %912 = vmatpush1.bf16.msra.mxu0 0
      %913 = vmatprep.subr.bf16.mxu0 0
      %914 = vmatpush1.bf16.msra.mxu0 0
      %915 = vmatprep.subr.bf16.mxu0 0
      %916 = vmatpush1.bf16.msra.mxu0 0
      %917 = vmatprep.mubr.bf16.mxu0 0
      %918 = vmatmul.mubr.bf16.gmra.mrb[0].mxu0 %v842
      %v919 = vpop.f32.mrb[0].mxu0
      %v920 = vadd.f32 %v879, %v919
      %v921 = vpop.f32.mrb[0].mxu0
      %v922 = vpop.f32.mrb[0].mxu0
      %v923 = vadd.f32 %v882, %v922
      %v924 = vpop.f32.mrb[0].mxu0
      %925 = vdwg.mxu0
      %v926 = vmax.f32 %v920, 0.0
      %v927 = vmax.f32 %v923, 0.0
      %v928 = vpack.c.bf16 %v927, %v926
      %v929 = vld [vmem:[%s7] sm:$0xf]
      %v930 = vld [vmem:[%s7 + $0x4] sm:$0xf]
      %v931 = vld [vmem:[%s7 + $0x8] sm:$0xf]
      %v932 = vld [vmem:[%s7 + $0xc] sm:$0xf]
      %v933 = vld [vmem:[%s8] sm:$0xf]
      %v934 = vld [vmem:[%s8 + $0x4] sm:$0xf]
      %v935 = vld [vmem:[%s8 + $0x8] sm:$0xf]
      %v936 = vld [vmem:[%s8 + $0xc] sm:$0xf]
      %v941 = vunpack.c.l.b16 %v933
      %v942 = vunpack.c.l.b16 %v934
      %v943 = vunpack.c.l.b16 %v935
      %v944 = vunpack.c.l.b16 %v936
      %v945 = vpack.c.b16 %v942, %v941
      %v946 = vpack.c.b16 %v944, %v943
      %vm949 = vcmask 261120
      %v951 = vsel %vm949, %v928, 0
      %953 = vmatprep.subr.bf16.mxu0 0
      %954 = vmatpush1.bf16.msra.mxu0 %v945
      %955 = vmatprep.subr.bf16.mxu0 0
      %956 = vmatpush1.bf16.msra.mxu0 %v946
      %957 = vmatprep.subr.bf16.mxu0 0
      %958 = vmatpush1.bf16.msra.mxu0 0
      %959 = vmatprep.subr.bf16.mxu0 0
      %960 = vmatpush1.bf16.msra.mxu0 0
      %961 = vmatprep.subr.bf16.mxu0 0
      %962 = vmatpush1.bf16.msra.mxu0 0
      %963 = vmatprep.subr.bf16.mxu0 0
      %964 = vmatpush1.bf16.msra.mxu0 0
      %965 = vmatprep.subr.bf16.mxu0 0
      %966 = vmatpush1.bf16.msra.mxu0 0
      %967 = vmatprep.subr.bf16.mxu0 0
      %968 = vmatpush1.bf16.msra.mxu0 0
      %969 = vmatprep.subr.bf16.mxu0 0
      %970 = vmatpush1.bf16.msra.mxu0 0
      %971 = vmatprep.subr.bf16.mxu0 0
      %972 = vmatpush1.bf16.msra.mxu0 0
      %973 = vmatprep.subr.bf16.mxu0 0
      %974 = vmatpush1.bf16.msra.mxu0 0
      %975 = vmatprep.subr.bf16.mxu0 0
      %976 = vmatpush1.bf16.msra.mxu0 0
      %977 = vmatprep.subr.bf16.mxu0 0
      %978 = vmatpush1.bf16.msra.mxu0 0
      %979 = vmatprep.subr.bf16.mxu0 0
      %980 = vmatpush1.bf16.msra.mxu0 0
      %981 = vmatprep.subr.bf16.mxu0 0
      %982 = vmatpush1.bf16.msra.mxu0 0
      %983 = vmatprep.subr.bf16.mxu0 0
      %984 = vmatpush1.bf16.msra.mxu0 0
      %985 = vmatprep.mubr.bf16.mxu0 0
      %986 = vmatmul.mubr.bf16.gmra.mrb[0].mxu0 %v951
      %v987 = vpop.f32.mrb[0].mxu0
      %v988 = vadd.f32 0.0, %v987
      %v989 = vpop.f32.mrb[0].mxu0
      %v990 = vpop.f32.mrb[0].mxu0
      %v991 = vadd.f32 0.0, %v990
      %v992 = vpop.f32.mrb[0].mxu0
      %993 = vdwg.mxu0
      %v998 = vunpack.c.l.b16 %v929
      %v999 = vunpack.c.l.b16 %v930
      %v1000 = vunpack.c.l.b16 %v931
      %v1001 = vunpack.c.l.b16 %v932
      %v1002 = vpack.c.b16 %v999, %v998
      %v1003 = vpack.c.b16 %v1001, %v1000
      %v1007 = vsel %vm949, %v813, 0
      %1009 = vmatprep.subr.bf16.mxu0 0
      %1010 = vmatpush1.bf16.msra.mxu0 %v1002
      %1011 = vmatprep.subr.bf16.mxu0 0
      %1012 = vmatpush1.bf16.msra.mxu0 %v1003
      %1013 = vmatprep.subr.bf16.mxu0 0
      %1014 = vmatpush1.bf16.msra.mxu0 0
      %1015 = vmatprep.subr.bf16.mxu0 0
      %1016 = vmatpush1.bf16.msra.mxu0 0
      %1017 = vmatprep.subr.bf16.mxu0 0
      %1018 = vmatpush1.bf16.msra.mxu0 0
      %1019 = vmatprep.subr.bf16.mxu0 0
      %1020 = vmatpush1.bf16.msra.mxu0 0
      %1021 = vmatprep.subr.bf16.mxu0 0
      %1022 = vmatpush1.bf16.msra.mxu0 0
      %1023 = vmatprep.subr.bf16.mxu0 0
      %1024 = vmatpush1.bf16.msra.mxu0 0
      %1025 = vmatprep.subr.bf16.mxu0 0
      %1026 = vmatpush1.bf16.msra.mxu0 0
      %1027 = vmatprep.subr.bf16.mxu0 0
      %1028 = vmatpush1.bf16.msra.mxu0 0
      %1029 = vmatprep.subr.bf16.mxu0 0
      %1030 = vmatpush1.bf16.msra.mxu0 0
      %1031 = vmatprep.subr.bf16.mxu0 0
      %1032 = vmatpush1.bf16.msra.mxu0 0
      %1033 = vmatprep.subr.bf16.mxu0 0
      %1034 = vmatpush1.bf16.msra.mxu0 0
      %1035 = vmatprep.subr.bf16.mxu0 0
      %1036 = vmatpush1.bf16.msra.mxu0 0
      %1037 = vmatprep.subr.bf16.mxu0 0
      %1038 = vmatpush1.bf16.msra.mxu0 0
      %1039 = vmatprep.subr.bf16.mxu0 0
      %1040 = vmatpush1.bf16.msra.mxu0 0
      %1041 = vmatprep.mubr.bf16.mxu0 0
      %1042 = vmatmul.mubr.bf16.gmra.mrb[0].mxu0 %v1007
      %v1043 = vpop.f32.mrb[0].mxu0
      %v1044 = vadd.f32 %v988, %v1043
      %v1045 = vpop.f32.mrb[0].mxu0
      %v1046 = vpop.f32.mrb[0].mxu0
      %v1047 = vadd.f32 %v991, %v1046
      %v1048 = vpop.f32.mrb[0].mxu0
      %1049 = vdwg.mxu0
      %v1050 = vld [vmem:[%s10] sm:$0x1]
      %v1052 = vlaneseq
      %v1053 = vshrl.u32 %v1052, 7
      %v1054 = vsub.s32 0, %v1053
      %v1055 = vrot.slane %v1050, %v1054
      %v1057 = vadd.f32 %v1044, %v1055
      %v1058 = vadd.f32 %v1047, %v1055
      %v1059 = vpack.c.bf16 %v1058, %v1057
      %v1061 = vunpack.c.l.b16 %v1059
      %v1062 = vunpack.c.h.b16 %v1059
      %v1063 = vpack.c.b16 %v1061, %v1061
      %v1064 = vpack.c.b16 %v1062, %v1062
      %1067 = vst [vmem:[%s498] sm:$0xf] %v1063
      %1068 = vst [vmem:[%s498 + $0x4] sm:$0xf] %v1064
      %p1069 = scmp.lt.s32.totalorder %s22, 1
      %s1070 = scalar_select %p1069, %s22, 1
      %s1071 = smul.addr %s1070, 2
      %s1072 = smul.addr %s1071, 4
      %s1073 = scalar_lea.vmem %s11, %s1072
      // Predicated region
      $region65: #{cnn_forward.8} parent=63 // pred_check
        %p1074 = pneg %p301
      $region66: #{cnn_forward.8} parent=63 // pred_check_branch
        %1076 = sbr.rel (%p1074) target = $region68
      $region67: #{cnn_forward.8} parent=63 // pred_region
        _
      $region68: #{cnn_forward.8} parent=63 // pred_fallthru
        _
    $region64: #{cnn_forward.8} parent=5 // pred_fallthru
      _
    %p1077 = scmp.le.s32.totalorder 2, %s17
    // Predicated region
    $region69: #{cnn_forward.8} parent=5 // pred_check
      %p1078 = pneg %p1077
    $region70: #{cnn_forward.8} parent=5 // pred_check_branch
      %1080 = sbr.rel (%p1078) target = $region72
    $region71: #{cnn_forward.8} parent=5 // pred_region
      %s1081 = ssub.s32 %s17, 2
      // Predicated region
      $region73: #{cnn_forward.8} parent=71 // pred_check
        %p1082 = pneg %p307
      $region74: #{cnn_forward.8} parent=71 // pred_check_branch
        %1084 = sbr.rel (%p1082) target = $region76
      $region75: #{cnn_forward.8} parent=71 // pred_region
        %p1085 = scmp.lt.s32.totalorder %s23, 1
        %s1086 = scalar_select %p1085, %s23, 1
        %s1087 = smul.addr %s1086, 2
        %s1088 = smul.addr %s1087, 4
        %s1089 = scalar_lea.vmem %s11, %s1088
      $region76: #{cnn_forward.8} parent=71 // pred_fallthru
        _
    $region72: #{cnn_forward.8} parent=5 // pred_fallthru
      _
  $region6: #{cnn_forward.8} parent=0 // loop_footer
    %s21 = sadd.s32 1, %s17
  $region7: #{cnn_forward.8} parent=0 // loop_footer_branch
    %16 = sbr.rel target = $region3
  $region8: #{cnn_forward.8} parent=0 // loop_exit
    _

// kernel: cnn_forward.5
$region0: #{cnn_forward.5}
  #allocation0 [shape = 'u32[]', space=smem, size = 0x4, offset = 0x4, fixed_abs, tag = 'smem constant byte address 0x4 - core index']
  #allocation1 [shape = 'u32[144,128]{1,0:T(1,128)}', space=vmem, size = 0x12000, scoped, tag = 'internal scratch']
  %s0 = inlined_call_operand.vmem [shape: bf16[2,342,3], index: 0, kind: input, shape index: {}]
  %s1 = inlined_call_operand.vmem [shape: bf16[9,3,128], index: 1, kind: input, shape index: {}]
  %s2 = inlined_call_operand.vmem [shape: f32[1,128], index: 2, kind: input, shape index: {}]
  %s3 = inlined_call_operand.vmem [shape: bf16[2,288,128], index: 3, kind: output, shape index: {}]
  %s4 = sld [smem:[#allocation0]]
  $region45: #{cnn_forward.5} parent=0
    _
  %s6 = ssub.s32 1, %s4
  %s7 = scalar_select 0, %s6, %s4
  loop: start=0, step=1, limit=4
  $region2: #{cnn_forward.5} parent=0 // loop_pre_header
    _
  $region3: #{cnn_forward.5} parent=0 // loop_header
    %s9 = sphi 0, %s13
    %p10 = scmp.ge.s32.totalorder %s9, 4
    %s19 = sphi 0, %s21
    %s22 = sphi 0, %s19
    %s23 = sphi 0, %s22
    %s39 = sphi 0, %s23
    %s43 = sphi 0, %s43
    %s45 = sphi 0, %s43
    %s46 = sphi 0, %s45
    %s60 = sphi 0, %s46
    %s64 = sphi 0, %s64
    %s66 = sphi 0, %s64
    %s67 = sphi 0, %s66
    %s81 = sphi 0, %s67
    %s87 = sphi 0, %s89
    %s90 = sphi 0, %s87
    %s91 = sphi 0, %s90
    %s107 = sphi 0, %s91
  $region4: #{cnn_forward.5} parent=0 // loop_header_branch
    %12 = sbr.rel (%p10) target = $region8
  $region5: #{cnn_forward.5} parent=0 // loop_body
    %s14 = ssub.s32 %s9, 1
    %s15 = ssub.s32 %s9, 2
    %s16 = sadd.s32 %s9, 1
    %s17 = ssub.s32 %s9, %s16
    %p18 = scmp.eq.s32.totalorder %s17, 0
    %s20 = sadd.s32 %s19, 1
    %s21 = scalar_select %p18, %s19, %s20
    %p24 = pneg %p18
    %p25 = scmp.eq.s32.totalorder %s9, 1
    %p26 = por %p24, %p25
    %p27 = scmp.ne.s32.totalorder %s19, %s22
    %p28 = scmp.eq.s32.totalorder %s9, 0
    %p29 = por %p27, %p28
    %p30 = scmp.ne.s32.totalorder %s19, %s22
    %p31 = scmp.eq.s32.totalorder %s14, 1
    %p32 = por %p30, %p31
    %p33 = scmp.ne.s32.totalorder %s22, %s23
    %p34 = scmp.eq.s32.totalorder %s14, 0
    %p35 = por %p33, %p34
    %p36 = scmp.ne.s32.totalorder %s22, %s23
    %p37 = scmp.eq.s32.totalorder %s15, 1
    %p38 = por %p36, %p37
    %p40 = scmp.ne.s32.totalorder %s23, %s39
    %p41 = scmp.eq.s32.totalorder %s15, 0
    %p42 = por %p40, %p41
    %s44 = sadd.s32 %s43, 1
    %p47 = scmp.eq.s32.totalorder %s9, 1
    %p48 = scmp.ne.s32.totalorder %s43, %s45
    %p49 = scmp.eq.s32.totalorder %s9, 0
    %p50 = por %p48, %p49
    %p51 = scmp.ne.s32.totalorder %s43, %s45
    %p52 = scmp.eq.s32.totalorder %s14, 1
    %p53 = por %p51, %p52
    %p54 = scmp.ne.s32.totalorder %s45, %s46
    %p55 = scmp.eq.s32.totalorder %s14, 0
    %p56 = por %p54, %p55
    %p57 = scmp.ne.s32.totalorder %s45, %s46
    %p58 = scmp.eq.s32.totalorder %s15, 1
    %p59 = por %p57, %p58
    %p61 = scmp.ne.s32.totalorder %s46, %s60
    %p62 = scmp.eq.s32.totalorder %s15, 0
    %p63 = por %p61, %p62
    %s65 = sadd.s32 %s64, 1
    %p68 = scmp.eq.s32.totalorder %s9, 1
    %p69 = scmp.ne.s32.totalorder %s64, %s66
    %p70 = scmp.eq.s32.totalorder %s9, 0
    %p71 = por %p69, %p70
    %p72 = scmp.ne.s32.totalorder %s64, %s66
    %p73 = scmp.eq.s32.totalorder %s14, 1
    %p74 = por %p72, %p73
    %p75 = scmp.ne.s32.totalorder %s66, %s67
    %p76 = scmp.eq.s32.totalorder %s14, 0
    %p77 = por %p75, %p76
    %p78 = scmp.ne.s32.totalorder %s66, %s67
    %p79 = scmp.eq.s32.totalorder %s15, 1
    %p80 = por %p78, %p79
    %p82 = scmp.ne.s32.totalorder %s67, %s81
    %p83 = scmp.eq.s32.totalorder %s15, 0
    %p84 = por %p82, %p83
    %s85 = ssub.s32 %s9, %s16
    %p86 = scmp.eq.s32.totalorder %s85, 0
    %s88 = sadd.s32 %s87, 1
    %s89 = scalar_select %p86, %s87, %s88
    %p92 = pneg %p86
    %p93 = scmp.eq.s32.totalorder %s9, 1
    %p94 = por %p92, %p93
    %p95 = scmp.ne.s32.totalorder %s87, %s90
    %p96 = scmp.eq.s32.totalorder %s9, 0
    %p97 = por %p95, %p96
    %p98 = scmp.ne.s32.totalorder %s87, %s90
    %p99 = scmp.eq.s32.totalorder %s14, 1
    %p100 = por %p98, %p99
    %p101 = scmp.ne.s32.totalorder %s90, %s91
    %p102 = scmp.eq.s32.totalorder %s14, 0
    %p103 = por %p101, %p102
    %p104 = scmp.ne.s32.totalorder %s90, %s91
    %p105 = scmp.eq.s32.totalorder %s15, 1
    %p106 = por %p104, %p105
    %p108 = scmp.ne.s32.totalorder %s91, %s107
    %p109 = scmp.eq.s32.totalorder %s15, 0
    %p110 = por %p108, %p109
    %p111 = scmp.le.s32.totalorder 1, %s9
    %p112 = scmp.lt.s32.totalorder %s9, 3
    %p113 = pnand %p111, %p112
    %p114 = pneg %p113
    // Predicated region
    $region9: #{cnn_forward.5} parent=5 // pred_check
      _
    $region10: #{cnn_forward.5} parent=5 // pred_check_branch
      %116 = sbr.rel (%p113) target = $region12
    $region11: #{cnn_forward.5} parent=5 // pred_region
      %s117 = ssub.s32 %s9, 1
      // Predicated region
      $region13: #{cnn_forward.5} parent=11 // pred_check
        %p118 = pneg %p56
      $region14: #{cnn_forward.5} parent=11 // pred_check_branch
        %120 = sbr.rel (%p118) target = $region16
      $region15: #{cnn_forward.5} parent=11 // pred_region
        _
      $region16: #{cnn_forward.5} parent=11 // pred_fallthru
        _
      // Predicated region
      $region17: #{cnn_forward.5} parent=11 // pred_check
        %p121 = pneg %p77
      $region18: #{cnn_forward.5} parent=11 // pred_check_branch
        %123 = sbr.rel (%p121) target = $region20
      $region19: #{cnn_forward.5} parent=11 // pred_region
        _
      $region20: #{cnn_forward.5} parent=11 // pred_fallthru
        _
    $region12: #{cnn_forward.5} parent=5 // pred_fallthru
      _
    %p124 = scmp.lt.s32.totalorder %s9, 2
    // Predicated region
    $region21: #{cnn_forward.5} parent=5 // pred_check
      %p125 = pneg %p124
    $region22: #{cnn_forward.5} parent=5 // pred_check_branch
      %127 = sbr.rel (%p125) target = $region24
    $region23: #{cnn_forward.5} parent=5 // pred_region
      // Predicated region
      $region25: #{cnn_forward.5} parent=23 // pred_check
        %p128 = pneg %p29
      $region26: #{cnn_forward.5} parent=23 // pred_check_branch
        %130 = sbr.rel (%p128) target = $region28
      $region27: #{cnn_forward.5} parent=23 // pred_region
        %p131 = scmp.lt.s32.totalorder %s9, 1
        %s132 = scalar_select %p131, %s9, 1
        %s133 = smul.addr %s132, 43
        %s134 = smul.addr %s133, 4
        %s135 = scalar_lea.vmem %s0, %s134
      $region28: #{cnn_forward.5} parent=23 // pred_fallthru
        _
    $region24: #{cnn_forward.5} parent=5 // pred_fallthru
      _
    %p136 = scmp.le.s32.totalorder 1, %s9
    %p137 = scmp.lt.s32.totalorder %s9, 3
    %p138 = pnand %p136, %p137
    %p139 = pneg %p138
    // Predicated region
    $region29: #{cnn_forward.5} parent=5 // pred_check
      _
    $region30: #{cnn_forward.5} parent=5 // pred_check_branch
      %141 = sbr.rel (%p138) target = $region32
    $region31: #{cnn_forward.5} parent=5 // pred_region
      %s142 = ssub.s32 %s9, 1
      %p143 = scmp.lt.s32.totalorder %s14, 1
      %s144 = scalar_select %p143, %s14, 1
      %s145 = smul.addr %s144, 43
      %s146 = smul.addr %s145, 4
      %s147 = scalar_lea.vmem %s0, %s146
      %p148 = pneg %p35
      %p149 = pneg %p32
      %p150 = pneg %p56
      %p151 = pneg %p53
      %p152 = pneg %p77
      %p153 = pneg %p74
      %p154 = pneg %p103
      %p155 = pneg %p100
      %p156 = scmp.lt.s32.totalorder %s14, 1
      %s157 = scalar_select %p156, %s14, 1
      %s158 = smul.addr %s157, 36
      %s159 = smul.addr %s158, 4
      %s160 = scalar_lea.vmem %s3, %s159
      %p161 = scmp.lt.s32.totalorder %s14, 1
      %s162 = scalar_select %p161, %s14, 1
      %s163 = smul.addr %s162, 43
      %s164 = smul.addr %s163, 4
      %s165 = scalar_lea.vmem %s0, %s164
      %p166 = scmp.lt.s32.totalorder %s14, 1
      %s167 = scalar_select %p166, %s14, 1
      %s168 = smul.addr %s167, 36
      %s169 = smul.addr %s168, 4
      %s170 = scalar_lea.vmem %s3, %s169
      %v172 = vld [vmem:[%s165] sm:$0xf]
      %v173 = vld [vmem:[%s165 + $0x4] sm:$0xf]
      %v174 = vld [vmem:[%s165 + $0x8] sm:$0xf]
      %v175 = vld [vmem:[%s165 + $0xc] sm:$0xf]
      %v176 = vld [vmem:[%s165 + $0x10] sm:$0xf]
      %v177 = vld [vmem:[%s165 + $0x14] sm:$0xf]
      %v178 = vld [vmem:[%s165 + $0x18] sm:$0xf]
      %v179 = vld [vmem:[%s165 + $0x1c] sm:$0xf]
      %v180 = vld [vmem:[%s165 + $0x20] sm:$0xf]
      %v181 = vld [vmem:[%s165 + $0x24] sm:$0xf]
      %v182 = vld [vmem:[%s165 + $0x28] sm:$0xf]
      %v183 = vld [vmem:[%s165 + $0x2c] sm:$0xf]
      %v184 = vld [vmem:[%s165 + $0x30] sm:$0xf]
      %v185 = vld [vmem:[%s165 + $0x34] sm:$0xf]
      %v186 = vld [vmem:[%s165 + $0x38] sm:$0xf]
      %v187 = vld [vmem:[%s165 + $0x3c] sm:$0xf]
      %v188 = vld [vmem:[%s165 + $0x40] sm:$0xf]
      %v189 = vld [vmem:[%s165 + $0x44] sm:$0xf]
      %v190 = vld [vmem:[%s165 + $0x48] sm:$0xf]
      %v191 = vld [vmem:[%s165 + $0x4c] sm:$0xf]
      %v192 = vld [vmem:[%s165 + $0x50] sm:$0xf]
      %v193 = vld [vmem:[%s165 + $0x54] sm:$0xf]
      %v194 = vld [vmem:[%s165 + $0x58] sm:$0xf]
      %v195 = vld [vmem:[%s165 + $0x5c] sm:$0xf]
      %v196 = vld [vmem:[%s165 + $0x60] sm:$0xf]
      %v197 = vld [vmem:[%s165 + $0x64] sm:$0xf]
      %v198 = vld [vmem:[%s165 + $0x68] sm:$0xf]
      %v199 = vld [vmem:[%s165 + $0x6c] sm:$0xf]
      %v200 = vld [vmem:[%s165 + $0x70] sm:$0xf]
      %v201 = vld [vmem:[%s165 + $0x74] sm:$0xf]
      %v202 = vld [vmem:[%s165 + $0x78] sm:$0xf]
      %v203 = vld [vmem:[%s165 + $0x7c] sm:$0xf]
      %v204 = vld [vmem:[%s165 + $0x80] sm:$0xf]
      %v205 = vld [vmem:[%s165 + $0x84] sm:$0xf]
      %v206 = vld [vmem:[%s165 + $0x88] sm:$0xf]
      %v207 = vld [vmem:[%s165 + $0x8c] sm:$0xf]
      %v208 = vld [vmem:[%s1] sm:$0x3]
      %v209 = vld [vmem:[%s165 + $0x90] sm:$0x1]
      %s210 = scalar_lea.vmem %s1, 2
      %v211 = vld [vmem:[%s210] sm:$0x3]
      %v249 = vunpack.c.l.b16 %v172
      %v250 = vunpack.c.l.b16 %v173
      %v251 = vunpack.c.l.b16 %v174
      %v252 = vunpack.c.l.b16 %v175
      %v253 = vunpack.c.l.b16 %v176
      %v254 = vunpack.c.l.b16 %v177
      %v255 = vunpack.c.l.b16 %v178
      %v256 = vunpack.c.l.b16 %v179
      %v257 = vunpack.c.l.b16 %v180
      %v258 = vunpack.c.l.b16 %v181
      %v259 = vunpack.c.l.b16 %v182
      %v260 = vunpack.c.l.b16 %v183
      %v261 = vunpack.c.l.b16 %v184
      %v262 = vunpack.c.l.b16 %v185
      %v263 = vunpack.c.l.b16 %v186
      %v264 = vunpack.c.l.b16 %v187
      %v265 = vunpack.c.l.b16 %v188
      %v266 = vunpack.c.l.b16 %v189
      %v267 = vunpack.c.l.b16 %v190
      %v268 = vunpack.c.l.b16 %v191
      %v269 = vunpack.c.l.b16 %v192
      %v270 = vunpack.c.l.b16 %v193
      %v271 = vunpack.c.l.b16 %v194
      %v272 = vunpack.c.l.b16 %v195
      %v273 = vunpack.c.l.b16 %v196
      %v274 = vunpack.c.l.b16 %v197
      %v275 = vunpack.c.l.b16 %v198
      %v276 = vunpack.c.l.b16 %v199
      %v277 = vunpack.c.l.b16 %v200
      %v278 = vunpack.c.l.b16 %v201
      %v279 = vunpack.c.l.b16 %v202
      %v280 = vunpack.c.l.b16 %v203
      %v281 = vunpack.c.l.b16 %v204
      %v282 = vunpack.c.l.b16 %v205
      %v283 = vunpack.c.l.b16 %v206
      %v284 = vunpack.c.l.b16 %v207
      %v285 = vunpack.c.l.b16 %v209
      %v286 = vpack.c.b16 %v250, %v249
      %v287 = vpack.c.b16 %v252, %v251
      %v288 = vpack.c.b16 %v254, %v253
      %v289 = vpack.c.b16 %v256, %v255
      %v290 = vpack.c.b16 %v258, %v257
      %v291 = vpack.c.b16 %v260, %v259
      %v292 = vpack.c.b16 %v262, %v261
      %v293 = vpack.c.b16 %v264, %v263
      %v294 = vpack.c.b16 %v266, %v265
      %v295 = vpack.c.b16 %v268, %v267
      %v296 = vpack.c.b16 %v270, %v269
      %v297 = vpack.c.b16 %v272, %v271
      %v298 = vpack.c.b16 %v274, %v273
      %v299 = vpack.c.b16 %v276, %v275
      %v300 = vpack.c.b16 %v278, %v277
      %v301 = vpack.c.b16 %v280, %v279
      %v302 = vpack.c.b16 %v282, %v281
      %v303 = vpack.c.b16 %v284, %v283
      %v304 = vpack.c.b16 %v285, %v285
      %vm305 = vsmask.f32 7424
      %v307 = vshrl.u32 %v286, 16
      %v309 = vshll.u32 %v286, 16
      %v311 = vrot.slane %v309, 1
      %v312 = vor.u32 %v307, %v311
      %v314 = vshll.u32 %v287, 16
      %v316 = vrot.slane %v314, 1
      %v317 = vsel %vm305, %v312, %v316
      %v318 = vshrl.u32 %v287, 16
      %v320 = vor.u32 %v318, %v316
      %v322 = vshll.u32 %v288, 16
      %v324 = vrot.slane %v322, 1
      %v325 = vsel %vm305, %v320, %v324
      %v326 = vshrl.u32 %v288, 16
      %v328 = vor.u32 %v326, %v324
      %v330 = vshll.u32 %v289, 16
      %v332 = vrot.slane %v330, 1
      %v333 = vsel %vm305, %v328, %v332
      %v334 = vshrl.u32 %v289, 16
      %v336 = vor.u32 %v334, %v332
      %v338 = vshll.u32 %v290, 16
      %v340 = vrot.slane %v338, 1
      %v341 = vsel %vm305, %v336, %v340
      %v342 = vshrl.u32 %v290, 16
      %v344 = vor.u32 %v342, %v340
      %v346 = vshll.u32 %v291, 16
      %v348 = vrot.slane %v346, 1
      %v349 = vsel %vm305, %v344, %v348
      %v350 = vshrl.u32 %v291, 16
      %v352 = vor.u32 %v350, %v348
      %v354 = vshll.u32 %v292, 16
      %v356 = vrot.slane %v354, 1
      %v357 = vsel %vm305, %v352, %v356
      %v358 = vshrl.u32 %v292, 16
      %v360 = vor.u32 %v358, %v356
      %v362 = vshll.u32 %v293, 16
      %v364 = vrot.slane %v362, 1
      %v365 = vsel %vm305, %v360, %v364
      %v366 = vshrl.u32 %v293, 16
      %v368 = vor.u32 %v366, %v364
      %v370 = vshll.u32 %v294, 16
      %v372 = vrot.slane %v370, 1
      %v373 = vsel %vm305, %v368, %v372
      %v374 = vshrl.u32 %v294, 16
      %v376 = vor.u32 %v374, %v372
      %v378 = vshll.u32 %v295, 16
      %v380 = vrot.slane %v378, 1
      %v381 = vsel %vm305, %v376, %v380
      %v382 = vshrl.u32 %v295, 16
      %v384 = vor.u32 %v382, %v380
      %v386 = vshll.u32 %v296, 16
      %v388 = vrot.slane %v386, 1
      %v389 = vsel %vm305, %v384, %v388
      %v390 = vshrl.u32 %v296, 16
      %v392 = vor.u32 %v390, %v388
      %v394 = vshll.u32 %v297, 16
      %v396 = vrot.slane %v394, 1
      %v397 = vsel %vm305, %v392, %v396
      %v398 = vshrl.u32 %v297, 16
      %v400 = vor.u32 %v398, %v396
      %v402 = vshll.u32 %v298, 16
      %v404 = vrot.slane %v402, 1
      %v405 = vsel %vm305, %v400, %v404
      %v406 = vshrl.u32 %v298, 16
      %v408 = vor.u32 %v406, %v404
      %v410 = vshll.u32 %v299, 16
      %v412 = vrot.slane %v410, 1
      %v413 = vsel %vm305, %v408, %v412
      %v414 = vshrl.u32 %v299, 16
      %v416 = vor.u32 %v414, %v412
      %v418 = vshll.u32 %v300, 16
      %v420 = vrot.slane %v418, 1
      %v421 = vsel %vm305, %v416, %v420
      %v422 = vshrl.u32 %v300, 16
      %v424 = vor.u32 %v422, %v420
      %v426 = vshll.u32 %v301, 16
      %v428 = vrot.slane %v426, 1
      %v429 = vsel %vm305, %v424, %v428
      %v430 = vshrl.u32 %v301, 16
      %v432 = vor.u32 %v430, %v428
      %v434 = vshll.u32 %v302, 16
      %v436 = vrot.slane %v434, 1
      %v437 = vsel %vm305, %v432, %v436
      %v438 = vshrl.u32 %v302, 16
      %v440 = vor.u32 %v438, %v436
      %v442 = vshll.u32 %v303, 16
      %v444 = vrot.slane %v442, 1
      %v445 = vsel %vm305, %v440, %v444
      %v446 = vshrl.u32 %v303, 16
      %v448 = vor.u32 %v446, %v444
      %v450 = vshll.u32 %v304, 16
      %v452 = vrot.slane %v450, 1
      %v453 = vsel %vm305, %v448, %v452
      %vm454 = vcmask 23552
      %v456 = vsel %vm454, %v317, 0
      %v459 = vsel %vm454, %v325, 0
      %v462 = vsel %vm454, %v333, 0
      %v465 = vsel %vm454, %v341, 0
      %v468 = vsel %vm454, %v349, 0
      %v471 = vsel %vm454, %v357, 0
      %v474 = vsel %vm454, %v365, 0
      %v477 = vsel %vm454, %v373, 0
      %v480 = vsel %vm454, %v381, 0
      %v483 = vsel %vm454, %v389, 0
      %v486 = vsel %vm454, %v397, 0
      %v489 = vsel %vm454, %v405, 0
      %v492 = vsel %vm454, %v413, 0
      %v495 = vsel %vm454, %v421, 0
      %v498 = vsel %vm454, %v429, 0
      %v501 = vsel %vm454, %v437, 0
      %v504 = vsel %vm454, %v445, 0
      %v507 = vsel %vm454, %v453, 0
      %vm509 = vcmask 1040384
      %vm510 = vcmask 1041408
      %v511 = vsel %vm509, 4294967295, 65535
      %v512 = vsel %vm510, %v511, 0
      %v514 = vand.u32 %v211, %v512
      %516 = vmatprep.subr.bf16.mxu0 0
      %517 = vmatpush1.bf16.msra.mxu0 %v514
      %518 = vmatprep.subr.bf16.mxu0 0
      %519 = vmatpush1.bf16.msra.mxu0 0
      %520 = vmatprep.subr.bf16.mxu0 0
      %521 = vmatpush1.bf16.msra.mxu0 0
      %522 = vmatprep.subr.bf16.mxu0 0
      %523 = vmatpush1.bf16.msra.mxu0 0
      %524 = vmatprep.subr.bf16.mxu0 0
      %525 = vmatpush1.bf16.msra.mxu0 0
      %526 = vmatprep.subr.bf16.mxu0 0
      %527 = vmatpush1.bf16.msra.mxu0 0
      %528 = vmatprep.subr.bf16.mxu0 0
      %529 = vmatpush1.bf16.msra.mxu0 0
      %530 = vmatprep.subr.bf16.mxu0 0
      %531 = vmatpush1.bf16.msra.mxu0 0
      %532 = vmatprep.subr.bf16.mxu0 0
      %533 = vmatpush1.bf16.msra.mxu0 0
      %534 = vmatprep.subr.bf16.mxu0 0
      %535 = vmatpush1.bf16.msra.mxu0 0
      %536 = vmatprep.subr.bf16.mxu0 0
      %537 = vmatpush1.bf16.msra.mxu0 0
      %538 = vmatprep.subr.bf16.mxu0 0
      %539 = vmatpush1.bf16.msra.mxu0 0
      %540 = vmatprep.subr.bf16.mxu0 0
      %541 = vmatpush1.bf16.msra.mxu0 0
      %542 = vmatprep.subr.bf16.mxu0 0
      %543 = vmatpush1.bf16.msra.mxu0 0
      %544 = vmatprep.subr.bf16.mxu0 0
      %545 = vmatpush1.bf16.msra.mxu0 0
      %546 = vmatprep.subr.bf16.mxu0 0
      %547 = vmatpush1.bf16.msra.mxu0 0
      %548 = vmatprep.mubr.bf16.mxu0 0
      %549 = vmatmul.mubr.bf16.gmra.mrb[0].mxu0 %v456
      %v550 = vpop.f32.mrb[0].mxu0
      %v551 = vadd.f32 0.0, %v550
      %v552 = vpop.f32.mrb[0].mxu0
      %v553 = vpop.f32.mrb[0].mxu0
      %v554 = vadd.f32 0.0, %v553
      %v555 = vpop.f32.mrb[0].mxu0
      %556 = vmatprep.mubr.bf16.mxu0 0
      %557 = vmatmul.mubr.bf16.gmra.mrb[0].mxu0 %v459
      %v558 = vpop.f32.mrb[0].mxu0
      %v559 = vadd.f32 0.0, %v558
      %v560 = vpop.f32.mrb[0].mxu0
      %v561 = vpop.f32.mrb[0].mxu0
      %v562 = vadd.f32 0.0, %v561
      %v563 = vpop.f32.mrb[0].mxu0
      %564 = vmatprep.mubr.bf16.mxu0 0
      %565 = vmatmul.mubr.bf16.gmra.mrb[0].mxu0 %v462
      %v566 = vpop.f32.mrb[0].mxu0
      %v567 = vadd.f32 0.0, %v566
      %v568 = vpop.f32.mrb[0].mxu0
      %v569 = vpop.f32.mrb[0].mxu0
      %v570 = vadd.f32 0.0, %v569
      %v571 = vpop.f32.mrb[0].mxu0
      %572 = vmatprep.mubr.bf16.mxu0 0
      %573 = vmatmul.mubr.bf16.gmra.mrb[0].mxu0 %v465
      %v574 = vpop.f32.mrb[0].mxu0
      %v575 = vadd.f32 0.0, %v574
      %v576 = vpop.f32.mrb[0].mxu0
      %v577 = vpop.f32.mrb[0].mxu0
      %v578 = vadd.f32 0.0, %v577
      %v579 = vpop.f32.mrb[0].mxu0
      %580 = vmatprep.mubr.bf16.mxu0 0
      %581 = vmatmul.mubr.bf16.gmra.mrb[0].mxu0 %v468
      %v582 = vpop.f32.mrb[0].mxu0
      %v583 = vadd.f32 0.0, %v582
      %v584 = vpop.f32.mrb[0].mxu0
      %v585 = vpop.f32.mrb[0].mxu0
      %v586 = vadd.f32 0.0, %v585
      %v587 = vpop.f32.mrb[0].mxu0
      %588 = vmatprep.mubr.bf16.mxu0 0
      %589 = vmatmul.mubr.bf16.gmra.mrb[0].mxu0 %v471
      %v590 = vpop.f32.mrb[0].mxu0
      %v591 = vadd.f32 0.0, %v590
      %v592 = vpop.f32.mrb[0].mxu0
      %v593 = vpop.f32.mrb[0].mxu0
      %v594 = vadd.f32 0.0, %v593
      %v595 = vpop.f32.mrb[0].mxu0
      %596 = vmatprep.mubr.bf16.mxu0 0
      %597 = vmatmul.mubr.bf16.gmra.mrb[0].mxu0 %v474
      %v598 = vpop.f32.mrb[0].mxu0
      %v599 = vadd.f32 0.0, %v598
      %v600 = vpop.f32.mrb[0].mxu0
      %v601 = vpop.f32.mrb[0].mxu0
      %v602 = vadd.f32 0.0, %v601
      %v603 = vpop.f32.mrb[0].mxu0
      %604 = vmatprep.mubr.bf16.mxu0 0
      %605 = vmatmul.mubr.bf16.gmra.mrb[0].mxu0 %v477
      %v606 = vpop.f32.mrb[0].mxu0
      %v607 = vadd.f32 0.0, %v606
      %v608 = vpop.f32.mrb[0].mxu0
      %v609 = vpop.f32.mrb[0].mxu0
      %v610 = vadd.f32 0.0, %v609
      %v611 = vpop.f32.mrb[0].mxu0
      %612 = vmatprep.mubr.bf16.mxu0 0
      %613 = vmatmul.mubr.bf16.gmra.mrb[0].mxu0 %v480
      %v614 = vpop.f32.mrb[0].mxu0
      %v615 = vadd.f32 0.0, %v614
      %v616 = vpop.f32.mrb[0].mxu0
      %v617 = vpop.f32.mrb[0].mxu0
      %v618 = vadd.f32 0.0, %v617
      %v619 = vpop.f32.mrb[0].mxu0
      %620 = vmatprep.mubr.bf16.mxu0 0
      %621 = vmatmul.mubr.bf16.gmra.mrb[0].mxu0 %v483
      %v622 = vpop.f32.mrb[0].mxu0
      %v623 = vadd.f32 0.0, %v622
      %v624 = vpop.f32.mrb[0].mxu0
      %v625 = vpop.f32.mrb[0].mxu0
      %v626 = vadd.f32 0.0, %v625
      %v627 = vpop.f32.mrb[0].mxu0
      %628 = vmatprep.mubr.bf16.mxu0 0
      %629 = vmatmul.mubr.bf16.gmra.mrb[0].mxu0 %v486
      %v630 = vpop.f32.mrb[0].mxu0
      %v631 = vadd.f32 0.0, %v630
      %v632 = vpop.f32.mrb[0].mxu0
      %v633 = vpop.f32.mrb[0].mxu0
      %v634 = vadd.f32 0.0, %v633
      %v635 = vpop.f32.mrb[0].mxu0
      %636 = vmatprep.mubr.bf16.mxu0 0
      %637 = vmatmul.mubr.bf16.gmra.mrb[0].mxu0 %v489
      %v638 = vpop.f32.mrb[0].mxu0
      %v639 = vadd.f32 0.0, %v638
      %v640 = vpop.f32.mrb[0].mxu0
      %v641 = vpop.f32.mrb[0].mxu0
      %v642 = vadd.f32 0.0, %v641
      %v643 = vpop.f32.mrb[0].mxu0
      %644 = vmatprep.mubr.bf16.mxu0 0
      %645 = vmatmul.mubr.bf16.gmra.mrb[0].mxu0 %v492
      %v646 = vpop.f32.mrb[0].mxu0
      %v647 = vadd.f32 0.0, %v646
      %v648 = vpop.f32.mrb[0].mxu0
      %v649 = vpop.f32.mrb[0].mxu0
      %v650 = vadd.f32 0.0, %v649
      %v651 = vpop.f32.mrb[0].mxu0
      %652 = vmatprep.mubr.bf16.mxu0 0
      %653 = vmatmul.mubr.bf16.gmra.mrb[0].mxu0 %v495
      %v654 = vpop.f32.mrb[0].mxu0
      %v655 = vadd.f32 0.0, %v654
      %v656 = vpop.f32.mrb[0].mxu0
      %v657 = vpop.f32.mrb[0].mxu0
      %v658 = vadd.f32 0.0, %v657
      %v659 = vpop.f32.mrb[0].mxu0
      %660 = vmatprep.mubr.bf16.mxu0 0
      %661 = vmatmul.mubr.bf16.gmra.mrb[0].mxu0 %v498
      %v662 = vpop.f32.mrb[0].mxu0
      %v663 = vadd.f32 0.0, %v662
      %v664 = vpop.f32.mrb[0].mxu0
      %v665 = vpop.f32.mrb[0].mxu0
      %v666 = vadd.f32 0.0, %v665
      %v667 = vpop.f32.mrb[0].mxu0
      %668 = vmatprep.mubr.bf16.mxu0 0
      %669 = vmatmul.mubr.bf16.gmra.mrb[0].mxu0 %v501
      %v670 = vpop.f32.mrb[0].mxu0
      %v671 = vadd.f32 0.0, %v670
      %v672 = vpop.f32.mrb[0].mxu0
      %v673 = vpop.f32.mrb[0].mxu0
      %v674 = vadd.f32 0.0, %v673
      %v675 = vpop.f32.mrb[0].mxu0
      %676 = vmatprep.mubr.bf16.mxu0 0
      %677 = vmatmul.mubr.bf16.gmra.mrb[0].mxu0 %v504
      %v678 = vpop.f32.mrb[0].mxu0
      %v679 = vadd.f32 0.0, %v678
      %v680 = vpop.f32.mrb[0].mxu0
      %v681 = vpop.f32.mrb[0].mxu0
      %v682 = vadd.f32 0.0, %v681
      %v683 = vpop.f32.mrb[0].mxu0
      %684 = vmatprep.mubr.bf16.mxu0 0
      %685 = vmatmul.mubr.bf16.gmra.mrb[0].mxu0 %v507
      %v686 = vpop.f32.mrb[0].mxu0
      %v687 = vadd.f32 0.0, %v686
      %v688 = vpop.f32.mrb[0].mxu0
      %v689 = vpop.f32.mrb[0].mxu0
      %v690 = vadd.f32 0.0, %v689
      %v691 = vpop.f32.mrb[0].mxu0
      %692 = vdwg.mxu0
      %v693 = vsel %vm454, %v286, 0
      %v695 = vsel %vm454, %v287, 0
      %v697 = vsel %vm454, %v288, 0
      %v699 = vsel %vm454, %v289, 0
      %v701 = vsel %vm454, %v290, 0
      %v703 = vsel %vm454, %v291, 0
      %v705 = vsel %vm454, %v292, 0
      %v707 = vsel %vm454, %v293, 0
      %v709 = vsel %vm454, %v294, 0
      %v711 = vsel %vm454, %v295, 0
      %v713 = vsel %vm454, %v296, 0
      %v715 = vsel %vm454, %v297, 0
      %v717 = vsel %vm454, %v298, 0
      %v719 = vsel %vm454, %v299, 0
      %v721 = vsel %vm454, %v300, 0
      %v723 = vsel %vm454, %v301, 0
      %v725 = vsel %vm454, %v302, 0
      %v727 = vsel %vm454, %v303, 0
      %v730 = vand.u32 %v208, %v512
      %732 = vmatprep.subr.bf16.mxu0 0
      %733 = vmatpush1.bf16.msra.mxu0 %v730
      %734 = vmatprep.subr.bf16.mxu0 0
      %735 = vmatpush1.bf16.msra.mxu0 0
      %736 = vmatprep.subr.bf16.mxu0 0
      %737 = vmatpush1.bf16.msra.mxu0 0
      %738 = vmatprep.subr.bf16.mxu0 0
      %739 = vmatpush1.bf16.msra.mxu0 0
      %740 = vmatprep.subr.bf16.mxu0 0
      %741 = vmatpush1.bf16.msra.mxu0 0
      %742 = vmatprep.subr.bf16.mxu0 0
      %743 = vmatpush1.bf16.msra.mxu0 0
      %744 = vmatprep.subr.bf16.mxu0 0
      %745 = vmatpush1.bf16.msra.mxu0 0
      %746 = vmatprep.subr.bf16.mxu0 0
      %747 = vmatpush1.bf16.msra.mxu0 0
      %748 = vmatprep.subr.bf16.mxu0 0
      %749 = vmatpush1.bf16.msra.mxu0 0
      %750 = vmatprep.subr.bf16.mxu0 0
      %751 = vmatpush1.bf16.msra.mxu0 0
      %752 = vmatprep.subr.bf16.mxu0 0
      %753 = vmatpush1.bf16.msra.mxu0 0
      %754 = vmatprep.subr.bf16.mxu0 0
      %755 = vmatpush1.bf16.msra.mxu0 0
      %756 = vmatprep.subr.bf16.mxu0 0
      %757 = vmatpush1.bf16.msra.mxu0 0
      %758 = vmatprep.subr.bf16.mxu0 0
      %759 = vmatpush1.bf16.msra.mxu0 0
      %760 = vmatprep.subr.bf16.mxu0 0
      %761 = vmatpush1.bf16.msra.mxu0 0
      %762 = vmatprep.subr.bf16.mxu0 0
      %763 = vmatpush1.bf16.msra.mxu0 0
      %764 = vmatprep.mubr.bf16.mxu0 0
      %765 = vmatmul.mubr.bf16.gmra.mrb[0].mxu0 %v693
      %v766 = vpop.f32.mrb[0].mxu0
      %v767 = vadd.f32 %v551, %v766
      %v768 = vpop.f32.mrb[0].mxu0
      %v769 = vpop.f32.mrb[0].mxu0
      %v770 = vadd.f32 %v554, %v769
      %v771 = vpop.f32.mrb[0].mxu0
      %772 = vmatprep.mubr.bf16.mxu0 0
      %773 = vmatmul.mubr.bf16.gmra.mrb[0].mxu0 %v695
      %v774 = vpop.f32.mrb[0].mxu0
      %v775 = vadd.f32 %v559, %v774
      %v776 = vpop.f32.mrb[0].mxu0
      %v777 = vpop.f32.mrb[0].mxu0
      %v778 = vadd.f32 %v562, %v777
      %v779 = vpop.f32.mrb[0].mxu0
      %780 = vmatprep.mubr.bf16.mxu0 0
      %781 = vmatmul.mubr.bf16.gmra.mrb[0].mxu0 %v697
      %v782 = vpop.f32.mrb[0].mxu0
      %v783 = vadd.f32 %v567, %v782
      %v784 = vpop.f32.mrb[0].mxu0
      %v785 = vpop.f32.mrb[0].mxu0
      %v786 = vadd.f32 %v570, %v785
      %v787 = vpop.f32.mrb[0].mxu0
      %788 = vmatprep.mubr.bf16.mxu0 0
      %789 = vmatmul.mubr.bf16.gmra.mrb[0].mxu0 %v699
      %v790 = vpop.f32.mrb[0].mxu0
      %v791 = vadd.f32 %v575, %v790
      %v792 = vpop.f32.mrb[0].mxu0
      %v793 = vpop.f32.mrb[0].mxu0
      %v794 = vadd.f32 %v578, %v793
      %v795 = vpop.f32.mrb[0].mxu0
      %796 = vmatprep.mubr.bf16.mxu0 0
      %797 = vmatmul.mubr.bf16.gmra.mrb[0].mxu0 %v701
      %v798 = vpop.f32.mrb[0].mxu0
      %v799 = vadd.f32 %v583, %v798
      %v800 = vpop.f32.mrb[0].mxu0
      %v801 = vpop.f32.mrb[0].mxu0
      %v802 = vadd.f32 %v586, %v801
      %v803 = vpop.f32.mrb[0].mxu0
      %804 = vmatprep.mubr.bf16.mxu0 0
      %805 = vmatmul.mubr.bf16.gmra.mrb[0].mxu0 %v703
      %v806 = vpop.f32.mrb[0].mxu0
      %v807 = vadd.f32 %v591, %v806
      %v808 = vpop.f32.mrb[0].mxu0
      %v809 = vpop.f32.mrb[0].mxu0
      %v810 = vadd.f32 %v594, %v809
      %v811 = vpop.f32.mrb[0].mxu0
      %812 = vmatprep.mubr.bf16.mxu0 0
      %813 = vmatmul.mubr.bf16.gmra.mrb[0].mxu0 %v705
      %v814 = vpop.f32.mrb[0].mxu0
      %v815 = vadd.f32 %v599, %v814
      %v816 = vpop.f32.mrb[0].mxu0
      %v817 = vpop.f32.mrb[0].mxu0
      %v818 = vadd.f32 %v602, %v817
      %v819 = vpop.f32.mrb[0].mxu0
      %820 = vmatprep.mubr.bf16.mxu0 0
      %821 = vmatmul.mubr.bf16.gmra.mrb[0].mxu0 %v707
      %v822 = vpop.f32.mrb[0].mxu0
      %v823 = vadd.f32 %v607, %v822
      %v824 = vpop.f32.mrb[0].mxu0
      %v825 = vpop.f32.mrb[0].mxu0
      %v826 = vadd.f32 %v610, %v825
      %v827 = vpop.f32.mrb[0].mxu0
      %828 = vmatprep.mubr.bf16.mxu0 0
      %829 = vmatmul.mubr.bf16.gmra.mrb[0].mxu0 %v709
      %v830 = vpop.f32.mrb[0].mxu0
      %v831 = vadd.f32 %v615, %v830
      %v832 = vpop.f32.mrb[0].mxu0
      %v833 = vpop.f32.mrb[0].mxu0
      %v834 = vadd.f32 %v618, %v833
      %v835 = vpop.f32.mrb[0].mxu0
      %836 = vmatprep.mubr.bf16.mxu0 0
      %837 = vmatmul.mubr.bf16.gmra.mrb[0].mxu0 %v711
      %v838 = vpop.f32.mrb[0].mxu0
      %v839 = vadd.f32 %v623, %v838
      %v840 = vpop.f32.mrb[0].mxu0
      %v841 = vpop.f32.mrb[0].mxu0
      %v842 = vadd.f32 %v626, %v841
      %v843 = vpop.f32.mrb[0].mxu0
      %844 = vmatprep.mubr.bf16.mxu0 0
      %845 = vmatmul.mubr.bf16.gmra.mrb[0].mxu0 %v713
      %v846 = vpop.f32.mrb[0].mxu0
      %v847 = vadd.f32 %v631, %v846
      %v848 = vpop.f32.mrb[0].mxu0
      %v849 = vpop.f32.mrb[0].mxu0
      %v850 = vadd.f32 %v634, %v849
      %v851 = vpop.f32.mrb[0].mxu0
      %852 = vmatprep.mubr.bf16.mxu0 0
      %853 = vmatmul.mubr.bf16.gmra.mrb[0].mxu0 %v715
      %v854 = vpop.f32.mrb[0].mxu0
      %v855 = vadd.f32 %v639, %v854
      %v856 = vpop.f32.mrb[0].mxu0
      %v857 = vpop.f32.mrb[0].mxu0
      %v858 = vadd.f32 %v642, %v857
      %v859 = vpop.f32.mrb[0].mxu0
      %860 = vmatprep.mubr.bf16.mxu0 0
      %861 = vmatmul.mubr.bf16.gmra.mrb[0].mxu0 %v717
      %v862 = vpop.f32.mrb[0].mxu0
      %v863 = vadd.f32 %v647, %v862
      %v864 = vpop.f32.mrb[0].mxu0
      %v865 = vpop.f32.mrb[0].mxu0
      %v866 = vadd.f32 %v650, %v865
      %v867 = vpop.f32.mrb[0].mxu0
      %868 = vmatprep.mubr.bf16.mxu0 0
      %869 = vmatmul.mubr.bf16.gmra.mrb[0].mxu0 %v719
      %v870 = vpop.f32.mrb[0].mxu0
      %v871 = vadd.f32 %v655, %v870
      %v872 = vpop.f32.mrb[0].mxu0
      %v873 = vpop.f32.mrb[0].mxu0
      %v874 = vadd.f32 %v658, %v873
      %v875 = vpop.f32.mrb[0].mxu0
      %876 = vmatprep.mubr.bf16.mxu0 0
      %877 = vmatmul.mubr.bf16.gmra.mrb[0].mxu0 %v721
      %v878 = vpop.f32.mrb[0].mxu0
      %v879 = vadd.f32 %v663, %v878
      %v880 = vpop.f32.mrb[0].mxu0
      %v881 = vpop.f32.mrb[0].mxu0
      %v882 = vadd.f32 %v666, %v881
      %v883 = vpop.f32.mrb[0].mxu0
      %884 = vmatprep.mubr.bf16.mxu0 0
      %885 = vmatmul.mubr.bf16.gmra.mrb[0].mxu0 %v723
      %v886 = vpop.f32.mrb[0].mxu0
      %v887 = vadd.f32 %v671, %v886
      %v888 = vpop.f32.mrb[0].mxu0
      %v889 = vpop.f32.mrb[0].mxu0
      %v890 = vadd.f32 %v674, %v889
      %v891 = vpop.f32.mrb[0].mxu0
      %892 = vmatprep.mubr.bf16.mxu0 0
      %893 = vmatmul.mubr.bf16.gmra.mrb[0].mxu0 %v725
      %v894 = vpop.f32.mrb[0].mxu0
      %v895 = vadd.f32 %v679, %v894
      %v896 = vpop.f32.mrb[0].mxu0
      %v897 = vpop.f32.mrb[0].mxu0
      %v898 = vadd.f32 %v682, %v897
      %v899 = vpop.f32.mrb[0].mxu0
      %900 = vmatprep.mubr.bf16.mxu0 0
      %901 = vmatmul.mubr.bf16.gmra.mrb[0].mxu0 %v727
      %v902 = vpop.f32.mrb[0].mxu0
      %v903 = vadd.f32 %v687, %v902
      %v904 = vpop.f32.mrb[0].mxu0
      %v905 = vpop.f32.mrb[0].mxu0
      %v906 = vadd.f32 %v690, %v905
      %v907 = vpop.f32.mrb[0].mxu0
      %908 = vdwg.mxu0
      %v909 = vld [vmem:[%s165] sm:$0xe]
      %s910 = scalar_lea.vmem %s1, 4
      %v911 = vld [vmem:[%s910] sm:$0x3]
      %v913 = vunpack.c.l.b16 %v909
      %v914 = vpack.c.b16 %v250, %v913
      %vm915 = vcmask 1046528
      %v916 = vrot.slane %v914, 1
      %v917 = vrot.slane %v287, 1
      %v918 = vsel %vm915, %v916, %v917
      %v919 = vrot.slane %v288, 1
      %v920 = vsel %vm915, %v917, %v919
      %v921 = vrot.slane %v289, 1
      %v922 = vsel %vm915, %v919, %v921
      %v923 = vrot.slane %v290, 1
      %v924 = vsel %vm915, %v921, %v923
      %v925 = vrot.slane %v291, 1
      %v926 = vsel %vm915, %v923, %v925
      %v927 = vrot.slane %v292, 1
      %v928 = vsel %vm915, %v925, %v927
      %v929 = vrot.slane %v293, 1
      %v930 = vsel %vm915, %v927, %v929
      %v931 = vrot.slane %v294, 1
      %v932 = vsel %vm915, %v929, %v931
      %v933 = vrot.slane %v295, 1
      %v934 = vsel %vm915, %v931, %v933
      %v935 = vrot.slane %v296, 1
      %v936 = vsel %vm915, %v933, %v935
      %v937 = vrot.slane %v297, 1
      %v938 = vsel %vm915, %v935, %v937
      %v939 = vrot.slane %v298, 1
      %v940 = vsel %vm915, %v937, %v939
      %v941 = vrot.slane %v299, 1
      %v942 = vsel %vm915, %v939, %v941
      %v943 = vrot.slane %v300, 1
      %v944 = vsel %vm915, %v941, %v943
      %v945 = vrot.slane %v301, 1
      %v946 = vsel %vm915, %v943, %v945
      %v947 = vrot.slane %v302, 1
      %v948 = vsel %vm915, %v945, %v947
      %v949 = vrot.slane %v303, 1
      %v950 = vsel %vm915, %v947, %v949
      %v951 = vrot.slane %v304, 1
      %v952 = vsel %vm915, %v949, %v951
      %v954 = vsel %vm454, %v918, 0
      %v957 = vsel %vm454, %v920, 0
      %v960 = vsel %vm454, %v922, 0
      %v963 = vsel %vm454, %v924, 0
      %v966 = vsel %vm454, %v926, 0
      %v969 = vsel %vm454, %v928, 0
      %v972 = vsel %vm454, %v930, 0
      %v975 = vsel %vm454, %v932, 0
      %v978 = vsel %vm454, %v934, 0
      %v981 = vsel %vm454, %v936, 0
      %v984 = vsel %vm454, %v938, 0
      %v987 = vsel %vm454, %v940, 0
      %v990 = vsel %vm454, %v942, 0
      %v993 = vsel %vm454, %v944, 0
      %v996 = vsel %vm454, %v946, 0
      %v999 = vsel %vm454, %v948, 0
      %v1002 = vsel %vm454, %v950, 0
      %v1005 = vsel %vm454, %v952, 0
      %v1008 = vand.u32 %v911, %v512
      %1010 = vmatprep.subr.bf16.mxu0 0
      %1011 = vmatpush1.bf16.msra.mxu0 %v1008
      %1012 = vmatprep.subr.bf16.mxu0 0
      %1013 = vmatpush1.bf16.msra.mxu0 0
      %1014 = vmatprep.subr.bf16.mxu0 0
      %1015 = vmatpush1.bf16.msra.mxu0 0
      %1016 = vmatprep.subr.bf16.mxu0 0
      %1017 = vmatpush1.bf16.msra.mxu0 0
      %1018 = vmatprep.subr.bf16.mxu0 0
      %1019 = vmatpush1.bf16.msra.mxu0 0
      %1020 = vmatprep.subr.bf16.mxu0 0
      %1021 = vmatpush1.bf16.msra.mxu0 0
      %1022 = vmatprep.subr.bf16.mxu0 0
      %1023 = vmatpush1.bf16.msra.mxu0 0
      %1024 = vmatprep.subr.bf16.mxu0 0
      %1025 = vmatpush1.bf16.msra.mxu0 0
      %1026 = vmatprep.subr.bf16.mxu0 0
      %1027 = vmatpush1.bf16.msra.mxu0 0
      %1028 = vmatprep.subr.bf16.mxu0 0
      %1029 = vmatpush1.bf16.msra.mxu0 0
      %1030 = vmatprep.subr.bf16.mxu0 0
      %1031 = vmatpush1.bf16.msra.mxu0 0
      %1032 = vmatprep.subr.bf16.mxu0 0
      %1033 = vmatpush1.bf16.msra.mxu0 0
      %1034 = vmatprep.subr.bf16.mxu0 0
      %1035 = vmatpush1.bf16.msra.mxu0 0
      %1036 = vmatprep.subr.bf16.mxu0 0
      %1037 = vmatpush1.bf16.msra.mxu0 0
      %1038 = vmatprep.subr.bf16.mxu0 0
      %1039 = vmatpush1.bf16.msra.mxu0 0
      %1040 = vmatprep.subr.bf16.mxu0 0
      %1041 = vmatpush1.bf16.msra.mxu0 0
      %1042 = vmatprep.mubr.bf16.mxu0 0
      %1043 = vmatmul.mubr.bf16.gmra.mrb[0].mxu0 %v954
      %v1044 = vpop.f32.mrb[0].mxu0
      %v1045 = vadd.f32 0.0, %v1044
      %v1046 = vpop.f32.mrb[0].mxu0
      %v1047 = vpop.f32.mrb[0].mxu0
      %v1048 = vadd.f32 0.0, %v1047
      %v1049 = vpop.f32.mrb[0].mxu0
      %1050 = vmatprep.mubr.bf16.mxu0 0
      %1051 = vmatmul.mubr.bf16.gmra.mrb[0].mxu0 %v957
      %v1052 = vpop.f32.mrb[0].mxu0
      %v1053 = vadd.f32 0.0, %v1052
      %v1054 = vpop.f32.mrb[0].mxu0
      %v1055 = vpop.f32.mrb[0].mxu0
      %v1056 = vadd.f32 0.0, %v1055
      %v1057 = vpop.f32.mrb[0].mxu0
      %1058 = vmatprep.mubr.bf16.mxu0 0
      %1059 = vmatmul.mubr.bf16.gmra.mrb[0].mxu0 %v960
      %v1060 = vpop.f32.mrb[0].mxu0
      %v1061 = vadd.f32 0.0, %v1060
      %v1062 = vpop.f32.mrb[0].mxu0
      %v1063 = vpop.f32.mrb[0].mxu0
      %v1064 = vadd.f32 0.0, %v1063
      %v1065 = vpop.f32.mrb[0].mxu0
      %1066 = vmatprep.mubr.bf16.mxu0 0
      %1067 = vmatmul.mubr.bf16.gmra.mrb[0].mxu0 %v963
      %v1068 = vpop.f32.mrb[0].mxu0
      %v1069 = vadd.f32 0.0, %v1068
      %v1070 = vpop.f32.mrb[0].mxu0
      %v1071 = vpop.f32.mrb[0].mxu0
      %v1072 = vadd.f32 0.0, %v1071
      %v1073 = vpop.f32.mrb[0].mxu0
      %1074 = vmatprep.mubr.bf16.mxu0 0
      %1075 = vmatmul.mubr.bf16.gmra.mrb[0].mxu0 %v966
      %v1076 = vpop.f32.mrb[0].mxu0
      %v1077 = vadd.f32 0.0, %v1076
      %v1078 = vpop.f32.mrb[0].mxu0
      %v1079 = vpop.f32.mrb[0].mxu0
      %v1080 = vadd.f32 0.0, %v1079
      %v1081 = vpop.f32.mrb[0].mxu0
      %1082 = vmatprep.mubr.bf16.mxu0 0
      %1083 = vmatmul.mubr.bf16.gmra.mrb[0].mxu0 %v969
      %v1084 = vpop.f32.mrb[0].mxu0
      %v1085 = vadd.f32 0.0, %v1084
      %v1086 = vpop.f32.mrb[0].mxu0
      %v1087 = vpop.f32.mrb[0].mxu0
      %v1088 = vadd.f32 0.0, %v1087
      %v1089 = vpop.f32.mrb[0].mxu0
      %1090 = vmatprep.mubr.bf16.mxu0 0
      %1091 = vmatmul.mubr.bf16.gmra.mrb[0].mxu0 %v972
      %v1092 = vpop.f32.mrb[0].mxu0
      %v1093 = vadd.f32 0.0, %v1092
      %v1094 = vpop.f32.mrb[0].mxu0
      %v1095 = vpop.f32.mrb[0].mxu0
      %v1096 = vadd.f32 0.0, %v1095
      %v1097 = vpop.f32.mrb[0].mxu0
      %1098 = vmatprep.mubr.bf16.mxu0 0
      %1099 = vmatmul.mubr.bf16.gmra.mrb[0].mxu0 %v975
      %v1100 = vpop.f32.mrb[0].mxu0
      %v1101 = vadd.f32 0.0, %v1100
      %v1102 = vpop.f32.mrb[0].mxu0
      %v1103 = vpop.f32.mrb[0].mxu0
      %v1104 = vadd.f32 0.0, %v1103
      %v1105 = vpop.f32.mrb[0].mxu0
      %1106 = vmatprep.mubr.bf16.mxu0 0
      %1107 = vmatmul.mubr.bf16.gmra.mrb[0].mxu0 %v978
      %v1108 = vpop.f32.mrb[0].mxu0
      %v1109 = vadd.f32 0.0, %v1108
      %v1110 = vpop.f32.mrb[0].mxu0
      %v1111 = vpop.f32.mrb[0].mxu0
      %v1112 = vadd.f32 0.0, %v1111
      %v1113 = vpop.f32.mrb[0].mxu0
      %1114 = vmatprep.mubr.bf16.mxu0 0
      %1115 = vmatmul.mubr.bf16.gmra.mrb[0].mxu0 %v981
      %v1116 = vpop.f32.mrb[0].mxu0
      %v1117 = vadd.f32 0.0, %v1116
      %v1118 = vpop.f32.mrb[0].mxu0
      %v1119 = vpop.f32.mrb[0].mxu0
      %v1120 = vadd.f32 0.0, %v1119
      %v1121 = vpop.f32.mrb[0].mxu0
      %1122 = vmatprep.mubr.bf16.mxu0 0
      %1123 = vmatmul.mubr.bf16.gmra.mrb[0].mxu0 %v984
      %v1124 = vpop.f32.mrb[0].mxu0
      %v1125 = vadd.f32 0.0, %v1124
      %v1126 = vpop.f32.mrb[0].mxu0
      %v1127 = vpop.f32.mrb[0].mxu0
      %v1128 = vadd.f32 0.0, %v1127
      %v1129 = vpop.f32.mrb[0].mxu0
      %1130 = vmatprep.mubr.bf16.mxu0 0
      %1131 = vmatmul.mubr.bf16.gmra.mrb[0].mxu0 %v987
      %v1132 = vpop.f32.mrb[0].mxu0
      %v1133 = vadd.f32 0.0, %v1132
      %v1134 = vpop.f32.mrb[0].mxu0
      %v1135 = vpop.f32.mrb[0].mxu0
      %v1136 = vadd.f32 0.0, %v1135
      %v1137 = vpop.f32.mrb[0].mxu0
      %1138 = vmatprep.mubr.bf16.mxu0 0
      %1139 = vmatmul.mubr.bf16.gmra.mrb[0].mxu0 %v990
      %v1140 = vpop.f32.mrb[0].mxu0
      %v1141 = vadd.f32 0.0, %v1140
      %v1142 = vpop.f32.mrb[0].mxu0
      %v1143 = vpop.f32.mrb[0].mxu0
      %v1144 = vadd.f32 0.0, %v1143
      %v1145 = vpop.f32.mrb[0].mxu0
      %1146 = vmatprep.mubr.bf16.mxu0 0
      %1147 = vmatmul.mubr.bf16.gmra.mrb[0].mxu0 %v993
      %v1148 = vpop.f32.mrb[0].mxu0
      %v1149 = vadd.f32 0.0, %v1148
      %v1150 = vpop.f32.mrb[0].mxu0
      %v1151 = vpop.f32.mrb[0].mxu0
      %v1152 = vadd.f32 0.0, %v1151
      %v1153 = vpop.f32.mrb[0].mxu0
      %1154 = vmatprep.mubr.bf16.mxu0 0
      %1155 = vmatmul.mubr.bf16.gmra.mrb[0].mxu0 %v996
      %v1156 = vpop.f32.mrb[0].mxu0
      %v1157 = vadd.f32 0.0, %v1156
      %v1158 = vpop.f32.mrb[0].mxu0
      %v1159 = vpop.f32.mrb[0].mxu0
      %v1160 = vadd.f32 0.0, %v1159
      %v1161 = vpop.f32.mrb[0].mxu0
      %1162 = vmatprep.mubr.bf16.mxu0 0
      %1163 = vmatmul.mubr.bf16.gmra.mrb[0].mxu0 %v999
      %v1164 = vpop.f32.mrb[0].mxu0
      %v1165 = vadd.f32 0.0, %v1164
      %v1166 = vpop.f32.mrb[0].mxu0
      %v1167 = vpop.f32.mrb[0].mxu0
      %v1168 = vadd.f32 0.0, %v1167
      %v1169 = vpop.f32.mrb[0].mxu0
      %1170 = vmatprep.mubr.bf16.mxu0 0
      %1171 = vmatmul.mubr.bf16.gmra.mrb[0].mxu0 %v1002
      %v1172 = vpop.f32.mrb[0].mxu0
      %v1173 = vadd.f32 0.0, %v1172
      %v1174 = vpop.f32.mrb[0].mxu0
      %v1175 = vpop.f32.mrb[0].mxu0
      %v1176 = vadd.f32 0.0, %v1175
      %v1177 = vpop.f32.mrb[0].mxu0
      %1178 = vmatprep.mubr.bf16.mxu0 0
      %1179 = vmatmul.mubr.bf16.gmra.mrb[0].mxu0 %v1005
      %v1180 = vpop.f32.mrb[0].mxu0
      %v1181 = vadd.f32 0.0, %v1180
      %v1182 = vpop.f32.mrb[0].mxu0
      %v1183 = vpop.f32.mrb[0].mxu0
      %v1184 = vadd.f32 0.0, %v1183
      %v1185 = vpop.f32.mrb[0].mxu0
      %1186 = vdwg.mxu0
      %v1187 = vadd.f32 %v767, %v1045
      %v1188 = vadd.f32 %v770, %v1048
      %v1189 = vadd.f32 %v775, %v1053
      %v1190 = vadd.f32 %v778, %v1056
      %v1191 = vadd.f32 %v783, %v1061
      %v1192 = vadd.f32 %v786, %v1064
      %v1193 = vadd.f32 %v791, %v1069
      %v1194 = vadd.f32 %v794, %v1072
      %v1195 = vadd.f32 %v799, %v1077
      %v1196 = vadd.f32 %v802, %v1080
      %v1197 = vadd.f32 %v807, %v1085
      %v1198 = vadd.f32 %v810, %v1088
      %v1199 = vadd.f32 %v815, %v1093
      %v1200 = vadd.f32 %v818, %v1096
      %v1201 = vadd.f32 %v823, %v1101
      %v1202 = vadd.f32 %v826, %v1104
      %v1203 = vadd.f32 %v831, %v1109
      %v1204 = vadd.f32 %v834, %v1112
      %v1205 = vadd.f32 %v839, %v1117
      %v1206 = vadd.f32 %v842, %v1120
      %v1207 = vadd.f32 %v847, %v1125
      %v1208 = vadd.f32 %v850, %v1128
      %v1209 = vadd.f32 %v855, %v1133
      %v1210 = vadd.f32 %v858, %v1136
      %v1211 = vadd.f32 %v863, %v1141
      %v1212 = vadd.f32 %v866, %v1144
      %v1213 = vadd.f32 %v871, %v1149
      %v1214 = vadd.f32 %v874, %v1152
      %v1215 = vadd.f32 %v879, %v1157
      %v1216 = vadd.f32 %v882, %v1160
      %v1217 = vadd.f32 %v887, %v1165
      %v1218 = vadd.f32 %v890, %v1168
      %v1219 = vadd.f32 %v895, %v1173
      %v1220 = vadd.f32 %v898, %v1176
      %v1221 = vadd.f32 %v903, %v1181
      %v1222 = vadd.f32 %v906, %v1184
      %v1223 = vld [vmem:[%s165 + $0x8] sm:$0xe]
      %v1224 = vld [vmem:[%s165 + $0xc] sm:$0xf]
      %v1225 = vld [vmem:[%s165 + $0x10] sm:$0xf]
      %v1226 = vld [vmem:[%s165 + $0x14] sm:$0xf]
      %v1227 = vld [vmem:[%s165 + $0x18] sm:$0xf]
      %v1228 = vld [vmem:[%s165 + $0x1c] sm:$0xf]
      %v1229 = vld [vmem:[%s165 + $0x20] sm:$0xf]
      %v1230 = vld [vmem:[%s165 + $0x24] sm:$0xf]
      %v1231 = vld [vmem:[%s165 + $0x28] sm:$0xf]
      %v1232 = vld [vmem:[%s165 + $0x2c] sm:$0xf]
      %v1233 = vld [vmem:[%s165 + $0x30] sm:$0xf]
      %v1234 = vld [vmem:[%s165 + $0x34] sm:$0xf]
      %v1235 = vld [vmem:[%s165 + $0x38] sm:$0xf]
      %v1236 = vld [vmem:[%s165 + $0x3c] sm:$0xf]
      %v1237 = vld [vmem:[%s165 + $0x40] sm:$0xf]
      %v1238 = vld [vmem:[%s165 + $0x44] sm:$0xf]
      %v1239 = vld [vmem:[%s165 + $0x48] sm:$0xf]
      %v1240 = vld [vmem:[%s165 + $0x4c] sm:$0xf]
      %v1241 = vld [vmem:[%s165 + $0x50] sm:$0xf]
      %v1242 = vld [vmem:[%s165 + $0x54] sm:$0xf]
      %v1243 = vld [vmem:[%s165 + $0x58] sm:$0xf]
      %v1244 = vld [vmem:[%s165 + $0x5c] sm:$0xf]
      %v1245 = vld [vmem:[%s165 + $0x60] sm:$0xf]
      %v1246 = vld [vmem:[%s165 + $0x64] sm:$0xf]
      %v1247 = vld [vmem:[%s165 + $0x68] sm:$0xf]
      %v1248 = vld [vmem:[%s165 + $0x6c] sm:$0xf]
      %v1249 = vld [vmem:[%s165 + $0x70] sm:$0xf]
      %v1250 = vld [vmem:[%s165 + $0x74] sm:$0xf]
      %v1251 = vld [vmem:[%s165 + $0x78] sm:$0xf]
      %v1252 = vld [vmem:[%s165 + $0x7c] sm:$0xf]
      %v1253 = vld [vmem:[%s165 + $0x80] sm:$0xf]
      %v1254 = vld [vmem:[%s165 + $0x84] sm:$0xf]
      %v1255 = vld [vmem:[%s165 + $0x88] sm:$0xf]
      %v1256 = vld [vmem:[%s165 + $0x8c] sm:$0xf]
      %v1257 = vld [vmem:[%s165 + $0x90] sm:$0xf]
      %v1258 = vld [vmem:[%s165 + $0x94] sm:$0xf]
      %v1259 = vld [vmem:[%s165 + $0x98] sm:$0x1]
      %s1260 = scalar_lea.vmem %s1, 6
      %v1261 = vld [vmem:[%s1260] sm:$0x3]
      %v1299 = vunpack.c.l.b16 %v1223
      %v1300 = vunpack.c.l.b16 %v1224
      %v1301 = vunpack.c.l.b16 %v1225
      %v1302 = vunpack.c.l.b16 %v1226
      %v1303 = vunpack.c.l.b16 %v1227
      %v1304 = vunpack.c.l.b16 %v1228
      %v1305 = vunpack.c.l.b16 %v1229
      %v1306 = vunpack.c.l.b16 %v1230
      %v1307 = vunpack.c.l.b16 %v1231
      %v1308 = vunpack.c.l.b16 %v1232
      %v1309 = vunpack.c.l.b16 %v1233
      %v1310 = vunpack.c.l.b16 %v1234
      %v1311 = vunpack.c.l.b16 %v1235
      %v1312 = vunpack.c.l.b16 %v1236
      %v1313 = vunpack.c.l.b16 %v1237
      %v1314 = vunpack.c.l.b16 %v1238
      %v1315 = vunpack.c.l.b16 %v1239
      %v1316 = vunpack.c.l.b16 %v1240
      %v1317 = vunpack.c.l.b16 %v1241
      %v1318 = vunpack.c.l.b16 %v1242
      %v1319 = vunpack.c.l.b16 %v1243
      %v1320 = vunpack.c.l.b16 %v1244
      %v1321 = vunpack.c.l.b16 %v1245
      %v1322 = vunpack.c.l.b16 %v1246
      %v1323 = vunpack.c.l.b16 %v1247
      %v1324 = vunpack.c.l.b16 %v1248
      %v1325 = vunpack.c.l.b16 %v1249
      %v1326 = vunpack.c.l.b16 %v1250
      %v1327 = vunpack.c.l.b16 %v1251
      %v1328 = vunpack.c.l.b16 %v1252
      %v1329 = vunpack.c.l.b16 %v1253
      %v1330 = vunpack.c.l.b16 %v1254
      %v1331 = vunpack.c.l.b16 %v1255
      %v1332 = vunpack.c.l.b16 %v1256
      %v1333 = vunpack.c.l.b16 %v1257
      %v1334 = vunpack.c.l.b16 %v1258
      %v1335 = vunpack.c.l.b16 %v1259
      %v1336 = vpack.c.b16 %v1300, %v1299
      %v1337 = vpack.c.b16 %v1302, %v1301
      %v1338 = vpack.c.b16 %v1304, %v1303
      %v1339 = vpack.c.b16 %v1306, %v1305
      %v1340 = vpack.c.b16 %v1308, %v1307
      %v1341 = vpack.c.b16 %v1310, %v1309
      %v1342 = vpack.c.b16 %v1312, %v1311
      %v1343 = vpack.c.b16 %v1314, %v1313
      %v1344 = vpack.c.b16 %v1316, %v1315
      %v1345 = vpack.c.b16 %v1318, %v1317
      %v1346 = vpack.c.b16 %v1320, %v1319
      %v1347 = vpack.c.b16 %v1322, %v1321
      %v1348 = vpack.c.b16 %v1324, %v1323
      %v1349 = vpack.c.b16 %v1326, %v1325
      %v1350 = vpack.c.b16 %v1328, %v1327
      %v1351 = vpack.c.b16 %v1330, %v1329
      %v1352 = vpack.c.b16 %v1332, %v1331
      %v1353 = vpack.c.b16 %v1334, %v1333
      %v1354 = vpack.c.b16 %v1335, %v1335
      %v1355 = vrot.slane %v1336, 1
      %v1356 = vrot.slane %v1337, 1
      %v1357 = vsel %vm915, %v1355, %v1356
      %v1358 = vrot.slane %v1338, 1
      %v1359 = vsel %vm915, %v1356, %v1358
      %v1360 = vrot.slane %v1339, 1
      %v1361 = vsel %vm915, %v1358, %v1360
      %v1362 = vrot.slane %v1340, 1
      %v1363 = vsel %vm915, %v1360, %v1362
      %v1364 = vrot.slane %v1341, 1
      %v1365 = vsel %vm915, %v1362, %v1364
      %v1366 = vrot.slane %v1342, 1
      %v1367 = vsel %vm915, %v1364, %v1366
      %v1368 = vrot.slane %v1343, 1
      %v1369 = vsel %vm915, %v1366, %v1368
      %v1370 = vrot.slane %v1344, 1
      %v1371 = vsel %vm915, %v1368, %v1370
      %v1372 = vrot.slane %v1345, 1
      %v1373 = vsel %vm915, %v1370, %v1372
      %v1374 = vrot.slane %v1346, 1
      %v1375 = vsel %vm915, %v1372, %v1374
      %v1376 = vrot.slane %v1347, 1
      %v1377 = vsel %vm915, %v1374, %v1376
      %v1378 = vrot.slane %v1348, 1
      %v1379 = vsel %vm915, %v1376, %v1378
      %v1380 = vrot.slane %v1349, 1
      %v1381 = vsel %vm915, %v1378, %v1380
      %v1382 = vrot.slane %v1350, 1
      %v1383 = vsel %vm915, %v1380, %v1382
      %v1384 = vrot.slane %v1351, 1
      %v1385 = vsel %vm915, %v1382, %v1384
      %v1386 = vrot.slane %v1352, 1
      %v1387 = vsel %vm915, %v1384, %v1386
      %v1388 = vrot.slane %v1353, 1
      %v1389 = vsel %vm915, %v1386, %v1388
      %v1390 = vrot.slane %v1354, 1
      %v1391 = vsel %vm915, %v1388, %v1390
      %v1393 = vsel %vm454, %v1357, 0
      %v1396 = vsel %vm454, %v1359, 0
      %v1399 = vsel %vm454, %v1361, 0
      %v1402 = vsel %vm454, %v1363, 0
      %v1405 = vsel %vm454, %v1365, 0
      %v1408 = vsel %vm454, %v1367, 0
      %v1411 = vsel %vm454, %v1369, 0
      %v1414 = vsel %vm454, %v1371, 0
      %v1417 = vsel %vm454, %v1373, 0
      %v1420 = vsel %vm454, %v1375, 0
      %v1423 = vsel %vm454, %v1377, 0
      %v1426 = vsel %vm454, %v1379, 0
      %v1429 = vsel %vm454, %v1381, 0
      %v1432 = vsel %vm454, %v1383, 0
      %v1435 = vsel %vm454, %v1385, 0
      %v1438 = vsel %vm454, %v1387, 0
      %v1441 = vsel %vm454, %v1389, 0
      %v1444 = vsel %vm454, %v1391, 0
      %v1447 = vand.u32 %v1261, %v512
      %1449 = vmatprep.subr.bf16.mxu0 0
      %1450 = vmatpush1.bf16.msra.mxu0 %v1447
      %1451 = vmatprep.subr.bf16.mxu0 0
      %1452 = vmatpush1.bf16.msra.mxu0 0
      %1453 = vmatprep.subr.bf16.mxu0 0
      %1454 = vmatpush1.bf16.msra.mxu0 0
      %1455 = vmatprep.subr.bf16.mxu0 0
      %1456 = vmatpush1.bf16.msra.mxu0 0
      %1457 = vmatprep.subr.bf16.mxu0 0
      %1458 = vmatpush1.bf16.msra.mxu0 0
      %1459 = vmatprep.subr.bf16.mxu0 0
      %1460 = vmatpush1.bf16.msra.mxu0 0
      %1461 = vmatprep.subr.bf16.mxu0 0
      %1462 = vmatpush1.bf16.msra.mxu0 0
      %1463 = vmatprep.subr.bf16.mxu0 0
      %1464 = vmatpush1.bf16.msra.mxu0 0
      %1465 = vmatprep.subr.bf16.mxu0 0
      %1466 = vmatpush1.bf16.msra.mxu0 0
      %1467 = vmatprep.subr.bf16.mxu0 0
      %1468 = vmatpush1.bf16.msra.mxu0 0
      %1469 = vmatprep.subr.bf16.mxu0 0
      %1470 = vmatpush1.bf16.msra.mxu0 0
      %1471 = vmatprep.subr.bf16.mxu0 0
      %1472 = vmatpush1.bf16.msra.mxu0 0
      %1473 = vmatprep.subr.bf16.mxu0 0
      %1474 = vmatpush1.bf16.msra.mxu0 0
      %1475 = vmatprep.subr.bf16.mxu0 0
      %1476 = vmatpush1.bf16.msra.mxu0 0
      %1477 = vmatprep.subr.bf16.mxu0 0
      %1478 = vmatpush1.bf16.msra.mxu0 0
      %1479 = vmatprep.subr.bf16.mxu0 0
      %1480 = vmatpush1.bf16.msra.mxu0 0
      %1481 = vmatprep.mubr.bf16.mxu0 0
      %1482 = vmatmul.mubr.bf16.gmra.mrb[0].mxu0 %v1393
      %v1483 = vpop.f32.mrb[0].mxu0
      %v1484 = vadd.f32 0.0, %v1483
      %v1485 = vpop.f32.mrb[0].mxu0
      %v1486 = vpop.f32.mrb[0].mxu0
      %v1487 = vadd.f32 0.0, %v1486
      %v1488 = vpop.f32.mrb[0].mxu0
      %1489 = vmatprep.mubr.bf16.mxu0 0
      %1490 = vmatmul.mubr.bf16.gmra.mrb[0].mxu0 %v1396
      %v1491 = vpop.f32.mrb[0].mxu0
      %v1492 = vadd.f32 0.0, %v1491
      %v1493 = vpop.f32.mrb[0].mxu0
      %v1494 = vpop.f32.mrb[0].mxu0
      %v1495 = vadd.f32 0.0, %v1494
      %v1496 = vpop.f32.mrb[0].mxu0
      %1497 = vmatprep.mubr.bf16.mxu0 0
      %1498 = vmatmul.mubr.bf16.gmra.mrb[0].mxu0 %v1399
      %v1499 = vpop.f32.mrb[0].mxu0
      %v1500 = vadd.f32 0.0, %v1499
      %v1501 = vpop.f32.mrb[0].mxu0
      %v1502 = vpop.f32.mrb[0].mxu0
      %v1503 = vadd.f32 0.0, %v1502
      %v1504 = vpop.f32.mrb[0].mxu0
      %1505 = vmatprep.mubr.bf16.mxu0 0
      %1506 = vmatmul.mubr.bf16.gmra.mrb[0].mxu0 %v1402
      %v1507 = vpop.f32.mrb[0].mxu0
      %v1508 = vadd.f32 0.0, %v1507
      %v1509 = vpop.f32.mrb[0].mxu0
      %v1510 = vpop.f32.mrb[0].mxu0
      %v1511 = vadd.f32 0.0, %v1510
      %v1512 = vpop.f32.mrb[0].mxu0
      %1513 = vmatprep.mubr.bf16.mxu0 0
      %1514 = vmatmul.mubr.bf16.gmra.mrb[0].mxu0 %v1405
      %v1515 = vpop.f32.mrb[0].mxu0
      %v1516 = vadd.f32 0.0, %v1515
      %v1517 = vpop.f32.mrb[0].mxu0
      %v1518 = vpop.f32.mrb[0].mxu0
      %v1519 = vadd.f32 0.0, %v1518
      %v1520 = vpop.f32.mrb[0].mxu0
      %1521 = vmatprep.mubr.bf16.mxu0 0
      %1522 = vmatmul.mubr.bf16.gmra.mrb[0].mxu0 %v1408
      %v1523 = vpop.f32.mrb[0].mxu0
      %v1524 = vadd.f32 0.0, %v1523
      %v1525 = vpop.f32.mrb[0].mxu0
      %v1526 = vpop.f32.mrb[0].mxu0
      %v1527 = vadd.f32 0.0, %v1526
      %v1528 = vpop.f32.mrb[0].mxu0
      %1529 = vmatprep.mubr.bf16.mxu0 0
      %1530 = vmatmul.mubr.bf16.gmra.mrb[0].mxu0 %v1411
      %v1531 = vpop.f32.mrb[0].mxu0
      %v1532 = vadd.f32 0.0, %v1531
      %v1533 = vpop.f32.mrb[0].mxu0
      %v1534 = vpop.f32.mrb[0].mxu0
      %v1535 = vadd.f32 0.0, %v1534
      %v1536 = vpop.f32.mrb[0].mxu0
      %1537 = vmatprep.mubr.bf16.mxu0 0
      %1538 = vmatmul.mubr.bf16.gmra.mrb[0].mxu0 %v1414
      %v1539 = vpop.f32.mrb[0].mxu0
      %v1540 = vadd.f32 0.0, %v1539
      %v1541 = vpop.f32.mrb[0].mxu0
      %v1542 = vpop.f32.mrb[0].mxu0
      %v1543 = vadd.f32 0.0, %v1542
      %v1544 = vpop.f32.mrb[0].mxu0
      %1545 = vmatprep.mubr.bf16.mxu0 0
      %1546 = vmatmul.mubr.bf16.gmra.mrb[0].mxu0 %v1417
      %v1547 = vpop.f32.mrb[0].mxu0
      %v1548 = vadd.f32 0.0, %v1547
      %v1549 = vpop.f32.mrb[0].mxu0
      %v1550 = vpop.f32.mrb[0].mxu0
      %v1551 = vadd.f32 0.0, %v1550
      %v1552 = vpop.f32.mrb[0].mxu0
      %1553 = vmatprep.mubr.bf16.mxu0 0
      %1554 = vmatmul.mubr.bf16.gmra.mrb[0].mxu0 %v1420
      %v1555 = vpop.f32.mrb[0].mxu0
      %v1556 = vadd.f32 0.0, %v1555
      %v1557 = vpop.f32.mrb[0].mxu0
      %v1558 = vpop.f32.mrb[0].mxu0
      %v1559 = vadd.f32 0.0, %v1558
      %v1560 = vpop.f32.mrb[0].mxu0
      %1561 = vmatprep.mubr.bf16.mxu0 0
      %1562 = vmatmul.mubr.bf16.gmra.mrb[0].mxu0 %v1423
      %v1563 = vpop.f32.mrb[0].mxu0
      %v1564 = vadd.f32 0.0, %v1563
      %v1565 = vpop.f32.mrb[0].mxu0
      %v1566 = vpop.f32.mrb[0].mxu0
      %v1567 = vadd.f32 0.0, %v1566
      %v1568 = vpop.f32.mrb[0].mxu0
      %1569 = vmatprep.mubr.bf16.mxu0 0
      %1570 = vmatmul.mubr.bf16.gmra.mrb[0].mxu0 %v1426
      %v1571 = vpop.f32.mrb[0].mxu0
      %v1572 = vadd.f32 0.0, %v1571
      %v1573 = vpop.f32.mrb[0].mxu0
      %v1574 = vpop.f32.mrb[0].mxu0
      %v1575 = vadd.f32 0.0, %v1574
      %v1576 = vpop.f32.mrb[0].mxu0
      %1577 = vmatprep.mubr.bf16.mxu0 0
      %1578 = vmatmul.mubr.bf16.gmra.mrb[0].mxu0 %v1429
      %v1579 = vpop.f32.mrb[0].mxu0
      %v1580 = vadd.f32 0.0, %v1579
      %v1581 = vpop.f32.mrb[0].mxu0
      %v1582 = vpop.f32.mrb[0].mxu0
      %v1583 = vadd.f32 0.0, %v1582
      %v1584 = vpop.f32.mrb[0].mxu0
      %1585 = vmatprep.mubr.bf16.mxu0 0
      %1586 = vmatmul.mubr.bf16.gmra.mrb[0].mxu0 %v1432
      %v1587 = vpop.f32.mrb[0].mxu0
      %v1588 = vadd.f32 0.0, %v1587
      %v1589 = vpop.f32.mrb[0].mxu0
      %v1590 = vpop.f32.mrb[0].mxu0
      %v1591 = vadd.f32 0.0, %v1590
      %v1592 = vpop.f32.mrb[0].mxu0
      %1593 = vmatprep.mubr.bf16.mxu0 0
      %1594 = vmatmul.mubr.bf16.gmra.mrb[0].mxu0 %v1435
      %v1595 = vpop.f32.mrb[0].mxu0
      %v1596 = vadd.f32 0.0, %v1595
      %v1597 = vpop.f32.mrb[0].mxu0
      %v1598 = vpop.f32.mrb[0].mxu0
      %v1599 = vadd.f32 0.0, %v1598
      %v1600 = vpop.f32.mrb[0].mxu0
      %1601 = vmatprep.mubr.bf16.mxu0 0
      %1602 = vmatmul.mubr.bf16.gmra.mrb[0].mxu0 %v1438
      %v1603 = vpop.f32.mrb[0].mxu0
      %v1604 = vadd.f32 0.0, %v1603
      %v1605 = vpop.f32.mrb[0].mxu0
      %v1606 = vpop.f32.mrb[0].mxu0
      %v1607 = vadd.f32 0.0, %v1606
      %v1608 = vpop.f32.mrb[0].mxu0
      %1609 = vmatprep.mubr.bf16.mxu0 0
      %1610 = vmatmul.mubr.bf16.gmra.mrb[0].mxu0 %v1441
      %v1611 = vpop.f32.mrb[0].mxu0
      %v1612 = vadd.f32 0.0, %v1611
      %v1613 = vpop.f32.mrb[0].mxu0
      %v1614 = vpop.f32.mrb[0].mxu0
      %v1615 = vadd.f32 0.0, %v1614
      %v1616 = vpop.f32.mrb[0].mxu0
      %1617 = vmatprep.mubr.bf16.mxu0 0
      %1618 = vmatmul.mubr.bf16.gmra.mrb[0].mxu0 %v1444
      %v1619 = vpop.f32.mrb[0].mxu0
      %v1620 = vadd.f32 0.0, %v1619
      %v1621 = vpop.f32.mrb[0].mxu0
      %v1622 = vpop.f32.mrb[0].mxu0
      %v1623 = vadd.f32 0.0, %v1622
      %v1624 = vpop.f32.mrb[0].mxu0
      %1625 = vdwg.mxu0
      %v1626 = vadd.f32 %v1187, %v1484
      %v1627 = vadd.f32 %v1188, %v1487
      %v1628 = vadd.f32 %v1189, %v1492
      %v1629 = vadd.f32 %v1190, %v1495
      %v1630 = vadd.f32 %v1191, %v1500
      %v1631 = vadd.f32 %v1192, %v1503
      %v1632 = vadd.f32 %v1193, %v1508
      %v1633 = vadd.f32 %v1194, %v1511
      %v1634 = vadd.f32 %v1195, %v1516
      %v1635 = vadd.f32 %v1196, %v1519
      %v1636 = vadd.f32 %v1197, %v1524
      %v1637 = vadd.f32 %v1198, %v1527
      %v1638 = vadd.f32 %v1199, %v1532
      %v1639 = vadd.f32 %v1200, %v1535
      %v1640 = vadd.f32 %v1201, %v1540
      %v1641 = vadd.f32 %v1202, %v1543
      %v1642 = vadd.f32 %v1203, %v1548
      %v1643 = vadd.f32 %v1204, %v1551
      %v1644 = vadd.f32 %v1205, %v1556
      %v1645 = vadd.f32 %v1206, %v1559
      %v1646 = vadd.f32 %v1207, %v1564
      %v1647 = vadd.f32 %v1208, %v1567
      %v1648 = vadd.f32 %v1209, %v1572
      %v1649 = vadd.f32 %v1210, %v1575
      %v1650 = vadd.f32 %v1211, %v1580
      %v1651 = vadd.f32 %v1212, %v1583
      %v1652 = vadd.f32 %v1213, %v1588
      %v1653 = vadd.f32 %v1214, %v1591
      %v1654 = vadd.f32 %v1215, %v1596
      %v1655 = vadd.f32 %v1216, %v1599
      %v1656 = vadd.f32 %v1217, %v1604
      %v1657 = vadd.f32 %v1218, %v1607
      %v1658 = vadd.f32 %v1219, %v1612
      %v1659 = vadd.f32 %v1220, %v1615
      %v1660 = vadd.f32 %v1221, %v1620
      %v1661 = vadd.f32 %v1222, %v1623
      %v1662 = vld [vmem:[%s165 + $0x98] sm:$0x3]
      %s1663 = scalar_lea.vmem %s1, 8
      %v1664 = vld [vmem:[%s1663] sm:$0x3]
      %v1666 = vunpack.c.l.b16 %v1662
      %v1667 = vpack.c.b16 %v1666, %v1666
      %vm1668 = vsmask.f32 6400
      %v1670 = vshrl.u32 %v1336, 16
      %v1672 = vrot.slane %v1670, 1
      %v1673 = vshll.u32 %v1336, 16
      %v1675 = vrot.slane %v1673, 2
      %v1676 = vor.u32 %v1672, %v1675
      %v1678 = vshrl.u32 %v1337, 16
      %v1680 = vrot.slane %v1678, 1
      %v1681 = vshll.u32 %v1337, 16
      %v1683 = vrot.slane %v1681, 2
      %v1684 = vor.u32 %v1680, %v1683
      %v1685 = vsel %vm1668, %v1676, %v1684
      %v1687 = vshrl.u32 %v1338, 16
      %v1689 = vrot.slane %v1687, 1
      %v1690 = vshll.u32 %v1338, 16
      %v1692 = vrot.slane %v1690, 2
      %v1693 = vor.u32 %v1689, %v1692
      %v1694 = vsel %vm1668, %v1684, %v1693
      %v1696 = vshrl.u32 %v1339, 16
      %v1698 = vrot.slane %v1696, 1
      %v1699 = vshll.u32 %v1339, 16
      %v1701 = vrot.slane %v1699, 2
      %v1702 = vor.u32 %v1698, %v1701
      %v1703 = vsel %vm1668, %v1693, %v1702
      %v1705 = vshrl.u32 %v1340, 16
      %v1707 = vrot.slane %v1705, 1
      %v1708 = vshll.u32 %v1340, 16
      %v1710 = vrot.slane %v1708, 2
      %v1711 = vor.u32 %v1707, %v1710
      %v1712 = vsel %vm1668, %v1702, %v1711
      %v1714 = vshrl.u32 %v1341, 16
      %v1716 = vrot.slane %v1714, 1
      %v1717 = vshll.u32 %v1341, 16
      %v1719 = vrot.slane %v1717, 2
      %v1720 = vor.u32 %v1716, %v1719
      %v1721 = vsel %vm1668, %v1711, %v1720
      %v1723 = vshrl.u32 %v1342, 16
      %v1725 = vrot.slane %v1723, 1
      %v1726 = vshll.u32 %v1342, 16
      %v1728 = vrot.slane %v1726, 2
      %v1729 = vor.u32 %v1725, %v1728
      %v1730 = vsel %vm1668, %v1720, %v1729
      %v1732 = vshrl.u32 %v1343, 16
      %v1734 = vrot.slane %v1732, 1
      %v1735 = vshll.u32 %v1343, 16
      %v1737 = vrot.slane %v1735, 2
      %v1738 = vor.u32 %v1734, %v1737
      %v1739 = vsel %vm1668, %v1729, %v1738
      %v1741 = vshrl.u32 %v1344, 16
      %v1743 = vrot.slane %v1741, 1
      %v1744 = vshll.u32 %v1344, 16
      %v1746 = vrot.slane %v1744, 2
      %v1747 = vor.u32 %v1743, %v1746
      %v1748 = vsel %vm1668, %v1738, %v1747
      %v1750 = vshrl.u32 %v1345, 16
      %v1752 = vrot.slane %v1750, 1
      %v1753 = vshll.u32 %v1345, 16
      %v1755 = vrot.slane %v1753, 2
      %v1756 = vor.u32 %v1752, %v1755
      %v1757 = vsel %vm1668, %v1747, %v1756
      %v1759 = vshrl.u32 %v1346, 16
      %v1761 = vrot.slane %v1759, 1
      %v1762 = vshll.u32 %v1346, 16
      %v1764 = vrot.slane %v1762, 2
      %v1765 = vor.u32 %v1761, %v1764
      %v1766 = vsel %vm1668, %v1756, %v1765
      %v1768 = vshrl.u32 %v1347, 16
      %v1770 = vrot.slane %v1768, 1
      %v1771 = vshll.u32 %v1347, 16
      %v1773 = vrot.slane %v1771, 2
      %v1774 = vor.u32 %v1770, %v1773
      %v1775 = vsel %vm1668, %v1765, %v1774
      %v1777 = vshrl.u32 %v1348, 16
      %v1779 = vrot.slane %v1777, 1
      %v1780 = vshll.u32 %v1348, 16
      %v1782 = vrot.slane %v1780, 2
      %v1783 = vor.u32 %v1779, %v1782
      %v1784 = vsel %vm1668, %v1774, %v1783
      %v1786 = vshrl.u32 %v1349, 16
      %v1788 = vrot.slane %v1786, 1
      %v1789 = vshll.u32 %v1349, 16
      %v1791 = vrot.slane %v1789, 2
      %v1792 = vor.u32 %v1788, %v1791
      %v1793 = vsel %vm1668, %v1783, %v1792
      %v1795 = vshrl.u32 %v1350, 16
      %v1797 = vrot.slane %v1795, 1
      %v1798 = vshll.u32 %v1350, 16
      %v1800 = vrot.slane %v1798, 2
      %v1801 = vor.u32 %v1797, %v1800
      %v1802 = vsel %vm1668, %v1792, %v1801
      %v1804 = vshrl.u32 %v1351, 16
      %v1806 = vrot.slane %v1804, 1
      %v1807 = vshll.u32 %v1351, 16
      %v1809 = vrot.slane %v1807, 2
      %v1810 = vor.u32 %v1806, %v1809
      %v1811 = vsel %vm1668, %v1801, %v1810
      %v1813 = vshrl.u32 %v1352, 16
      %v1815 = vrot.slane %v1813, 1
      %v1816 = vshll.u32 %v1352, 16
      %v1818 = vrot.slane %v1816, 2
      %v1819 = vor.u32 %v1815, %v1818
      %v1820 = vsel %vm1668, %v1810, %v1819
      %v1822 = vshrl.u32 %v1353, 16
      %v1824 = vrot.slane %v1822, 1
      %v1825 = vshll.u32 %v1353, 16
      %v1827 = vrot.slane %v1825, 2
      %v1828 = vor.u32 %v1824, %v1827
      %v1829 = vsel %vm1668, %v1819, %v1828
      %v1831 = vshrl.u32 %v1667, 16
      %v1833 = vrot.slane %v1831, 1
      %v1834 = vshll.u32 %v1667, 16
      %v1836 = vrot.slane %v1834, 2
      %v1837 = vor.u32 %v1833, %v1836
      %v1838 = vsel %vm1668, %v1828, %v1837
      %v1840 = vsel %vm454, %v1685, 0
      %v1843 = vsel %vm454, %v1694, 0
      %v1846 = vsel %vm454, %v1703, 0
      %v1849 = vsel %vm454, %v1712, 0
      %v1852 = vsel %vm454, %v1721, 0
      %v1855 = vsel %vm454, %v1730, 0
      %v1858 = vsel %vm454, %v1739, 0
      %v1861 = vsel %vm454, %v1748, 0
      %v1864 = vsel %vm454, %v1757, 0
      %v1867 = vsel %vm454, %v1766, 0
      %v1870 = vsel %vm454, %v1775, 0
      %v1873 = vsel %vm454, %v1784, 0
      %v1876 = vsel %vm454, %v1793, 0
      %v1879 = vsel %vm454, %v1802, 0
      %v1882 = vsel %vm454, %v1811, 0
      %v1885 = vsel %vm454, %v1820, 0
      %v1888 = vsel %vm454, %v1829, 0
      %v1891 = vsel %vm454, %v1838, 0
      %v1894 = vand.u32 %v1664, %v512
      %1896 = vmatprep.subr.bf16.mxu0 0
      %1897 = vmatpush1.bf16.msra.mxu0 %v1894
      %1898 = vmatprep.subr.bf16.mxu0 0
      %1899 = vmatpush1.bf16.msra.mxu0 0
      %1900 = vmatprep.subr.bf16.mxu0 0
      %1901 = vmatpush1.bf16.msra.mxu0 0
      %1902 = vmatprep.subr.bf16.mxu0 0
      %1903 = vmatpush1.bf16.msra.mxu0 0
      %1904 = vmatprep.subr.bf16.mxu0 0
      %1905 = vmatpush1.bf16.msra.mxu0 0
      %1906 = vmatprep.subr.bf16.mxu0 0
      %1907 = vmatpush1.bf16.msra.mxu0 0
      %1908 = vmatprep.subr.bf16.mxu0 0
      %1909 = vmatpush1.bf16.msra.mxu0 0
      %1910 = vmatprep.subr.bf16.mxu0 0
      %1911 = vmatpush1.bf16.msra.mxu0 0
      %1912 = vmatprep.subr.bf16.mxu0 0
      %1913 = vmatpush1.bf16.msra.mxu0 0
      %1914 = vmatprep.subr.bf16.mxu0 0
      %1915 = vmatpush1.bf16.msra.mxu0 0
      %1916 = vmatprep.subr.bf16.mxu0 0
      %1917 = vmatpush1.bf16.msra.mxu0 0
      %1918 = vmatprep.subr.bf16.mxu0 0
      %1919 = vmatpush1.bf16.msra.mxu0 0
      %1920 = vmatprep.subr.bf16.mxu0 0
      %1921 = vmatpush1.bf16.msra.mxu0 0
      %1922 = vmatprep.subr.bf16.mxu0 0
      %1923 = vmatpush1.bf16.msra.mxu0 0
      %1924 = vmatprep.subr.bf16.mxu0 0
      %1925 = vmatpush1.bf16.msra.mxu0 0
      %1926 = vmatprep.subr.bf16.mxu0 0
      %1927 = vmatpush1.bf16.msra.mxu0 0
      %1928 = vmatprep.mubr.bf16.mxu0 0
      %1929 = vmatmul.mubr.bf16.gmra.mrb[0].mxu0 %v1840
      %v1930 = vpop.f32.mrb[0].mxu0
      %v1931 = vadd.f32 0.0, %v1930
      %v1932 = vpop.f32.mrb[0].mxu0
      %v1933 = vpop.f32.mrb[0].mxu0
      %v1934 = vadd.f32 0.0, %v1933
      %v1935 = vpop.f32.mrb[0].mxu0
      %1936 = vmatprep.mubr.bf16.mxu0 0
      %1937 = vmatmul.mubr.bf16.gmra.mrb[0].mxu0 %v1843
      %v1938 = vpop.f32.mrb[0].mxu0
      %v1939 = vadd.f32 0.0, %v1938
      %v1940 = vpop.f32.mrb[0].mxu0
      %v1941 = vpop.f32.mrb[0].mxu0
      %v1942 = vadd.f32 0.0, %v1941
      %v1943 = vpop.f32.mrb[0].mxu0
      %1944 = vmatprep.mubr.bf16.mxu0 0
      %1945 = vmatmul.mubr.bf16.gmra.mrb[0].mxu0 %v1846
      %v1946 = vpop.f32.mrb[0].mxu0
      %v1947 = vadd.f32 0.0, %v1946
      %v1948 = vpop.f32.mrb[0].mxu0
      %v1949 = vpop.f32.mrb[0].mxu0
      %v1950 = vadd.f32 0.0, %v1949
      %v1951 = vpop.f32.mrb[0].mxu0
      %1952 = vmatprep.mubr.bf16.mxu0 0
      %1953 = vmatmul.mubr.bf16.gmra.mrb[0].mxu0 %v1849
      %v1954 = vpop.f32.mrb[0].mxu0
      %v1955 = vadd.f32 0.0, %v1954
      %v1956 = vpop.f32.mrb[0].mxu0
      %v1957 = vpop.f32.mrb[0].mxu0
      %v1958 = vadd.f32 0.0, %v1957
      %v1959 = vpop.f32.mrb[0].mxu0
      %1960 = vmatprep.mubr.bf16.mxu0 0
      %1961 = vmatmul.mubr.bf16.gmra.mrb[0].mxu0 %v1852
      %v1962 = vpop.f32.mrb[0].mxu0
      %v1963 = vadd.f32 0.0, %v1962
      %v1964 = vpop.f32.mrb[0].mxu0
      %v1965 = vpop.f32.mrb[0].mxu0
      %v1966 = vadd.f32 0.0, %v1965
      %v1967 = vpop.f32.mrb[0].mxu0
      %1968 = vmatprep.mubr.bf16.mxu0 0
      %1969 = vmatmul.mubr.bf16.gmra.mrb[0].mxu0 %v1855
      %v1970 = vpop.f32.mrb[0].mxu0
      %v1971 = vadd.f32 0.0, %v1970
      %v1972 = vpop.f32.mrb[0].mxu0
      %v1973 = vpop.f32.mrb[0].mxu0
      %v1974 = vadd.f32 0.0, %v1973
      %v1975 = vpop.f32.mrb[0].mxu0
      %1976 = vmatprep.mubr.bf16.mxu0 0
      %1977 = vmatmul.mubr.bf16.gmra.mrb[0].mxu0 %v1858
      %v1978 = vpop.f32.mrb[0].mxu0
      %v1979 = vadd.f32 0.0, %v1978
      %v1980 = vpop.f32.mrb[0].mxu0
      %v1981 = vpop.f32.mrb[0].mxu0
      %v1982 = vadd.f32 0.0, %v1981
      %v1983 = vpop.f32.mrb[0].mxu0
      %1984 = vmatprep.mubr.bf16.mxu0 0
      %1985 = vmatmul.mubr.bf16.gmra.mrb[0].mxu0 %v1861
      %v1986 = vpop.f32.mrb[0].mxu0
      %v1987 = vadd.f32 0.0, %v1986
      %v1988 = vpop.f32.mrb[0].mxu0
      %v1989 = vpop.f32.mrb[0].mxu0
      %v1990 = vadd.f32 0.0, %v1989
      %v1991 = vpop.f32.mrb[0].mxu0
      %1992 = vmatprep.mubr.bf16.mxu0 0
      %1993 = vmatmul.mubr.bf16.gmra.mrb[0].mxu0 %v1864
      %v1994 = vpop.f32.mrb[0].mxu0
      %v1995 = vadd.f32 0.0, %v1994
      %v1996 = vpop.f32.mrb[0].mxu0
      %v1997 = vpop.f32.mrb[0].mxu0
      %v1998 = vadd.f32 0.0, %v1997
      %v1999 = vpop.f32.mrb[0].mxu0
      %2000 = vmatprep.mubr.bf16.mxu0 0
      %2001 = vmatmul.mubr.bf16.gmra.mrb[0].mxu0 %v1867
      %v2002 = vpop.f32.mrb[0].mxu0
      %v2003 = vadd.f32 0.0, %v2002
      %v2004 = vpop.f32.mrb[0].mxu0
      %v2005 = vpop.f32.mrb[0].mxu0
      %v2006 = vadd.f32 0.0, %v2005
      %v2007 = vpop.f32.mrb[0].mxu0
      %2008 = vmatprep.mubr.bf16.mxu0 0
      %2009 = vmatmul.mubr.bf16.gmra.mrb[0].mxu0 %v1870
      %v2010 = vpop.f32.mrb[0].mxu0
      %v2011 = vadd.f32 0.0, %v2010
      %v2012 = vpop.f32.mrb[0].mxu0
      %v2013 = vpop.f32.mrb[0].mxu0
      %v2014 = vadd.f32 0.0, %v2013
      %v2015 = vpop.f32.mrb[0].mxu0
      %2016 = vmatprep.mubr.bf16.mxu0 0
      %2017 = vmatmul.mubr.bf16.gmra.mrb[0].mxu0 %v1873
      %v2018 = vpop.f32.mrb[0].mxu0
      %v2019 = vadd.f32 0.0, %v2018
      %v2020 = vpop.f32.mrb[0].mxu0
      %v2021 = vpop.f32.mrb[0].mxu0
      %v2022 = vadd.f32 0.0, %v2021
      %v2023 = vpop.f32.mrb[0].mxu0
      %2024 = vmatprep.mubr.bf16.mxu0 0
      %2025 = vmatmul.mubr.bf16.gmra.mrb[0].mxu0 %v1876
      %v2026 = vpop.f32.mrb[0].mxu0
      %v2027 = vadd.f32 0.0, %v2026
      %v2028 = vpop.f32.mrb[0].mxu0
      %v2029 = vpop.f32.mrb[0].mxu0
      %v2030 = vadd.f32 0.0, %v2029
      %v2031 = vpop.f32.mrb[0].mxu0
      %2032 = vmatprep.mubr.bf16.mxu0 0
      %2033 = vmatmul.mubr.bf16.gmra.mrb[0].mxu0 %v1879
      %v2034 = vpop.f32.mrb[0].mxu0
      %v2035 = vadd.f32 0.0, %v2034
      %v2036 = vpop.f32.mrb[0].mxu0
      %v2037 = vpop.f32.mrb[0].mxu0
      %v2038 = vadd.f32 0.0, %v2037
      %v2039 = vpop.f32.mrb[0].mxu0
      %2040 = vmatprep.mubr.bf16.mxu0 0
      %2041 = vmatmul.mubr.bf16.gmra.mrb[0].mxu0 %v1882
      %v2042 = vpop.f32.mrb[0].mxu0
      %v2043 = vadd.f32 0.0, %v2042
      %v2044 = vpop.f32.mrb[0].mxu0
      %v2045 = vpop.f32.mrb[0].mxu0
      %v2046 = vadd.f32 0.0, %v2045
      %v2047 = vpop.f32.mrb[0].mxu0
      %2048 = vmatprep.mubr.bf16.mxu0 0
      %2049 = vmatmul.mubr.bf16.gmra.mrb[0].mxu0 %v1885
      %v2050 = vpop.f32.mrb[0].mxu0
      %v2051 = vadd.f32 0.0, %v2050
      %v2052 = vpop.f32.mrb[0].mxu0
      %v2053 = vpop.f32.mrb[0].mxu0
      %v2054 = vadd.f32 0.0, %v2053
      %v2055 = vpop.f32.mrb[0].mxu0
      %2056 = vmatprep.mubr.bf16.mxu0 0
      %2057 = vmatmul.mubr.bf16.gmra.mrb[0].mxu0 %v1888
      %v2058 = vpop.f32.mrb[0].mxu0
      %v2059 = vadd.f32 0.0, %v2058
      %v2060 = vpop.f32.mrb[0].mxu0
      %v2061 = vpop.f32.mrb[0].mxu0
      %v2062 = vadd.f32 0.0, %v2061
      %v2063 = vpop.f32.mrb[0].mxu0
      %2064 = vmatprep.mubr.bf16.mxu0 0
      %2065 = vmatmul.mubr.bf16.gmra.mrb[0].mxu0 %v1891
      %v2066 = vpop.f32.mrb[0].mxu0
      %v2067 = vadd.f32 0.0, %v2066
      %v2068 = vpop.f32.mrb[0].mxu0
      %v2069 = vpop.f32.mrb[0].mxu0
      %v2070 = vadd.f32 0.0, %v2069
      %v2071 = vpop.f32.mrb[0].mxu0
      %2072 = vdwg.mxu0
      %v2073 = vadd.f32 %v1626, %v1931
      %v2074 = vadd.f32 %v1627, %v1934
      %v2075 = vadd.f32 %v1628, %v1939
      %v2076 = vadd.f32 %v1629, %v1942
      %v2077 = vadd.f32 %v1630, %v1947
      %v2078 = vadd.f32 %v1631, %v1950
      %v2079 = vadd.f32 %v1632, %v1955
      %v2080 = vadd.f32 %v1633, %v1958
      %v2081 = vadd.f32 %v1634, %v1963
      %v2082 = vadd.f32 %v1635, %v1966
      %v2083 = vadd.f32 %v1636, %v1971
      %v2084 = vadd.f32 %v1637, %v1974
      %v2085 = vadd.f32 %v1638, %v1979
      %v2086 = vadd.f32 %v1639, %v1982
      %v2087 = vadd.f32 %v1640, %v1987
      %v2088 = vadd.f32 %v1641, %v1990
      %v2089 = vadd.f32 %v1642, %v1995
      %v2090 = vadd.f32 %v1643, %v1998
      %v2091 = vadd.f32 %v1644, %v2003
      %v2092 = vadd.f32 %v1645, %v2006
      %v2093 = vadd.f32 %v1646, %v2011
      %v2094 = vadd.f32 %v1647, %v2014
      %v2095 = vadd.f32 %v1648, %v2019
      %v2096 = vadd.f32 %v1649, %v2022
      %v2097 = vadd.f32 %v1650, %v2027
      %v2098 = vadd.f32 %v1651, %v2030
      %v2099 = vadd.f32 %v1652, %v2035
      %v2100 = vadd.f32 %v1653, %v2038
      %v2101 = vadd.f32 %v1654, %v2043
      %v2102 = vadd.f32 %v1655, %v2046
      %v2103 = vadd.f32 %v1656, %v2051
      %v2104 = vadd.f32 %v1657, %v2054
      %v2105 = vadd.f32 %v1658, %v2059
      %v2106 = vadd.f32 %v1659, %v2062
      %v2107 = vadd.f32 %v1660, %v2067
      %v2108 = vadd.f32 %v1661, %v2070
      %v2109 = vld [vmem:[%s165 + $0x8] sm:$0xc]
      %s2110 = scalar_lea.vmem %s1, 10
      %v2111 = vld [vmem:[%s2110] sm:$0x3]
      %v2113 = vunpack.c.l.b16 %v2109
      %v2114 = vpack.c.b16 %v1300, %v2113
      %vm2115 = vcmask 1045504
      %v2116 = vrot.slane %v2114, 2
      %v2117 = vrot.slane %v1337, 2
      %v2118 = vsel %vm2115, %v2116, %v2117
      %v2119 = vrot.slane %v1338, 2
      %v2120 = vsel %vm2115, %v2117, %v2119
      %v2121 = vrot.slane %v1339, 2
      %v2122 = vsel %vm2115, %v2119, %v2121
      %v2123 = vrot.slane %v1340, 2
      %v2124 = vsel %vm2115, %v2121, %v2123
      %v2125 = vrot.slane %v1341, 2
      %v2126 = vsel %vm2115, %v2123, %v2125
      %v2127 = vrot.slane %v1342, 2
      %v2128 = vsel %vm2115, %v2125, %v2127
      %v2129 = vrot.slane %v1343, 2
      %v2130 = vsel %vm2115, %v2127, %v2129
      %v2131 = vrot.slane %v1344, 2
      %v2132 = vsel %vm2115, %v2129, %v2131
      %v2133 = vrot.slane %v1345, 2
      %v2134 = vsel %vm2115, %v2131, %v2133
      %v2135 = vrot.slane %v1346, 2
      %v2136 = vsel %vm2115, %v2133, %v2135
      %v2137 = vrot.slane %v1347, 2
      %v2138 = vsel %vm2115, %v2135, %v2137
      %v2139 = vrot.slane %v1348, 2
      %v2140 = vsel %vm2115, %v2137, %v2139
      %v2141 = vrot.slane %v1349, 2
      %v2142 = vsel %vm2115, %v2139, %v2141
      %v2143 = vrot.slane %v1350, 2
      %v2144 = vsel %vm2115, %v2141, %v2143
      %v2145 = vrot.slane %v1351, 2
      %v2146 = vsel %vm2115, %v2143, %v2145
      %v2147 = vrot.slane %v1352, 2
      %v2148 = vsel %vm2115, %v2145, %v2147
      %v2149 = vrot.slane %v1353, 2
      %v2150 = vsel %vm2115, %v2147, %v2149
      %v2151 = vrot.slane %v1667, 2
      %v2152 = vsel %vm2115, %v2149, %v2151
      %v2154 = vsel %vm454, %v2118, 0
      %v2157 = vsel %vm454, %v2120, 0
      %v2160 = vsel %vm454, %v2122, 0
      %v2163 = vsel %vm454, %v2124, 0
      %v2166 = vsel %vm454, %v2126, 0
      %v2169 = vsel %vm454, %v2128, 0
      %v2172 = vsel %vm454, %v2130, 0
      %v2175 = vsel %vm454, %v2132, 0
      %v2178 = vsel %vm454, %v2134, 0
      %v2181 = vsel %vm454, %v2136, 0
      %v2184 = vsel %vm454, %v2138, 0
      %v2187 = vsel %vm454, %v2140, 0
      %v2190 = vsel %vm454, %v2142, 0
      %v2193 = vsel %vm454, %v2144, 0
      %v2196 = vsel %vm454, %v2146, 0
      %v2199 = vsel %vm454, %v2148, 0
      %v2202 = vsel %vm454, %v2150, 0
      %v2205 = vsel %vm454, %v2152, 0
      %v2208 = vand.u32 %v2111, %v512
      %2210 = vmatprep.subr.bf16.mxu0 0
      %2211 = vmatpush1.bf16.msra.mxu0 %v2208
      %2212 = vmatprep.subr.bf16.mxu0 0
      %2213 = vmatpush1.bf16.msra.mxu0 0
      %2214 = vmatprep.subr.bf16.mxu0 0
      %2215 = vmatpush1.bf16.msra.mxu0 0
      %2216 = vmatprep.subr.bf16.mxu0 0
      %2217 = vmatpush1.bf16.msra.mxu0 0
      %2218 = vmatprep.subr.bf16.mxu0 0
      %2219 = vmatpush1.bf16.msra.mxu0 0
      %2220 = vmatprep.subr.bf16.mxu0 0
      %2221 = vmatpush1.bf16.msra.mxu0 0
      %2222 = vmatprep.subr.bf16.mxu0 0
      %2223 = vmatpush1.bf16.msra.mxu0 0
      %2224 = vmatprep.subr.bf16.mxu0 0
      %2225 = vmatpush1.bf16.msra.mxu0 0
      %2226 = vmatprep.subr.bf16.mxu0 0
      %2227 = vmatpush1.bf16.msra.mxu0 0
      %2228 = vmatprep.subr.bf16.mxu0 0
      %2229 = vmatpush1.bf16.msra.mxu0 0
      %2230 = vmatprep.subr.bf16.mxu0 0
      %2231 = vmatpush1.bf16.msra.mxu0 0
      %2232 = vmatprep.subr.bf16.mxu0 0
      %2233 = vmatpush1.bf16.msra.mxu0 0
      %2234 = vmatprep.subr.bf16.mxu0 0
      %2235 = vmatpush1.bf16.msra.mxu0 0
      %2236 = vmatprep.subr.bf16.mxu0 0
      %2237 = vmatpush1.bf16.msra.mxu0 0
      %2238 = vmatprep.subr.bf16.mxu0 0
      %2239 = vmatpush1.bf16.msra.mxu0 0
      %2240 = vmatprep.subr.bf16.mxu0 0
      %2241 = vmatpush1.bf16.msra.mxu0 0
      %2242 = vmatprep.mubr.bf16.mxu0 0
      %2243 = vmatmul.mubr.bf16.gmra.mrb[0].mxu0 %v2154
      %v2244 = vpop.f32.mrb[0].mxu0
      %v2245 = vadd.f32 0.0, %v2244
      %v2246 = vpop.f32.mrb[0].mxu0
      %v2247 = vpop.f32.mrb[0].mxu0
      %v2248 = vadd.f32 0.0, %v2247
      %v2249 = vpop.f32.mrb[0].mxu0
      %2250 = vmatprep.mubr.bf16.mxu0 0
      %2251 = vmatmul.mubr.bf16.gmra.mrb[0].mxu0 %v2157
      %v2252 = vpop.f32.mrb[0].mxu0
      %v2253 = vadd.f32 0.0, %v2252
      %v2254 = vpop.f32.mrb[0].mxu0
      %v2255 = vpop.f32.mrb[0].mxu0
      %v2256 = vadd.f32 0.0, %v2255
      %v2257 = vpop.f32.mrb[0].mxu0
      %2258 = vmatprep.mubr.bf16.mxu0 0
      %2259 = vmatmul.mubr.bf16.gmra.mrb[0].mxu0 %v2160
      %v2260 = vpop.f32.mrb[0].mxu0
      %v2261 = vadd.f32 0.0, %v2260
      %v2262 = vpop.f32.mrb[0].mxu0
      %v2263 = vpop.f32.mrb[0].mxu0
      %v2264 = vadd.f32 0.0, %v2263
      %v2265 = vpop.f32.mrb[0].mxu0
      %2266 = vmatprep.mubr.bf16.mxu0 0
      %2267 = vmatmul.mubr.bf16.gmra.mrb[0].mxu0 %v2163
      %v2268 = vpop.f32.mrb[0].mxu0
      %v2269 = vadd.f32 0.0, %v2268
      %v2270 = vpop.f32.mrb[0].mxu0
      %v2271 = vpop.f32.mrb[0].mxu0
      %v2272 = vadd.f32 0.0, %v2271
      %v2273 = vpop.f32.mrb[0].mxu0
      %2274 = vmatprep.mubr.bf16.mxu0 0
      %2275 = vmatmul.mubr.bf16.gmra.mrb[0].mxu0 %v2166
      %v2276 = vpop.f32.mrb[0].mxu0
      %v2277 = vadd.f32 0.0, %v2276
      %v2278 = vpop.f32.mrb[0].mxu0
      %v2279 = vpop.f32.mrb[0].mxu0
      %v2280 = vadd.f32 0.0, %v2279
      %v2281 = vpop.f32.mrb[0].mxu0
      %2282 = vmatprep.mubr.bf16.mxu0 0
      %2283 = vmatmul.mubr.bf16.gmra.mrb[0].mxu0 %v2169
      %v2284 = vpop.f32.mrb[0].mxu0
      %v2285 = vadd.f32 0.0, %v2284
      %v2286 = vpop.f32.mrb[0].mxu0
      %v2287 = vpop.f32.mrb[0].mxu0
      %v2288 = vadd.f32 0.0, %v2287
      %v2289 = vpop.f32.mrb[0].mxu0
      %2290 = vmatprep.mubr.bf16.mxu0 0
      %2291 = vmatmul.mubr.bf16.gmra.mrb[0].mxu0 %v2172
      %v2292 = vpop.f32.mrb[0].mxu0
      %v2293 = vadd.f32 0.0, %v2292
      %v2294 = vpop.f32.mrb[0].mxu0
      %v2295 = vpop.f32.mrb[0].mxu0
      %v2296 = vadd.f32 0.0, %v2295
      %v2297 = vpop.f32.mrb[0].mxu0
      %2298 = vmatprep.mubr.bf16.mxu0 0
      %2299 = vmatmul.mubr.bf16.gmra.mrb[0].mxu0 %v2175
      %v2300 = vpop.f32.mrb[0].mxu0
      %v2301 = vadd.f32 0.0, %v2300
      %v2302 = vpop.f32.mrb[0].mxu0
      %v2303 = vpop.f32.mrb[0].mxu0
      %v2304 = vadd.f32 0.0, %v2303
      %v2305 = vpop.f32.mrb[0].mxu0
      %2306 = vmatprep.mubr.bf16.mxu0 0
      %2307 = vmatmul.mubr.bf16.gmra.mrb[0].mxu0 %v2178
      %v2308 = vpop.f32.mrb[0].mxu0
      %v2309 = vadd.f32 0.0, %v2308
      %v2310 = vpop.f32.mrb[0].mxu0
      %v2311 = vpop.f32.mrb[0].mxu0
      %v2312 = vadd.f32 0.0, %v2311
      %v2313 = vpop.f32.mrb[0].mxu0
      %2314 = vmatprep.mubr.bf16.mxu0 0
      %2315 = vmatmul.mubr.bf16.gmra.mrb[0].mxu0 %v2181
      %v2316 = vpop.f32.mrb[0].mxu0
      %v2317 = vadd.f32 0.0, %v2316
      %v2318 = vpop.f32.mrb[0].mxu0
      %v2319 = vpop.f32.mrb[0].mxu0
      %v2320 = vadd.f32 0.0, %v2319
      %v2321 = vpop.f32.mrb[0].mxu0
      %2322 = vmatprep.mubr.bf16.mxu0 0
      %2323 = vmatmul.mubr.bf16.gmra.mrb[0].mxu0 %v2184
      %v2324 = vpop.f32.mrb[0].mxu0
      %v2325 = vadd.f32 0.0, %v2324
      %v2326 = vpop.f32.mrb[0].mxu0
      %v2327 = vpop.f32.mrb[0].mxu0
      %v2328 = vadd.f32 0.0, %v2327
      %v2329 = vpop.f32.mrb[0].mxu0
      %2330 = vmatprep.mubr.bf16.mxu0 0
      %2331 = vmatmul.mubr.bf16.gmra.mrb[0].mxu0 %v2187
      %v2332 = vpop.f32.mrb[0].mxu0
      %v2333 = vadd.f32 0.0, %v2332
      %v2334 = vpop.f32.mrb[0].mxu0
      %v2335 = vpop.f32.mrb[0].mxu0
      %v2336 = vadd.f32 0.0, %v2335
      %v2337 = vpop.f32.mrb[0].mxu0
      %2338 = vmatprep.mubr.bf16.mxu0 0
      %2339 = vmatmul.mubr.bf16.gmra.mrb[0].mxu0 %v2190
      %v2340 = vpop.f32.mrb[0].mxu0
      %v2341 = vadd.f32 0.0, %v2340
      %v2342 = vpop.f32.mrb[0].mxu0
      %v2343 = vpop.f32.mrb[0].mxu0
      %v2344 = vadd.f32 0.0, %v2343
      %v2345 = vpop.f32.mrb[0].mxu0
      %2346 = vmatprep.mubr.bf16.mxu0 0
      %2347 = vmatmul.mubr.bf16.gmra.mrb[0].mxu0 %v2193
      %v2348 = vpop.f32.mrb[0].mxu0
      %v2349 = vadd.f32 0.0, %v2348
      %v2350 = vpop.f32.mrb[0].mxu0
      %v2351 = vpop.f32.mrb[0].mxu0
      %v2352 = vadd.f32 0.0, %v2351
      %v2353 = vpop.f32.mrb[0].mxu0
      %2354 = vmatprep.mubr.bf16.mxu0 0
      %2355 = vmatmul.mubr.bf16.gmra.mrb[0].mxu0 %v2196
      %v2356 = vpop.f32.mrb[0].mxu0
      %v2357 = vadd.f32 0.0, %v2356
      %v2358 = vpop.f32.mrb[0].mxu0
      %v2359 = vpop.f32.mrb[0].mxu0
      %v2360 = vadd.f32 0.0, %v2359
      %v2361 = vpop.f32.mrb[0].mxu0
      %2362 = vmatprep.mubr.bf16.mxu0 0
      %2363 = vmatmul.mubr.bf16.gmra.mrb[0].mxu0 %v2199
      %v2364 = vpop.f32.mrb[0].mxu0
      %v2365 = vadd.f32 0.0, %v2364
      %v2366 = vpop.f32.mrb[0].mxu0
      %v2367 = vpop.f32.mrb[0].mxu0
      %v2368 = vadd.f32 0.0, %v2367
      %v2369 = vpop.f32.mrb[0].mxu0
      %2370 = vmatprep.mubr.bf16.mxu0 0
      %2371 = vmatmul.mubr.bf16.gmra.mrb[0].mxu0 %v2202
      %v2372 = vpop.f32.mrb[0].mxu0
      %v2373 = vadd.f32 0.0, %v2372
      %v2374 = vpop.f32.mrb[0].mxu0
      %v2375 = vpop.f32.mrb[0].mxu0
      %v2376 = vadd.f32 0.0, %v2375
      %v2377 = vpop.f32.mrb[0].mxu0
      %2378 = vmatprep.mubr.bf16.mxu0 0
      %2379 = vmatmul.mubr.bf16.gmra.mrb[0].mxu0 %v2205
      %v2380 = vpop.f32.mrb[0].mxu0
      %v2381 = vadd.f32 0.0, %v2380
      %v2382 = vpop.f32.mrb[0].mxu0
      %v2383 = vpop.f32.mrb[0].mxu0
      %v2384 = vadd.f32 0.0, %v2383
      %v2385 = vpop.f32.mrb[0].mxu0
      %2386 = vdwg.mxu0
      %v2387 = vadd.f32 %v2073, %v2245
      %v2388 = vadd.f32 %v2074, %v2248
      %v2389 = vadd.f32 %v2075, %v2253
      %v2390 = vadd.f32 %v2076, %v2256
      %v2391 = vadd.f32 %v2077, %v2261
      %v2392 = vadd.f32 %v2078, %v2264
      %v2393 = vadd.f32 %v2079, %v2269
      %v2394 = vadd.f32 %v2080, %v2272
      %v2395 = vadd.f32 %v2081, %v2277
      %v2396 = vadd.f32 %v2082, %v2280
      %v2397 = vadd.f32 %v2083, %v2285
      %v2398 = vadd.f32 %v2084, %v2288
      %v2399 = vadd.f32 %v2085, %v2293
      %v2400 = vadd.f32 %v2086, %v2296
      %v2401 = vadd.f32 %v2087, %v2301
      %v2402 = vadd.f32 %v2088, %v2304
      %v2403 = vadd.f32 %v2089, %v2309
      %v2404 = vadd.f32 %v2090, %v2312
      %v2405 = vadd.f32 %v2091, %v2317
      %v2406 = vadd.f32 %v2092, %v2320
      %v2407 = vadd.f32 %v2093, %v2325
      %v2408 = vadd.f32 %v2094, %v2328
      %v2409 = vadd.f32 %v2095, %v2333
      %v2410 = vadd.f32 %v2096, %v2336
      %v2411 = vadd.f32 %v2097, %v2341
      %v2412 = vadd.f32 %v2098, %v2344
      %v2413 = vadd.f32 %v2099, %v2349
      %v2414 = vadd.f32 %v2100, %v2352
      %v2415 = vadd.f32 %v2101, %v2357
      %v2416 = vadd.f32 %v2102, %v2360
      %v2417 = vadd.f32 %v2103, %v2365
      %v2418 = vadd.f32 %v2104, %v2368
      %v2419 = vadd.f32 %v2105, %v2373
      %v2420 = vadd.f32 %v2106, %v2376
      %v2421 = vadd.f32 %v2107, %v2381
      %v2422 = vadd.f32 %v2108, %v2384
      %v2423 = vld [vmem:[%s165 + $0x10] sm:$0xc]
      %v2424 = vld [vmem:[%s165 + $0x14] sm:$0xf]
      %v2425 = vld [vmem:[%s165 + $0x18] sm:$0xf]
      %v2426 = vld [vmem:[%s165 + $0x1c] sm:$0xf]
      %v2427 = vld [vmem:[%s165 + $0x20] sm:$0xf]
      %v2428 = vld [vmem:[%s165 + $0x24] sm:$0xf]
      %v2429 = vld [vmem:[%s165 + $0x28] sm:$0xf]
      %v2430 = vld [vmem:[%s165 + $0x2c] sm:$0xf]
      %v2431 = vld [vmem:[%s165 + $0x30] sm:$0xf]
      %v2432 = vld [vmem:[%s165 + $0x34] sm:$0xf]
      %v2433 = vld [vmem:[%s165 + $0x38] sm:$0xf]
      %v2434 = vld [vmem:[%s165 + $0x3c] sm:$0xf]
      %v2435 = vld [vmem:[%s165 + $0x40] sm:$0xf]
      %v2436 = vld [vmem:[%s165 + $0x44] sm:$0xf]
      %v2437 = vld [vmem:[%s165 + $0x48] sm:$0xf]
      %v2438 = vld [vmem:[%s165 + $0x4c] sm:$0xf]
      %v2439 = vld [vmem:[%s165 + $0x50] sm:$0xf]
      %v2440 = vld [vmem:[%s165 + $0x54] sm:$0xf]
      %v2441 = vld [vmem:[%s165 + $0x58] sm:$0xf]
      %v2442 = vld [vmem:[%s165 + $0x5c] sm:$0xf]
      %v2443 = vld [vmem:[%s165 + $0x60] sm:$0xf]
      %v2444 = vld [vmem:[%s165 + $0x64] sm:$0xf]
      %v2445 = vld [vmem:[%s165 + $0x68] sm:$0xf]
      %v2446 = vld [vmem:[%s165 + $0x6c] sm:$0xf]
      %v2447 = vld [vmem:[%s165 + $0x70] sm:$0xf]
      %v2448 = vld [vmem:[%s165 + $0x74] sm:$0xf]
      %v2449 = vld [vmem:[%s165 + $0x78] sm:$0xf]
      %v2450 = vld [vmem:[%s165 + $0x7c] sm:$0xf]
      %v2451 = vld [vmem:[%s165 + $0x80] sm:$0xf]
      %v2452 = vld [vmem:[%s165 + $0x84] sm:$0xf]
      %v2453 = vld [vmem:[%s165 + $0x88] sm:$0xf]
      %v2454 = vld [vmem:[%s165 + $0x8c] sm:$0xf]
      %v2455 = vld [vmem:[%s165 + $0x90] sm:$0xf]
      %v2456 = vld [vmem:[%s165 + $0x94] sm:$0xf]
      %v2457 = vld [vmem:[%s165 + $0x98] sm:$0xf]
      %v2458 = vld [vmem:[%s165 + $0x9c] sm:$0xf]
      %v2459 = vld [vmem:[%s165 + $0xa0] sm:$0x3]
      %s2460 = scalar_lea.vmem %s1, 12
      %v2461 = vld [vmem:[%s2460] sm:$0x3]
      %v2499 = vunpack.c.l.b16 %v2423
      %v2500 = vunpack.c.l.b16 %v2424
      %v2501 = vunpack.c.l.b16 %v2425
      %v2502 = vunpack.c.l.b16 %v2426
      %v2503 = vunpack.c.l.b16 %v2427
      %v2504 = vunpack.c.l.b16 %v2428
      %v2505 = vunpack.c.l.b16 %v2429
      %v2506 = vunpack.c.l.b16 %v2430
      %v2507 = vunpack.c.l.b16 %v2431
      %v2508 = vunpack.c.l.b16 %v2432
      %v2509 = vunpack.c.l.b16 %v2433
      %v2510 = vunpack.c.l.b16 %v2434
      %v2511 = vunpack.c.l.b16 %v2435
      %v2512 = vunpack.c.l.b16 %v2436
      %v2513 = vunpack.c.l.b16 %v2437
      %v2514 = vunpack.c.l.b16 %v2438
      %v2515 = vunpack.c.l.b16 %v2439
      %v2516 = vunpack.c.l.b16 %v2440
      %v2517 = vunpack.c.l.b16 %v2441
      %v2518 = vunpack.c.l.b16 %v2442
      %v2519 = vunpack.c.l.b16 %v2443
      %v2520 = vunpack.c.l.b16 %v2444
      %v2521 = vunpack.c.l.b16 %v2445
      %v2522 = vunpack.c.l.b16 %v2446
      %v2523 = vunpack.c.l.b16 %v2447
      %v2524 = vunpack.c.l.b16 %v2448
      %v2525 = vunpack.c.l.b16 %v2449
      %v2526 = vunpack.c.l.b16 %v2450
      %v2527 = vunpack.c.l.b16 %v2451
      %v2528 = vunpack.c.l.b16 %v2452
      %v2529 = vunpack.c.l.b16 %v2453
      %v2530 = vunpack.c.l.b16 %v2454
      %v2531 = vunpack.c.l.b16 %v2455
      %v2532 = vunpack.c.l.b16 %v2456
      %v2533 = vunpack.c.l.b16 %v2457
      %v2534 = vunpack.c.l.b16 %v2458
      %v2535 = vunpack.c.l.b16 %v2459
      %v2536 = vpack.c.b16 %v2500, %v2499
      %v2537 = vpack.c.b16 %v2502, %v2501
      %v2538 = vpack.c.b16 %v2504, %v2503
      %v2539 = vpack.c.b16 %v2506, %v2505
      %v2540 = vpack.c.b16 %v2508, %v2507
      %v2541 = vpack.c.b16 %v2510, %v2509
      %v2542 = vpack.c.b16 %v2512, %v2511
      %v2543 = vpack.c.b16 %v2514, %v2513
      %v2544 = vpack.c.b16 %v2516, %v2515
      %v2545 = vpack.c.b16 %v2518, %v2517
      %v2546 = vpack.c.b16 %v2520, %v2519
      %v2547 = vpack.c.b16 %v2522, %v2521
      %v2548 = vpack.c.b16 %v2524, %v2523
      %v2549 = vpack.c.b16 %v2526, %v2525
      %v2550 = vpack.c.b16 %v2528, %v2527
      %v2551 = vpack.c.b16 %v2530, %v2529
      %v2552 = vpack.c.b16 %v2532, %v2531
      %v2553 = vpack.c.b16 %v2534, %v2533
      %v2554 = vpack.c.b16 %v2535, %v2535
      %v2555 = vrot.slane %v2536, 2
      %v2556 = vrot.slane %v2537, 2
      %v2557 = vsel %vm2115, %v2555, %v2556
      %v2558 = vrot.slane %v2538, 2
      %v2559 = vsel %vm2115, %v2556, %v2558
      %v2560 = vrot.slane %v2539, 2
      %v2561 = vsel %vm2115, %v2558, %v2560
      %v2562 = vrot.slane %v2540, 2
      %v2563 = vsel %vm2115, %v2560, %v2562
      %v2564 = vrot.slane %v2541, 2
      %v2565 = vsel %vm2115, %v2562, %v2564
      %v2566 = vrot.slane %v2542, 2
      %v2567 = vsel %vm2115, %v2564, %v2566
      %v2568 = vrot.slane %v2543, 2
      %v2569 = vsel %vm2115, %v2566, %v2568
      %v2570 = vrot.slane %v2544, 2
      %v2571 = vsel %vm2115, %v2568, %v2570
      %v2572 = vrot.slane %v2545, 2
      %v2573 = vsel %vm2115, %v2570, %v2572
      %v2574 = vrot.slane %v2546, 2
      %v2575 = vsel %vm2115, %v2572, %v2574
      %v2576 = vrot.slane %v2547, 2
      %v2577 = vsel %vm2115, %v2574, %v2576
      %v2578 = vrot.slane %v2548, 2
      %v2579 = vsel %vm2115, %v2576, %v2578
      %v2580 = vrot.slane %v2549, 2
      %v2581 = vsel %vm2115, %v2578, %v2580
      %v2582 = vrot.slane %v2550, 2
      %v2583 = vsel %vm2115, %v2580, %v2582
      %v2584 = vrot.slane %v2551, 2
      %v2585 = vsel %vm2115, %v2582, %v2584
      %v2586 = vrot.slane %v2552, 2
      %v2587 = vsel %vm2115, %v2584, %v2586
      %v2588 = vrot.slane %v2553, 2
      %v2589 = vsel %vm2115, %v2586, %v2588
      %v2590 = vrot.slane %v2554, 2
      %v2591 = vsel %vm2115, %v2588, %v2590
      %v2593 = vsel %vm454, %v2557, 0
      %v2596 = vsel %vm454, %v2559, 0
      %v2599 = vsel %vm454, %v2561, 0
      %v2602 = vsel %vm454, %v2563, 0
      %v2605 = vsel %vm454, %v2565, 0
      %v2608 = vsel %vm454, %v2567, 0
      %v2611 = vsel %vm454, %v2569, 0
      %v2614 = vsel %vm454, %v2571, 0
      %v2617 = vsel %vm454, %v2573, 0
      %v2620 = vsel %vm454, %v2575, 0
      %v2623 = vsel %vm454, %v2577, 0
      %v2626 = vsel %vm454, %v2579, 0
      %v2629 = vsel %vm454, %v2581, 0
      %v2632 = vsel %vm454, %v2583, 0
      %v2635 = vsel %vm454, %v2585, 0
      %v2638 = vsel %vm454, %v2587, 0
      %v2641 = vsel %vm454, %v2589, 0
      %v2644 = vsel %vm454, %v2591, 0
      %v2647 = vand.u32 %v2461, %v512
      %2649 = vmatprep.subr.bf16.mxu0 0
      %2650 = vmatpush1.bf16.msra.mxu0 %v2647
      %2651 = vmatprep.subr.bf16.mxu0 0
      %2652 = vmatpush1.bf16.msra.mxu0 0
      %2653 = vmatprep.subr.bf16.mxu0 0
      %2654 = vmatpush1.bf16.msra.mxu0 0
      %2655 = vmatprep.subr.bf16.mxu0 0
      %2656 = vmatpush1.bf16.msra.mxu0 0
      %2657 = vmatprep.subr.bf16.mxu0 0
      %2658 = vmatpush1.bf16.msra.mxu0 0
      %2659 = vmatprep.subr.bf16.mxu0 0
      %2660 = vmatpush1.bf16.msra.mxu0 0
      %2661 = vmatprep.subr.bf16.mxu0 0
      %2662 = vmatpush1.bf16.msra.mxu0 0
      %2663 = vmatprep.subr.bf16.mxu0 0
      %2664 = vmatpush1.bf16.msra.mxu0 0
      %2665 = vmatprep.subr.bf16.mxu0 0
      %2666 = vmatpush1.bf16.msra.mxu0 0
      %2667 = vmatprep.subr.bf16.mxu0 0
      %2668 = vmatpush1.bf16.msra.mxu0 0
      %2669 = vmatprep.subr.bf16.mxu0 0
      %2670 = vmatpush1.bf16.msra.mxu0 0
      %2671 = vmatprep.subr.bf16.mxu0 0
      %2672 = vmatpush1.bf16.msra.mxu0 0
      %2673 = vmatprep.subr.bf16.mxu0 0
      %2674 = vmatpush1.bf16.msra.mxu0 0
      %2675 = vmatprep.subr.bf16.mxu0 0
      %2676 = vmatpush1.bf16.msra.mxu0 0
      %2677 = vmatprep.subr.bf16.mxu0 0
      %2678 = vmatpush1.bf16.msra.mxu0 0
      %2679 = vmatprep.subr.bf16.mxu0 0
      %2680 = vmatpush1.bf16.msra.mxu0 0
      %2681 = vmatprep.mubr.bf16.mxu0 0
      %2682 = vmatmul.mubr.bf16.gmra.mrb[0].mxu0 %v2593
      %v2683 = vpop.f32.mrb[0].mxu0
      %v2684 = vadd.f32 0.0, %v2683
      %v2685 = vpop.f32.mrb[0].mxu0
      %v2686 = vpop.f32.mrb[0].mxu0
      %v2687 = vadd.f32 0.0, %v2686
      %v2688 = vpop.f32.mrb[0].mxu0
      %2689 = vmatprep.mubr.bf16.mxu0 0
      %2690 = vmatmul.mubr.bf16.gmra.mrb[0].mxu0 %v2596
      %v2691 = vpop.f32.mrb[0].mxu0
      %v2692 = vadd.f32 0.0, %v2691
      %v2693 = vpop.f32.mrb[0].mxu0
      %v2694 = vpop.f32.mrb[0].mxu0
      %v2695 = vadd.f32 0.0, %v2694
      %v2696 = vpop.f32.mrb[0].mxu0
      %2697 = vmatprep.mubr.bf16.mxu0 0
      %2698 = vmatmul.mubr.bf16.gmra.mrb[0].mxu0 %v2599
      %v2699 = vpop.f32.mrb[0].mxu0
      %v2700 = vadd.f32 0.0, %v2699
      %v2701 = vpop.f32.mrb[0].mxu0
      %v2702 = vpop.f32.mrb[0].mxu0
      %v2703 = vadd.f32 0.0, %v2702
      %v2704 = vpop.f32.mrb[0].mxu0
      %2705 = vmatprep.mubr.bf16.mxu0 0
      %2706 = vmatmul.mubr.bf16.gmra.mrb[0].mxu0 %v2602
      %v2707 = vpop.f32.mrb[0].mxu0
      %v2708 = vadd.f32 0.0, %v2707
      %v2709 = vpop.f32.mrb[0].mxu0
      %v2710 = vpop.f32.mrb[0].mxu0
      %v2711 = vadd.f32 0.0, %v2710
      %v2712 = vpop.f32.mrb[0].mxu0
      %2713 = vmatprep.mubr.bf16.mxu0 0
      %2714 = vmatmul.mubr.bf16.gmra.mrb[0].mxu0 %v2605
      %v2715 = vpop.f32.mrb[0].mxu0
      %v2716 = vadd.f32 0.0, %v2715
      %v2717 = vpop.f32.mrb[0].mxu0
      %v2718 = vpop.f32.mrb[0].mxu0
      %v2719 = vadd.f32 0.0, %v2718
      %v2720 = vpop.f32.mrb[0].mxu0
      %2721 = vmatprep.mubr.bf16.mxu0 0
      %2722 = vmatmul.mubr.bf16.gmra.mrb[0].mxu0 %v2608
      %v2723 = vpop.f32.mrb[0].mxu0
      %v2724 = vadd.f32 0.0, %v2723
      %v2725 = vpop.f32.mrb[0].mxu0
      %v2726 = vpop.f32.mrb[0].mxu0
      %v2727 = vadd.f32 0.0, %v2726
      %v2728 = vpop.f32.mrb[0].mxu0
      %2729 = vmatprep.mubr.bf16.mxu0 0
      %2730 = vmatmul.mubr.bf16.gmra.mrb[0].mxu0 %v2611
      %v2731 = vpop.f32.mrb[0].mxu0
      %v2732 = vadd.f32 0.0, %v2731
      %v2733 = vpop.f32.mrb[0].mxu0
      %v2734 = vpop.f32.mrb[0].mxu0
      %v2735 = vadd.f32 0.0, %v2734
      %v2736 = vpop.f32.mrb[0].mxu0
      %2737 = vmatprep.mubr.bf16.mxu0 0
      %2738 = vmatmul.mubr.bf16.gmra.mrb[0].mxu0 %v2614
      %v2739 = vpop.f32.mrb[0].mxu0
      %v2740 = vadd.f32 0.0, %v2739
      %v2741 = vpop.f32.mrb[0].mxu0
      %v2742 = vpop.f32.mrb[0].mxu0
      %v2743 = vadd.f32 0.0, %v2742
      %v2744 = vpop.f32.mrb[0].mxu0
      %2745 = vmatprep.mubr.bf16.mxu0 0
      %2746 = vmatmul.mubr.bf16.gmra.mrb[0].mxu0 %v2617
      %v2747 = vpop.f32.mrb[0].mxu0
      %v2748 = vadd.f32 0.0, %v2747
      %v2749 = vpop.f32.mrb[0].mxu0
      %v2750 = vpop.f32.mrb[0].mxu0
      %v2751 = vadd.f32 0.0, %v2750
      %v2752 = vpop.f32.mrb[0].mxu0
      %2753 = vmatprep.mubr.bf16.mxu0 0
      %2754 = vmatmul.mubr.bf16.gmra.mrb[0].mxu0 %v2620
      %v2755 = vpop.f32.mrb[0].mxu0
      %v2756 = vadd.f32 0.0, %v2755
      %v2757 = vpop.f32.mrb[0].mxu0
      %v2758 = vpop.f32.mrb[0].mxu0
      %v2759 = vadd.f32 0.0, %v2758
      %v2760 = vpop.f32.mrb[0].mxu0
      %2761 = vmatprep.mubr.bf16.mxu0 0
      %2762 = vmatmul.mubr.bf16.gmra.mrb[0].mxu0 %v2623
      %v2763 = vpop.f32.mrb[0].mxu0
      %v2764 = vadd.f32 0.0, %v2763
      %v2765 = vpop.f32.mrb[0].mxu0
      %v2766 = vpop.f32.mrb[0].mxu0
      %v2767 = vadd.f32 0.0, %v2766
      %v2768 = vpop.f32.mrb[0].mxu0
      %2769 = vmatprep.mubr.bf16.mxu0 0
      %2770 = vmatmul.mubr.bf16.gmra.mrb[0].mxu0 %v2626
      %v2771 = vpop.f32.mrb[0].mxu0
      %v2772 = vadd.f32 0.0, %v2771
      %v2773 = vpop.f32.mrb[0].mxu0
      %v2774 = vpop.f32.mrb[0].mxu0
      %v2775 = vadd.f32 0.0, %v2774
      %v2776 = vpop.f32.mrb[0].mxu0
      %2777 = vmatprep.mubr.bf16.mxu0 0
      %2778 = vmatmul.mubr.bf16.gmra.mrb[0].mxu0 %v2629
      %v2779 = vpop.f32.mrb[0].mxu0
      %v2780 = vadd.f32 0.0, %v2779
      %v2781 = vpop.f32.mrb[0].mxu0
      %v2782 = vpop.f32.mrb[0].mxu0
      %v2783 = vadd.f32 0.0, %v2782
      %v2784 = vpop.f32.mrb[0].mxu0
      %2785 = vmatprep.mubr.bf16.mxu0 0
      %2786 = vmatmul.mubr.bf16.gmra.mrb[0].mxu0 %v2632
      %v2787 = vpop.f32.mrb[0].mxu0
      %v2788 = vadd.f32 0.0, %v2787
      %v2789 = vpop.f32.mrb[0].mxu0
      %v2790 = vpop.f32.mrb[0].mxu0
      %v2791 = vadd.f32 0.0, %v2790
      %v2792 = vpop.f32.mrb[0].mxu0
      %2793 = vmatprep.mubr.bf16.mxu0 0
      %2794 = vmatmul.mubr.bf16.gmra.mrb[0].mxu0 %v2635
      %v2795 = vpop.f32.mrb[0].mxu0
      %v2796 = vadd.f32 0.0, %v2795
      %v2797 = vpop.f32.mrb[0].mxu0
      %v2798 = vpop.f32.mrb[0].mxu0
      %v2799 = vadd.f32 0.0, %v2798
      %v2800 = vpop.f32.mrb[0].mxu0
      %2801 = vmatprep.mubr.bf16.mxu0 0
      %2802 = vmatmul.mubr.bf16.gmra.mrb[0].mxu0 %v2638
      %v2803 = vpop.f32.mrb[0].mxu0
      %v2804 = vadd.f32 0.0, %v2803
      %v2805 = vpop.f32.mrb[0].mxu0
      %v2806 = vpop.f32.mrb[0].mxu0
      %v2807 = vadd.f32 0.0, %v2806
      %v2808 = vpop.f32.mrb[0].mxu0
      %2809 = vmatprep.mubr.bf16.mxu0 0
      %2810 = vmatmul.mubr.bf16.gmra.mrb[0].mxu0 %v2641
      %v2811 = vpop.f32.mrb[0].mxu0
      %v2812 = vadd.f32 0.0, %v2811
      %v2813 = vpop.f32.mrb[0].mxu0
      %v2814 = vpop.f32.mrb[0].mxu0
      %v2815 = vadd.f32 0.0, %v2814
      %v2816 = vpop.f32.mrb[0].mxu0
      %2817 = vmatprep.mubr.bf16.mxu0 0
      %2818 = vmatmul.mubr.bf16.gmra.mrb[0].mxu0 %v2644
      %v2819 = vpop.f32.mrb[0].mxu0
      %v2820 = vadd.f32 0.0, %v2819
      %v2821 = vpop.f32.mrb[0].mxu0
      %v2822 = vpop.f32.mrb[0].mxu0
      %v2823 = vadd.f32 0.0, %v2822
      %v2824 = vpop.f32.mrb[0].mxu0
      %2825 = vdwg.mxu0
      %v2826 = vadd.f32 %v2387, %v2684
      %v2827 = vadd.f32 %v2388, %v2687
      %v2828 = vadd.f32 %v2389, %v2692
      %v2829 = vadd.f32 %v2390, %v2695
      %v2830 = vadd.f32 %v2391, %v2700
      %v2831 = vadd.f32 %v2392, %v2703
      %v2832 = vadd.f32 %v2393, %v2708
      %v2833 = vadd.f32 %v2394, %v2711
      %v2834 = vadd.f32 %v2395, %v2716
      %v2835 = vadd.f32 %v2396, %v2719
      %v2836 = vadd.f32 %v2397, %v2724
      %v2837 = vadd.f32 %v2398, %v2727
      %v2838 = vadd.f32 %v2399, %v2732
      %v2839 = vadd.f32 %v2400, %v2735
      %v2840 = vadd.f32 %v2401, %v2740
      %v2841 = vadd.f32 %v2402, %v2743
      %v2842 = vadd.f32 %v2403, %v2748
      %v2843 = vadd.f32 %v2404, %v2751
      %v2844 = vadd.f32 %v2405, %v2756
      %v2845 = vadd.f32 %v2406, %v2759
      %v2846 = vadd.f32 %v2407, %v2764
      %v2847 = vadd.f32 %v2408, %v2767
      %v2848 = vadd.f32 %v2409, %v2772
      %v2849 = vadd.f32 %v2410, %v2775
      %v2850 = vadd.f32 %v2411, %v2780
      %v2851 = vadd.f32 %v2412, %v2783
      %v2852 = vadd.f32 %v2413, %v2788
      %v2853 = vadd.f32 %v2414, %v2791
      %v2854 = vadd.f32 %v2415, %v2796
      %v2855 = vadd.f32 %v2416, %v2799
      %v2856 = vadd.f32 %v2417, %v2804
      %v2857 = vadd.f32 %v2418, %v2807
      %v2858 = vadd.f32 %v2419, %v2812
      %v2859 = vadd.f32 %v2420, %v2815
      %v2860 = vadd.f32 %v2421, %v2820
      %v2861 = vadd.f32 %v2422, %v2823
      %v2862 = vld [vmem:[%s165 + $0xa0] sm:$0x7]
      %s2863 = scalar_lea.vmem %s1, 14
      %v2864 = vld [vmem:[%s2863] sm:$0x3]
      %v2866 = vunpack.c.l.b16 %v2862
      %v2867 = vpack.c.b16 %v2866, %v2866
      %vm2868 = vsmask.f32 5376
      %v2870 = vshrl.u32 %v2536, 16
      %v2872 = vrot.slane %v2870, 2
      %v2873 = vshll.u32 %v2536, 16
      %v2875 = vrot.slane %v2873, 3
      %v2876 = vor.u32 %v2872, %v2875
      %v2878 = vshrl.u32 %v2537, 16
      %v2880 = vrot.slane %v2878, 2
      %v2881 = vshll.u32 %v2537, 16
      %v2883 = vrot.slane %v2881, 3
      %v2884 = vor.u32 %v2880, %v2883
      %v2885 = vsel %vm2868, %v2876, %v2884
      %v2887 = vshrl.u32 %v2538, 16
      %v2889 = vrot.slane %v2887, 2
      %v2890 = vshll.u32 %v2538, 16
      %v2892 = vrot.slane %v2890, 3
      %v2893 = vor.u32 %v2889, %v2892
      %v2894 = vsel %vm2868, %v2884, %v2893
      %v2896 = vshrl.u32 %v2539, 16
      %v2898 = vrot.slane %v2896, 2
      %v2899 = vshll.u32 %v2539, 16
      %v2901 = vrot.slane %v2899, 3
      %v2902 = vor.u32 %v2898, %v2901
      %v2903 = vsel %vm2868, %v2893, %v2902
      %v2905 = vshrl.u32 %v2540, 16
      %v2907 = vrot.slane %v2905, 2
      %v2908 = vshll.u32 %v2540, 16
      %v2910 = vrot.slane %v2908, 3
      %v2911 = vor.u32 %v2907, %v2910
      %v2912 = vsel %vm2868, %v2902, %v2911
      %v2914 = vshrl.u32 %v2541, 16
      %v2916 = vrot.slane %v2914, 2
      %v2917 = vshll.u32 %v2541, 16
      %v2919 = vrot.slane %v2917, 3
      %v2920 = vor.u32 %v2916, %v2919
      %v2921 = vsel %vm2868, %v2911, %v2920
      %v2923 = vshrl.u32 %v2542, 16
      %v2925 = vrot.slane %v2923, 2
      %v2926 = vshll.u32 %v2542, 16
      %v2928 = vrot.slane %v2926, 3
      %v2929 = vor.u32 %v2925, %v2928
      %v2930 = vsel %vm2868, %v2920, %v2929
      %v2932 = vshrl.u32 %v2543, 16
      %v2934 = vrot.slane %v2932, 2
      %v2935 = vshll.u32 %v2543, 16
      %v2937 = vrot.slane %v2935, 3
      %v2938 = vor.u32 %v2934, %v2937
      %v2939 = vsel %vm2868, %v2929, %v2938
      %v2941 = vshrl.u32 %v2544, 16
      %v2943 = vrot.slane %v2941, 2
      %v2944 = vshll.u32 %v2544, 16
      %v2946 = vrot.slane %v2944, 3
      %v2947 = vor.u32 %v2943, %v2946
      %v2948 = vsel %vm2868, %v2938, %v2947
      %v2950 = vshrl.u32 %v2545, 16
      %v2952 = vrot.slane %v2950, 2
      %v2953 = vshll.u32 %v2545, 16
      %v2955 = vrot.slane %v2953, 3
      %v2956 = vor.u32 %v2952, %v2955
      %v2957 = vsel %vm2868, %v2947, %v2956
      %v2959 = vshrl.u32 %v2546, 16
      %v2961 = vrot.slane %v2959, 2
      %v2962 = vshll.u32 %v2546, 16
      %v2964 = vrot.slane %v2962, 3
      %v2965 = vor.u32 %v2961, %v2964
      %v2966 = vsel %vm2868, %v2956, %v2965
      %v2968 = vshrl.u32 %v2547, 16
      %v2970 = vrot.slane %v2968, 2
      %v2971 = vshll.u32 %v2547, 16
      %v2973 = vrot.slane %v2971, 3
      %v2974 = vor.u32 %v2970, %v2973
      %v2975 = vsel %vm2868, %v2965, %v2974
      %v2977 = vshrl.u32 %v2548, 16
      %v2979 = vrot.slane %v2977, 2
      %v2980 = vshll.u32 %v2548, 16
      %v2982 = vrot.slane %v2980, 3
      %v2983 = vor.u32 %v2979, %v2982
      %v2984 = vsel %vm2868, %v2974, %v2983
      %v2986 = vshrl.u32 %v2549, 16
      %v2988 = vrot.slane %v2986, 2
      %v2989 = vshll.u32 %v2549, 16
      %v2991 = vrot.slane %v2989, 3
      %v2992 = vor.u32 %v2988, %v2991
      %v2993 = vsel %vm2868, %v2983, %v2992
      %v2995 = vshrl.u32 %v2550, 16
      %v2997 = vrot.slane %v2995, 2
      %v2998 = vshll.u32 %v2550, 16
      %v3000 = vrot.slane %v2998, 3
      %v3001 = vor.u32 %v2997, %v3000
      %v3002 = vsel %vm2868, %v2992, %v3001
      %v3004 = vshrl.u32 %v2551, 16
      %v3006 = vrot.slane %v3004, 2
      %v3007 = vshll.u32 %v2551, 16
      %v3009 = vrot.slane %v3007, 3
      %v3010 = vor.u32 %v3006, %v3009
      %v3011 = vsel %vm2868, %v3001, %v3010
      %v3013 = vshrl.u32 %v2552, 16
      %v3015 = vrot.slane %v3013, 2
      %v3016 = vshll.u32 %v2552, 16
      %v3018 = vrot.slane %v3016, 3
      %v3019 = vor.u32 %v3015, %v3018
      %v3020 = vsel %vm2868, %v3010, %v3019
      %v3022 = vshrl.u32 %v2553, 16
      %v3024 = vrot.slane %v3022, 2
      %v3025 = vshll.u32 %v2553, 16
      %v3027 = vrot.slane %v3025, 3
      %v3028 = vor.u32 %v3024, %v3027
      %v3029 = vsel %vm2868, %v3019, %v3028
      %v3031 = vshrl.u32 %v2867, 16
      %v3033 = vrot.slane %v3031, 2
      %v3034 = vshll.u32 %v2867, 16
      %v3036 = vrot.slane %v3034, 3
      %v3037 = vor.u32 %v3033, %v3036
      %v3038 = vsel %vm2868, %v3028, %v3037
      %v3040 = vsel %vm454, %v2885, 0
      %v3043 = vsel %vm454, %v2894, 0
      %v3046 = vsel %vm454, %v2903, 0
      %v3049 = vsel %vm454, %v2912, 0
      %v3052 = vsel %vm454, %v2921, 0
      %v3055 = vsel %vm454, %v2930, 0
      %v3058 = vsel %vm454, %v2939, 0
      %v3061 = vsel %vm454, %v2948, 0
      %v3064 = vsel %vm454, %v2957, 0
      %v3067 = vsel %vm454, %v2966, 0
      %v3070 = vsel %vm454, %v2975, 0
      %v3073 = vsel %vm454, %v2984, 0
      %v3076 = vsel %vm454, %v2993, 0
      %v3079 = vsel %vm454, %v3002, 0
      %v3082 = vsel %vm454, %v3011, 0
      %v3085 = vsel %vm454, %v3020, 0
      %v3088 = vsel %vm454, %v3029, 0
      %v3091 = vsel %vm454, %v3038, 0
      %v3094 = vand.u32 %v2864, %v512
      %3096 = vmatprep.subr.bf16.mxu0 0
      %3097 = vmatpush1.bf16.msra.mxu0 %v3094
      %3098 = vmatprep.subr.bf16.mxu0 0
      %3099 = vmatpush1.bf16.msra.mxu0 0
      %3100 = vmatprep.subr.bf16.mxu0 0
      %3101 = vmatpush1.bf16.msra.mxu0 0
      %3102 = vmatprep.subr.bf16.mxu0 0
      %3103 = vmatpush1.bf16.msra.mxu0 0
      %3104 = vmatprep.subr.bf16.mxu0 0
      %3105 = vmatpush1.bf16.msra.mxu0 0
      %3106 = vmatprep.subr.bf16.mxu0 0
      %3107 = vmatpush1.bf16.msra.mxu0 0
      %3108 = vmatprep.subr.bf16.mxu0 0
      %3109 = vmatpush1.bf16.msra.mxu0 0
      %3110 = vmatprep.subr.bf16.mxu0 0
      %3111 = vmatpush1.bf16.msra.mxu0 0
      %3112 = vmatprep.subr.bf16.mxu0 0
      %3113 = vmatpush1.bf16.msra.mxu0 0
      %3114 = vmatprep.subr.bf16.mxu0 0
      %3115 = vmatpush1.bf16.msra.mxu0 0
      %3116 = vmatprep.subr.bf16.mxu0 0
      %3117 = vmatpush1.bf16.msra.mxu0 0
      %3118 = vmatprep.subr.bf16.mxu0 0
      %3119 = vmatpush1.bf16.msra.mxu0 0
      %3120 = vmatprep.subr.bf16.mxu0 0
      %3121 = vmatpush1.bf16.msra.mxu0 0
      %3122 = vmatprep.subr.bf16.mxu0 0
      %3123 = vmatpush1.bf16.msra.mxu0 0
      %3124 = vmatprep.subr.bf16.mxu0 0
      %3125 = vmatpush1.bf16.msra.mxu0 0
      %3126 = vmatprep.subr.bf16.mxu0 0
      %3127 = vmatpush1.bf16.msra.mxu0 0
      %3128 = vmatprep.mubr.bf16.mxu0 0
      %3129 = vmatmul.mubr.bf16.gmra.mrb[0].mxu0 %v3040
      %v3130 = vpop.f32.mrb[0].mxu0
      %v3131 = vadd.f32 0.0, %v3130
      %v3132 = vpop.f32.mrb[0].mxu0
      %v3133 = vpop.f32.mrb[0].mxu0
      %v3134 = vadd.f32 0.0, %v3133
      %v3135 = vpop.f32.mrb[0].mxu0
      %3136 = vmatprep.mubr.bf16.mxu0 0
      %3137 = vmatmul.mubr.bf16.gmra.mrb[0].mxu0 %v3043
      %v3138 = vpop.f32.mrb[0].mxu0
      %v3139 = vadd.f32 0.0, %v3138
      %v3140 = vpop.f32.mrb[0].mxu0
      %v3141 = vpop.f32.mrb[0].mxu0
      %v3142 = vadd.f32 0.0, %v3141
      %v3143 = vpop.f32.mrb[0].mxu0
      %3144 = vmatprep.mubr.bf16.mxu0 0
      %3145 = vmatmul.mubr.bf16.gmra.mrb[0].mxu0 %v3046
      %v3146 = vpop.f32.mrb[0].mxu0
      %v3147 = vadd.f32 0.0, %v3146
      %v3148 = vpop.f32.mrb[0].mxu0
      %v3149 = vpop.f32.mrb[0].mxu0
      %v3150 = vadd.f32 0.0, %v3149
      %v3151 = vpop.f32.mrb[0].mxu0
      %3152 = vmatprep.mubr.bf16.mxu0 0
      %3153 = vmatmul.mubr.bf16.gmra.mrb[0].mxu0 %v3049
      %v3154 = vpop.f32.mrb[0].mxu0
      %v3155 = vadd.f32 0.0, %v3154
      %v3156 = vpop.f32.mrb[0].mxu0
      %v3157 = vpop.f32.mrb[0].mxu0
      %v3158 = vadd.f32 0.0, %v3157
      %v3159 = vpop.f32.mrb[0].mxu0
      %3160 = vmatprep.mubr.bf16.mxu0 0
      %3161 = vmatmul.mubr.bf16.gmra.mrb[0].mxu0 %v3052
      %v3162 = vpop.f32.mrb[0].mxu0
      %v3163 = vadd.f32 0.0, %v3162
      %v3164 = vpop.f32.mrb[0].mxu0
      %v3165 = vpop.f32.mrb[0].mxu0
      %v3166 = vadd.f32 0.0, %v3165
      %v3167 = vpop.f32.mrb[0].mxu0
      %3168 = vmatprep.mubr.bf16.mxu0 0
      %3169 = vmatmul.mubr.bf16.gmra.mrb[0].mxu0 %v3055
      %v3170 = vpop.f32.mrb[0].mxu0
      %v3171 = vadd.f32 0.0, %v3170
      %v3172 = vpop.f32.mrb[0].mxu0
      %v3173 = vpop.f32.mrb[0].mxu0
      %v3174 = vadd.f32 0.0, %v3173
      %v3175 = vpop.f32.mrb[0].mxu0
      %3176 = vmatprep.mubr.bf16.mxu0 0
      %3177 = vmatmul.mubr.bf16.gmra.mrb[0].mxu0 %v3058
      %v3178 = vpop.f32.mrb[0].mxu0
      %v3179 = vadd.f32 0.0, %v3178
      %v3180 = vpop.f32.mrb[0].mxu0
      %v3181 = vpop.f32.mrb[0].mxu0
      %v3182 = vadd.f32 0.0, %v3181
      %v3183 = vpop.f32.mrb[0].mxu0
      %3184 = vmatprep.mubr.bf16.mxu0 0
      %3185 = vmatmul.mubr.bf16.gmra.mrb[0].mxu0 %v3061
      %v3186 = vpop.f32.mrb[0].mxu0
      %v3187 = vadd.f32 0.0, %v3186
      %v3188 = vpop.f32.mrb[0].mxu0
      %v3189 = vpop.f32.mrb[0].mxu0
      %v3190 = vadd.f32 0.0, %v3189
      %v3191 = vpop.f32.mrb[0].mxu0
      %3192 = vmatprep.mubr.bf16.mxu0 0
      %3193 = vmatmul.mubr.bf16.gmra.mrb[0].mxu0 %v3064
      %v3194 = vpop.f32.mrb[0].mxu0
      %v3195 = vadd.f32 0.0, %v3194
      %v3196 = vpop.f32.mrb[0].mxu0
      %v3197 = vpop.f32.mrb[0].mxu0
      %v3198 = vadd.f32 0.0, %v3197
      %v3199 = vpop.f32.mrb[0].mxu0
      %3200 = vmatprep.mubr.bf16.mxu0 0
      %3201 = vmatmul.mubr.bf16.gmra.mrb[0].mxu0 %v3067
      %v3202 = vpop.f32.mrb[0].mxu0
      %v3203 = vadd.f32 0.0, %v3202
      %v3204 = vpop.f32.mrb[0].mxu0
      %v3205 = vpop.f32.mrb[0].mxu0
      %v3206 = vadd.f32 0.0, %v3205
      %v3207 = vpop.f32.mrb[0].mxu0
      %3208 = vmatprep.mubr.bf16.mxu0 0
      %3209 = vmatmul.mubr.bf16.gmra.mrb[0].mxu0 %v3070
      %v3210 = vpop.f32.mrb[0].mxu0
      %v3211 = vadd.f32 0.0, %v3210
      %v3212 = vpop.f32.mrb[0].mxu0
      %v3213 = vpop.f32.mrb[0].mxu0
      %v3214 = vadd.f32 0.0, %v3213
      %v3215 = vpop.f32.mrb[0].mxu0
      %3216 = vmatprep.mubr.bf16.mxu0 0
      %3217 = vmatmul.mubr.bf16.gmra.mrb[0].mxu0 %v3073
      %v3218 = vpop.f32.mrb[0].mxu0
      %v3219 = vadd.f32 0.0, %v3218
      %v3220 = vpop.f32.mrb[0].mxu0
      %v3221 = vpop.f32.mrb[0].mxu0
      %v3222 = vadd.f32 0.0, %v3221
      %v3223 = vpop.f32.mrb[0].mxu0
      %3224 = vmatprep.mubr.bf16.mxu0 0
      %3225 = vmatmul.mubr.bf16.gmra.mrb[0].mxu0 %v3076
      %v3226 = vpop.f32.mrb[0].mxu0
      %v3227 = vadd.f32 0.0, %v3226
      %v3228 = vpop.f32.mrb[0].mxu0
      %v3229 = vpop.f32.mrb[0].mxu0
      %v3230 = vadd.f32 0.0, %v3229
      %v3231 = vpop.f32.mrb[0].mxu0
      %3232 = vmatprep.mubr.bf16.mxu0 0
      %3233 = vmatmul.mubr.bf16.gmra.mrb[0].mxu0 %v3079
      %v3234 = vpop.f32.mrb[0].mxu0
      %v3235 = vadd.f32 0.0, %v3234
      %v3236 = vpop.f32.mrb[0].mxu0
      %v3237 = vpop.f32.mrb[0].mxu0
      %v3238 = vadd.f32 0.0, %v3237
      %v3239 = vpop.f32.mrb[0].mxu0
      %3240 = vmatprep.mubr.bf16.mxu0 0
      %3241 = vmatmul.mubr.bf16.gmra.mrb[0].mxu0 %v3082
      %v3242 = vpop.f32.mrb[0].mxu0
      %v3243 = vadd.f32 0.0, %v3242
      %v3244 = vpop.f32.mrb[0].mxu0
      %v3245 = vpop.f32.mrb[0].mxu0
      %v3246 = vadd.f32 0.0, %v3245
      %v3247 = vpop.f32.mrb[0].mxu0
      %3248 = vmatprep.mubr.bf16.mxu0 0
      %3249 = vmatmul.mubr.bf16.gmra.mrb[0].mxu0 %v3085
      %v3250 = vpop.f32.mrb[0].mxu0
      %v3251 = vadd.f32 0.0, %v3250
      %v3252 = vpop.f32.mrb[0].mxu0
      %v3253 = vpop.f32.mrb[0].mxu0
      %v3254 = vadd.f32 0.0, %v3253
      %v3255 = vpop.f32.mrb[0].mxu0
      %3256 = vmatprep.mubr.bf16.mxu0 0
      %3257 = vmatmul.mubr.bf16.gmra.mrb[0].mxu0 %v3088
      %v3258 = vpop.f32.mrb[0].mxu0
      %v3259 = vadd.f32 0.0, %v3258
      %v3260 = vpop.f32.mrb[0].mxu0
      %v3261 = vpop.f32.mrb[0].mxu0
      %v3262 = vadd.f32 0.0, %v3261
      %v3263 = vpop.f32.mrb[0].mxu0
      %3264 = vmatprep.mubr.bf16.mxu0 0
      %3265 = vmatmul.mubr.bf16.gmra.mrb[0].mxu0 %v3091
      %v3266 = vpop.f32.mrb[0].mxu0
      %v3267 = vadd.f32 0.0, %v3266
      %v3268 = vpop.f32.mrb[0].mxu0
      %v3269 = vpop.f32.mrb[0].mxu0
      %v3270 = vadd.f32 0.0, %v3269
      %v3271 = vpop.f32.mrb[0].mxu0
      %3272 = vdwg.mxu0
      %v3273 = vadd.f32 %v2826, %v3131
      %v3274 = vadd.f32 %v2827, %v3134
      %v3275 = vadd.f32 %v2828, %v3139
      %v3276 = vadd.f32 %v2829, %v3142
      %v3277 = vadd.f32 %v2830, %v3147
      %v3278 = vadd.f32 %v2831, %v3150
      %v3279 = vadd.f32 %v2832, %v3155
      %v3280 = vadd.f32 %v2833, %v3158
      %v3281 = vadd.f32 %v2834, %v3163
      %v3282 = vadd.f32 %v2835, %v3166
      %v3283 = vadd.f32 %v2836, %v3171
      %v3284 = vadd.f32 %v2837, %v3174
      %v3285 = vadd.f32 %v2838, %v3179
      %v3286 = vadd.f32 %v2839, %v3182
      %v3287 = vadd.f32 %v2840, %v3187
      %v3288 = vadd.f32 %v2841, %v3190
      %v3289 = vadd.f32 %v2842, %v3195
      %v3290 = vadd.f32 %v2843, %v3198
      %v3291 = vadd.f32 %v2844, %v3203
      %v3292 = vadd.f32 %v2845, %v3206
      %v3293 = vadd.f32 %v2846, %v3211
      %v3294 = vadd.f32 %v2847, %v3214
      %v3295 = vadd.f32 %v2848, %v3219
      %v3296 = vadd.f32 %v2849, %v3222
      %v3297 = vadd.f32 %v2850, %v3227
      %v3298 = vadd.f32 %v2851, %v3230
      %v3299 = vadd.f32 %v2852, %v3235
      %v3300 = vadd.f32 %v2853, %v3238
      %v3301 = vadd.f32 %v2854, %v3243
      %v3302 = vadd.f32 %v2855, %v3246
      %v3303 = vadd.f32 %v2856, %v3251
      %v3304 = vadd.f32 %v2857, %v3254
      %v3305 = vadd.f32 %v2858, %v3259
      %v3306 = vadd.f32 %v2859, %v3262
      %v3307 = vadd.f32 %v2860, %v3267
      %v3308 = vadd.f32 %v2861, %v3270
      %v3309 = vld [vmem:[%s165 + $0x10] sm:$0x8]
      %s3310 = scalar_lea.vmem %s1, 16
      %v3311 = vld [vmem:[%s3310] sm:$0x3]
      %v3313 = vunpack.c.l.b16 %v3309
      %v3314 = vpack.c.b16 %v2500, %v3313
      %vm3315 = vcmask 1044480
      %v3316 = vrot.slane %v3314, 3
      %v3317 = vrot.slane %v2537, 3
      %v3318 = vsel %vm3315, %v3316, %v3317
      %v3319 = vrot.slane %v2538, 3
      %v3320 = vsel %vm3315, %v3317, %v3319
      %v3321 = vrot.slane %v2539, 3
      %v3322 = vsel %vm3315, %v3319, %v3321
      %v3323 = vrot.slane %v2540, 3
      %v3324 = vsel %vm3315, %v3321, %v3323
      %v3325 = vrot.slane %v2541, 3
      %v3326 = vsel %vm3315, %v3323, %v3325
      %v3327 = vrot.slane %v2542, 3
      %v3328 = vsel %vm3315, %v3325, %v3327
      %v3329 = vrot.slane %v2543, 3
      %v3330 = vsel %vm3315, %v3327, %v3329
      %v3331 = vrot.slane %v2544, 3
      %v3332 = vsel %vm3315, %v3329, %v3331
      %v3333 = vrot.slane %v2545, 3
      %v3334 = vsel %vm3315, %v3331, %v3333
      %v3335 = vrot.slane %v2546, 3
      %v3336 = vsel %vm3315, %v3333, %v3335
      %v3337 = vrot.slane %v2547, 3
      %v3338 = vsel %vm3315, %v3335, %v3337
      %v3339 = vrot.slane %v2548, 3
      %v3340 = vsel %vm3315, %v3337, %v3339
      %v3341 = vrot.slane %v2549, 3
      %v3342 = vsel %vm3315, %v3339, %v3341
      %v3343 = vrot.slane %v2550, 3
      %v3344 = vsel %vm3315, %v3341, %v3343
      %v3345 = vrot.slane %v2551, 3
      %v3346 = vsel %vm3315, %v3343, %v3345
      %v3347 = vrot.slane %v2552, 3
      %v3348 = vsel %vm3315, %v3345, %v3347
      %v3349 = vrot.slane %v2553, 3
      %v3350 = vsel %vm3315, %v3347, %v3349
      %v3351 = vrot.slane %v2867, 3
      %v3352 = vsel %vm3315, %v3349, %v3351
      %v3354 = vsel %vm454, %v3318, 0
      %v3357 = vsel %vm454, %v3320, 0
      %v3360 = vsel %vm454, %v3322, 0
      %v3363 = vsel %vm454, %v3324, 0
      %v3366 = vsel %vm454, %v3326, 0
      %v3369 = vsel %vm454, %v3328, 0
      %v3372 = vsel %vm454, %v3330, 0
      %v3375 = vsel %vm454, %v3332, 0
      %v3378 = vsel %vm454, %v3334, 0
      %v3381 = vsel %vm454, %v3336, 0
      %v3384 = vsel %vm454, %v3338, 0
      %v3387 = vsel %vm454, %v3340, 0
      %v3390 = vsel %vm454, %v3342, 0
      %v3393 = vsel %vm454, %v3344, 0
      %v3396 = vsel %vm454, %v3346, 0
      %v3399 = vsel %vm454, %v3348, 0
      %v3402 = vsel %vm454, %v3350, 0
      %v3405 = vsel %vm454, %v3352, 0
      %v3408 = vand.u32 %v3311, %v512
      %3410 = vmatprep.subr.bf16.mxu0 0
      %3411 = vmatpush1.bf16.msra.mxu0 %v3408
      %3412 = vmatprep.subr.bf16.mxu0 0
      %3413 = vmatpush1.bf16.msra.mxu0 0
      %3414 = vmatprep.subr.bf16.mxu0 0
      %3415 = vmatpush1.bf16.msra.mxu0 0
      %3416 = vmatprep.subr.bf16.mxu0 0
      %3417 = vmatpush1.bf16.msra.mxu0 0
      %3418 = vmatprep.subr.bf16.mxu0 0
      %3419 = vmatpush1.bf16.msra.mxu0 0
      %3420 = vmatprep.subr.bf16.mxu0 0
      %3421 = vmatpush1.bf16.msra.mxu0 0
      %3422 = vmatprep.subr.bf16.mxu0 0
      %3423 = vmatpush1.bf16.msra.mxu0 0
      %3424 = vmatprep.subr.bf16.mxu0 0
      %3425 = vmatpush1.bf16.msra.mxu0 0
      %3426 = vmatprep.subr.bf16.mxu0 0
      %3427 = vmatpush1.bf16.msra.mxu0 0
      %3428 = vmatprep.subr.bf16.mxu0 0
      %3429 = vmatpush1.bf16.msra.mxu0 0
      %3430 = vmatprep.subr.bf16.mxu0 0
      %3431 = vmatpush1.bf16.msra.mxu0 0
      %3432 = vmatprep.subr.bf16.mxu0 0
      %3433 = vmatpush1.bf16.msra.mxu0 0
      %3434 = vmatprep.subr.bf16.mxu0 0
      %3435 = vmatpush1.bf16.msra.mxu0 0
      %3436 = vmatprep.subr.bf16.mxu0 0
      %3437 = vmatpush1.bf16.msra.mxu0 0
      %3438 = vmatprep.subr.bf16.mxu0 0
      %3439 = vmatpush1.bf16.msra.mxu0 0
      %3440 = vmatprep.subr.bf16.mxu0 0
      %3441 = vmatpush1.bf16.msra.mxu0 0
      %3442 = vmatprep.mubr.bf16.mxu0 0
      %3443 = vmatmul.mubr.bf16.gmra.mrb[0].mxu0 %v3354
      %v3444 = vpop.f32.mrb[0].mxu0
      %v3445 = vadd.f32 0.0, %v3444
      %v3446 = vpop.f32.mrb[0].mxu0
      %v3447 = vpop.f32.mrb[0].mxu0
      %v3448 = vadd.f32 0.0, %v3447
      %v3449 = vpop.f32.mrb[0].mxu0
      %3450 = vmatprep.mubr.bf16.mxu0 0
      %3451 = vmatmul.mubr.bf16.gmra.mrb[0].mxu0 %v3357
      %v3452 = vpop.f32.mrb[0].mxu0
      %v3453 = vadd.f32 0.0, %v3452
      %v3454 = vpop.f32.mrb[0].mxu0
      %v3455 = vpop.f32.mrb[0].mxu0
      %v3456 = vadd.f32 0.0, %v3455
      %v3457 = vpop.f32.mrb[0].mxu0
      %3458 = vmatprep.mubr.bf16.mxu0 0
      %3459 = vmatmul.mubr.bf16.gmra.mrb[0].mxu0 %v3360
      %v3460 = vpop.f32.mrb[0].mxu0
      %v3461 = vadd.f32 0.0, %v3460
      %v3462 = vpop.f32.mrb[0].mxu0
      %v3463 = vpop.f32.mrb[0].mxu0
      %v3464 = vadd.f32 0.0, %v3463
      %v3465 = vpop.f32.mrb[0].mxu0
      %3466 = vmatprep.mubr.bf16.mxu0 0
      %3467 = vmatmul.mubr.bf16.gmra.mrb[0].mxu0 %v3363
      %v3468 = vpop.f32.mrb[0].mxu0
      %v3469 = vadd.f32 0.0, %v3468
      %v3470 = vpop.f32.mrb[0].mxu0
      %v3471 = vpop.f32.mrb[0].mxu0
      %v3472 = vadd.f32 0.0, %v3471
      %v3473 = vpop.f32.mrb[0].mxu0
      %3474 = vmatprep.mubr.bf16.mxu0 0
      %3475 = vmatmul.mubr.bf16.gmra.mrb[0].mxu0 %v3366
      %v3476 = vpop.f32.mrb[0].mxu0
      %v3477 = vadd.f32 0.0, %v3476
      %v3478 = vpop.f32.mrb[0].mxu0
      %v3479 = vpop.f32.mrb[0].mxu0
      %v3480 = vadd.f32 0.0, %v3479
      %v3481 = vpop.f32.mrb[0].mxu0
      %3482 = vmatprep.mubr.bf16.mxu0 0
      %3483 = vmatmul.mubr.bf16.gmra.mrb[0].mxu0 %v3369
      %v3484 = vpop.f32.mrb[0].mxu0
      %v3485 = vadd.f32 0.0, %v3484
      %v3486 = vpop.f32.mrb[0].mxu0
      %v3487 = vpop.f32.mrb[0].mxu0
      %v3488 = vadd.f32 0.0, %v3487
      %v3489 = vpop.f32.mrb[0].mxu0
      %3490 = vmatprep.mubr.bf16.mxu0 0
      %3491 = vmatmul.mubr.bf16.gmra.mrb[0].mxu0 %v3372
      %v3492 = vpop.f32.mrb[0].mxu0
      %v3493 = vadd.f32 0.0, %v3492
      %v3494 = vpop.f32.mrb[0].mxu0
      %v3495 = vpop.f32.mrb[0].mxu0
      %v3496 = vadd.f32 0.0, %v3495
      %v3497 = vpop.f32.mrb[0].mxu0
      %3498 = vmatprep.mubr.bf16.mxu0 0
      %3499 = vmatmul.mubr.bf16.gmra.mrb[0].mxu0 %v3375
      %v3500 = vpop.f32.mrb[0].mxu0
      %v3501 = vadd.f32 0.0, %v3500
      %v3502 = vpop.f32.mrb[0].mxu0
      %v3503 = vpop.f32.mrb[0].mxu0
      %v3504 = vadd.f32 0.0, %v3503
      %v3505 = vpop.f32.mrb[0].mxu0
      %3506 = vmatprep.mubr.bf16.mxu0 0
      %3507 = vmatmul.mubr.bf16.gmra.mrb[0].mxu0 %v3378
      %v3508 = vpop.f32.mrb[0].mxu0
      %v3509 = vadd.f32 0.0, %v3508
      %v3510 = vpop.f32.mrb[0].mxu0
      %v3511 = vpop.f32.mrb[0].mxu0
      %v3512 = vadd.f32 0.0, %v3511
      %v3513 = vpop.f32.mrb[0].mxu0
      %3514 = vmatprep.mubr.bf16.mxu0 0
      %3515 = vmatmul.mubr.bf16.gmra.mrb[0].mxu0 %v3381
      %v3516 = vpop.f32.mrb[0].mxu0
      %v3517 = vadd.f32 0.0, %v3516
      %v3518 = vpop.f32.mrb[0].mxu0
      %v3519 = vpop.f32.mrb[0].mxu0
      %v3520 = vadd.f32 0.0, %v3519
      %v3521 = vpop.f32.mrb[0].mxu0
      %3522 = vmatprep.mubr.bf16.mxu0 0
      %3523 = vmatmul.mubr.bf16.gmra.mrb[0].mxu0 %v3384
      %v3524 = vpop.f32.mrb[0].mxu0
      %v3525 = vadd.f32 0.0, %v3524
      %v3526 = vpop.f32.mrb[0].mxu0
      %v3527 = vpop.f32.mrb[0].mxu0
      %v3528 = vadd.f32 0.0, %v3527
      %v3529 = vpop.f32.mrb[0].mxu0
      %3530 = vmatprep.mubr.bf16.mxu0 0
      %3531 = vmatmul.mubr.bf16.gmra.mrb[0].mxu0 %v3387
      %v3532 = vpop.f32.mrb[0].mxu0
      %v3533 = vadd.f32 0.0, %v3532
      %v3534 = vpop.f32.mrb[0].mxu0
      %v3535 = vpop.f32.mrb[0].mxu0
      %v3536 = vadd.f32 0.0, %v3535
      %v3537 = vpop.f32.mrb[0].mxu0
      %3538 = vmatprep.mubr.bf16.mxu0 0
      %3539 = vmatmul.mubr.bf16.gmra.mrb[0].mxu0 %v3390
      %v3540 = vpop.f32.mrb[0].mxu0
      %v3541 = vadd.f32 0.0, %v3540
      %v3542 = vpop.f32.mrb[0].mxu0
      %v3543 = vpop.f32.mrb[0].mxu0
      %v3544 = vadd.f32 0.0, %v3543
      %v3545 = vpop.f32.mrb[0].mxu0
      %3546 = vmatprep.mubr.bf16.mxu0 0
      %3547 = vmatmul.mubr.bf16.gmra.mrb[0].mxu0 %v3393
      %v3548 = vpop.f32.mrb[0].mxu0
      %v3549 = vadd.f32 0.0, %v3548
      %v3550 = vpop.f32.mrb[0].mxu0
      %v3551 = vpop.f32.mrb[0].mxu0
      %v3552 = vadd.f32 0.0, %v3551
      %v3553 = vpop.f32.mrb[0].mxu0
      %3554 = vmatprep.mubr.bf16.mxu0 0
      %3555 = vmatmul.mubr.bf16.gmra.mrb[0].mxu0 %v3396
      %v3556 = vpop.f32.mrb[0].mxu0
      %v3557 = vadd.f32 0.0, %v3556
      %v3558 = vpop.f32.mrb[0].mxu0
      %v3559 = vpop.f32.mrb[0].mxu0
      %v3560 = vadd.f32 0.0, %v3559
      %v3561 = vpop.f32.mrb[0].mxu0
      %3562 = vmatprep.mubr.bf16.mxu0 0
      %3563 = vmatmul.mubr.bf16.gmra.mrb[0].mxu0 %v3399
      %v3564 = vpop.f32.mrb[0].mxu0
      %v3565 = vadd.f32 0.0, %v3564
      %v3566 = vpop.f32.mrb[0].mxu0
      %v3567 = vpop.f32.mrb[0].mxu0
      %v3568 = vadd.f32 0.0, %v3567
      %v3569 = vpop.f32.mrb[0].mxu0
      %3570 = vmatprep.mubr.bf16.mxu0 0
      %3571 = vmatmul.mubr.bf16.gmra.mrb[0].mxu0 %v3402
      %v3572 = vpop.f32.mrb[0].mxu0
      %v3573 = vadd.f32 0.0, %v3572
      %v3574 = vpop.f32.mrb[0].mxu0
      %v3575 = vpop.f32.mrb[0].mxu0
      %v3576 = vadd.f32 0.0, %v3575
      %v3577 = vpop.f32.mrb[0].mxu0
      %3578 = vmatprep.mubr.bf16.mxu0 0
      %3579 = vmatmul.mubr.bf16.gmra.mrb[0].mxu0 %v3405
      %v3580 = vpop.f32.mrb[0].mxu0
      %v3581 = vadd.f32 0.0, %v3580
      %v3582 = vpop.f32.mrb[0].mxu0
      %v3583 = vpop.f32.mrb[0].mxu0
      %v3584 = vadd.f32 0.0, %v3583
      %v3585 = vpop.f32.mrb[0].mxu0
      %3586 = vdwg.mxu0
      %v3587 = vadd.f32 %v3273, %v3445
      %v3588 = vadd.f32 %v3274, %v3448
      %v3589 = vadd.f32 %v3275, %v3453
      %v3590 = vadd.f32 %v3276, %v3456
      %v3591 = vadd.f32 %v3277, %v3461
      %v3592 = vadd.f32 %v3278, %v3464
      %v3593 = vadd.f32 %v3279, %v3469
      %v3594 = vadd.f32 %v3280, %v3472
      %v3595 = vadd.f32 %v3281, %v3477
      %v3596 = vadd.f32 %v3282, %v3480
      %v3597 = vadd.f32 %v3283, %v3485
      %v3598 = vadd.f32 %v3284, %v3488
      %v3599 = vadd.f32 %v3285, %v3493
      %v3600 = vadd.f32 %v3286, %v3496
      %v3601 = vadd.f32 %v3287, %v3501
      %v3602 = vadd.f32 %v3288, %v3504
      %v3603 = vadd.f32 %v3289, %v3509
      %v3604 = vadd.f32 %v3290, %v3512
      %v3605 = vadd.f32 %v3291, %v3517
      %v3606 = vadd.f32 %v3292, %v3520
      %v3607 = vadd.f32 %v3293, %v3525
      %v3608 = vadd.f32 %v3294, %v3528
      %v3609 = vadd.f32 %v3295, %v3533
      %v3610 = vadd.f32 %v3296, %v3536
      %v3611 = vadd.f32 %v3297, %v3541
      %v3612 = vadd.f32 %v3298, %v3544
      %v3613 = vadd.f32 %v3299, %v3549
      %v3614 = vadd.f32 %v3300, %v3552
      %v3615 = vadd.f32 %v3301, %v3557
      %v3616 = vadd.f32 %v3302, %v3560
      %v3617 = vadd.f32 %v3303, %v3565
      %v3618 = vadd.f32 %v3304, %v3568
      %v3619 = vadd.f32 %v3305, %v3573
      %v3620 = vadd.f32 %v3306, %v3576
      %v3621 = vadd.f32 %v3307, %v3581
      %v3622 = vadd.f32 %v3308, %v3584
      %v3623 = vld [vmem:[%s2] sm:$0x1]
      %v3625 = vlaneseq
      %v3626 = vshrl.u32 %v3625, 7
      %v3627 = vsub.s32 0, %v3626
      %v3628 = vrot.slane %v3623, %v3627
      %v3630 = vadd.f32 %v3587, %v3628
      %v3631 = vadd.f32 %v3588, %v3628
      %v3632 = vadd.f32 %v3589, %v3628
      %v3633 = vadd.f32 %v3590, %v3628
      %v3634 = vadd.f32 %v3591, %v3628
      %v3635 = vadd.f32 %v3592, %v3628
      %v3636 = vadd.f32 %v3593, %v3628
      %v3637 = vadd.f32 %v3594, %v3628
      %v3638 = vadd.f32 %v3595, %v3628
      %v3639 = vadd.f32 %v3596, %v3628
      %v3640 = vadd.f32 %v3597, %v3628
      %v3641 = vadd.f32 %v3598, %v3628
      %v3642 = vadd.f32 %v3599, %v3628
      %v3643 = vadd.f32 %v3600, %v3628
      %v3644 = vadd.f32 %v3601, %v3628
      %v3645 = vadd.f32 %v3602, %v3628
      %v3646 = vadd.f32 %v3603, %v3628
      %v3647 = vadd.f32 %v3604, %v3628
      %v3648 = vadd.f32 %v3605, %v3628
      %v3649 = vadd.f32 %v3606, %v3628
      %v3650 = vadd.f32 %v3607, %v3628
      %v3651 = vadd.f32 %v3608, %v3628
      %v3652 = vadd.f32 %v3609, %v3628
      %v3653 = vadd.f32 %v3610, %v3628
      %v3654 = vadd.f32 %v3611, %v3628
      %v3655 = vadd.f32 %v3612, %v3628
      %v3656 = vadd.f32 %v3613, %v3628
      %v3657 = vadd.f32 %v3614, %v3628
      %v3658 = vadd.f32 %v3615, %v3628
      %v3659 = vadd.f32 %v3616, %v3628
      %v3660 = vadd.f32 %v3617, %v3628
      %v3661 = vadd.f32 %v3618, %v3628
      %v3662 = vadd.f32 %v3619, %v3628
      %v3663 = vadd.f32 %v3620, %v3628
      %v3664 = vadd.f32 %v3621, %v3628
      %v3665 = vadd.f32 %v3622, %v3628
      %v3666 = vpack.c.bf16 %v3631, %v3630
      %v3667 = vpack.c.bf16 %v3633, %v3632
      %v3668 = vpack.c.bf16 %v3635, %v3634
      %v3669 = vpack.c.bf16 %v3637, %v3636
      %v3670 = vpack.c.bf16 %v3639, %v3638
      %v3671 = vpack.c.bf16 %v3641, %v3640
      %v3672 = vpack.c.bf16 %v3643, %v3642
      %v3673 = vpack.c.bf16 %v3645, %v3644
      %v3674 = vpack.c.bf16 %v3647, %v3646
      %v3675 = vpack.c.bf16 %v3649, %v3648
      %v3676 = vpack.c.bf16 %v3651, %v3650
      %v3677 = vpack.c.bf16 %v3653, %v3652
      %v3678 = vpack.c.bf16 %v3655, %v3654
      %v3679 = vpack.c.bf16 %v3657, %v3656
      %v3680 = vpack.c.bf16 %v3659, %v3658
      %v3681 = vpack.c.bf16 %v3661, %v3660
      %v3682 = vpack.c.bf16 %v3663, %v3662
      %v3683 = vpack.c.bf16 %v3665, %v3664
      %v3702 = vunpack.c.l.b16 %v3666
      %v3703 = vunpack.c.h.b16 %v3666
      %v3704 = vunpack.c.l.b16 %v3667
      %v3705 = vunpack.c.h.b16 %v3667
      %v3706 = vunpack.c.l.b16 %v3668
      %v3707 = vunpack.c.h.b16 %v3668
      %v3708 = vunpack.c.l.b16 %v3669
      %v3709 = vunpack.c.h.b16 %v3669
      %v3710 = vunpack.c.l.b16 %v3670
      %v3711 = vunpack.c.h.b16 %v3670
      %v3712 = vunpack.c.l.b16 %v3671
      %v3713 = vunpack.c.h.b16 %v3671
      %v3714 = vunpack.c.l.b16 %v3672
      %v3715 = vunpack.c.h.b16 %v3672
      %v3716 = vunpack.c.l.b16 %v3673
      %v3717 = vunpack.c.h.b16 %v3673
      %v3718 = vunpack.c.l.b16 %v3674
      %v3719 = vunpack.c.h.b16 %v3674
      %v3720 = vunpack.c.l.b16 %v3675
      %v3721 = vunpack.c.h.b16 %v3675
      %v3722 = vunpack.c.l.b16 %v3676
      %v3723 = vunpack.c.h.b16 %v3676
      %v3724 = vunpack.c.l.b16 %v3677
      %v3725 = vunpack.c.h.b16 %v3677
      %v3726 = vunpack.c.l.b16 %v3678
      %v3727 = vunpack.c.h.b16 %v3678
      %v3728 = vunpack.c.l.b16 %v3679
      %v3729 = vunpack.c.h.b16 %v3679
      %v3730 = vunpack.c.l.b16 %v3680
      %v3731 = vunpack.c.h.b16 %v3680
      %v3732 = vunpack.c.l.b16 %v3681
      %v3733 = vunpack.c.h.b16 %v3681
      %v3734 = vunpack.c.l.b16 %v3682
      %v3735 = vunpack.c.h.b16 %v3682
      %v3736 = vunpack.c.l.b16 %v3683
      %v3737 = vunpack.c.h.b16 %v3683
      %v3738 = vpack.c.b16 %v3702, %v3702
      %v3739 = vpack.c.b16 %v3703, %v3703
      %v3740 = vpack.c.b16 %v3704, %v3704
      %v3741 = vpack.c.b16 %v3705, %v3705
      %v3742 = vpack.c.b16 %v3706, %v3706
      %v3743 = vpack.c.b16 %v3707, %v3707
      %v3744 = vpack.c.b16 %v3708, %v3708
      %v3745 = vpack.c.b16 %v3709, %v3709
      %v3746 = vpack.c.b16 %v3710, %v3710
      %v3747 = vpack.c.b16 %v3711, %v3711
      %v3748 = vpack.c.b16 %v3712, %v3712
      %v3749 = vpack.c.b16 %v3713, %v3713
      %v3750 = vpack.c.b16 %v3714, %v3714
      %v3751 = vpack.c.b16 %v3715, %v3715
      %v3752 = vpack.c.b16 %v3716, %v3716
      %v3753 = vpack.c.b16 %v3717, %v3717
      %v3754 = vpack.c.b16 %v3718, %v3718
      %v3755 = vpack.c.b16 %v3719, %v3719
      %v3756 = vpack.c.b16 %v3720, %v3720
      %v3757 = vpack.c.b16 %v3721, %v3721
      %v3758 = vpack.c.b16 %v3722, %v3722
      %v3759 = vpack.c.b16 %v3723, %v3723
      %v3760 = vpack.c.b16 %v3724, %v3724
      %v3761 = vpack.c.b16 %v3725, %v3725
      %v3762 = vpack.c.b16 %v3726, %v3726
      %v3763 = vpack.c.b16 %v3727, %v3727
      %v3764 = vpack.c.b16 %v3728, %v3728
      %v3765 = vpack.c.b16 %v3729, %v3729
      %v3766 = vpack.c.b16 %v3730, %v3730
      %v3767 = vpack.c.b16 %v3731, %v3731
      %v3768 = vpack.c.b16 %v3732, %v3732
      %v3769 = vpack.c.b16 %v3733, %v3733
      %v3770 = vpack.c.b16 %v3734, %v3734
      %v3771 = vpack.c.b16 %v3735, %v3735
      %v3772 = vpack.c.b16 %v3736, %v3736
      %v3773 = vpack.c.b16 %v3737, %v3737
      %3810 = vst [vmem:[%s170] sm:$0xf] %v3738
      %3811 = vst [vmem:[%s170 + $0x4] sm:$0xf] %v3739
      %3812 = vst [vmem:[%s170 + $0x8] sm:$0xf] %v3740
      %3813 = vst [vmem:[%s170 + $0xc] sm:$0xf] %v3741
      %3814 = vst [vmem:[%s170 + $0x10] sm:$0xf] %v3742
      %3815 = vst [vmem:[%s170 + $0x14] sm:$0xf] %v3743
      %3816 = vst [vmem:[%s170 + $0x18] sm:$0xf] %v3744
      %3817 = vst [vmem:[%s170 + $0x1c] sm:$0xf] %v3745
      %3818 = vst [vmem:[%s170 + $0x20] sm:$0xf] %v3746
      %3819 = vst [vmem:[%s170 + $0x24] sm:$0xf] %v3747
      %3820 = vst [vmem:[%s170 + $0x28] sm:$0xf] %v3748
      %3821 = vst [vmem:[%s170 + $0x2c] sm:$0xf] %v3749
      %3822 = vst [vmem:[%s170 + $0x30] sm:$0xf] %v3750
      %3823 = vst [vmem:[%s170 + $0x34] sm:$0xf] %v3751
      %3824 = vst [vmem:[%s170 + $0x38] sm:$0xf] %v3752
      %3825 = vst [vmem:[%s170 + $0x3c] sm:$0xf] %v3753
      %3826 = vst [vmem:[%s170 + $0x40] sm:$0xf] %v3754
      %3827 = vst [vmem:[%s170 + $0x44] sm:$0xf] %v3755
      %3828 = vst [vmem:[%s170 + $0x48] sm:$0xf] %v3756
      %3829 = vst [vmem:[%s170 + $0x4c] sm:$0xf] %v3757
      %3830 = vst [vmem:[%s170 + $0x50] sm:$0xf] %v3758
      %3831 = vst [vmem:[%s170 + $0x54] sm:$0xf] %v3759
      %3832 = vst [vmem:[%s170 + $0x58] sm:$0xf] %v3760
      %3833 = vst [vmem:[%s170 + $0x5c] sm:$0xf] %v3761
      %3834 = vst [vmem:[%s170 + $0x60] sm:$0xf] %v3762
      %3835 = vst [vmem:[%s170 + $0x64] sm:$0xf] %v3763
      %3836 = vst [vmem:[%s170 + $0x68] sm:$0xf] %v3764
      %3837 = vst [vmem:[%s170 + $0x6c] sm:$0xf] %v3765
      %3838 = vst [vmem:[%s170 + $0x70] sm:$0xf] %v3766
      %3839 = vst [vmem:[%s170 + $0x74] sm:$0xf] %v3767
      %3840 = vst [vmem:[%s170 + $0x78] sm:$0xf] %v3768
      %3841 = vst [vmem:[%s170 + $0x7c] sm:$0xf] %v3769
      %3842 = vst [vmem:[%s170 + $0x80] sm:$0xf] %v3770
      %3843 = vst [vmem:[%s170 + $0x84] sm:$0xf] %v3771
      %3844 = vst [vmem:[%s170 + $0x88] sm:$0xf] %v3772
      %3845 = vst [vmem:[%s170 + $0x8c] sm:$0xf] %v3773
      %p3846 = scmp.lt.s32.totalorder %s14, 1
      %s3847 = scalar_select %p3846, %s14, 1
      %s3848 = smul.addr %s3847, 36
      %s3849 = smul.addr %s3848, 4
      %s3850 = scalar_lea.vmem %s3, %s3849
      // Predicated region
      $region33: #{cnn_forward.5} parent=31 // pred_check
        %p3851 = pneg %p100
      $region34: #{cnn_forward.5} parent=31 // pred_check_branch
        %3853 = sbr.rel (%p3851) target = $region36
      $region35: #{cnn_forward.5} parent=31 // pred_region
        _
      $region36: #{cnn_forward.5} parent=31 // pred_fallthru
        _
    $region32: #{cnn_forward.5} parent=5 // pred_fallthru
      _
    %p3854 = scmp.le.s32.totalorder 2, %s9
    // Predicated region
    $region37: #{cnn_forward.5} parent=5 // pred_check
      %p3855 = pneg %p3854
    $region38: #{cnn_forward.5} parent=5 // pred_check_branch
      %3857 = sbr.rel (%p3855) target = $region40
    $region39: #{cnn_forward.5} parent=5 // pred_region
      %s3858 = ssub.s32 %s9, 2
      // Predicated region
      $region41: #{cnn_forward.5} parent=39 // pred_check
        %p3859 = pneg %p106
      $region42: #{cnn_forward.5} parent=39 // pred_check_branch
        %3861 = sbr.rel (%p3859) target = $region44
      $region43: #{cnn_forward.5} parent=39 // pred_region
        %p3862 = scmp.lt.s32.totalorder %s15, 1
        %s3863 = scalar_select %p3862, %s15, 1
        %s3864 = smul.addr %s3863, 36
        %s3865 = smul.addr %s3864, 4
        %s3866 = scalar_lea.vmem %s3, %s3865
      $region44: #{cnn_forward.5} parent=39 // pred_fallthru
        _
    $region40: #{cnn_forward.5} parent=5 // pred_fallthru
      _
  $region6: #{cnn_forward.5} parent=0 // loop_footer
    %s13 = sadd.s32 1, %s9
  $region7: #{cnn_forward.5} parent=0 // loop_footer_branch
    %8 = sbr.rel target = $region3
  $region8: #{cnn_forward.5} parent=0 // loop_exit
    _

</llo_original>
